<compile_context>
chip_gen: v7x
topology: tpu7x:2x2x1
jax: 0.10.0
libtpu: 0.0.40
codegen_flags: <defaults>
</compile_context>

<pallas_src>
import functools
import math

import jax
import jax.numpy as jnp
from jax.experimental import pallas as pl
from jax.experimental.pallas import tpu as pltpu

EPS = 1e-5  # torch.nn.LayerNorm default eps


# ----------------------------- Pallas kernels --------------------------------

def _block(x, o_slab, wqkv, bqkv, wo, bo, w1, b1, w2, b2, num_heads):
    """One transformer layer (MHA sublayer + FFN sublayer) on an (N, D) slab.

    LayerNorm affines of to_q/to_kv (composed with the MHA in-projections and
    the 1/sqrt(dh) scale) are pre-folded into wqkv/bqkv; the FFN LayerNorm
    affine is pre-folded into w1/b1.  layer_scale=None in ContextCast -> 1.
    """
    N, D = x.shape
    dh = D // num_heads

    # ---- MHA sublayer: pre-LN (stats only; affine folded) + fused QKV matmul ----
    mu = jnp.mean(x, axis=-1, keepdims=True)
    var = jnp.mean(jnp.square(x - mu), axis=-1, keepdims=True)
    xn = (x - mu) * jax.lax.rsqrt(var + EPS)
    qkv = jnp.dot(xn, wqkv, preferred_element_type=jnp.float32) + bqkv   # (N, 3D)

    # Per-head softmax core (dh=4 is too narrow for a relayout-free batched
    # dot_general); head outputs land in a VMEM slab so the out-projection is
    # a single aligned matmul afterwards.
    for h in range(num_heads):
        lo, hi = h * dh, (h + 1) * dh
        qh = qkv[:, lo:hi]                               # Q already scaled
        kh = qkv[:, D + lo:D + hi]
        vh = qkv[:, 2 * D + lo:2 * D + hi]
        # q @ k^T without materializing kh.T: contract K on its last dim.
        s = jax.lax.dot_general(qh, kh, (((1,), (1,)), ((), ())),
                                preferred_element_type=jnp.float32)
        s = s - jnp.max(s, axis=-1, keepdims=True)
        p = jnp.exp(s)
        p = p * pl.reciprocal(jnp.sum(p, axis=-1, keepdims=True), approx=True)
        o_slab[:, lo:hi] = jnp.dot(p, vh, preferred_element_type=jnp.float32)

    x1 = x + jnp.dot(o_slab[...], wo, preferred_element_type=jnp.float32) + bo

    # ---- FFN sublayer: pre-LN (affine folded into w1/b1) ----
    mu2 = jnp.mean(x1, axis=-1, keepdims=True)
    var2 = jnp.mean(jnp.square(x1 - mu2), axis=-1, keepdims=True)
    x1n = (x1 - mu2) * jax.lax.rsqrt(var2 + EPS)
    hid = jnp.dot(x1n, w1, preferred_element_type=jnp.float32) + b1
    hid = 0.5 * hid * (1.0 + jax.lax.erf(hid * 0.7071067811865476))  # exact GELU
    y = jnp.dot(hid, w2, preferred_element_type=jnp.float32) + b2
    return x1 + y                                         # residuals (scale = 1)


def _stack_kernel(x_ref, wqkv_ref, bqkv_ref, wo_ref, bo_ref,
                  w1_ref, b1_ref, w2_ref, b2_ref, wp_ref, bp_ref,
                  x_out_ref, p_out_ref, o_slab, *, num_heads, num_layers):
    """Full layer stack + trailing LN->Linear projection for one batch element.

    Encoder call: projection = decoder_projection  (outputs z and zd).
    Decoder call: projection = fused to_mean/to_std head (outputs y and heads).
    """
    x = x_ref[0].astype(jnp.float32)                      # (N, D)
    for l in range(num_layers):
        x = _block(x, o_slab, wqkv_ref[l], bqkv_ref[l], wo_ref[l], bo_ref[l],
                   w1_ref[l], b1_ref[l], w2_ref[l], b2_ref[l], num_heads)
    x_out_ref[0] = x.astype(x_out_ref.dtype)

    # trailing projection: LayerNorm (affine folded into wp/bp) -> Linear
    mu = jnp.mean(x, axis=-1, keepdims=True)
    var = jnp.mean(jnp.square(x - mu), axis=-1, keepdims=True)
    xn = (x - mu) * jax.lax.rsqrt(var + EPS)
    p_out_ref[0] = (jnp.dot(xn, wp_ref[...], preferred_element_type=jnp.float32)
                    + bp_ref[...]).astype(p_out_ref.dtype)


def transformer_stack(x, sp, wp, bp, num_heads):
    """One pallas_call running the entire layer stack plus a final projection.

    grid=(B,) "parallel": on v7x the two TensorCores split the batch (each gets
    several layers of work); on v5e/v6e the extra grid step is ~0.35us and the
    constant-index weight blocks stay resident in VMEM.
    """
    B, N, D = x.shape
    L, _, H = sp['w1'].shape
    Dp = wp.shape[1]
    kern = functools.partial(_stack_kernel, num_heads=num_heads, num_layers=L)
    seq = pl.BlockSpec((1, N, D), lambda b: (b, 0, 0))
    seq_p = pl.BlockSpec((1, N, Dp), lambda b: (b, 0, 0))

    def full(shape):
        return pl.BlockSpec(shape, lambda b: (0,) * len(shape))

    return pl.pallas_call(
        kern,
        out_shape=(jax.ShapeDtypeStruct((B, N, D), x.dtype),
                   jax.ShapeDtypeStruct((B, N, Dp), x.dtype)),
        grid=(B,),
        in_specs=[seq,
                  full((L, D, 3 * D)), full((L, 1, 3 * D)),
                  full((L, D, D)), full((L, 1, D)),
                  full((L, D, H)), full((L, 1, H)),
                  full((L, H, D)), full((L, 1, D)),
                  full((D, Dp)), full((1, Dp))],
        out_specs=(seq, seq_p),
        scratch_shapes=[pltpu.VMEM((N, D), jnp.float32)],   # per-head output slab
        compiler_params=pltpu.CompilerParams(dimension_semantics=("parallel",)),
    )(x, sp['w_qkv'], sp['b_qkv'], sp['w_out'], sp['b_out'],
      sp['w1'], sp['b1'], sp['w2'], sp['b2'], wp, bp)


def _embed_kernel(x_ref, w_ref, b_ref, g2_ref, b2_ref, o_ref):
    # LayerNorm(patch_dim) (affine folded into w/b) -> Linear -> LayerNorm(dim)
    x = x_ref[...].astype(jnp.float32)
    mu = jnp.mean(x, axis=-1, keepdims=True)
    var = jnp.mean(jnp.square(x - mu), axis=-1, keepdims=True)
    xn = (x - mu) * jax.lax.rsqrt(var + EPS)
    y = jnp.dot(xn, w_ref[...], preferred_element_type=jnp.float32) + b_ref[...]
    mu2 = jnp.mean(y, axis=-1, keepdims=True)
    var2 = jnp.mean(jnp.square(y - mu2), axis=-1, keepdims=True)
    yn = (y - mu2) * jax.lax.rsqrt(var2 + EPS)
    o_ref[...] = (yn * g2_ref[...] + b2_ref[...]).astype(o_ref.dtype)


def patch_embed(x, W, b, g2, b2):
    M, Din = x.shape
    Dout = W.shape[1]
    return pl.pallas_call(
        _embed_kernel,
        out_shape=jax.ShapeDtypeStruct((M, Dout), x.dtype),
        grid=(1,),
        in_specs=[pl.BlockSpec((M, Din), lambda i: (0, 0)),
                  pl.BlockSpec((Din, Dout), lambda i: (0, 0)),
                  pl.BlockSpec((1, Dout), lambda i: (0, 0)),
                  pl.BlockSpec((1, Dout), lambda i: (0, 0)),
                  pl.BlockSpec((1, Dout), lambda i: (0, 0))],
        out_specs=pl.BlockSpec((M, Dout), lambda i: (0, 0)),
    )(x, W, b, g2, b2)


# --------------------------------- glue ---------------------------------------

def to_patches(x, pt, ph, pw):
    # 'b c (t pt) (h ph) (w pw) -> b (t h w) (c pt ph pw)'
    b, c, T, H, W = x.shape
    t, h, w = T // pt, H // ph, W // pw
    x = x.reshape(b, c, t, pt, h, ph, w, pw)
    x = x.transpose(0, 2, 4, 6, 1, 3, 5, 7)
    return x.reshape(b, t * h * w, c * pt * ph * pw)


def from_patches_rearrange(x, pt, ph, pw, t, h, w, c):
    # 'b (t h w) (c pt ph pw) -> b c (t pt) (h ph) (w pw)'
    b = x.shape[0]
    x = x.reshape(b, t, h, w, c, pt, ph, pw)
    x = x.transpose(0, 4, 1, 5, 2, 6, 3, 7)
    return x.reshape(b, c, t * pt, h * ph, w * pw)


# ------------------------------ parameters ------------------------------------

def _key_iter(key):
    while True:
        key, sub = jax.random.split(key)
        yield sub


def init_params(key, *, patch_dim, num_patches, enc_dim, dec_dim,
                enc_depth, dec_depth, expansion=4):
    keys = _key_iter(key)

    def xavier(shape):
        fan_in, fan_out = shape
        lim = math.sqrt(6.0 / (fan_in + fan_out))
        return jax.random.uniform(next(keys), shape, jnp.float32, -lim, lim)

    def ln(dim):
        return jnp.ones((dim,), jnp.float32), jnp.zeros((dim,), jnp.float32)

    def mha_params(dim):
        lnq_g, lnq_b = ln(dim)
        lnkv_g, lnkv_b = ln(dim)
        return dict(
            lnq_g=lnq_g, lnq_b=lnq_b, wq=xavier((dim, dim)), bq=jnp.zeros((dim,)),
            lnkv_g=lnkv_g, lnkv_b=lnkv_b, wkv=xavier((dim, 2 * dim)), bkv=jnp.zeros((2 * dim,)),
            in_wq=xavier((dim, dim)), in_wk=xavier((dim, dim)), in_wv=xavier((dim, dim)),
            in_bq=jnp.zeros((dim,)), in_bk=jnp.zeros((dim,)), in_bv=jnp.zeros((dim,)),
            out_w=xavier((dim, dim)), out_b=jnp.zeros((dim,)),
        )

    def ffn_params(dim):
        g, b = ln(dim)
        hid = dim * expansion
        return dict(ln_g=g, ln_b=b, w1=xavier((dim, hid)), b1=jnp.zeros((hid,)),
                    w2=xavier((hid, dim)), b2=jnp.zeros((dim,)))

    g1, b1 = ln(patch_dim)
    g2, b2 = ln(enc_dim)
    return dict(
        embed=dict(ln1_g=g1, ln1_b=b1, lin_w=xavier((patch_dim, enc_dim)),
                   lin_b=jnp.zeros((enc_dim,)), ln2_g=g2, ln2_b=b2),
        encoder=[dict(mha=mha_params(enc_dim), ffn=ffn_params(enc_dim))
                 for _ in range(enc_depth)],
        dec_proj=dict(ln_g=ln(enc_dim)[0], ln_b=ln(enc_dim)[1],
                      w=xavier((enc_dim, dec_dim)), b=jnp.zeros((dec_dim,))),
        decoder=[dict(mha=mha_params(dec_dim), ffn=ffn_params(dec_dim))
                 for _ in range(dec_depth)],
        to_mean=dict(ln_g=ln(dec_dim)[0], ln_b=ln(dec_dim)[1],
                     w=xavier((dec_dim, patch_dim)), b=jnp.zeros((patch_dim,))),
        to_std=dict(ln_g=ln(dec_dim)[0], ln_b=ln(dec_dim)[1],
                    w=xavier((dec_dim, patch_dim)), b=jnp.zeros((patch_dim,))),
        mask_token=0.02 * jax.random.normal(next(keys), (1, 1, dec_dim), jnp.float32),
        class_token=0.02 * jax.random.normal(next(keys), (1, 1, enc_dim), jnp.float32),
        enc_pos=0.2 * jax.random.normal(next(keys), (1, num_patches, enc_dim), jnp.float32),
        dec_pos=0.2 * jax.random.normal(next(keys), (1, num_patches, dec_dim), jnp.float32),
    )


# ---------------------- host-side weight fusion (one-time) ---------------------

def _fold_ln_linear(g, b, W, bias):
    # (xn*g + b) @ W + bias  ==  xn @ (g[:,None]*W) + (b @ W + bias)
    return g[:, None] * W, b @ W + bias


def fuse_block_params(mha, ffn, dim, num_heads):
    """Fold LN affines, compose to_q/to_kv with the MHA in-projections, and fold
    the 1/sqrt(dh) attention scale into the Q columns, so the kernel needs a
    single (D, 3D) QKV matmul on the shared-LN-normalized input."""
    wq, bq = _fold_ln_linear(mha['lnq_g'], mha['lnq_b'], mha['wq'], mha['bq'])
    wkv, bkv = _fold_ln_linear(mha['lnkv_g'], mha['lnkv_b'], mha['wkv'], mha['bkv'])
    scale = 1.0 / math.sqrt(dim // num_heads)
    wq2 = (wq @ mha['in_wq']) * scale
    bq2 = (bq @ mha['in_wq'] + mha['in_bq']) * scale
    wk2 = wkv[:, :dim] @ mha['in_wk']
    bk2 = bkv[:dim] @ mha['in_wk'] + mha['in_bk']
    wv2 = wkv[:, dim:] @ mha['in_wv']
    bv2 = bkv[dim:] @ mha['in_wv'] + mha['in_bv']
    w1, b1 = _fold_ln_linear(ffn['ln_g'], ffn['ln_b'], ffn['w1'], ffn['b1'])
    return dict(
        w_qkv=jnp.concatenate([wq2, wk2, wv2], axis=1),
        b_qkv=jnp.concatenate([bq2, bk2, bv2], axis=0).reshape(1, 3 * dim),
        w_out=mha['out_w'], b_out=mha['out_b'].reshape(1, dim),
        w1=w1, b1=b1.reshape(1, -1), w2=ffn['w2'], b2=ffn['b2'].reshape(1, dim))


def _stack_layers(layers):
    # list of per-layer dicts -> dict of (L, ...) stacked arrays for the kernel
    return {k: jnp.stack([lyr[k] for lyr in layers], axis=0) for k in layers[0]}


def fuse_params(params, enc_dim, dec_dim, num_heads):
    em = params['embed']
    we, be = _fold_ln_linear(em['ln1_g'], em['ln1_b'], em['lin_w'], em['lin_b'])
    dp = params['dec_proj']
    wd, bd = _fold_ln_linear(dp['ln_g'], dp['ln_b'], dp['w'], dp['b'])
    wm, bm = _fold_ln_linear(params['to_mean']['ln_g'], params['to_mean']['ln_b'],
                             params['to_mean']['w'], params['to_mean']['b'])
    ws, bs = _fold_ln_linear(params['to_std']['ln_g'], params['to_std']['ln_b'],
                             params['to_std']['w'], params['to_std']['b'])
    return dict(
        embed=dict(w=we, b=be.reshape(1, -1),
                   ln2_g=em['ln2_g'].reshape(1, -1), ln2_b=em['ln2_b'].reshape(1, -1)),
        encoder=_stack_layers([fuse_block_params(l['mha'], l['ffn'], enc_dim, num_heads)
                               for l in params['encoder']]),
        dec_proj=dict(w=wd, b=bd.reshape(1, -1)),
        decoder=_stack_layers([fuse_block_params(l['mha'], l['ffn'], dec_dim, num_heads)
                               for l in params['decoder']]),
        # to_mean / to_std fused into one lane-denser (dec_dim, 2*patch_dim) head
        out_head=dict(w=jnp.concatenate([wm, ws], axis=1),
                      b=jnp.concatenate([bm, bs], axis=0).reshape(1, -1)),
        mask_token=params['mask_token'], class_token=params['class_token'],
        enc_pos=params['enc_pos'], dec_pos=params['dec_pos'])


# ------------------------------- forward ---------------------------------------

@functools.partial(jax.jit, static_argnames=("patch_size", "grid_size", "data_dim",
                                              "num_heads", "mask_ratio"))
def _forward_core(fparams, patches, nan_mask, kept, mask_key, *,
                  patch_size, grid_size, data_dim, num_heads, mask_ratio):
    pt, ph, pw = patch_size
    t, h, w = grid_size
    B, P, PD = patches.shape
    enc_dim = fparams['enc_pos'].shape[-1]
    dec_dim = fparams['dec_pos'].shape[-1]
    num_patches = kept.shape[0]

    x = jnp.nan_to_num(patches[:, kept, :], nan=0.0)

    # patch embedding: LN -> Linear -> LN  (single fused kernel)
    em = fparams['embed']
    xf = patch_embed(x.reshape(B * num_patches, PD), em['w'], em['b'],
                     em['ln2_g'], em['ln2_b'])
    patches_emb = xf.reshape(B, num_patches, enc_dim)

    # random masking (torch.rand -> jax.random.uniform)
    M = int(num_patches * (1.0 - mask_ratio))
    noise = jax.random.uniform(mask_key, (B, num_patches, 1))
    shuffle_idcs = jnp.argsort(noise, axis=1)
    restore_idcs = jnp.argsort(shuffle_idcs, axis=1)
    keep_idcs = shuffle_idcs[:, :M]
    mask = jnp.ones((B, num_patches, PD), jnp.float32).at[:, :M].set(0.0)
    mask = jnp.take_along_axis(
        mask, jnp.broadcast_to(restore_idcs, (B, num_patches, PD)), axis=1)

    # ----- encoder stack + decoder projection (ONE pallas_call) -----
    # TODO(synk): move this keep_idcs gather into the encoder kernel via
    # PrefetchScalarGridSpec row-gather once num_patches is no longer tiny.
    s_enc = jnp.broadcast_to(fparams['enc_pos'], (B, P, enc_dim))[:, kept, :]
    z = s_enc + patches_emb
    z = jnp.take_along_axis(z, jnp.broadcast_to(keep_idcs, (B, M, enc_dim)), axis=1)
    cls_tok = jnp.broadcast_to(fparams['class_token'], (B, 1, enc_dim))
    z = jnp.concatenate([cls_tok, z], axis=1)
    dp = fparams['dec_proj']
    z, zd = transformer_stack(z, fparams['encoder'], dp['w'], dp['b'], num_heads)
    cls_encoder = z[:, :1]

    # ----- decoder stack + fused to_mean/to_std head (ONE pallas_call) -----
    Mz = zd.shape[1]
    s_dec = jnp.broadcast_to(fparams['dec_pos'], (B, P, dec_dim))[:, kept, :]
    Nmask = num_patches - Mz + 1
    if Nmask > 0:
        mask_tokens = jnp.broadcast_to(fparams['mask_token'], (B, Nmask, dec_dim))
        y = jnp.concatenate([zd[:, 1:], mask_tokens], axis=1)
    else:
        y = zd[:, 1:]
    y = s_dec + jnp.take_along_axis(
        y, jnp.broadcast_to(restore_idcs, (B, num_patches, dec_dim)), axis=1)
    y = jnp.concatenate([zd[:, :1], y], axis=1)
    hp = fparams['out_head']
    y, head_full = transformer_stack(y, fparams['decoder'], hp['w'], hp['b'], num_heads)
    cls_decoder = y[:, :1]
    head_out = head_full[:, 1:]                          # drop cls row
    mean_p, std_p = head_out[..., :PD], head_out[..., PD:]

    def from_patch(xp, fill, dtype):
        full = jnp.full((B, P, PD), fill, dtype=dtype)
        full = full.at[:, kept, :].set(xp.astype(dtype))
        full = jnp.where(nan_mask[None], jnp.asarray(fill, dtype), full)
        return from_patches_rearrange(full, pt, ph, pw, t, h, w, data_dim)

    mean = from_patch(mean_p, jnp.nan, jnp.float32)
    std = from_patch(std_p, jnp.nan, jnp.float32)
    mask_full = from_patch(mask, 0.0, jnp.float32)
    nan_tokens = from_patch(jnp.ones((B, num_patches, PD), jnp.bool_), False, jnp.bool_)

    return (mean, std), (mask_full, nan_tokens), cls_encoder, cls_decoder


def context_cast_forward(fparams, cfg, observation, mask_ratio=0.0, mask_key=None):
    pt, ph, pw = cfg['patch_size']
    if observation.ndim == 4:
        observation = observation[:, None]

    patches = to_patches(observation, pt, ph, pw)         # (B, P, patch_dim)
    PD = patches.shape[2]

    # TODO(synk): data-dependent NaN-token filtering (dynamic kept count) must run
    # eagerly; like the reference it uses batch element 0 only. Everything after
    # it is jitted with num_patches static.
    nan_mask = jnp.isnan(patches[0])
    nan_ratio = nan_mask.sum(axis=-1) / PD
    nan_mask_th = nan_ratio < cfg['nan_mask_threshold']
    kept = jnp.nonzero(nan_mask_th)[0]

    return _forward_core(fparams, patches, nan_mask, kept, mask_key,
                         patch_size=tuple(cfg['patch_size']),
                         grid_size=tuple(cfg['grid_size']),
                         data_dim=int(cfg['data_dim']),
                         num_heads=int(cfg['heads']),
                         mask_ratio=float(mask_ratio))


# --------------------------------- main ----------------------------------------

if __name__ == "__main__":
    # cfg: temporal_step=2, coarse_level=180, nan_mask_threshold=0.5
    temporal_step, coarse_level, nan_mask_threshold = 2, 180, 0.5
    data_dim = 3
    patch_size = (2, 2, 2)
    grid_raw = (temporal_step, 720 // coarse_level, 1440 // coarse_level)  # (2, 4, 8)
    grid = tuple(g // p for g, p in zip(grid_raw, patch_size))             # (1, 2, 4)
    num_patches = grid[0] * grid[1] * grid[2]                              # 8
    patch_dim = patch_size[0] * patch_size[1] * patch_size[2] * data_dim   # 24
    enc_dim = dec_dim = 32
    enc_depth, dec_depth, heads = 2, 1, 8
    B = 2

    cfg = dict(patch_size=patch_size, grid_size=grid, data_dim=data_dim,
               nan_mask_threshold=nan_mask_threshold,
               enc_dim=enc_dim, dec_dim=dec_dim, heads=heads)

    root = jax.random.PRNGKey(0)
    k_param, k_obs, k_mask = jax.random.split(root, 3)
    params = init_params(k_param, patch_dim=patch_dim, num_patches=num_patches,
                         enc_dim=enc_dim, dec_dim=dec_dim,
                         enc_depth=enc_depth, dec_depth=dec_depth)
    # one-time host-side fold of LN affines / projection chains / attention scale
    fparams = fuse_params(params, enc_dim, dec_dim, heads)
    observation = jax.random.normal(k_obs, (B, data_dim) + grid_raw, jnp.float32)

    out = context_cast_forward(fparams, cfg, observation, mask_ratio=0.0, mask_key=k_mask)
    out = jax.block_until_ready(out)
    (mean, std), (mask, nan_tokens), cls_enc, cls_dec = out
    assert mean.shape == observation.shape and std.shape == observation.shape
    assert mask.shape == observation.shape and nan_tokens.dtype == jnp.bool_
    assert cls_enc.shape == (B, 1, enc_dim) and cls_dec.shape == (B, 1, dec_dim)
    assert bool(jnp.all(jnp.isfinite(mean))) and bool(jnp.all(jnp.isfinite(std)))
    print("KERNEL_OK")
</pallas_src>

<mosaic_0001>
module attributes {stable_mosaic.version = 11 : i64} {
  func.func @_embed_kernel(%arg0: i32, %arg1: memref<16x24xf32, #tpu.memory_space<vmem>>, %arg2: memref<24x32xf32, #tpu.memory_space<vmem>>, %arg3: memref<1x32xf32, #tpu.memory_space<vmem>>, %arg4: memref<1x32xf32, #tpu.memory_space<vmem>>, %arg5: memref<1x32xf32, #tpu.memory_space<vmem>>, %arg6: memref<16x32xf32, #tpu.memory_space<vmem>>) attributes {dimension_semantics = [#tpu.dimension_semantics<arbitrary>], iteration_bounds = array<i64: 1>, scalar_prefetch = 0 : i64, scratch_operands = 0 : i64, tpu.core_type = #tpu.core_type<tc>, window_params = [{pipeline_mode = #tpu.pipeline_mode<synchronous>, transform_indices = @transform_0, window_bounds = array<i64: 16, 24>}, {pipeline_mode = #tpu.pipeline_mode<synchronous>, transform_indices = @transform_1, window_bounds = array<i64: 24, 32>}, {pipeline_mode = #tpu.pipeline_mode<synchronous>, transform_indices = @transform_2, window_bounds = array<i64: 1, 32>}, {pipeline_mode = #tpu.pipeline_mode<synchronous>, transform_indices = @transform_3, window_bounds = array<i64: 1, 32>}, {pipeline_mode = #tpu.pipeline_mode<synchronous>, transform_indices = @transform_4, window_bounds = array<i64: 1, 32>}, {pipeline_mode = #tpu.pipeline_mode<synchronous>, transform_indices = @transform_5, window_bounds = array<i64: 16, 32>}]} {
    %c0 = arith.constant 0 : index
    %c0_0 = arith.constant 0 : index
    %0 = vector.load %arg1[%c0, %c0_0] : memref<16x24xf32, #tpu.memory_space<vmem>>, vector<16x24xf32>
    %cst = arith.constant dense<0.000000e+00> : vector<16xf32>
    %1 = vector.multi_reduction <add>, %0, %cst [1] : vector<16x24xf32> to vector<16xf32>
    %2 = vector.shape_cast %1 : vector<16xf32> to vector<16x1xf32>
    %cst_1 = arith.constant 2.400000e+01 : f32
    %3 = vector.broadcast %cst_1 : f32 to vector<16x1xf32>
    %4 = arith.divf %2, %3 : vector<16x1xf32>
    %5 = vector.broadcast %4 : vector<16x1xf32> to vector<16x24xf32>
    %6 = arith.subf %0, %5 : vector<16x24xf32>
    %7 = arith.mulf %6, %6 : vector<16x24xf32>
    %cst_2 = arith.constant dense<0.000000e+00> : vector<16xf32>
    %8 = vector.multi_reduction <add>, %7, %cst_2 [1] : vector<16x24xf32> to vector<16xf32>
    %9 = vector.shape_cast %8 : vector<16xf32> to vector<16x1xf32>
    %cst_3 = arith.constant 2.400000e+01 : f32
    %10 = vector.broadcast %cst_3 : f32 to vector<16x1xf32>
    %11 = arith.divf %9, %10 : vector<16x1xf32>
    %12 = vector.broadcast %4 : vector<16x1xf32> to vector<16x24xf32>
    %13 = arith.subf %0, %12 : vector<16x24xf32>
    %cst_4 = arith.constant 9.99999974E-6 : f32
    %14 = vector.broadcast %cst_4 : f32 to vector<16x1xf32>
    %15 = arith.addf %11, %14 : vector<16x1xf32>
    %16 = math.rsqrt %15 : vector<16x1xf32>
    %17 = vector.broadcast %16 : vector<16x1xf32> to vector<16x24xf32>
    %18 = arith.mulf %13, %17 : vector<16x24xf32>
    %c0_5 = arith.constant 0 : index
    %c0_6 = arith.constant 0 : index
    %19 = vector.load %arg2[%c0_5, %c0_6] : memref<24x32xf32, #tpu.memory_space<vmem>>, vector<24x32xf32>
    %cst_7 = arith.constant dense<0.000000e+00> : vector<16x32xf32>
    %20 = tpu.matmul %18, %19, %cst_7 {dimension_numbers = #tpu.dot_dimension_numbers<[1], [0], [0], [1], [0, 0, 1, 1], [], []>} : vector<16x24xf32>, vector<24x32xf32>, vector<16x32xf32> -> vector<16x32xf32>
    %c0_8 = arith.constant 0 : index
    %c0_9 = arith.constant 0 : index
    %21 = vector.load %arg3[%c0_8, %c0_9] : memref<1x32xf32, #tpu.memory_space<vmem>>, vector<1x32xf32>
    %22 = vector.broadcast %21 : vector<1x32xf32> to vector<16x32xf32>
    %23 = arith.addf %20, %22 : vector<16x32xf32>
    %cst_10 = arith.constant dense<0.000000e+00> : vector<16xf32>
    %24 = vector.multi_reduction <add>, %23, %cst_10 [1] : vector<16x32xf32> to vector<16xf32>
    %25 = vector.shape_cast %24 : vector<16xf32> to vector<16x1xf32>
    %cst_11 = arith.constant 3.200000e+01 : f32
    %26 = vector.broadcast %cst_11 : f32 to vector<16x1xf32>
    %27 = arith.divf %25, %26 : vector<16x1xf32>
    %28 = vector.broadcast %27 : vector<16x1xf32> to vector<16x32xf32>
    %29 = arith.subf %23, %28 : vector<16x32xf32>
    %30 = arith.mulf %29, %29 : vector<16x32xf32>
    %cst_12 = arith.constant dense<0.000000e+00> : vector<16xf32>
    %31 = vector.multi_reduction <add>, %30, %cst_12 [1] : vector<16x32xf32> to vector<16xf32>
    %32 = vector.shape_cast %31 : vector<16xf32> to vector<16x1xf32>
    %cst_13 = arith.constant 3.200000e+01 : f32
    %33 = vector.broadcast %cst_13 : f32 to vector<16x1xf32>
    %34 = arith.divf %32, %33 : vector<16x1xf32>
    %35 = vector.broadcast %27 : vector<16x1xf32> to vector<16x32xf32>
    %36 = arith.subf %23, %35 : vector<16x32xf32>
    %cst_14 = arith.constant 9.99999974E-6 : f32
    %37 = vector.broadcast %cst_14 : f32 to vector<16x1xf32>
    %38 = arith.addf %34, %37 : vector<16x1xf32>
    %39 = math.rsqrt %38 : vector<16x1xf32>
    %40 = vector.broadcast %39 : vector<16x1xf32> to vector<16x32xf32>
    %41 = arith.mulf %36, %40 : vector<16x32xf32>
    %c0_15 = arith.constant 0 : index
    %c0_16 = arith.constant 0 : index
    %42 = vector.load %arg4[%c0_15, %c0_16] : memref<1x32xf32, #tpu.memory_space<vmem>>, vector<1x32xf32>
    %43 = vector.broadcast %42 : vector<1x32xf32> to vector<16x32xf32>
    %44 = arith.mulf %41, %43 : vector<16x32xf32>
    %c0_17 = arith.constant 0 : index
    %c0_18 = arith.constant 0 : index
    %45 = vector.load %arg5[%c0_17, %c0_18] : memref<1x32xf32, #tpu.memory_space<vmem>>, vector<1x32xf32>
    %46 = vector.broadcast %45 : vector<1x32xf32> to vector<16x32xf32>
    %47 = arith.addf %44, %46 : vector<16x32xf32>
    %c0_19 = arith.constant 0 : index
    %c0_20 = arith.constant 0 : index
    %48 = vector.load %arg6[%c0_19, %c0_20] : memref<16x32xf32, #tpu.memory_space<vmem>>, vector<16x32xf32>
    tpu.vector_store %arg6[%c0_19, %c0_20], %47 {strides = array<i32>} : memref<16x32xf32, #tpu.memory_space<vmem>>, vector<16x32xf32>,
    return
  }
  func.func @transform_0(%arg0: i32) -> (i32, i32) {
    %c0_i32 = arith.constant 0 : i32
    %c0_i32_0 = arith.constant 0 : i32
    %c0_i32_1 = arith.constant 0 : i32
    return %c0_i32, %c0_i32_0 : i32, i32
  }
  func.func @transform_1(%arg0: i32) -> (i32, i32) {
    %c0_i32 = arith.constant 0 : i32
    %c0_i32_0 = arith.constant 0 : i32
    %c0_i32_1 = arith.constant 0 : i32
    return %c0_i32, %c0_i32_0 : i32, i32
  }
  func.func @transform_2(%arg0: i32) -> (i32, i32) {
    %c0_i32 = arith.constant 0 : i32
    %c0_i32_0 = arith.constant 0 : i32
    %c0_i32_1 = arith.constant 0 : i32
    return %c0_i32, %c0_i32_0 : i32, i32
  }
  func.func @transform_3(%arg0: i32) -> (i32, i32) {
    %c0_i32 = arith.constant 0 : i32
    %c0_i32_0 = arith.constant 0 : i32
    %c0_i32_1 = arith.constant 0 : i32
    return %c0_i32, %c0_i32_0 : i32, i32
  }
  func.func @transform_4(%arg0: i32) -> (i32, i32) {
    %c0_i32 = arith.constant 0 : i32
    %c0_i32_0 = arith.constant 0 : i32
    %c0_i32_1 = arith.constant 0 : i32
    return %c0_i32, %c0_i32_0 : i32, i32
  }
  func.func @transform_5(%arg0: i32) -> (i32, i32) {
    %c0_i32 = arith.constant 0 : i32
    %c0_i32_0 = arith.constant 0 : i32
    %c0_i32_1 = arith.constant 0 : i32
    return %c0_i32, %c0_i32_0 : i32, i32
  }
}

module attributes {stable_mosaic.version = 11 : i64} {
  func.func @_stack_kernel(%arg0: i32, %arg1: memref<1x9x32xf32, #tpu.memory_space<vmem>>, %arg2: memref<2x32x96xf32, #tpu.memory_space<vmem>>, %arg3: memref<2x1x96xf32, #tpu.memory_space<vmem>>, %arg4: memref<2x32x32xf32, #tpu.memory_space<vmem>>, %arg5: memref<2x1x32xf32, #tpu.memory_space<vmem>>, %arg6: memref<2x32x128xf32, #tpu.memory_space<vmem>>, %arg7: memref<2x1x128xf32, #tpu.memory_space<vmem>>, %arg8: memref<2x128x32xf32, #tpu.memory_space<vmem>>, %arg9: memref<2x1x32xf32, #tpu.memory_space<vmem>>, %arg10: memref<32x32xf32, #tpu.memory_space<vmem>>, %arg11: memref<1x32xf32, #tpu.memory_space<vmem>>, %arg12: memref<1x9x32xf32, #tpu.memory_space<vmem>>, %arg13: memref<1x9x32xf32, #tpu.memory_space<vmem>>, %arg14: memref<9x32xf32, #tpu.memory_space<vmem>>) attributes {dimension_semantics = [#tpu.dimension_semantics<parallel>], iteration_bounds = array<i64: 2>, scalar_prefetch = 0 : i64, scratch_operands = 1 : i64, tpu.core_type = #tpu.core_type<tc>, window_params = [{transform_indices = @transform_0, window_bounds = array<i64: 1, 9, 32>}, {pipeline_mode = #tpu.pipeline_mode<synchronous>, transform_indices = @transform_1, window_bounds = array<i64: 2, 32, 96>}, {pipeline_mode = #tpu.pipeline_mode<synchronous>, transform_indices = @transform_2, window_bounds = array<i64: 2, 1, 96>}, {pipeline_mode = #tpu.pipeline_mode<synchronous>, transform_indices = @transform_3, window_bounds = array<i64: 2, 32, 32>}, {pipeline_mode = #tpu.pipeline_mode<synchronous>, transform_indices = @transform_4, window_bounds = array<i64: 2, 1, 32>}, {pipeline_mode = #tpu.pipeline_mode<synchronous>, transform_indices = @transform_5, window_bounds = array<i64: 2, 32, 128>}, {pipeline_mode = #tpu.pipeline_mode<synchronous>, transform_indices = @transform_6, window_bounds = array<i64: 2, 1, 128>}, {pipeline_mode = #tpu.pipeline_mode<synchronous>, transform_indices = @transform_7, window_bounds = array<i64: 2, 128, 32>}, {pipeline_mode = #tpu.pipeline_mode<synchronous>, transform_indices = @transform_8, window_bounds = array<i64: 2, 1, 32>}, {pipeline_mode = #tpu.pipeline_mode<synchronous>, transform_indices = @transform_9, window_bounds = array<i64: 32, 32>}, {pipeline_mode = #tpu.pipeline_mode<synchronous>, transform_indices = @transform_10, window_bounds = array<i64: 1, 32>}, {transform_indices = @transform_11, window_bounds = array<i64: 1, 9, 32>}, {transform_indices = @transform_12, window_bounds = array<i64: 1, 9, 32>}]} {
    %c0 = arith.constant 0 : index
    %c0_0 = arith.constant 0 : index
    %c0_1 = arith.constant 0 : index
    %0 = vector.load %arg1[%c0, %c0_0, %c0_1] : memref<1x9x32xf32, #tpu.memory_space<vmem>>, vector<1x9x32xf32>
    %1 = vector.shape_cast %0 : vector<1x9x32xf32> to vector<9x32xf32>
    %c0_2 = arith.constant 0 : index
    %c0_3 = arith.constant 0 : index
    %c0_4 = arith.constant 0 : index
    %2 = vector.load %arg2[%c0_2, %c0_3, %c0_4] : memref<2x32x96xf32, #tpu.memory_space<vmem>>, vector<1x32x96xf32>
    %3 = vector.shape_cast %2 : vector<1x32x96xf32> to vector<32x96xf32>
    %c0_5 = arith.constant 0 : index
    %c0_6 = arith.constant 0 : index
    %c0_7 = arith.constant 0 : index
    %4 = vector.load %arg3[%c0_5, %c0_6, %c0_7] : memref<2x1x96xf32, #tpu.memory_space<vmem>>, vector<1x1x96xf32>
    %5 = vector.shape_cast %4 : vector<1x1x96xf32> to vector<1x96xf32>
    %c0_8 = arith.constant 0 : index
    %c0_9 = arith.constant 0 : index
    %c0_10 = arith.constant 0 : index
    %6 = vector.load %arg4[%c0_8, %c0_9, %c0_10] : memref<2x32x32xf32, #tpu.memory_space<vmem>>, vector<1x32x32xf32>
    %7 = vector.shape_cast %6 : vector<1x32x32xf32> to vector<32x32xf32>
    %c0_11 = arith.constant 0 : index
    %c0_12 = arith.constant 0 : index
    %c0_13 = arith.constant 0 : index
    %8 = vector.load %arg5[%c0_11, %c0_12, %c0_13] : memref<2x1x32xf32, #tpu.memory_space<vmem>>, vector<1x1x32xf32>
    %9 = vector.shape_cast %8 : vector<1x1x32xf32> to vector<1x32xf32>
    %c0_14 = arith.constant 0 : index
    %c0_15 = arith.constant 0 : index
    %c0_16 = arith.constant 0 : index
    %10 = vector.load %arg6[%c0_14, %c0_15, %c0_16] : memref<2x32x128xf32, #tpu.memory_space<vmem>>, vector<1x32x128xf32>
    %11 = vector.shape_cast %10 : vector<1x32x128xf32> to vector<32x128xf32>
    %c0_17 = arith.constant 0 : index
    %c0_18 = arith.constant 0 : index
    %c0_19 = arith.constant 0 : index
    %12 = vector.load %arg7[%c0_17, %c0_18, %c0_19] : memref<2x1x128xf32, #tpu.memory_space<vmem>>, vector<1x1x128xf32>
    %13 = vector.shape_cast %12 : vector<1x1x128xf32> to vector<1x128xf32>
    %c0_20 = arith.constant 0 : index
    %c0_21 = arith.constant 0 : index
    %c0_22 = arith.constant 0 : index
    %14 = vector.load %arg8[%c0_20, %c0_21, %c0_22] : memref<2x128x32xf32, #tpu.memory_space<vmem>>, vector<1x128x32xf32>
    %15 = vector.shape_cast %14 : vector<1x128x32xf32> to vector<128x32xf32>
    %c0_23 = arith.constant 0 : index
    %c0_24 = arith.constant 0 : index
    %c0_25 = arith.constant 0 : index
    %16 = vector.load %arg9[%c0_23, %c0_24, %c0_25] : memref<2x1x32xf32, #tpu.memory_space<vmem>>, vector<1x1x32xf32>
    %17 = vector.shape_cast %16 : vector<1x1x32xf32> to vector<1x32xf32>
    %cst = arith.constant dense<0.000000e+00> : vector<9xf32>
    %18 = vector.multi_reduction <add>, %1, %cst [1] : vector<9x32xf32> to vector<9xf32>
    %19 = vector.shape_cast %18 : vector<9xf32> to vector<9x1xf32>
    %cst_26 = arith.constant 3.200000e+01 : f32
    %20 = vector.broadcast %cst_26 : f32 to vector<9x1xf32>
    %21 = arith.divf %19, %20 : vector<9x1xf32>
    %22 = vector.broadcast %21 : vector<9x1xf32> to vector<9x32xf32>
    %23 = arith.subf %1, %22 : vector<9x32xf32>
    %24 = arith.mulf %23, %23 : vector<9x32xf32>
    %cst_27 = arith.constant dense<0.000000e+00> : vector<9xf32>
    %25 = vector.multi_reduction <add>, %24, %cst_27 [1] : vector<9x32xf32> to vector<9xf32>
    %26 = vector.shape_cast %25 : vector<9xf32> to vector<9x1xf32>
    %cst_28 = arith.constant 3.200000e+01 : f32
    %27 = vector.broadcast %cst_28 : f32 to vector<9x1xf32>
    %28 = arith.divf %26, %27 : vector<9x1xf32>
    %29 = vector.broadcast %21 : vector<9x1xf32> to vector<9x32xf32>
    %30 = arith.subf %1, %29 : vector<9x32xf32>
    %cst_29 = arith.constant 9.99999974E-6 : f32
    %31 = vector.broadcast %cst_29 : f32 to vector<9x1xf32>
    %32 = arith.addf %28, %31 : vector<9x1xf32>
    %33 = math.rsqrt %32 : vector<9x1xf32>
    %34 = vector.broadcast %33 : vector<9x1xf32> to vector<9x32xf32>
    %35 = arith.mulf %30, %34 : vector<9x32xf32>
    %cst_30 = arith.constant dense<0.000000e+00> : vector<9x96xf32>
    %36 = tpu.matmul %35, %3, %cst_30 {dimension_numbers = #tpu.dot_dimension_numbers<[1], [0], [0], [1], [0, 0, 1, 1], [], []>} : vector<9x32xf32>, vector<32x96xf32>, vector<9x96xf32> -> vector<9x96xf32>
    %37 = vector.broadcast %5 : vector<1x96xf32> to vector<9x96xf32>
    %38 = arith.addf %36, %37 : vector<9x96xf32>
    %39 = vector.extract_strided_slice %38 {offsets = [0, 0], sizes = [9, 4], strides = [1, 1]} : vector<9x96xf32> to vector<9x4xf32>
    %40 = vector.extract_strided_slice %38 {offsets = [0, 32], sizes = [9, 4], strides = [1, 1]} : vector<9x96xf32> to vector<9x4xf32>
    %41 = vector.extract_strided_slice %38 {offsets = [0, 64], sizes = [9, 4], strides = [1, 1]} : vector<9x96xf32> to vector<9x4xf32>
    %cst_31 = arith.constant dense<0.000000e+00> : vector<9x9xf32>
    %42 = tpu.matmul %39, %40, %cst_31 {dimension_numbers = #tpu.dot_dimension_numbers<[1], [1], [0], [0], [0, 0, 1, 0], [], []>} : vector<9x4xf32>, vector<9x4xf32>, vector<9x9xf32> -> vector<9x9xf32>
    %cst_32 = arith.constant dense<0xFF800000> : vector<9xf32>
    %43 = vector.multi_reduction <maximumf>, %42, %cst_32 [1] : vector<9x9xf32> to vector<9xf32>
    %44 = vector.shape_cast %43 : vector<9xf32> to vector<9x1xf32>
    %45 = vector.broadcast %44 : vector<9x1xf32> to vector<9x9xf32>
    %46 = arith.subf %42, %45 : vector<9x9xf32>
    %47 = math.exp %46 : vector<9x9xf32>
    %cst_33 = arith.constant dense<0.000000e+00> : vector<9xf32>
    %48 = vector.multi_reduction <add>, %47, %cst_33 [1] : vector<9x9xf32> to vector<9xf32>
    %49 = vector.shape_cast %48 : vector<9xf32> to vector<9x1xf32>
    %50 = tpu.reciprocal %49 {approx = true} : vector<9x1xf32> -> vector<9x1xf32>
    %51 = vector.broadcast %50 : vector<9x1xf32> to vector<9x9xf32>
    %52 = arith.mulf %47, %51 : vector<9x9xf32>
    %cst_34 = arith.constant dense<0.000000e+00> : vector<9x4xf32>
    %53 = tpu.matmul %52, %41, %cst_34 {dimension_numbers = #tpu.dot_dimension_numbers<[1], [0], [0], [1], [0, 0, 1, 1], [], []>} : vector<9x9xf32>, vector<9x4xf32>, vector<9x4xf32> -> vector<9x4xf32>
    %c0_35 = arith.constant 0 : index
    %c0_36 = arith.constant 0 : index
    %54 = vector.load %arg14[%c0_35, %c0_36] : memref<9x32xf32, #tpu.memory_space<vmem>>, vector<9x4xf32>
    tpu.vector_store %arg14[%c0_35, %c0_36], %53 {strides = array<i32>} : memref<9x32xf32, #tpu.memory_space<vmem>>, vector<9x4xf32>,
    %55 = vector.extract_strided_slice %38 {offsets = [0, 4], sizes = [9, 4], strides = [1, 1]} : vector<9x96xf32> to vector<9x4xf32>
    %56 = vector.extract_strided_slice %38 {offsets = [0, 36], sizes = [9, 4], strides = [1, 1]} : vector<9x96xf32> to vector<9x4xf32>
    %57 = vector.extract_strided_slice %38 {offsets = [0, 68], sizes = [9, 4], strides = [1, 1]} : vector<9x96xf32> to vector<9x4xf32>
    %cst_37 = arith.constant dense<0.000000e+00> : vector<9x9xf32>
    %58 = tpu.matmul %55, %56, %cst_37 {dimension_numbers = #tpu.dot_dimension_numbers<[1], [1], [0], [0], [0, 0, 1, 0], [], []>} : vector<9x4xf32>, vector<9x4xf32>, vector<9x9xf32> -> vector<9x9xf32>
    %cst_38 = arith.constant dense<0xFF800000> : vector<9xf32>
    %59 = vector.multi_reduction <maximumf>, %58, %cst_38 [1] : vector<9x9xf32> to vector<9xf32>
    %60 = vector.shape_cast %59 : vector<9xf32> to vector<9x1xf32>
    %61 = vector.broadcast %60 : vector<9x1xf32> to vector<9x9xf32>
    %62 = arith.subf %58, %61 : vector<9x9xf32>
    %63 = math.exp %62 : vector<9x9xf32>
    %cst_39 = arith.constant dense<0.000000e+00> : vector<9xf32>
    %64 = vector.multi_reduction <add>, %63, %cst_39 [1] : vector<9x9xf32> to vector<9xf32>
    %65 = vector.shape_cast %64 : vector<9xf32> to vector<9x1xf32>
    %66 = tpu.reciprocal %65 {approx = true} : vector<9x1xf32> -> vector<9x1xf32>
    %67 = vector.broadcast %66 : vector<9x1xf32> to vector<9x9xf32>
    %68 = arith.mulf %63, %67 : vector<9x9xf32>
    %cst_40 = arith.constant dense<0.000000e+00> : vector<9x4xf32>
    %69 = tpu.matmul %68, %57, %cst_40 {dimension_numbers = #tpu.dot_dimension_numbers<[1], [0], [0], [1], [0, 0, 1, 1], [], []>} : vector<9x9xf32>, vector<9x4xf32>, vector<9x4xf32> -> vector<9x4xf32>
    %c0_41 = arith.constant 0 : index
    %c4 = arith.constant 4 : index
    %70 = vector.load %arg14[%c0_41, %c4] : memref<9x32xf32, #tpu.memory_space<vmem>>, vector<9x4xf32>
    tpu.vector_store %arg14[%c0_41, %c4], %69 {strides = array<i32>} : memref<9x32xf32, #tpu.memory_space<vmem>>, vector<9x4xf32>,
    %71 = vector.extract_strided_slice %38 {offsets = [0, 8], sizes = [9, 4], strides = [1, 1]} : vector<9x96xf32> to vector<9x4xf32>
    %72 = vector.extract_strided_slice %38 {offsets = [0, 40], sizes = [9, 4], strides = [1, 1]} : vector<9x96xf32> to vector<9x4xf32>
    %73 = vector.extract_strided_slice %38 {offsets = [0, 72], sizes = [9, 4], strides = [1, 1]} : vector<9x96xf32> to vector<9x4xf32>
    %cst_42 = arith.constant dense<0.000000e+00> : vector<9x9xf32>
    %74 = tpu.matmul %71, %72, %cst_42 {dimension_numbers = #tpu.dot_dimension_numbers<[1], [1], [0], [0], [0, 0, 1, 0], [], []>} : vector<9x4xf32>, vector<9x4xf32>, vector<9x9xf32> -> vector<9x9xf32>
    %cst_43 = arith.constant dense<0xFF800000> : vector<9xf32>
    %75 = vector.multi_reduction <maximumf>, %74, %cst_43 [1] : vector<9x9xf32> to vector<9xf32>
    %76 = vector.shape_cast %75 : vector<9xf32> to vector<9x1xf32>
    %77 = vector.broadcast %76 : vector<9x1xf32> to vector<9x9xf32>
    %78 = arith.subf %74, %77 : vector<9x9xf32>
    %79 = math.exp %78 : vector<9x9xf32>
    %cst_44 = arith.constant dense<0.000000e+00> : vector<9xf32>
    %80 = vector.multi_reduction <add>, %79, %cst_44 [1] : vector<9x9xf32> to vector<9xf32>
    %81 = vector.shape_cast %80 : vector<9xf32> to vector<9x1xf32>
    %82 = tpu.reciprocal %81 {approx = true} : vector<9x1xf32> -> vector<9x1xf32>
    %83 = vector.broadcast %82 : vector<9x1xf32> to vector<9x9xf32>
    %84 = arith.mulf %79, %83 : vector<9x9xf32>
    %cst_45 = arith.constant dense<0.000000e+00> : vector<9x4xf32>
    %85 = tpu.matmul %84, %73, %cst_45 {dimension_numbers = #tpu.dot_dimension_numbers<[1], [0], [0], [1], [0, 0, 1, 1], [], []>} : vector<9x9xf32>, vector<9x4xf32>, vector<9x4xf32> -> vector<9x4xf32>
    %c0_46 = arith.constant 0 : index
    %c8 = arith.constant 8 : index
    %86 = vector.load %arg14[%c0_46, %c8] : memref<9x32xf32, #tpu.memory_space<vmem>>, vector<9x4xf32>
    tpu.vector_store %arg14[%c0_46, %c8], %85 {strides = array<i32>} : memref<9x32xf32, #tpu.memory_space<vmem>>, vector<9x4xf32>,
    %87 = vector.extract_strided_slice %38 {offsets = [0, 12], sizes = [9, 4], strides = [1, 1]} : vector<9x96xf32> to vector<9x4xf32>
    %88 = vector.extract_strided_slice %38 {offsets = [0, 44], sizes = [9, 4], strides = [1, 1]} : vector<9x96xf32> to vector<9x4xf32>
    %89 = vector.extract_strided_slice %38 {offsets = [0, 76], sizes = [9, 4], strides = [1, 1]} : vector<9x96xf32> to vector<9x4xf32>
    %cst_47 = arith.constant dense<0.000000e+00> : vector<9x9xf32>
    %90 = tpu.matmul %87, %88, %cst_47 {dimension_numbers = #tpu.dot_dimension_numbers<[1], [1], [0], [0], [0, 0, 1, 0], [], []>} : vector<9x4xf32>, vector<9x4xf32>, vector<9x9xf32> -> vector<9x9xf32>
    %cst_48 = arith.constant dense<0xFF800000> : vector<9xf32>
    %91 = vector.multi_reduction <maximumf>, %90, %cst_48 [1] : vector<9x9xf32> to vector<9xf32>
    %92 = vector.shape_cast %91 : vector<9xf32> to vector<9x1xf32>
    %93 = vector.broadcast %92 : vector<9x1xf32> to vector<9x9xf32>
    %94 = arith.subf %90, %93 : vector<9x9xf32>
    %95 = math.exp %94 : vector<9x9xf32>
    %cst_49 = arith.constant dense<0.000000e+00> : vector<9xf32>
    %96 = vector.multi_reduction <add>, %95, %cst_49 [1] : vector<9x9xf32> to vector<9xf32>
    %97 = vector.shape_cast %96 : vector<9xf32> to vector<9x1xf32>
    %98 = tpu.reciprocal %97 {approx = true} : vector<9x1xf32> -> vector<9x1xf32>
    %99 = vector.broadcast %98 : vector<9x1xf32> to vector<9x9xf32>
    %100 = arith.mulf %95, %99 : vector<9x9xf32>
    %cst_50 = arith.constant dense<0.000000e+00> : vector<9x4xf32>
    %101 = tpu.matmul %100, %89, %cst_50 {dimension_numbers = #tpu.dot_dimension_numbers<[1], [0], [0], [1], [0, 0, 1, 1], [], []>} : vector<9x9xf32>, vector<9x4xf32>, vector<9x4xf32> -> vector<9x4xf32>
    %c0_51 = arith.constant 0 : index
    %c12 = arith.constant 12 : index
    %102 = vector.load %arg14[%c0_51, %c12] : memref<9x32xf32, #tpu.memory_space<vmem>>, vector<9x4xf32>
    tpu.vector_store %arg14[%c0_51, %c12], %101 {strides = array<i32>} : memref<9x32xf32, #tpu.memory_space<vmem>>, vector<9x4xf32>,
    %103 = vector.extract_strided_slice %38 {offsets = [0, 16], sizes = [9, 4], strides = [1, 1]} : vector<9x96xf32> to vector<9x4xf32>
    %104 = vector.extract_strided_slice %38 {offsets = [0, 48], sizes = [9, 4], strides = [1, 1]} : vector<9x96xf32> to vector<9x4xf32>
    %105 = vector.extract_strided_slice %38 {offsets = [0, 80], sizes = [9, 4], strides = [1, 1]} : vector<9x96xf32> to vector<9x4xf32>
    %cst_52 = arith.constant dense<0.000000e+00> : vector<9x9xf32>
    %106 = tpu.matmul %103, %104, %cst_52 {dimension_numbers = #tpu.dot_dimension_numbers<[1], [1], [0], [0], [0, 0, 1, 0], [], []>} : vector<9x4xf32>, vector<9x4xf32>, vector<9x9xf32> -> vector<9x9xf32>
    %cst_53 = arith.constant dense<0xFF800000> : vector<9xf32>
    %107 = vector.multi_reduction <maximumf>, %106, %cst_53 [1] : vector<9x9xf32> to vector<9xf32>
    %108 = vector.shape_cast %107 : vector<9xf32> to vector<9x1xf32>
    %109 = vector.broadcast %108 : vector<9x1xf32> to vector<9x9xf32>
    %110 = arith.subf %106, %109 : vector<9x9xf32>
    %111 = math.exp %110 : vector<9x9xf32>
    %cst_54 = arith.constant dense<0.000000e+00> : vector<9xf32>
    %112 = vector.multi_reduction <add>, %111, %cst_54 [1] : vector<9x9xf32> to vector<9xf32>
    %113 = vector.shape_cast %112 : vector<9xf32> to vector<9x1xf32>
    %114 = tpu.reciprocal %113 {approx = true} : vector<9x1xf32> -> vector<9x1xf32>
    %115 = vector.broadcast %114 : vector<9x1xf32> to vector<9x9xf32>
    %116 = arith.mulf %111, %115 : vector<9x9xf32>
    %cst_55 = arith.constant dense<0.000000e+00> : vector<9x4xf32>
    %117 = tpu.matmul %116, %105, %cst_55 {dimension_numbers = #tpu.dot_dimension_numbers<[1], [0], [0], [1], [0, 0, 1, 1], [], []>} : vector<9x9xf32>, vector<9x4xf32>, vector<9x4xf32> -> vector<9x4xf32>
    %c0_56 = arith.constant 0 : index
    %c16 = arith.constant 16 : index
    %118 = vector.load %arg14[%c0_56, %c16] : memref<9x32xf32, #tpu.memory_space<vmem>>, vector<9x4xf32>
    tpu.vector_store %arg14[%c0_56, %c16], %117 {strides = array<i32>} : memref<9x32xf32, #tpu.memory_space<vmem>>, vector<9x4xf32>,
    %119 = vector.extract_strided_slice %38 {offsets = [0, 20], sizes = [9, 4], strides = [1, 1]} : vector<9x96xf32> to vector<9x4xf32>
    %120 = vector.extract_strided_slice %38 {offsets = [0, 52], sizes = [9, 4], strides = [1, 1]} : vector<9x96xf32> to vector<9x4xf32>
    %121 = vector.extract_strided_slice %38 {offsets = [0, 84], sizes = [9, 4], strides = [1, 1]} : vector<9x96xf32> to vector<9x4xf32>
    %cst_57 = arith.constant dense<0.000000e+00> : vector<9x9xf32>
    %122 = tpu.matmul %119, %120, %cst_57 {dimension_numbers = #tpu.dot_dimension_numbers<[1], [1], [0], [0], [0, 0, 1, 0], [], []>} : vector<9x4xf32>, vector<9x4xf32>, vector<9x9xf32> -> vector<9x9xf32>
    %cst_58 = arith.constant dense<0xFF800000> : vector<9xf32>
    %123 = vector.multi_reduction <maximumf>, %122, %cst_58 [1] : vector<9x9xf32> to vector<9xf32>
    %124 = vector.shape_cast %123 : vector<9xf32> to vector<9x1xf32>
    %125 = vector.broadcast %124 : vector<9x1xf32> to vector<9x9xf32>
    %126 = arith.subf %122, %125 : vector<9x9xf32>
    %127 = math.exp %126 : vector<9x9xf32>
    %cst_59 = arith.constant dense<0.000000e+00> : vector<9xf32>
    %128 = vector.multi_reduction <add>, %127, %cst_59 [1] : vector<9x9xf32> to vector<9xf32>
    %129 = vector.shape_cast %128 : vector<9xf32> to vector<9x1xf32>
    %130 = tpu.reciprocal %129 {approx = true} : vector<9x1xf32> -> vector<9x1xf32>
    %131 = vector.broadcast %130 : vector<9x1xf32> to vector<9x9xf32>
    %132 = arith.mulf %127, %131 : vector<9x9xf32>
    %cst_60 = arith.constant dense<0.000000e+00> : vector<9x4xf32>
    %133 = tpu.matmul %132, %121, %cst_60 {dimension_numbers = #tpu.dot_dimension_numbers<[1], [0], [0], [1], [0, 0, 1, 1], [], []>} : vector<9x9xf32>, vector<9x4xf32>, vector<9x4xf32> -> vector<9x4xf32>
    %c0_61 = arith.constant 0 : index
    %c20 = arith.constant 20 : index
    %134 = vector.load %arg14[%c0_61, %c20] : memref<9x32xf32, #tpu.memory_space<vmem>>, vector<9x4xf32>
    tpu.vector_store %arg14[%c0_61, %c20], %133 {strides = array<i32>} : memref<9x32xf32, #tpu.memory_space<vmem>>, vector<9x4xf32>,
    %135 = vector.extract_strided_slice %38 {offsets = [0, 24], sizes = [9, 4], strides = [1, 1]} : vector<9x96xf32> to vector<9x4xf32>
    %136 = vector.extract_strided_slice %38 {offsets = [0, 56], sizes = [9, 4], strides = [1, 1]} : vector<9x96xf32> to vector<9x4xf32>
    %137 = vector.extract_strided_slice %38 {offsets = [0, 88], sizes = [9, 4], strides = [1, 1]} : vector<9x96xf32> to vector<9x4xf32>
    %cst_62 = arith.constant dense<0.000000e+00> : vector<9x9xf32>
    %138 = tpu.matmul %135, %136, %cst_62 {dimension_numbers = #tpu.dot_dimension_numbers<[1], [1], [0], [0], [0, 0, 1, 0], [], []>} : vector<9x4xf32>, vector<9x4xf32>, vector<9x9xf32> -> vector<9x9xf32>
    %cst_63 = arith.constant dense<0xFF800000> : vector<9xf32>
    %139 = vector.multi_reduction <maximumf>, %138, %cst_63 [1] : vector<9x9xf32> to vector<9xf32>
    %140 = vector.shape_cast %139 : vector<9xf32> to vector<9x1xf32>
    %141 = vector.broadcast %140 : vector<9x1xf32> to vector<9x9xf32>
    %142 = arith.subf %138, %141 : vector<9x9xf32>
    %143 = math.exp %142 : vector<9x9xf32>
    %cst_64 = arith.constant dense<0.000000e+00> : vector<9xf32>
    %144 = vector.multi_reduction <add>, %143, %cst_64 [1] : vector<9x9xf32> to vector<9xf32>
    %145 = vector.shape_cast %144 : vector<9xf32> to vector<9x1xf32>
    %146 = tpu.reciprocal %145 {approx = true} : vector<9x1xf32> -> vector<9x1xf32>
    %147 = vector.broadcast %146 : vector<9x1xf32> to vector<9x9xf32>
    %148 = arith.mulf %143, %147 : vector<9x9xf32>
    %cst_65 = arith.constant dense<0.000000e+00> : vector<9x4xf32>
    %149 = tpu.matmul %148, %137, %cst_65 {dimension_numbers = #tpu.dot_dimension_numbers<[1], [0], [0], [1], [0, 0, 1, 1], [], []>} : vector<9x9xf32>, vector<9x4xf32>, vector<9x4xf32> -> vector<9x4xf32>
    %c0_66 = arith.constant 0 : index
    %c24 = arith.constant 24 : index
    %150 = vector.load %arg14[%c0_66, %c24] : memref<9x32xf32, #tpu.memory_space<vmem>>, vector<9x4xf32>
    tpu.vector_store %arg14[%c0_66, %c24], %149 {strides = array<i32>} : memref<9x32xf32, #tpu.memory_space<vmem>>, vector<9x4xf32>,
    %151 = vector.extract_strided_slice %38 {offsets = [0, 28], sizes = [9, 4], strides = [1, 1]} : vector<9x96xf32> to vector<9x4xf32>
    %152 = vector.extract_strided_slice %38 {offsets = [0, 60], sizes = [9, 4], strides = [1, 1]} : vector<9x96xf32> to vector<9x4xf32>
    %153 = vector.extract_strided_slice %38 {offsets = [0, 92], sizes = [9, 4], strides = [1, 1]} : vector<9x96xf32> to vector<9x4xf32>
    %cst_67 = arith.constant dense<0.000000e+00> : vector<9x9xf32>
    %154 = tpu.matmul %151, %152, %cst_67 {dimension_numbers = #tpu.dot_dimension_numbers<[1], [1], [0], [0], [0, 0, 1, 0], [], []>} : vector<9x4xf32>, vector<9x4xf32>, vector<9x9xf32> -> vector<9x9xf32>
    %cst_68 = arith.constant dense<0xFF800000> : vector<9xf32>
    %155 = vector.multi_reduction <maximumf>, %154, %cst_68 [1] : vector<9x9xf32> to vector<9xf32>
    %156 = vector.shape_cast %155 : vector<9xf32> to vector<9x1xf32>
    %157 = vector.broadcast %156 : vector<9x1xf32> to vector<9x9xf32>
    %158 = arith.subf %154, %157 : vector<9x9xf32>
    %159 = math.exp %158 : vector<9x9xf32>
    %cst_69 = arith.constant dense<0.000000e+00> : vector<9xf32>
    %160 = vector.multi_reduction <add>, %159, %cst_69 [1] : vector<9x9xf32> to vector<9xf32>
    %161 = vector.shape_cast %160 : vector<9xf32> to vector<9x1xf32>
    %162 = tpu.reciprocal %161 {approx = true} : vector<9x1xf32> -> vector<9x1xf32>
    %163 = vector.broadcast %162 : vector<9x1xf32> to vector<9x9xf32>
    %164 = arith.mulf %159, %163 : vector<9x9xf32>
    %cst_70 = arith.constant dense<0.000000e+00> : vector<9x4xf32>
    %165 = tpu.matmul %164, %153, %cst_70 {dimension_numbers = #tpu.dot_dimension_numbers<[1], [0], [0], [1], [0, 0, 1, 1], [], []>} : vector<9x9xf32>, vector<9x4xf32>, vector<9x4xf32> -> vector<9x4xf32>
    %c0_71 = arith.constant 0 : index
    %c28 = arith.constant 28 : index
    %166 = vector.load %arg14[%c0_71, %c28] : memref<9x32xf32, #tpu.memory_space<vmem>>, vector<9x4xf32>
    tpu.vector_store %arg14[%c0_71, %c28], %165 {strides = array<i32>} : memref<9x32xf32, #tpu.memory_space<vmem>>, vector<9x4xf32>,
    %c0_72 = arith.constant 0 : index
    %c0_73 = arith.constant 0 : index
    %167 = vector.load %arg14[%c0_72, %c0_73] : memref<9x32xf32, #tpu.memory_space<vmem>>, vector<9x32xf32>
    %cst_74 = arith.constant dense<0.000000e+00> : vector<9x32xf32>
    %168 = tpu.matmul %167, %7, %cst_74 {dimension_numbers = #tpu.dot_dimension_numbers<[1], [0], [0], [1], [0, 0, 1, 1], [], []>} : vector<9x32xf32>, vector<32x32xf32>, vector<9x32xf32> -> vector<9x32xf32>
    %169 = arith.addf %1, %168 : vector<9x32xf32>
    %170 = vector.broadcast %9 : vector<1x32xf32> to vector<9x32xf32>
    %171 = arith.addf %169, %170 : vector<9x32xf32>
    %cst_75 = arith.constant dense<0.000000e+00> : vector<9xf32>
    %172 = vector.multi_reduction <add>, %171, %cst_75 [1] : vector<9x32xf32> to vector<9xf32>
    %173 = vector.shape_cast %172 : vector<9xf32> to vector<9x1xf32>
    %cst_76 = arith.constant 3.200000e+01 : f32
    %174 = vector.broadcast %cst_76 : f32 to vector<9x1xf32>
    %175 = arith.divf %173, %174 : vector<9x1xf32>
    %176 = vector.broadcast %175 : vector<9x1xf32> to vector<9x32xf32>
    %177 = arith.subf %171, %176 : vector<9x32xf32>
    %178 = arith.mulf %177, %177 : vector<9x32xf32>
    %cst_77 = arith.constant dense<0.000000e+00> : vector<9xf32>
    %179 = vector.multi_reduction <add>, %178, %cst_77 [1] : vector<9x32xf32> to vector<9xf32>
    %180 = vector.shape_cast %179 : vector<9xf32> to vector<9x1xf32>
    %cst_78 = arith.constant 3.200000e+01 : f32
    %181 = vector.broadcast %cst_78 : f32 to vector<9x1xf32>
    %182 = arith.divf %180, %181 : vector<9x1xf32>
    %183 = vector.broadcast %175 : vector<9x1xf32> to vector<9x32xf32>
    %184 = arith.subf %171, %183 : vector<9x32xf32>
    %cst_79 = arith.constant 9.99999974E-6 : f32
    %185 = vector.broadcast %cst_79 : f32 to vector<9x1xf32>
    %186 = arith.addf %182, %185 : vector<9x1xf32>
    %187 = math.rsqrt %186 : vector<9x1xf32>
    %188 = vector.broadcast %187 : vector<9x1xf32> to vector<9x32xf32>
    %189 = arith.mulf %184, %188 : vector<9x32xf32>
    %cst_80 = arith.constant dense<0.000000e+00> : vector<9x128xf32>
    %190 = tpu.matmul %189, %11, %cst_80 {dimension_numbers = #tpu.dot_dimension_numbers<[1], [0], [0], [1], [0, 0, 1, 1], [], []>} : vector<9x32xf32>, vector<32x128xf32>, vector<9x128xf32> -> vector<9x128xf32>
    %191 = vector.broadcast %13 : vector<1x128xf32> to vector<9x128xf32>
    %192 = arith.addf %190, %191 : vector<9x128xf32>
    %cst_81 = arith.constant 5.000000e-01 : f32
    %193 = vector.broadcast %cst_81 : f32 to vector<9x128xf32>
    %194 = arith.mulf %193, %192 : vector<9x128xf32>
    %cst_82 = arith.constant 0.707106769 : f32
    %195 = vector.broadcast %cst_82 : f32 to vector<9x128xf32>
    %196 = arith.mulf %192, %195 : vector<9x128xf32>
    %197 = math.erf %196 : vector<9x128xf32>
    %cst_83 = arith.constant 1.000000e+00 : f32
    %198 = vector.broadcast %cst_83 : f32 to vector<9x128xf32>
    %199 = arith.addf %198, %197 : vector<9x128xf32>
    %200 = arith.mulf %194, %199 : vector<9x128xf32>
    %cst_84 = arith.constant dense<0.000000e+00> : vector<9x32xf32>
    %201 = tpu.matmul %200, %15, %cst_84 {dimension_numbers = #tpu.dot_dimension_numbers<[1], [0], [0], [1], [0, 0, 1, 1], [], []>} : vector<9x128xf32>, vector<128x32xf32>, vector<9x32xf32> -> vector<9x32xf32>
    %202 = vector.broadcast %17 : vector<1x32xf32> to vector<9x32xf32>
    %203 = arith.addf %201, %202 : vector<9x32xf32>
    %204 = arith.addf %171, %203 : vector<9x32xf32>
    %c1 = arith.constant 1 : index
    %c0_85 = arith.constant 0 : index
    %c0_86 = arith.constant 0 : index
    %205 = vector.load %arg2[%c1, %c0_85, %c0_86] : memref<2x32x96xf32, #tpu.memory_space<vmem>>, vector<1x32x96xf32>
    %206 = vector.shape_cast %205 : vector<1x32x96xf32> to vector<32x96xf32>
    %c1_87 = arith.constant 1 : index
    %c0_88 = arith.constant 0 : index
    %c0_89 = arith.constant 0 : index
    %207 = vector.load %arg3[%c1_87, %c0_88, %c0_89] : memref<2x1x96xf32, #tpu.memory_space<vmem>>, vector<1x1x96xf32>
    %208 = vector.shape_cast %207 : vector<1x1x96xf32> to vector<1x96xf32>
    %c1_90 = arith.constant 1 : index
    %c0_91 = arith.constant 0 : index
    %c0_92 = arith.constant 0 : index
    %209 = vector.load %arg4[%c1_90, %c0_91, %c0_92] : memref<2x32x32xf32, #tpu.memory_space<vmem>>, vector<1x32x32xf32>
    %210 = vector.shape_cast %209 : vector<1x32x32xf32> to vector<32x32xf32>
    %c1_93 = arith.constant 1 : index
    %c0_94 = arith.constant 0 : index
    %c0_95 = arith.constant 0 : index
    %211 = vector.load %arg5[%c1_93, %c0_94, %c0_95] : memref<2x1x32xf32, #tpu.memory_space<vmem>>, vector<1x1x32xf32>
    %212 = vector.shape_cast %211 : vector<1x1x32xf32> to vector<1x32xf32>
    %c1_96 = arith.constant 1 : index
    %c0_97 = arith.constant 0 : index
    %c0_98 = arith.constant 0 : index
    %213 = vector.load %arg6[%c1_96, %c0_97, %c0_98] : memref<2x32x128xf32, #tpu.memory_space<vmem>>, vector<1x32x128xf32>
    %214 = vector.shape_cast %213 : vector<1x32x128xf32> to vector<32x128xf32>
    %c1_99 = arith.constant 1 : index
    %c0_100 = arith.constant 0 : index
    %c0_101 = arith.constant 0 : index
    %215 = vector.load %arg7[%c1_99, %c0_100, %c0_101] : memref<2x1x128xf32, #tpu.memory_space<vmem>>, vector<1x1x128xf32>
    %216 = vector.shape_cast %215 : vector<1x1x128xf32> to vector<1x128xf32>
    %c1_102 = arith.constant 1 : index
    %c0_103 = arith.constant 0 : index
    %c0_104 = arith.constant 0 : index
    %217 = vector.load %arg8[%c1_102, %c0_103, %c0_104] : memref<2x128x32xf32, #tpu.memory_space<vmem>>, vector<1x128x32xf32>
    %218 = vector.shape_cast %217 : vector<1x128x32xf32> to vector<128x32xf32>
    %c1_105 = arith.constant 1 : index
    %c0_106 = arith.constant 0 : index
    %c0_107 = arith.constant 0 : index
    %219 = vector.load %arg9[%c1_105, %c0_106, %c0_107] : memref<2x1x32xf32, #tpu.memory_space<vmem>>, vector<1x1x32xf32>
    %220 = vector.shape_cast %219 : vector<1x1x32xf32> to vector<1x32xf32>
    %cst_108 = arith.constant dense<0.000000e+00> : vector<9xf32>
    %221 = vector.multi_reduction <add>, %204, %cst_108 [1] : vector<9x32xf32> to vector<9xf32>
    %222 = vector.shape_cast %221 : vector<9xf32> to vector<9x1xf32>
    %cst_109 = arith.constant 3.200000e+01 : f32
    %223 = vector.broadcast %cst_109 : f32 to vector<9x1xf32>
    %224 = arith.divf %222, %223 : vector<9x1xf32>
    %225 = vector.broadcast %224 : vector<9x1xf32> to vector<9x32xf32>
    %226 = arith.subf %204, %225 : vector<9x32xf32>
    %227 = arith.mulf %226, %226 : vector<9x32xf32>
    %cst_110 = arith.constant dense<0.000000e+00> : vector<9xf32>
    %228 = vector.multi_reduction <add>, %227, %cst_110 [1] : vector<9x32xf32> to vector<9xf32>
    %229 = vector.shape_cast %228 : vector<9xf32> to vector<9x1xf32>
    %cst_111 = arith.constant 3.200000e+01 : f32
    %230 = vector.broadcast %cst_111 : f32 to vector<9x1xf32>
    %231 = arith.divf %229, %230 : vector<9x1xf32>
    %232 = vector.broadcast %224 : vector<9x1xf32> to vector<9x32xf32>
    %233 = arith.subf %204, %232 : vector<9x32xf32>
    %cst_112 = arith.constant 9.99999974E-6 : f32
    %234 = vector.broadcast %cst_112 : f32 to vector<9x1xf32>
    %235 = arith.addf %231, %234 : vector<9x1xf32>
    %236 = math.rsqrt %235 : vector<9x1xf32>
    %237 = vector.broadcast %236 : vector<9x1xf32> to vector<9x32xf32>
    %238 = arith.mulf %233, %237 : vector<9x32xf32>
    %cst_113 = arith.constant dense<0.000000e+00> : vector<9x96xf32>
    %239 = tpu.matmul %238, %206, %cst_113 {dimension_numbers = #tpu.dot_dimension_numbers<[1], [0], [0], [1], [0, 0, 1, 1], [], []>} : vector<9x32xf32>, vector<32x96xf32>, vector<9x96xf32> -> vector<9x96xf32>
    %240 = vector.broadcast %208 : vector<1x96xf32> to vector<9x96xf32>
    %241 = arith.addf %239, %240 : vector<9x96xf32>
    %242 = vector.extract_strided_slice %241 {offsets = [0, 0], sizes = [9, 4], strides = [1, 1]} : vector<9x96xf32> to vector<9x4xf32>
    %243 = vector.extract_strided_slice %241 {offsets = [0, 32], sizes = [9, 4], strides = [1, 1]} : vector<9x96xf32> to vector<9x4xf32>
    %244 = vector.extract_strided_slice %241 {offsets = [0, 64], sizes = [9, 4], strides = [1, 1]} : vector<9x96xf32> to vector<9x4xf32>
    %cst_114 = arith.constant dense<0.000000e+00> : vector<9x9xf32>
    %245 = tpu.matmul %242, %243, %cst_114 {dimension_numbers = #tpu.dot_dimension_numbers<[1], [1], [0], [0], [0, 0, 1, 0], [], []>} : vector<9x4xf32>, vector<9x4xf32>, vector<9x9xf32> -> vector<9x9xf32>
    %cst_115 = arith.constant dense<0xFF800000> : vector<9xf32>
    %246 = vector.multi_reduction <maximumf>, %245, %cst_115 [1] : vector<9x9xf32> to vector<9xf32>
    %247 = vector.shape_cast %246 : vector<9xf32> to vector<9x1xf32>
    %248 = vector.broadcast %247 : vector<9x1xf32> to vector<9x9xf32>
    %249 = arith.subf %245, %248 : vector<9x9xf32>
    %250 = math.exp %249 : vector<9x9xf32>
    %cst_116 = arith.constant dense<0.000000e+00> : vector<9xf32>
    %251 = vector.multi_reduction <add>, %250, %cst_116 [1] : vector<9x9xf32> to vector<9xf32>
    %252 = vector.shape_cast %251 : vector<9xf32> to vector<9x1xf32>
    %253 = tpu.reciprocal %252 {approx = true} : vector<9x1xf32> -> vector<9x1xf32>
    %254 = vector.broadcast %253 : vector<9x1xf32> to vector<9x9xf32>
    %255 = arith.mulf %250, %254 : vector<9x9xf32>
    %cst_117 = arith.constant dense<0.000000e+00> : vector<9x4xf32>
    %256 = tpu.matmul %255, %244, %cst_117 {dimension_numbers = #tpu.dot_dimension_numbers<[1], [0], [0], [1], [0, 0, 1, 1], [], []>} : vector<9x9xf32>, vector<9x4xf32>, vector<9x4xf32> -> vector<9x4xf32>
    %c0_118 = arith.constant 0 : index
    %c0_119 = arith.constant 0 : index
    %257 = vector.load %arg14[%c0_118, %c0_119] : memref<9x32xf32, #tpu.memory_space<vmem>>, vector<9x4xf32>
    tpu.vector_store %arg14[%c0_118, %c0_119], %256 {strides = array<i32>} : memref<9x32xf32, #tpu.memory_space<vmem>>, vector<9x4xf32>,
    %258 = vector.extract_strided_slice %241 {offsets = [0, 4], sizes = [9, 4], strides = [1, 1]} : vector<9x96xf32> to vector<9x4xf32>
    %259 = vector.extract_strided_slice %241 {offsets = [0, 36], sizes = [9, 4], strides = [1, 1]} : vector<9x96xf32> to vector<9x4xf32>
    %260 = vector.extract_strided_slice %241 {offsets = [0, 68], sizes = [9, 4], strides = [1, 1]} : vector<9x96xf32> to vector<9x4xf32>
    %cst_120 = arith.constant dense<0.000000e+00> : vector<9x9xf32>
    %261 = tpu.matmul %258, %259, %cst_120 {dimension_numbers = #tpu.dot_dimension_numbers<[1], [1], [0], [0], [0, 0, 1, 0], [], []>} : vector<9x4xf32>, vector<9x4xf32>, vector<9x9xf32> -> vector<9x9xf32>
    %cst_121 = arith.constant dense<0xFF800000> : vector<9xf32>
    %262 = vector.multi_reduction <maximumf>, %261, %cst_121 [1] : vector<9x9xf32> to vector<9xf32>
    %263 = vector.shape_cast %262 : vector<9xf32> to vector<9x1xf32>
    %264 = vector.broadcast %263 : vector<9x1xf32> to vector<9x9xf32>
    %265 = arith.subf %261, %264 : vector<9x9xf32>
    %266 = math.exp %265 : vector<9x9xf32>
    %cst_122 = arith.constant dense<0.000000e+00> : vector<9xf32>
    %267 = vector.multi_reduction <add>, %266, %cst_122 [1] : vector<9x9xf32> to vector<9xf32>
    %268 = vector.shape_cast %267 : vector<9xf32> to vector<9x1xf32>
    %269 = tpu.reciprocal %268 {approx = true} : vector<9x1xf32> -> vector<9x1xf32>
    %270 = vector.broadcast %269 : vector<9x1xf32> to vector<9x9xf32>
    %271 = arith.mulf %266, %270 : vector<9x9xf32>
    %cst_123 = arith.constant dense<0.000000e+00> : vector<9x4xf32>
    %272 = tpu.matmul %271, %260, %cst_123 {dimension_numbers = #tpu.dot_dimension_numbers<[1], [0], [0], [1], [0, 0, 1, 1], [], []>} : vector<9x9xf32>, vector<9x4xf32>, vector<9x4xf32> -> vector<9x4xf32>
    %c0_124 = arith.constant 0 : index
    %c4_125 = arith.constant 4 : index
    %273 = vector.load %arg14[%c0_124, %c4_125] : memref<9x32xf32, #tpu.memory_space<vmem>>, vector<9x4xf32>
    tpu.vector_store %arg14[%c0_124, %c4_125], %272 {strides = array<i32>} : memref<9x32xf32, #tpu.memory_space<vmem>>, vector<9x4xf32>,
    %274 = vector.extract_strided_slice %241 {offsets = [0, 8], sizes = [9, 4], strides = [1, 1]} : vector<9x96xf32> to vector<9x4xf32>
    %275 = vector.extract_strided_slice %241 {offsets = [0, 40], sizes = [9, 4], strides = [1, 1]} : vector<9x96xf32> to vector<9x4xf32>
    %276 = vector.extract_strided_slice %241 {offsets = [0, 72], sizes = [9, 4], strides = [1, 1]} : vector<9x96xf32> to vector<9x4xf32>
    %cst_126 = arith.constant dense<0.000000e+00> : vector<9x9xf32>
    %277 = tpu.matmul %274, %275, %cst_126 {dimension_numbers = #tpu.dot_dimension_numbers<[1], [1], [0], [0], [0, 0, 1, 0], [], []>} : vector<9x4xf32>, vector<9x4xf32>, vector<9x9xf32> -> vector<9x9xf32>
    %cst_127 = arith.constant dense<0xFF800000> : vector<9xf32>
    %278 = vector.multi_reduction <maximumf>, %277, %cst_127 [1] : vector<9x9xf32> to vector<9xf32>
    %279 = vector.shape_cast %278 : vector<9xf32> to vector<9x1xf32>
    %280 = vector.broadcast %279 : vector<9x1xf32> to vector<9x9xf32>
    %281 = arith.subf %277, %280 : vector<9x9xf32>
    %282 = math.exp %281 : vector<9x9xf32>
    %cst_128 = arith.constant dense<0.000000e+00> : vector<9xf32>
    %283 = vector.multi_reduction <add>, %282, %cst_128 [1] : vector<9x9xf32> to vector<9xf32>
    %284 = vector.shape_cast %283 : vector<9xf32> to vector<9x1xf32>
    %285 = tpu.reciprocal %284 {approx = true} : vector<9x1xf32> -> vector<9x1xf32>
    %286 = vector.broadcast %285 : vector<9x1xf32> to vector<9x9xf32>
    %287 = arith.mulf %282, %286 : vector<9x9xf32>
    %cst_129 = arith.constant dense<0.000000e+00> : vector<9x4xf32>
    %288 = tpu.matmul %287, %276, %cst_129 {dimension_numbers = #tpu.dot_dimension_numbers<[1], [0], [0], [1], [0, 0, 1, 1], [], []>} : vector<9x9xf32>, vector<9x4xf32>, vector<9x4xf32> -> vector<9x4xf32>
    %c0_130 = arith.constant 0 : index
    %c8_131 = arith.constant 8 : index
    %289 = vector.load %arg14[%c0_130, %c8_131] : memref<9x32xf32, #tpu.memory_space<vmem>>, vector<9x4xf32>
    tpu.vector_store %arg14[%c0_130, %c8_131], %288 {strides = array<i32>} : memref<9x32xf32, #tpu.memory_space<vmem>>, vector<9x4xf32>,
    %290 = vector.extract_strided_slice %241 {offsets = [0, 12], sizes = [9, 4], strides = [1, 1]} : vector<9x96xf32> to vector<9x4xf32>
    %291 = vector.extract_strided_slice %241 {offsets = [0, 44], sizes = [9, 4], strides = [1, 1]} : vector<9x96xf32> to vector<9x4xf32>
    %292 = vector.extract_strided_slice %241 {offsets = [0, 76], sizes = [9, 4], strides = [1, 1]} : vector<9x96xf32> to vector<9x4xf32>
    %cst_132 = arith.constant dense<0.000000e+00> : vector<9x9xf32>
    %293 = tpu.matmul %290, %291, %cst_132 {dimension_numbers = #tpu.dot_dimension_numbers<[1], [1], [0], [0], [0, 0, 1, 0], [], []>} : vector<9x4xf32>, vector<9x4xf32>, vector<9x9xf32> -> vector<9x9xf32>
    %cst_133 = arith.constant dense<0xFF800000> : vector<9xf32>
    %294 = vector.multi_reduction <maximumf>, %293, %cst_133 [1] : vector<9x9xf32> to vector<9xf32>
    %295 = vector.shape_cast %294 : vector<9xf32> to vector<9x1xf32>
    %296 = vector.broadcast %295 : vector<9x1xf32> to vector<9x9xf32>
    %297 = arith.subf %293, %296 : vector<9x9xf32>
    %298 = math.exp %297 : vector<9x9xf32>
    %cst_134 = arith.constant dense<0.000000e+00> : vector<9xf32>
    %299 = vector.multi_reduction <add>, %298, %cst_134 [1] : vector<9x9xf32> to vector<9xf32>
    %300 = vector.shape_cast %299 : vector<9xf32> to vector<9x1xf32>
    %301 = tpu.reciprocal %300 {approx = true} : vector<9x1xf32> -> vector<9x1xf32>
    %302 = vector.broadcast %301 : vector<9x1xf32> to vector<9x9xf32>
    %303 = arith.mulf %298, %302 : vector<9x9xf32>
    %cst_135 = arith.constant dense<0.000000e+00> : vector<9x4xf32>
    %304 = tpu.matmul %303, %292, %cst_135 {dimension_numbers = #tpu.dot_dimension_numbers<[1], [0], [0], [1], [0, 0, 1, 1], [], []>} : vector<9x9xf32>, vector<9x4xf32>, vector<9x4xf32> -> vector<9x4xf32>
    %c0_136 = arith.constant 0 : index
    %c12_137 = arith.constant 12 : index
    %305 = vector.load %arg14[%c0_136, %c12_137] : memref<9x32xf32, #tpu.memory_space<vmem>>, vector<9x4xf32>
    tpu.vector_store %arg14[%c0_136, %c12_137], %304 {strides = array<i32>} : memref<9x32xf32, #tpu.memory_space<vmem>>, vector<9x4xf32>,
    %306 = vector.extract_strided_slice %241 {offsets = [0, 16], sizes = [9, 4], strides = [1, 1]} : vector<9x96xf32> to vector<9x4xf32>
    %307 = vector.extract_strided_slice %241 {offsets = [0, 48], sizes = [9, 4], strides = [1, 1]} : vector<9x96xf32> to vector<9x4xf32>
    %308 = vector.extract_strided_slice %241 {offsets = [0, 80], sizes = [9, 4], strides = [1, 1]} : vector<9x96xf32> to vector<9x4xf32>
    %cst_138 = arith.constant dense<0.000000e+00> : vector<9x9xf32>
    %309 = tpu.matmul %306, %307, %cst_138 {dimension_numbers = #tpu.dot_dimension_numbers<[1], [1], [0], [0], [0, 0, 1, 0], [], []>} : vector<9x4xf32>, vector<9x4xf32>, vector<9x9xf32> -> vector<9x9xf32>
    %cst_139 = arith.constant dense<0xFF800000> : vector<9xf32>
    %310 = vector.multi_reduction <maximumf>, %309, %cst_139 [1] : vector<9x9xf32> to vector<9xf32>
    %311 = vector.shape_cast %310 : vector<9xf32> to vector<9x1xf32>
    %312 = vector.broadcast %311 : vector<9x1xf32> to vector<9x9xf32>
    %313 = arith.subf %309, %312 : vector<9x9xf32>
    %314 = math.exp %313 : vector<9x9xf32>
    %cst_140 = arith.constant dense<0.000000e+00> : vector<9xf32>
    %315 = vector.multi_reduction <add>, %314, %cst_140 [1] : vector<9x9xf32> to vector<9xf32>
    %316 = vector.shape_cast %315 : vector<9xf32> to vector<9x1xf32>
    %317 = tpu.reciprocal %316 {approx = true} : vector<9x1xf32> -> vector<9x1xf32>
    %318 = vector.broadcast %317 : vector<9x1xf32> to vector<9x9xf32>
    %319 = arith.mulf %314, %318 : vector<9x9xf32>
    %cst_141 = arith.constant dense<0.000000e+00> : vector<9x4xf32>
    %320 = tpu.matmul %319, %308, %cst_141 {dimension_numbers = #tpu.dot_dimension_numbers<[1], [0], [0], [1], [0, 0, 1, 1], [], []>} : vector<9x9xf32>, vector<9x4xf32>, vector<9x4xf32> -> vector<9x4xf32>
    %c0_142 = arith.constant 0 : index
    %c16_143 = arith.constant 16 : index
    %321 = vector.load %arg14[%c0_142, %c16_143] : memref<9x32xf32, #tpu.memory_space<vmem>>, vector<9x4xf32>
    tpu.vector_store %arg14[%c0_142, %c16_143], %320 {strides = array<i32>} : memref<9x32xf32, #tpu.memory_space<vmem>>, vector<9x4xf32>,
    %322 = vector.extract_strided_slice %241 {offsets = [0, 20], sizes = [9, 4], strides = [1, 1]} : vector<9x96xf32> to vector<9x4xf32>
    %323 = vector.extract_strided_slice %241 {offsets = [0, 52], sizes = [9, 4], strides = [1, 1]} : vector<9x96xf32> to vector<9x4xf32>
    %324 = vector.extract_strided_slice %241 {offsets = [0, 84], sizes = [9, 4], strides = [1, 1]} : vector<9x96xf32> to vector<9x4xf32>
    %cst_144 = arith.constant dense<0.000000e+00> : vector<9x9xf32>
    %325 = tpu.matmul %322, %323, %cst_144 {dimension_numbers = #tpu.dot_dimension_numbers<[1], [1], [0], [0], [0, 0, 1, 0], [], []>} : vector<9x4xf32>, vector<9x4xf32>, vector<9x9xf32> -> vector<9x9xf32>
    %cst_145 = arith.constant dense<0xFF800000> : vector<9xf32>
    %326 = vector.multi_reduction <maximumf>, %325, %cst_145 [1] : vector<9x9xf32> to vector<9xf32>
    %327 = vector.shape_cast %326 : vector<9xf32> to vector<9x1xf32>
    %328 = vector.broadcast %327 : vector<9x1xf32> to vector<9x9xf32>
    %329 = arith.subf %325, %328 : vector<9x9xf32>
    %330 = math.exp %329 : vector<9x9xf32>
    %cst_146 = arith.constant dense<0.000000e+00> : vector<9xf32>
    %331 = vector.multi_reduction <add>, %330, %cst_146 [1] : vector<9x9xf32> to vector<9xf32>
    %332 = vector.shape_cast %331 : vector<9xf32> to vector<9x1xf32>
    %333 = tpu.reciprocal %332 {approx = true} : vector<9x1xf32> -> vector<9x1xf32>
    %334 = vector.broadcast %333 : vector<9x1xf32> to vector<9x9xf32>
    %335 = arith.mulf %330, %334 : vector<9x9xf32>
    %cst_147 = arith.constant dense<0.000000e+00> : vector<9x4xf32>
    %336 = tpu.matmul %335, %324, %cst_147 {dimension_numbers = #tpu.dot_dimension_numbers<[1], [0], [0], [1], [0, 0, 1, 1], [], []>} : vector<9x9xf32>, vector<9x4xf32>, vector<9x4xf32> -> vector<9x4xf32>
    %c0_148 = arith.constant 0 : index
    %c20_149 = arith.constant 20 : index
    %337 = vector.load %arg14[%c0_148, %c20_149] : memref<9x32xf32, #tpu.memory_space<vmem>>, vector<9x4xf32>
    tpu.vector_store %arg14[%c0_148, %c20_149], %336 {strides = array<i32>} : memref<9x32xf32, #tpu.memory_space<vmem>>, vector<9x4xf32>,
    %338 = vector.extract_strided_slice %241 {offsets = [0, 24], sizes = [9, 4], strides = [1, 1]} : vector<9x96xf32> to vector<9x4xf32>
    %339 = vector.extract_strided_slice %241 {offsets = [0, 56], sizes = [9, 4], strides = [1, 1]} : vector<9x96xf32> to vector<9x4xf32>
    %340 = vector.extract_strided_slice %241 {offsets = [0, 88], sizes = [9, 4], strides = [1, 1]} : vector<9x96xf32> to vector<9x4xf32>
    %cst_150 = arith.constant dense<0.000000e+00> : vector<9x9xf32>
    %341 = tpu.matmul %338, %339, %cst_150 {dimension_numbers = #tpu.dot_dimension_numbers<[1], [1], [0], [0], [0, 0, 1, 0], [], []>} : vector<9x4xf32>, vector<9x4xf32>, vector<9x9xf32> -> vector<9x9xf32>
    %cst_151 = arith.constant dense<0xFF800000> : vector<9xf32>
    %342 = vector.multi_reduction <maximumf>, %341, %cst_151 [1] : vector<9x9xf32> to vector<9xf32>
    %343 = vector.shape_cast %342 : vector<9xf32> to vector<9x1xf32>
    %344 = vector.broadcast %343 : vector<9x1xf32> to vector<9x9xf32>
    %345 = arith.subf %341, %344 : vector<9x9xf32>
    %346 = math.exp %345 : vector<9x9xf32>
    %cst_152 = arith.constant dense<0.000000e+00> : vector<9xf32>
    %347 = vector.multi_reduction <add>, %346, %cst_152 [1] : vector<9x9xf32> to vector<9xf32>
    %348 = vector.shape_cast %347 : vector<9xf32> to vector<9x1xf32>
    %349 = tpu.reciprocal %348 {approx = true} : vector<9x1xf32> -> vector<9x1xf32>
    %350 = vector.broadcast %349 : vector<9x1xf32> to vector<9x9xf32>
    %351 = arith.mulf %346, %350 : vector<9x9xf32>
    %cst_153 = arith.constant dense<0.000000e+00> : vector<9x4xf32>
    %352 = tpu.matmul %351, %340, %cst_153 {dimension_numbers = #tpu.dot_dimension_numbers<[1], [0], [0], [1], [0, 0, 1, 1], [], []>} : vector<9x9xf32>, vector<9x4xf32>, vector<9x4xf32> -> vector<9x4xf32>
    %c0_154 = arith.constant 0 : index
    %c24_155 = arith.constant 24 : index
    %353 = vector.load %arg14[%c0_154, %c24_155] : memref<9x32xf32, #tpu.memory_space<vmem>>, vector<9x4xf32>
    tpu.vector_store %arg14[%c0_154, %c24_155], %352 {strides = array<i32>} : memref<9x32xf32, #tpu.memory_space<vmem>>, vector<9x4xf32>,
    %354 = vector.extract_strided_slice %241 {offsets = [0, 28], sizes = [9, 4], strides = [1, 1]} : vector<9x96xf32> to vector<9x4xf32>
    %355 = vector.extract_strided_slice %241 {offsets = [0, 60], sizes = [9, 4], strides = [1, 1]} : vector<9x96xf32> to vector<9x4xf32>
    %356 = vector.extract_strided_slice %241 {offsets = [0, 92], sizes = [9, 4], strides = [1, 1]} : vector<9x96xf32> to vector<9x4xf32>
    %cst_156 = arith.constant dense<0.000000e+00> : vector<9x9xf32>
    %357 = tpu.matmul %354, %355, %cst_156 {dimension_numbers = #tpu.dot_dimension_numbers<[1], [1], [0], [0], [0, 0, 1, 0], [], []>} : vector<9x4xf32>, vector<9x4xf32>, vector<9x9xf32> -> vector<9x9xf32>
    %cst_157 = arith.constant dense<0xFF800000> : vector<9xf32>
    %358 = vector.multi_reduction <maximumf>, %357, %cst_157 [1] : vector<9x9xf32> to vector<9xf32>
    %359 = vector.shape_cast %358 : vector<9xf32> to vector<9x1xf32>
    %360 = vector.broadcast %359 : vector<9x1xf32> to vector<9x9xf32>
    %361 = arith.subf %357, %360 : vector<9x9xf32>
    %362 = math.exp %361 : vector<9x9xf32>
    %cst_158 = arith.constant dense<0.000000e+00> : vector<9xf32>
    %363 = vector.multi_reduction <add>, %362, %cst_158 [1] : vector<9x9xf32> to vector<9xf32>
    %364 = vector.shape_cast %363 : vector<9xf32> to vector<9x1xf32>
    %365 = tpu.reciprocal %364 {approx = true} : vector<9x1xf32> -> vector<9x1xf32>
    %366 = vector.broadcast %365 : vector<9x1xf32> to vector<9x9xf32>
    %367 = arith.mulf %362, %366 : vector<9x9xf32>
    %cst_159 = arith.constant dense<0.000000e+00> : vector<9x4xf32>
    %368 = tpu.matmul %367, %356, %cst_159 {dimension_numbers = #tpu.dot_dimension_numbers<[1], [0], [0], [1], [0, 0, 1, 1], [], []>} : vector<9x9xf32>, vector<9x4xf32>, vector<9x4xf32> -> vector<9x4xf32>
    %c0_160 = arith.constant 0 : index
    %c28_161 = arith.constant 28 : index
    %369 = vector.load %arg14[%c0_160, %c28_161] : memref<9x32xf32, #tpu.memory_space<vmem>>, vector<9x4xf32>
    tpu.vector_store %arg14[%c0_160, %c28_161], %368 {strides = array<i32>} : memref<9x32xf32, #tpu.memory_space<vmem>>, vector<9x4xf32>,
    %c0_162 = arith.constant 0 : index
    %c0_163 = arith.constant 0 : index
    %370 = vector.load %arg14[%c0_162, %c0_163] : memref<9x32xf32, #tpu.memory_space<vmem>>, vector<9x32xf32>
    %cst_164 = arith.constant dense<0.000000e+00> : vector<9x32xf32>
    %371 = tpu.matmul %370, %210, %cst_164 {dimension_numbers = #tpu.dot_dimension_numbers<[1], [0], [0], [1], [0, 0, 1, 1], [], []>} : vector<9x32xf32>, vector<32x32xf32>, vector<9x32xf32> -> vector<9x32xf32>
    %372 = arith.addf %204, %371 : vector<9x32xf32>
    %373 = vector.broadcast %212 : vector<1x32xf32> to vector<9x32xf32>
    %374 = arith.addf %372, %373 : vector<9x32xf32>
    %cst_165 = arith.constant dense<0.000000e+00> : vector<9xf32>
    %375 = vector.multi_reduction <add>, %374, %cst_165 [1] : vector<9x32xf32> to vector<9xf32>
    %376 = vector.shape_cast %375 : vector<9xf32> to vector<9x1xf32>
    %cst_166 = arith.constant 3.200000e+01 : f32
    %377 = vector.broadcast %cst_166 : f32 to vector<9x1xf32>
    %378 = arith.divf %376, %377 : vector<9x1xf32>
    %379 = vector.broadcast %378 : vector<9x1xf32> to vector<9x32xf32>
    %380 = arith.subf %374, %379 : vector<9x32xf32>
    %381 = arith.mulf %380, %380 : vector<9x32xf32>
    %cst_167 = arith.constant dense<0.000000e+00> : vector<9xf32>
    %382 = vector.multi_reduction <add>, %381, %cst_167 [1] : vector<9x32xf32> to vector<9xf32>
    %383 = vector.shape_cast %382 : vector<9xf32> to vector<9x1xf32>
    %cst_168 = arith.constant 3.200000e+01 : f32
    %384 = vector.broadcast %cst_168 : f32 to vector<9x1xf32>
    %385 = arith.divf %383, %384 : vector<9x1xf32>
    %386 = vector.broadcast %378 : vector<9x1xf32> to vector<9x32xf32>
    %387 = arith.subf %374, %386 : vector<9x32xf32>
    %cst_169 = arith.constant 9.99999974E-6 : f32
    %388 = vector.broadcast %cst_169 : f32 to vector<9x1xf32>
    %389 = arith.addf %385, %388 : vector<9x1xf32>
    %390 = math.rsqrt %389 : vector<9x1xf32>
    %391 = vector.broadcast %390 : vector<9x1xf32> to vector<9x32xf32>
    %392 = arith.mulf %387, %391 : vector<9x32xf32>
    %cst_170 = arith.constant dense<0.000000e+00> : vector<9x128xf32>
    %393 = tpu.matmul %392, %214, %cst_170 {dimension_numbers = #tpu.dot_dimension_numbers<[1], [0], [0], [1], [0, 0, 1, 1], [], []>} : vector<9x32xf32>, vector<32x128xf32>, vector<9x128xf32> -> vector<9x128xf32>
    %394 = vector.broadcast %216 : vector<1x128xf32> to vector<9x128xf32>
    %395 = arith.addf %393, %394 : vector<9x128xf32>
    %cst_171 = arith.constant 5.000000e-01 : f32
    %396 = vector.broadcast %cst_171 : f32 to vector<9x128xf32>
    %397 = arith.mulf %396, %395 : vector<9x128xf32>
    %cst_172 = arith.constant 0.707106769 : f32
    %398 = vector.broadcast %cst_172 : f32 to vector<9x128xf32>
    %399 = arith.mulf %395, %398 : vector<9x128xf32>
    %400 = math.erf %399 : vector<9x128xf32>
    %cst_173 = arith.constant 1.000000e+00 : f32
    %401 = vector.broadcast %cst_173 : f32 to vector<9x128xf32>
    %402 = arith.addf %401, %400 : vector<9x128xf32>
    %403 = arith.mulf %397, %402 : vector<9x128xf32>
    %cst_174 = arith.constant dense<0.000000e+00> : vector<9x32xf32>
    %404 = tpu.matmul %403, %218, %cst_174 {dimension_numbers = #tpu.dot_dimension_numbers<[1], [0], [0], [1], [0, 0, 1, 1], [], []>} : vector<9x128xf32>, vector<128x32xf32>, vector<9x32xf32> -> vector<9x32xf32>
    %405 = vector.broadcast %220 : vector<1x32xf32> to vector<9x32xf32>
    %406 = arith.addf %404, %405 : vector<9x32xf32>
    %407 = arith.addf %374, %406 : vector<9x32xf32>
    %c0_175 = arith.constant 0 : index
    %c0_176 = arith.constant 0 : index
    %c0_177 = arith.constant 0 : index
    %408 = vector.load %arg12[%c0_175, %c0_176, %c0_177] : memref<1x9x32xf32, #tpu.memory_space<vmem>>, vector<1x9x32xf32>
    %409 = vector.shape_cast %408 : vector<1x9x32xf32> to vector<9x32xf32>
    %410 = vector.shape_cast %407 : vector<9x32xf32> to vector<1x9x32xf32>
    tpu.vector_store %arg12[%c0_175, %c0_176, %c0_177], %410 {strides = array<i32>} : memref<1x9x32xf32, #tpu.memory_space<vmem>>, vector<1x9x32xf32>,
    %cst_178 = arith.constant dense<0.000000e+00> : vector<9xf32>
    %411 = vector.multi_reduction <add>, %407, %cst_178 [1] : vector<9x32xf32> to vector<9xf32>
    %412 = vector.shape_cast %411 : vector<9xf32> to vector<9x1xf32>
    %cst_179 = arith.constant 3.200000e+01 : f32
    %413 = vector.broadcast %cst_179 : f32 to vector<9x1xf32>
    %414 = arith.divf %412, %413 : vector<9x1xf32>
    %415 = vector.broadcast %414 : vector<9x1xf32> to vector<9x32xf32>
    %416 = arith.subf %407, %415 : vector<9x32xf32>
    %417 = arith.mulf %416, %416 : vector<9x32xf32>
    %cst_180 = arith.constant dense<0.000000e+00> : vector<9xf32>
    %418 = vector.multi_reduction <add>, %417, %cst_180 [1] : vector<9x32xf32> to vector<9xf32>
    %419 = vector.shape_cast %418 : vector<9xf32> to vector<9x1xf32>
    %cst_181 = arith.constant 3.200000e+01 : f32
    %420 = vector.broadcast %cst_181 : f32 to vector<9x1xf32>
    %421 = arith.divf %419, %420 : vector<9x1xf32>
    %422 = vector.broadcast %414 : vector<9x1xf32> to vector<9x32xf32>
    %423 = arith.subf %407, %422 : vector<9x32xf32>
    %cst_182 = arith.constant 9.99999974E-6 : f32
    %424 = vector.broadcast %cst_182 : f32 to vector<9x1xf32>
    %425 = arith.addf %421, %424 : vector<9x1xf32>
    %426 = math.rsqrt %425 : vector<9x1xf32>
    %427 = vector.broadcast %426 : vector<9x1xf32> to vector<9x32xf32>
    %428 = arith.mulf %423, %427 : vector<9x32xf32>
    %c0_183 = arith.constant 0 : index
    %c0_184 = arith.constant 0 : index
    %429 = vector.load %arg10[%c0_183, %c0_184] : memref<32x32xf32, #tpu.memory_space<vmem>>, vector<32x32xf32>
    %cst_185 = arith.constant dense<0.000000e+00> : vector<9x32xf32>
    %430 = tpu.matmul %428, %429, %cst_185 {dimension_numbers = #tpu.dot_dimension_numbers<[1], [0], [0], [1], [0, 0, 1, 1], [], []>} : vector<9x32xf32>, vector<32x32xf32>, vector<9x32xf32> -> vector<9x32xf32>
    %c0_186 = arith.constant 0 : index
    %c0_187 = arith.constant 0 : index
    %431 = vector.load %arg11[%c0_186, %c0_187] : memref<1x32xf32, #tpu.memory_space<vmem>>, vector<1x32xf32>
    %432 = vector.broadcast %431 : vector<1x32xf32> to vector<9x32xf32>
    %433 = arith.addf %430, %432 : vector<9x32xf32>
    %c0_188 = arith.constant 0 : index
    %c0_189 = arith.constant 0 : index
    %c0_190 = arith.constant 0 : index
    %434 = vector.load %arg13[%c0_188, %c0_189, %c0_190] : memref<1x9x32xf32, #tpu.memory_space<vmem>>, vector<1x9x32xf32>
    %435 = vector.shape_cast %434 : vector<1x9x32xf32> to vector<9x32xf32>
    %436 = vector.shape_cast %433 : vector<9x32xf32> to vector<1x9x32xf32>
    tpu.vector_store %arg13[%c0_188, %c0_189, %c0_190], %436 {strides = array<i32>} : memref<1x9x32xf32, #tpu.memory_space<vmem>>, vector<1x9x32xf32>,
    return
  }
  func.func @transform_0(%arg0: i32) -> (i32, i32, i32) {
    %c0_i32 = arith.constant 0 : i32
    %c0_i32_0 = arith.constant 0 : i32
    %c0_i32_1 = arith.constant 0 : i32
    return %arg0, %c0_i32, %c0_i32_0 : i32, i32, i32
  }
  func.func @transform_1(%arg0: i32) -> (i32, i32, i32) {
    %c0_i32 = arith.constant 0 : i32
    %c0_i32_0 = arith.constant 0 : i32
    %c0_i32_1 = arith.constant 0 : i32
    %c0_i32_2 = arith.constant 0 : i32
    return %c0_i32, %c0_i32_0, %c0_i32_1 : i32, i32, i32
  }
  func.func @transform_2(%arg0: i32) -> (i32, i32, i32) {
    %c0_i32 = arith.constant 0 : i32
    %c0_i32_0 = arith.constant 0 : i32
    %c0_i32_1 = arith.constant 0 : i32
    %c0_i32_2 = arith.constant 0 : i32
    return %c0_i32, %c0_i32_0, %c0_i32_1 : i32, i32, i32
  }
  func.func @transform_3(%arg0: i32) -> (i32, i32, i32) {
    %c0_i32 = arith.constant 0 : i32
    %c0_i32_0 = arith.constant 0 : i32
    %c0_i32_1 = arith.constant 0 : i32
    %c0_i32_2 = arith.constant 0 : i32
    return %c0_i32, %c0_i32_0, %c0_i32_1 : i32, i32, i32
  }
  func.func @transform_4(%arg0: i32) -> (i32, i32, i32) {
    %c0_i32 = arith.constant 0 : i32
    %c0_i32_0 = arith.constant 0 : i32
    %c0_i32_1 = arith.constant 0 : i32
    %c0_i32_2 = arith.constant 0 : i32
    return %c0_i32, %c0_i32_0, %c0_i32_1 : i32, i32, i32
  }
  func.func @transform_5(%arg0: i32) -> (i32, i32, i32) {
    %c0_i32 = arith.constant 0 : i32
    %c0_i32_0 = arith.constant 0 : i32
    %c0_i32_1 = arith.constant 0 : i32
    %c0_i32_2 = arith.constant 0 : i32
    return %c0_i32, %c0_i32_0, %c0_i32_1 : i32, i32, i32
  }
  func.func @transform_6(%arg0: i32) -> (i32, i32, i32) {
    %c0_i32 = arith.constant 0 : i32
    %c0_i32_0 = arith.constant 0 : i32
    %c0_i32_1 = arith.constant 0 : i32
    %c0_i32_2 = arith.constant 0 : i32
    return %c0_i32, %c0_i32_0, %c0_i32_1 : i32, i32, i32
  }
  func.func @transform_7(%arg0: i32) -> (i32, i32, i32) {
    %c0_i32 = arith.constant 0 : i32
    %c0_i32_0 = arith.constant 0 : i32
    %c0_i32_1 = arith.constant 0 : i32
    %c0_i32_2 = arith.constant 0 : i32
    return %c0_i32, %c0_i32_0, %c0_i32_1 : i32, i32, i32
  }
  func.func @transform_8(%arg0: i32) -> (i32, i32, i32) {
    %c0_i32 = arith.constant 0 : i32
    %c0_i32_0 = arith.constant 0 : i32
    %c0_i32_1 = arith.constant 0 : i32
    %c0_i32_2 = arith.constant 0 : i32
    return %c0_i32, %c0_i32_0, %c0_i32_1 : i32, i32, i32
  }
  func.func @transform_9(%arg0: i32) -> (i32, i32) {
    %c0_i32 = arith.constant 0 : i32
    %c0_i32_0 = arith.constant 0 : i32
    %c0_i32_1 = arith.constant 0 : i32
    return %c0_i32, %c0_i32_0 : i32, i32
  }
  func.func @transform_10(%arg0: i32) -> (i32, i32) {
    %c0_i32 = arith.constant 0 : i32
    %c0_i32_0 = arith.constant 0 : i32
    %c0_i32_1 = arith.constant 0 : i32
    return %c0_i32, %c0_i32_0 : i32, i32
  }
  func.func @transform_11(%arg0: i32) -> (i32, i32, i32) {
    %c0_i32 = arith.constant 0 : i32
    %c0_i32_0 = arith.constant 0 : i32
    %c0_i32_1 = arith.constant 0 : i32
    return %arg0, %c0_i32, %c0_i32_0 : i32, i32, i32
  }
  func.func @transform_12(%arg0: i32) -> (i32, i32, i32) {
    %c0_i32 = arith.constant 0 : i32
    %c0_i32_0 = arith.constant 0 : i32
    %c0_i32_1 = arith.constant 0 : i32
    return %arg0, %c0_i32, %c0_i32_0 : i32, i32, i32
  }
}

module attributes {stable_mosaic.version = 11 : i64} {
  func.func @_stack_kernel(%arg0: i32, %arg1: memref<1x9x32xf32, #tpu.memory_space<vmem>>, %arg2: memref<1x32x96xf32, #tpu.memory_space<vmem>>, %arg3: memref<1x1x96xf32, #tpu.memory_space<vmem>>, %arg4: memref<1x32x32xf32, #tpu.memory_space<vmem>>, %arg5: memref<1x1x32xf32, #tpu.memory_space<vmem>>, %arg6: memref<1x32x128xf32, #tpu.memory_space<vmem>>, %arg7: memref<1x1x128xf32, #tpu.memory_space<vmem>>, %arg8: memref<1x128x32xf32, #tpu.memory_space<vmem>>, %arg9: memref<1x1x32xf32, #tpu.memory_space<vmem>>, %arg10: memref<32x48xf32, #tpu.memory_space<vmem>>, %arg11: memref<1x48xf32, #tpu.memory_space<vmem>>, %arg12: memref<1x9x32xf32, #tpu.memory_space<vmem>>, %arg13: memref<1x9x48xf32, #tpu.memory_space<vmem>>, %arg14: memref<9x32xf32, #tpu.memory_space<vmem>>) attributes {dimension_semantics = [#tpu.dimension_semantics<parallel>], iteration_bounds = array<i64: 2>, scalar_prefetch = 0 : i64, scratch_operands = 1 : i64, tpu.core_type = #tpu.core_type<tc>, window_params = [{transform_indices = @transform_0, window_bounds = array<i64: 1, 9, 32>}, {pipeline_mode = #tpu.pipeline_mode<synchronous>, transform_indices = @transform_1, window_bounds = array<i64: 1, 32, 96>}, {pipeline_mode = #tpu.pipeline_mode<synchronous>, transform_indices = @transform_2, window_bounds = array<i64: 1, 1, 96>}, {pipeline_mode = #tpu.pipeline_mode<synchronous>, transform_indices = @transform_3, window_bounds = array<i64: 1, 32, 32>}, {pipeline_mode = #tpu.pipeline_mode<synchronous>, transform_indices = @transform_4, window_bounds = array<i64: 1, 1, 32>}, {pipeline_mode = #tpu.pipeline_mode<synchronous>, transform_indices = @transform_5, window_bounds = array<i64: 1, 32, 128>}, {pipeline_mode = #tpu.pipeline_mode<synchronous>, transform_indices = @transform_6, window_bounds = array<i64: 1, 1, 128>}, {pipeline_mode = #tpu.pipeline_mode<synchronous>, transform_indices = @transform_7, window_bounds = array<i64: 1, 128, 32>}, {pipeline_mode = #tpu.pipeline_mode<synchronous>, transform_indices = @transform_8, window_bounds = array<i64: 1, 1, 32>}, {pipeline_mode = #tpu.pipeline_mode<synchronous>, transform_indices = @transform_9, window_bounds = array<i64: 32, 48>}, {pipeline_mode = #tpu.pipeline_mode<synchronous>, transform_indices = @transform_10, window_bounds = array<i64: 1, 48>}, {transform_indices = @transform_11, window_bounds = array<i64: 1, 9, 32>}, {transform_indices = @transform_12, window_bounds = array<i64: 1, 9, 48>}]} {
    %c0 = arith.constant 0 : index
    %c0_0 = arith.constant 0 : index
    %c0_1 = arith.constant 0 : index
    %0 = vector.load %arg1[%c0, %c0_0, %c0_1] : memref<1x9x32xf32, #tpu.memory_space<vmem>>, vector<1x9x32xf32>
    %1 = vector.shape_cast %0 : vector<1x9x32xf32> to vector<9x32xf32>
    %c0_2 = arith.constant 0 : index
    %c0_3 = arith.constant 0 : index
    %c0_4 = arith.constant 0 : index
    %2 = vector.load %arg2[%c0_2, %c0_3, %c0_4] : memref<1x32x96xf32, #tpu.memory_space<vmem>>, vector<1x32x96xf32>
    %3 = vector.shape_cast %2 : vector<1x32x96xf32> to vector<32x96xf32>
    %c0_5 = arith.constant 0 : index
    %c0_6 = arith.constant 0 : index
    %c0_7 = arith.constant 0 : index
    %4 = vector.load %arg3[%c0_5, %c0_6, %c0_7] : memref<1x1x96xf32, #tpu.memory_space<vmem>>, vector<1x1x96xf32>
    %5 = vector.shape_cast %4 : vector<1x1x96xf32> to vector<1x96xf32>
    %c0_8 = arith.constant 0 : index
    %c0_9 = arith.constant 0 : index
    %c0_10 = arith.constant 0 : index
    %6 = vector.load %arg4[%c0_8, %c0_9, %c0_10] : memref<1x32x32xf32, #tpu.memory_space<vmem>>, vector<1x32x32xf32>
    %7 = vector.shape_cast %6 : vector<1x32x32xf32> to vector<32x32xf32>
    %c0_11 = arith.constant 0 : index
    %c0_12 = arith.constant 0 : index
    %c0_13 = arith.constant 0 : index
    %8 = vector.load %arg5[%c0_11, %c0_12, %c0_13] : memref<1x1x32xf32, #tpu.memory_space<vmem>>, vector<1x1x32xf32>
    %9 = vector.shape_cast %8 : vector<1x1x32xf32> to vector<1x32xf32>
    %c0_14 = arith.constant 0 : index
    %c0_15 = arith.constant 0 : index
    %c0_16 = arith.constant 0 : index
    %10 = vector.load %arg6[%c0_14, %c0_15, %c0_16] : memref<1x32x128xf32, #tpu.memory_space<vmem>>, vector<1x32x128xf32>
    %11 = vector.shape_cast %10 : vector<1x32x128xf32> to vector<32x128xf32>
    %c0_17 = arith.constant 0 : index
    %c0_18 = arith.constant 0 : index
    %c0_19 = arith.constant 0 : index
    %12 = vector.load %arg7[%c0_17, %c0_18, %c0_19] : memref<1x1x128xf32, #tpu.memory_space<vmem>>, vector<1x1x128xf32>
    %13 = vector.shape_cast %12 : vector<1x1x128xf32> to vector<1x128xf32>
    %c0_20 = arith.constant 0 : index
    %c0_21 = arith.constant 0 : index
    %c0_22 = arith.constant 0 : index
    %14 = vector.load %arg8[%c0_20, %c0_21, %c0_22] : memref<1x128x32xf32, #tpu.memory_space<vmem>>, vector<1x128x32xf32>
    %15 = vector.shape_cast %14 : vector<1x128x32xf32> to vector<128x32xf32>
    %c0_23 = arith.constant 0 : index
    %c0_24 = arith.constant 0 : index
    %c0_25 = arith.constant 0 : index
    %16 = vector.load %arg9[%c0_23, %c0_24, %c0_25] : memref<1x1x32xf32, #tpu.memory_space<vmem>>, vector<1x1x32xf32>
    %17 = vector.shape_cast %16 : vector<1x1x32xf32> to vector<1x32xf32>
    %cst = arith.constant dense<0.000000e+00> : vector<9xf32>
    %18 = vector.multi_reduction <add>, %1, %cst [1] : vector<9x32xf32> to vector<9xf32>
    %19 = vector.shape_cast %18 : vector<9xf32> to vector<9x1xf32>
    %cst_26 = arith.constant 3.200000e+01 : f32
    %20 = vector.broadcast %cst_26 : f32 to vector<9x1xf32>
    %21 = arith.divf %19, %20 : vector<9x1xf32>
    %22 = vector.broadcast %21 : vector<9x1xf32> to vector<9x32xf32>
    %23 = arith.subf %1, %22 : vector<9x32xf32>
    %24 = arith.mulf %23, %23 : vector<9x32xf32>
    %cst_27 = arith.constant dense<0.000000e+00> : vector<9xf32>
    %25 = vector.multi_reduction <add>, %24, %cst_27 [1] : vector<9x32xf32> to vector<9xf32>
    %26 = vector.shape_cast %25 : vector<9xf32> to vector<9x1xf32>
    %cst_28 = arith.constant 3.200000e+01 : f32
    %27 = vector.broadcast %cst_28 : f32 to vector<9x1xf32>
    %28 = arith.divf %26, %27 : vector<9x1xf32>
    %29 = vector.broadcast %21 : vector<9x1xf32> to vector<9x32xf32>
    %30 = arith.subf %1, %29 : vector<9x32xf32>
    %cst_29 = arith.constant 9.99999974E-6 : f32
    %31 = vector.broadcast %cst_29 : f32 to vector<9x1xf32>
    %32 = arith.addf %28, %31 : vector<9x1xf32>
    %33 = math.rsqrt %32 : vector<9x1xf32>
    %34 = vector.broadcast %33 : vector<9x1xf32> to vector<9x32xf32>
    %35 = arith.mulf %30, %34 : vector<9x32xf32>
    %cst_30 = arith.constant dense<0.000000e+00> : vector<9x96xf32>
    %36 = tpu.matmul %35, %3, %cst_30 {dimension_numbers = #tpu.dot_dimension_numbers<[1], [0], [0], [1], [0, 0, 1, 1], [], []>} : vector<9x32xf32>, vector<32x96xf32>, vector<9x96xf32> -> vector<9x96xf32>
    %37 = vector.broadcast %5 : vector<1x96xf32> to vector<9x96xf32>
    %38 = arith.addf %36, %37 : vector<9x96xf32>
    %39 = vector.extract_strided_slice %38 {offsets = [0, 0], sizes = [9, 4], strides = [1, 1]} : vector<9x96xf32> to vector<9x4xf32>
    %40 = vector.extract_strided_slice %38 {offsets = [0, 32], sizes = [9, 4], strides = [1, 1]} : vector<9x96xf32> to vector<9x4xf32>
    %41 = vector.extract_strided_slice %38 {offsets = [0, 64], sizes = [9, 4], strides = [1, 1]} : vector<9x96xf32> to vector<9x4xf32>
    %cst_31 = arith.constant dense<0.000000e+00> : vector<9x9xf32>
    %42 = tpu.matmul %39, %40, %cst_31 {dimension_numbers = #tpu.dot_dimension_numbers<[1], [1], [0], [0], [0, 0, 1, 0], [], []>} : vector<9x4xf32>, vector<9x4xf32>, vector<9x9xf32> -> vector<9x9xf32>
    %cst_32 = arith.constant dense<0xFF800000> : vector<9xf32>
    %43 = vector.multi_reduction <maximumf>, %42, %cst_32 [1] : vector<9x9xf32> to vector<9xf32>
    %44 = vector.shape_cast %43 : vector<9xf32> to vector<9x1xf32>
    %45 = vector.broadcast %44 : vector<9x1xf32> to vector<9x9xf32>
    %46 = arith.subf %42, %45 : vector<9x9xf32>
    %47 = math.exp %46 : vector<9x9xf32>
    %cst_33 = arith.constant dense<0.000000e+00> : vector<9xf32>
    %48 = vector.multi_reduction <add>, %47, %cst_33 [1] : vector<9x9xf32> to vector<9xf32>
    %49 = vector.shape_cast %48 : vector<9xf32> to vector<9x1xf32>
    %50 = tpu.reciprocal %49 {approx = true} : vector<9x1xf32> -> vector<9x1xf32>
    %51 = vector.broadcast %50 : vector<9x1xf32> to vector<9x9xf32>
    %52 = arith.mulf %47, %51 : vector<9x9xf32>
    %cst_34 = arith.constant dense<0.000000e+00> : vector<9x4xf32>
    %53 = tpu.matmul %52, %41, %cst_34 {dimension_numbers = #tpu.dot_dimension_numbers<[1], [0], [0], [1], [0, 0, 1, 1], [], []>} : vector<9x9xf32>, vector<9x4xf32>, vector<9x4xf32> -> vector<9x4xf32>
    %c0_35 = arith.constant 0 : index
    %c0_36 = arith.constant 0 : index
    %54 = vector.load %arg14[%c0_35, %c0_36] : memref<9x32xf32, #tpu.memory_space<vmem>>, vector<9x4xf32>
    tpu.vector_store %arg14[%c0_35, %c0_36], %53 {strides = array<i32>} : memref<9x32xf32, #tpu.memory_space<vmem>>, vector<9x4xf32>,
    %55 = vector.extract_strided_slice %38 {offsets = [0, 4], sizes = [9, 4], strides = [1, 1]} : vector<9x96xf32> to vector<9x4xf32>
    %56 = vector.extract_strided_slice %38 {offsets = [0, 36], sizes = [9, 4], strides = [1, 1]} : vector<9x96xf32> to vector<9x4xf32>
    %57 = vector.extract_strided_slice %38 {offsets = [0, 68], sizes = [9, 4], strides = [1, 1]} : vector<9x96xf32> to vector<9x4xf32>
    %cst_37 = arith.constant dense<0.000000e+00> : vector<9x9xf32>
    %58 = tpu.matmul %55, %56, %cst_37 {dimension_numbers = #tpu.dot_dimension_numbers<[1], [1], [0], [0], [0, 0, 1, 0], [], []>} : vector<9x4xf32>, vector<9x4xf32>, vector<9x9xf32> -> vector<9x9xf32>
    %cst_38 = arith.constant dense<0xFF800000> : vector<9xf32>
    %59 = vector.multi_reduction <maximumf>, %58, %cst_38 [1] : vector<9x9xf32> to vector<9xf32>
    %60 = vector.shape_cast %59 : vector<9xf32> to vector<9x1xf32>
    %61 = vector.broadcast %60 : vector<9x1xf32> to vector<9x9xf32>
    %62 = arith.subf %58, %61 : vector<9x9xf32>
    %63 = math.exp %62 : vector<9x9xf32>
    %cst_39 = arith.constant dense<0.000000e+00> : vector<9xf32>
    %64 = vector.multi_reduction <add>, %63, %cst_39 [1] : vector<9x9xf32> to vector<9xf32>
    %65 = vector.shape_cast %64 : vector<9xf32> to vector<9x1xf32>
    %66 = tpu.reciprocal %65 {approx = true} : vector<9x1xf32> -> vector<9x1xf32>
    %67 = vector.broadcast %66 : vector<9x1xf32> to vector<9x9xf32>
    %68 = arith.mulf %63, %67 : vector<9x9xf32>
    %cst_40 = arith.constant dense<0.000000e+00> : vector<9x4xf32>
    %69 = tpu.matmul %68, %57, %cst_40 {dimension_numbers = #tpu.dot_dimension_numbers<[1], [0], [0], [1], [0, 0, 1, 1], [], []>} : vector<9x9xf32>, vector<9x4xf32>, vector<9x4xf32> -> vector<9x4xf32>
    %c0_41 = arith.constant 0 : index
    %c4 = arith.constant 4 : index
    %70 = vector.load %arg14[%c0_41, %c4] : memref<9x32xf32, #tpu.memory_space<vmem>>, vector<9x4xf32>
    tpu.vector_store %arg14[%c0_41, %c4], %69 {strides = array<i32>} : memref<9x32xf32, #tpu.memory_space<vmem>>, vector<9x4xf32>,
    %71 = vector.extract_strided_slice %38 {offsets = [0, 8], sizes = [9, 4], strides = [1, 1]} : vector<9x96xf32> to vector<9x4xf32>
    %72 = vector.extract_strided_slice %38 {offsets = [0, 40], sizes = [9, 4], strides = [1, 1]} : vector<9x96xf32> to vector<9x4xf32>
    %73 = vector.extract_strided_slice %38 {offsets = [0, 72], sizes = [9, 4], strides = [1, 1]} : vector<9x96xf32> to vector<9x4xf32>
    %cst_42 = arith.constant dense<0.000000e+00> : vector<9x9xf32>
    %74 = tpu.matmul %71, %72, %cst_42 {dimension_numbers = #tpu.dot_dimension_numbers<[1], [1], [0], [0], [0, 0, 1, 0], [], []>} : vector<9x4xf32>, vector<9x4xf32>, vector<9x9xf32> -> vector<9x9xf32>
    %cst_43 = arith.constant dense<0xFF800000> : vector<9xf32>
    %75 = vector.multi_reduction <maximumf>, %74, %cst_43 [1] : vector<9x9xf32> to vector<9xf32>
    %76 = vector.shape_cast %75 : vector<9xf32> to vector<9x1xf32>
    %77 = vector.broadcast %76 : vector<9x1xf32> to vector<9x9xf32>
    %78 = arith.subf %74, %77 : vector<9x9xf32>
    %79 = math.exp %78 : vector<9x9xf32>
    %cst_44 = arith.constant dense<0.000000e+00> : vector<9xf32>
    %80 = vector.multi_reduction <add>, %79, %cst_44 [1] : vector<9x9xf32> to vector<9xf32>
    %81 = vector.shape_cast %80 : vector<9xf32> to vector<9x1xf32>
    %82 = tpu.reciprocal %81 {approx = true} : vector<9x1xf32> -> vector<9x1xf32>
    %83 = vector.broadcast %82 : vector<9x1xf32> to vector<9x9xf32>
    %84 = arith.mulf %79, %83 : vector<9x9xf32>
    %cst_45 = arith.constant dense<0.000000e+00> : vector<9x4xf32>
    %85 = tpu.matmul %84, %73, %cst_45 {dimension_numbers = #tpu.dot_dimension_numbers<[1], [0], [0], [1], [0, 0, 1, 1], [], []>} : vector<9x9xf32>, vector<9x4xf32>, vector<9x4xf32> -> vector<9x4xf32>
    %c0_46 = arith.constant 0 : index
    %c8 = arith.constant 8 : index
    %86 = vector.load %arg14[%c0_46, %c8] : memref<9x32xf32, #tpu.memory_space<vmem>>, vector<9x4xf32>
    tpu.vector_store %arg14[%c0_46, %c8], %85 {strides = array<i32>} : memref<9x32xf32, #tpu.memory_space<vmem>>, vector<9x4xf32>,
    %87 = vector.extract_strided_slice %38 {offsets = [0, 12], sizes = [9, 4], strides = [1, 1]} : vector<9x96xf32> to vector<9x4xf32>
    %88 = vector.extract_strided_slice %38 {offsets = [0, 44], sizes = [9, 4], strides = [1, 1]} : vector<9x96xf32> to vector<9x4xf32>
    %89 = vector.extract_strided_slice %38 {offsets = [0, 76], sizes = [9, 4], strides = [1, 1]} : vector<9x96xf32> to vector<9x4xf32>
    %cst_47 = arith.constant dense<0.000000e+00> : vector<9x9xf32>
    %90 = tpu.matmul %87, %88, %cst_47 {dimension_numbers = #tpu.dot_dimension_numbers<[1], [1], [0], [0], [0, 0, 1, 0], [], []>} : vector<9x4xf32>, vector<9x4xf32>, vector<9x9xf32> -> vector<9x9xf32>
    %cst_48 = arith.constant dense<0xFF800000> : vector<9xf32>
    %91 = vector.multi_reduction <maximumf>, %90, %cst_48 [1] : vector<9x9xf32> to vector<9xf32>
    %92 = vector.shape_cast %91 : vector<9xf32> to vector<9x1xf32>
    %93 = vector.broadcast %92 : vector<9x1xf32> to vector<9x9xf32>
    %94 = arith.subf %90, %93 : vector<9x9xf32>
    %95 = math.exp %94 : vector<9x9xf32>
    %cst_49 = arith.constant dense<0.000000e+00> : vector<9xf32>
    %96 = vector.multi_reduction <add>, %95, %cst_49 [1] : vector<9x9xf32> to vector<9xf32>
    %97 = vector.shape_cast %96 : vector<9xf32> to vector<9x1xf32>
    %98 = tpu.reciprocal %97 {approx = true} : vector<9x1xf32> -> vector<9x1xf32>
    %99 = vector.broadcast %98 : vector<9x1xf32> to vector<9x9xf32>
    %100 = arith.mulf %95, %99 : vector<9x9xf32>
    %cst_50 = arith.constant dense<0.000000e+00> : vector<9x4xf32>
    %101 = tpu.matmul %100, %89, %cst_50 {dimension_numbers = #tpu.dot_dimension_numbers<[1], [0], [0], [1], [0, 0, 1, 1], [], []>} : vector<9x9xf32>, vector<9x4xf32>, vector<9x4xf32> -> vector<9x4xf32>
    %c0_51 = arith.constant 0 : index
    %c12 = arith.constant 12 : index
    %102 = vector.load %arg14[%c0_51, %c12] : memref<9x32xf32, #tpu.memory_space<vmem>>, vector<9x4xf32>
    tpu.vector_store %arg14[%c0_51, %c12], %101 {strides = array<i32>} : memref<9x32xf32, #tpu.memory_space<vmem>>, vector<9x4xf32>,
    %103 = vector.extract_strided_slice %38 {offsets = [0, 16], sizes = [9, 4], strides = [1, 1]} : vector<9x96xf32> to vector<9x4xf32>
    %104 = vector.extract_strided_slice %38 {offsets = [0, 48], sizes = [9, 4], strides = [1, 1]} : vector<9x96xf32> to vector<9x4xf32>
    %105 = vector.extract_strided_slice %38 {offsets = [0, 80], sizes = [9, 4], strides = [1, 1]} : vector<9x96xf32> to vector<9x4xf32>
    %cst_52 = arith.constant dense<0.000000e+00> : vector<9x9xf32>
    %106 = tpu.matmul %103, %104, %cst_52 {dimension_numbers = #tpu.dot_dimension_numbers<[1], [1], [0], [0], [0, 0, 1, 0], [], []>} : vector<9x4xf32>, vector<9x4xf32>, vector<9x9xf32> -> vector<9x9xf32>
    %cst_53 = arith.constant dense<0xFF800000> : vector<9xf32>
    %107 = vector.multi_reduction <maximumf>, %106, %cst_53 [1] : vector<9x9xf32> to vector<9xf32>
    %108 = vector.shape_cast %107 : vector<9xf32> to vector<9x1xf32>
    %109 = vector.broadcast %108 : vector<9x1xf32> to vector<9x9xf32>
    %110 = arith.subf %106, %109 : vector<9x9xf32>
    %111 = math.exp %110 : vector<9x9xf32>
    %cst_54 = arith.constant dense<0.000000e+00> : vector<9xf32>
    %112 = vector.multi_reduction <add>, %111, %cst_54 [1] : vector<9x9xf32> to vector<9xf32>
    %113 = vector.shape_cast %112 : vector<9xf32> to vector<9x1xf32>
    %114 = tpu.reciprocal %113 {approx = true} : vector<9x1xf32> -> vector<9x1xf32>
    %115 = vector.broadcast %114 : vector<9x1xf32> to vector<9x9xf32>
    %116 = arith.mulf %111, %115 : vector<9x9xf32>
    %cst_55 = arith.constant dense<0.000000e+00> : vector<9x4xf32>
    %117 = tpu.matmul %116, %105, %cst_55 {dimension_numbers = #tpu.dot_dimension_numbers<[1], [0], [0], [1], [0, 0, 1, 1], [], []>} : vector<9x9xf32>, vector<9x4xf32>, vector<9x4xf32> -> vector<9x4xf32>
    %c0_56 = arith.constant 0 : index
    %c16 = arith.constant 16 : index
    %118 = vector.load %arg14[%c0_56, %c16] : memref<9x32xf32, #tpu.memory_space<vmem>>, vector<9x4xf32>
    tpu.vector_store %arg14[%c0_56, %c16], %117 {strides = array<i32>} : memref<9x32xf32, #tpu.memory_space<vmem>>, vector<9x4xf32>,
    %119 = vector.extract_strided_slice %38 {offsets = [0, 20], sizes = [9, 4], strides = [1, 1]} : vector<9x96xf32> to vector<9x4xf32>
    %120 = vector.extract_strided_slice %38 {offsets = [0, 52], sizes = [9, 4], strides = [1, 1]} : vector<9x96xf32> to vector<9x4xf32>
    %121 = vector.extract_strided_slice %38 {offsets = [0, 84], sizes = [9, 4], strides = [1, 1]} : vector<9x96xf32> to vector<9x4xf32>
    %cst_57 = arith.constant dense<0.000000e+00> : vector<9x9xf32>
    %122 = tpu.matmul %119, %120, %cst_57 {dimension_numbers = #tpu.dot_dimension_numbers<[1], [1], [0], [0], [0, 0, 1, 0], [], []>} : vector<9x4xf32>, vector<9x4xf32>, vector<9x9xf32> -> vector<9x9xf32>
    %cst_58 = arith.constant dense<0xFF800000> : vector<9xf32>
    %123 = vector.multi_reduction <maximumf>, %122, %cst_58 [1] : vector<9x9xf32> to vector<9xf32>
    %124 = vector.shape_cast %123 : vector<9xf32> to vector<9x1xf32>
    %125 = vector.broadcast %124 : vector<9x1xf32> to vector<9x9xf32>
    %126 = arith.subf %122, %125 : vector<9x9xf32>
    %127 = math.exp %126 : vector<9x9xf32>
    %cst_59 = arith.constant dense<0.000000e+00> : vector<9xf32>
    %128 = vector.multi_reduction <add>, %127, %cst_59 [1] : vector<9x9xf32> to vector<9xf32>
    %129 = vector.shape_cast %128 : vector<9xf32> to vector<9x1xf32>
    %130 = tpu.reciprocal %129 {approx = true} : vector<9x1xf32> -> vector<9x1xf32>
    %131 = vector.broadcast %130 : vector<9x1xf32> to vector<9x9xf32>
    %132 = arith.mulf %127, %131 : vector<9x9xf32>
    %cst_60 = arith.constant dense<0.000000e+00> : vector<9x4xf32>
    %133 = tpu.matmul %132, %121, %cst_60 {dimension_numbers = #tpu.dot_dimension_numbers<[1], [0], [0], [1], [0, 0, 1, 1], [], []>} : vector<9x9xf32>, vector<9x4xf32>, vector<9x4xf32> -> vector<9x4xf32>
    %c0_61 = arith.constant 0 : index
    %c20 = arith.constant 20 : index
    %134 = vector.load %arg14[%c0_61, %c20] : memref<9x32xf32, #tpu.memory_space<vmem>>, vector<9x4xf32>
    tpu.vector_store %arg14[%c0_61, %c20], %133 {strides = array<i32>} : memref<9x32xf32, #tpu.memory_space<vmem>>, vector<9x4xf32>,
    %135 = vector.extract_strided_slice %38 {offsets = [0, 24], sizes = [9, 4], strides = [1, 1]} : vector<9x96xf32> to vector<9x4xf32>
    %136 = vector.extract_strided_slice %38 {offsets = [0, 56], sizes = [9, 4], strides = [1, 1]} : vector<9x96xf32> to vector<9x4xf32>
    %137 = vector.extract_strided_slice %38 {offsets = [0, 88], sizes = [9, 4], strides = [1, 1]} : vector<9x96xf32> to vector<9x4xf32>
    %cst_62 = arith.constant dense<0.000000e+00> : vector<9x9xf32>
    %138 = tpu.matmul %135, %136, %cst_62 {dimension_numbers = #tpu.dot_dimension_numbers<[1], [1], [0], [0], [0, 0, 1, 0], [], []>} : vector<9x4xf32>, vector<9x4xf32>, vector<9x9xf32> -> vector<9x9xf32>
    %cst_63 = arith.constant dense<0xFF800000> : vector<9xf32>
    %139 = vector.multi_reduction <maximumf>, %138, %cst_63 [1] : vector<9x9xf32> to vector<9xf32>
    %140 = vector.shape_cast %139 : vector<9xf32> to vector<9x1xf32>
    %141 = vector.broadcast %140 : vector<9x1xf32> to vector<9x9xf32>
    %142 = arith.subf %138, %141 : vector<9x9xf32>
    %143 = math.exp %142 : vector<9x9xf32>
    %cst_64 = arith.constant dense<0.000000e+00> : vector<9xf32>
    %144 = vector.multi_reduction <add>, %143, %cst_64 [1] : vector<9x9xf32> to vector<9xf32>
    %145 = vector.shape_cast %144 : vector<9xf32> to vector<9x1xf32>
    %146 = tpu.reciprocal %145 {approx = true} : vector<9x1xf32> -> vector<9x1xf32>
    %147 = vector.broadcast %146 : vector<9x1xf32> to vector<9x9xf32>
    %148 = arith.mulf %143, %147 : vector<9x9xf32>
    %cst_65 = arith.constant dense<0.000000e+00> : vector<9x4xf32>
    %149 = tpu.matmul %148, %137, %cst_65 {dimension_numbers = #tpu.dot_dimension_numbers<[1], [0], [0], [1], [0, 0, 1, 1], [], []>} : vector<9x9xf32>, vector<9x4xf32>, vector<9x4xf32> -> vector<9x4xf32>
    %c0_66 = arith.constant 0 : index
    %c24 = arith.constant 24 : index
    %150 = vector.load %arg14[%c0_66, %c24] : memref<9x32xf32, #tpu.memory_space<vmem>>, vector<9x4xf32>
    tpu.vector_store %arg14[%c0_66, %c24], %149 {strides = array<i32>} : memref<9x32xf32, #tpu.memory_space<vmem>>, vector<9x4xf32>,
    %151 = vector.extract_strided_slice %38 {offsets = [0, 28], sizes = [9, 4], strides = [1, 1]} : vector<9x96xf32> to vector<9x4xf32>
    %152 = vector.extract_strided_slice %38 {offsets = [0, 60], sizes = [9, 4], strides = [1, 1]} : vector<9x96xf32> to vector<9x4xf32>
    %153 = vector.extract_strided_slice %38 {offsets = [0, 92], sizes = [9, 4], strides = [1, 1]} : vector<9x96xf32> to vector<9x4xf32>
    %cst_67 = arith.constant dense<0.000000e+00> : vector<9x9xf32>
    %154 = tpu.matmul %151, %152, %cst_67 {dimension_numbers = #tpu.dot_dimension_numbers<[1], [1], [0], [0], [0, 0, 1, 0], [], []>} : vector<9x4xf32>, vector<9x4xf32>, vector<9x9xf32> -> vector<9x9xf32>
    %cst_68 = arith.constant dense<0xFF800000> : vector<9xf32>
    %155 = vector.multi_reduction <maximumf>, %154, %cst_68 [1] : vector<9x9xf32> to vector<9xf32>
    %156 = vector.shape_cast %155 : vector<9xf32> to vector<9x1xf32>
    %157 = vector.broadcast %156 : vector<9x1xf32> to vector<9x9xf32>
    %158 = arith.subf %154, %157 : vector<9x9xf32>
    %159 = math.exp %158 : vector<9x9xf32>
    %cst_69 = arith.constant dense<0.000000e+00> : vector<9xf32>
    %160 = vector.multi_reduction <add>, %159, %cst_69 [1] : vector<9x9xf32> to vector<9xf32>
    %161 = vector.shape_cast %160 : vector<9xf32> to vector<9x1xf32>
    %162 = tpu.reciprocal %161 {approx = true} : vector<9x1xf32> -> vector<9x1xf32>
    %163 = vector.broadcast %162 : vector<9x1xf32> to vector<9x9xf32>
    %164 = arith.mulf %159, %163 : vector<9x9xf32>
    %cst_70 = arith.constant dense<0.000000e+00> : vector<9x4xf32>
    %165 = tpu.matmul %164, %153, %cst_70 {dimension_numbers = #tpu.dot_dimension_numbers<[1], [0], [0], [1], [0, 0, 1, 1], [], []>} : vector<9x9xf32>, vector<9x4xf32>, vector<9x4xf32> -> vector<9x4xf32>
    %c0_71 = arith.constant 0 : index
    %c28 = arith.constant 28 : index
    %166 = vector.load %arg14[%c0_71, %c28] : memref<9x32xf32, #tpu.memory_space<vmem>>, vector<9x4xf32>
    tpu.vector_store %arg14[%c0_71, %c28], %165 {strides = array<i32>} : memref<9x32xf32, #tpu.memory_space<vmem>>, vector<9x4xf32>,
    %c0_72 = arith.constant 0 : index
    %c0_73 = arith.constant 0 : index
    %167 = vector.load %arg14[%c0_72, %c0_73] : memref<9x32xf32, #tpu.memory_space<vmem>>, vector<9x32xf32>
    %cst_74 = arith.constant dense<0.000000e+00> : vector<9x32xf32>
    %168 = tpu.matmul %167, %7, %cst_74 {dimension_numbers = #tpu.dot_dimension_numbers<[1], [0], [0], [1], [0, 0, 1, 1], [], []>} : vector<9x32xf32>, vector<32x32xf32>, vector<9x32xf32> -> vector<9x32xf32>
    %169 = arith.addf %1, %168 : vector<9x32xf32>
    %170 = vector.broadcast %9 : vector<1x32xf32> to vector<9x32xf32>
    %171 = arith.addf %169, %170 : vector<9x32xf32>
    %cst_75 = arith.constant dense<0.000000e+00> : vector<9xf32>
    %172 = vector.multi_reduction <add>, %171, %cst_75 [1] : vector<9x32xf32> to vector<9xf32>
    %173 = vector.shape_cast %172 : vector<9xf32> to vector<9x1xf32>
    %cst_76 = arith.constant 3.200000e+01 : f32
    %174 = vector.broadcast %cst_76 : f32 to vector<9x1xf32>
    %175 = arith.divf %173, %174 : vector<9x1xf32>
    %176 = vector.broadcast %175 : vector<9x1xf32> to vector<9x32xf32>
    %177 = arith.subf %171, %176 : vector<9x32xf32>
    %178 = arith.mulf %177, %177 : vector<9x32xf32>
    %cst_77 = arith.constant dense<0.000000e+00> : vector<9xf32>
    %179 = vector.multi_reduction <add>, %178, %cst_77 [1] : vector<9x32xf32> to vector<9xf32>
    %180 = vector.shape_cast %179 : vector<9xf32> to vector<9x1xf32>
    %cst_78 = arith.constant 3.200000e+01 : f32
    %181 = vector.broadcast %cst_78 : f32 to vector<9x1xf32>
    %182 = arith.divf %180, %181 : vector<9x1xf32>
    %183 = vector.broadcast %175 : vector<9x1xf32> to vector<9x32xf32>
    %184 = arith.subf %171, %183 : vector<9x32xf32>
    %cst_79 = arith.constant 9.99999974E-6 : f32
    %185 = vector.broadcast %cst_79 : f32 to vector<9x1xf32>
    %186 = arith.addf %182, %185 : vector<9x1xf32>
    %187 = math.rsqrt %186 : vector<9x1xf32>
    %188 = vector.broadcast %187 : vector<9x1xf32> to vector<9x32xf32>
    %189 = arith.mulf %184, %188 : vector<9x32xf32>
    %cst_80 = arith.constant dense<0.000000e+00> : vector<9x128xf32>
    %190 = tpu.matmul %189, %11, %cst_80 {dimension_numbers = #tpu.dot_dimension_numbers<[1], [0], [0], [1], [0, 0, 1, 1], [], []>} : vector<9x32xf32>, vector<32x128xf32>, vector<9x128xf32> -> vector<9x128xf32>
    %191 = vector.broadcast %13 : vector<1x128xf32> to vector<9x128xf32>
    %192 = arith.addf %190, %191 : vector<9x128xf32>
    %cst_81 = arith.constant 5.000000e-01 : f32
    %193 = vector.broadcast %cst_81 : f32 to vector<9x128xf32>
    %194 = arith.mulf %193, %192 : vector<9x128xf32>
    %cst_82 = arith.constant 0.707106769 : f32
    %195 = vector.broadcast %cst_82 : f32 to vector<9x128xf32>
    %196 = arith.mulf %192, %195 : vector<9x128xf32>
    %197 = math.erf %196 : vector<9x128xf32>
    %cst_83 = arith.constant 1.000000e+00 : f32
    %198 = vector.broadcast %cst_83 : f32 to vector<9x128xf32>
    %199 = arith.addf %198, %197 : vector<9x128xf32>
    %200 = arith.mulf %194, %199 : vector<9x128xf32>
    %cst_84 = arith.constant dense<0.000000e+00> : vector<9x32xf32>
    %201 = tpu.matmul %200, %15, %cst_84 {dimension_numbers = #tpu.dot_dimension_numbers<[1], [0], [0], [1], [0, 0, 1, 1], [], []>} : vector<9x128xf32>, vector<128x32xf32>, vector<9x32xf32> -> vector<9x32xf32>
    %202 = vector.broadcast %17 : vector<1x32xf32> to vector<9x32xf32>
    %203 = arith.addf %201, %202 : vector<9x32xf32>
    %204 = arith.addf %171, %203 : vector<9x32xf32>
    %c0_85 = arith.constant 0 : index
    %c0_86 = arith.constant 0 : index
    %c0_87 = arith.constant 0 : index
    %205 = vector.load %arg12[%c0_85, %c0_86, %c0_87] : memref<1x9x32xf32, #tpu.memory_space<vmem>>, vector<1x9x32xf32>
    %206 = vector.shape_cast %205 : vector<1x9x32xf32> to vector<9x32xf32>
    %207 = vector.shape_cast %204 : vector<9x32xf32> to vector<1x9x32xf32>
    tpu.vector_store %arg12[%c0_85, %c0_86, %c0_87], %207 {strides = array<i32>} : memref<1x9x32xf32, #tpu.memory_space<vmem>>, vector<1x9x32xf32>,
    %cst_88 = arith.constant dense<0.000000e+00> : vector<9xf32>
    %208 = vector.multi_reduction <add>, %204, %cst_88 [1] : vector<9x32xf32> to vector<9xf32>
    %209 = vector.shape_cast %208 : vector<9xf32> to vector<9x1xf32>
    %cst_89 = arith.constant 3.200000e+01 : f32
    %210 = vector.broadcast %cst_89 : f32 to vector<9x1xf32>
    %211 = arith.divf %209, %210 : vector<9x1xf32>
    %212 = vector.broadcast %211 : vector<9x1xf32> to vector<9x32xf32>
    %213 = arith.subf %204, %212 : vector<9x32xf32>
    %214 = arith.mulf %213, %213 : vector<9x32xf32>
    %cst_90 = arith.constant dense<0.000000e+00> : vector<9xf32>
    %215 = vector.multi_reduction <add>, %214, %cst_90 [1] : vector<9x32xf32> to vector<9xf32>
    %216 = vector.shape_cast %215 : vector<9xf32> to vector<9x1xf32>
    %cst_91 = arith.constant 3.200000e+01 : f32
    %217 = vector.broadcast %cst_91 : f32 to vector<9x1xf32>
    %218 = arith.divf %216, %217 : vector<9x1xf32>
    %219 = vector.broadcast %211 : vector<9x1xf32> to vector<9x32xf32>
    %220 = arith.subf %204, %219 : vector<9x32xf32>
    %cst_92 = arith.constant 9.99999974E-6 : f32
    %221 = vector.broadcast %cst_92 : f32 to vector<9x1xf32>
    %222 = arith.addf %218, %221 : vector<9x1xf32>
    %223 = math.rsqrt %222 : vector<9x1xf32>
    %224 = vector.broadcast %223 : vector<9x1xf32> to vector<9x32xf32>
    %225 = arith.mulf %220, %224 : vector<9x32xf32>
    %c0_93 = arith.constant 0 : index
    %c0_94 = arith.constant 0 : index
    %226 = vector.load %arg10[%c0_93, %c0_94] : memref<32x48xf32, #tpu.memory_space<vmem>>, vector<32x48xf32>
    %cst_95 = arith.constant dense<0.000000e+00> : vector<9x48xf32>
    %227 = tpu.matmul %225, %226, %cst_95 {dimension_numbers = #tpu.dot_dimension_numbers<[1], [0], [0], [1], [0, 0, 1, 1], [], []>} : vector<9x32xf32>, vector<32x48xf32>, vector<9x48xf32> -> vector<9x48xf32>
    %c0_96 = arith.constant 0 : index
    %c0_97 = arith.constant 0 : index
    %228 = vector.load %arg11[%c0_96, %c0_97] : memref<1x48xf32, #tpu.memory_space<vmem>>, vector<1x48xf32>
    %229 = vector.broadcast %228 : vector<1x48xf32> to vector<9x48xf32>
    %230 = arith.addf %227, %229 : vector<9x48xf32>
    %c0_98 = arith.constant 0 : index
    %c0_99 = arith.constant 0 : index
    %c0_100 = arith.constant 0 : index
    %231 = vector.load %arg13[%c0_98, %c0_99, %c0_100] : memref<1x9x48xf32, #tpu.memory_space<vmem>>, vector<1x9x48xf32>
    %232 = vector.shape_cast %231 : vector<1x9x48xf32> to vector<9x48xf32>
    %233 = vector.shape_cast %230 : vector<9x48xf32> to vector<1x9x48xf32>
    tpu.vector_store %arg13[%c0_98, %c0_99, %c0_100], %233 {strides = array<i32>} : memref<1x9x48xf32, #tpu.memory_space<vmem>>, vector<1x9x48xf32>,
    return
  }
  func.func @transform_0(%arg0: i32) -> (i32, i32, i32) {
    %c0_i32 = arith.constant 0 : i32
    %c0_i32_0 = arith.constant 0 : i32
    %c0_i32_1 = arith.constant 0 : i32
    return %arg0, %c0_i32, %c0_i32_0 : i32, i32, i32
  }
  func.func @transform_1(%arg0: i32) -> (i32, i32, i32) {
    %c0_i32 = arith.constant 0 : i32
    %c0_i32_0 = arith.constant 0 : i32
    %c0_i32_1 = arith.constant 0 : i32
    %c0_i32_2 = arith.constant 0 : i32
    return %c0_i32, %c0_i32_0, %c0_i32_1 : i32, i32, i32
  }
  func.func @transform_2(%arg0: i32) -> (i32, i32, i32) {
    %c0_i32 = arith.constant 0 : i32
    %c0_i32_0 = arith.constant 0 : i32
    %c0_i32_1 = arith.constant 0 : i32
    %c0_i32_2 = arith.constant 0 : i32
    return %c0_i32, %c0_i32_0, %c0_i32_1 : i32, i32, i32
  }
  func.func @transform_3(%arg0: i32) -> (i32, i32, i32) {
    %c0_i32 = arith.constant 0 : i32
    %c0_i32_0 = arith.constant 0 : i32
    %c0_i32_1 = arith.constant 0 : i32
    %c0_i32_2 = arith.constant 0 : i32
    return %c0_i32, %c0_i32_0, %c0_i32_1 : i32, i32, i32
  }
  func.func @transform_4(%arg0: i32) -> (i32, i32, i32) {
    %c0_i32 = arith.constant 0 : i32
    %c0_i32_0 = arith.constant 0 : i32
    %c0_i32_1 = arith.constant 0 : i32
    %c0_i32_2 = arith.constant 0 : i32
    return %c0_i32, %c0_i32_0, %c0_i32_1 : i32, i32, i32
  }
  func.func @transform_5(%arg0: i32) -> (i32, i32, i32) {
    %c0_i32 = arith.constant 0 : i32
    %c0_i32_0 = arith.constant 0 : i32
    %c0_i32_1 = arith.constant 0 : i32
    %c0_i32_2 = arith.constant 0 : i32
    return %c0_i32, %c0_i32_0, %c0_i32_1 : i32, i32, i32
  }
  func.func @transform_6(%arg0: i32) -> (i32, i32, i32) {
    %c0_i32 = arith.constant 0 : i32
    %c0_i32_0 = arith.constant 0 : i32
    %c0_i32_1 = arith.constant 0 : i32
    %c0_i32_2 = arith.constant 0 : i32
    return %c0_i32, %c0_i32_0, %c0_i32_1 : i32, i32, i32
  }
  func.func @transform_7(%arg0: i32) -> (i32, i32, i32) {
    %c0_i32 = arith.constant 0 : i32
    %c0_i32_0 = arith.constant 0 : i32
    %c0_i32_1 = arith.constant 0 : i32
    %c0_i32_2 = arith.constant 0 : i32
    return %c0_i32, %c0_i32_0, %c0_i32_1 : i32, i32, i32
  }
  func.func @transform_8(%arg0: i32) -> (i32, i32, i32) {
    %c0_i32 = arith.constant 0 : i32
    %c0_i32_0 = arith.constant 0 : i32
    %c0_i32_1 = arith.constant 0 : i32
    %c0_i32_2 = arith.constant 0 : i32
    return %c0_i32, %c0_i32_0, %c0_i32_1 : i32, i32, i32
  }
  func.func @transform_9(%arg0: i32) -> (i32, i32) {
    %c0_i32 = arith.constant 0 : i32
    %c0_i32_0 = arith.constant 0 : i32
    %c0_i32_1 = arith.constant 0 : i32
    return %c0_i32, %c0_i32_0 : i32, i32
  }
  func.func @transform_10(%arg0: i32) -> (i32, i32) {
    %c0_i32 = arith.constant 0 : i32
    %c0_i32_0 = arith.constant 0 : i32
    %c0_i32_1 = arith.constant 0 : i32
    return %c0_i32, %c0_i32_0 : i32, i32
  }
  func.func @transform_11(%arg0: i32) -> (i32, i32, i32) {
    %c0_i32 = arith.constant 0 : i32
    %c0_i32_0 = arith.constant 0 : i32
    %c0_i32_1 = arith.constant 0 : i32
    return %arg0, %c0_i32, %c0_i32_0 : i32, i32, i32
  }
  func.func @transform_12(%arg0: i32) -> (i32, i32, i32) {
    %c0_i32 = arith.constant 0 : i32
    %c0_i32_0 = arith.constant 0 : i32
    %c0_i32_1 = arith.constant 0 : i32
    return %arg0, %c0_i32, %c0_i32_0 : i32, i32, i32
  }
}

</mosaic_0001>

<llo_original>
// kernel: _forward_core.3
$region0: #{_forward_core.3}
  #allocation0 [shape = 'u32[]', space=smem, size = 0x4, offset = 0x4, fixed_abs, tag = 'smem constant byte address 0x4 - core index']
  #allocation1 [shape = 'u32[144,128]{1,0:T(1,128)}', space=vmem, size = 0x12000, scoped, tag = 'internal scratch']
  %s0 = inlined_call_operand.vmem [shape: f32[16,24], index: 0, kind: input, shape index: {}]
  %s1 = inlined_call_operand.vmem [shape: f32[24,32], index: 1, kind: input, shape index: {}]
  %s2 = inlined_call_operand.vmem [shape: f32[1,32], index: 2, kind: input, shape index: {}]
  %s3 = inlined_call_operand.vmem [shape: f32[1,32], index: 3, kind: input, shape index: {}]
  %s4 = inlined_call_operand.vmem [shape: f32[1,32], index: 4, kind: input, shape index: {}]
  %s5 = inlined_call_operand.vmem [shape: f32[16,32], index: 5, kind: output, shape index: {}]
  %s6 = sld [smem:[#allocation0]]
  $region30: #{_forward_core.3} parent=0
    _
  %s8 = ssub.s32 1, %s6
  %s9 = scalar_select 0, %s8, %s6
  // Predicated region
  $region2: #{_forward_core.3} parent=0 // pred_check
    _
  $region3: #{_forward_core.3} parent=0 // pred_check_branch
    %11 = sbr.rel (0) target = $region5
  $region4: #{_forward_core.3} parent=0 // pred_region
    _
  $region5: #{_forward_core.3} parent=0 // pred_fallthru
    _
  // Predicated region
  $region6: #{_forward_core.3} parent=0 // pred_check
    _
  $region7: #{_forward_core.3} parent=0 // pred_check_branch
    %13 = sbr.rel (0) target = $region9
  $region8: #{_forward_core.3} parent=0 // pred_region
    _
  $region9: #{_forward_core.3} parent=0 // pred_fallthru
    _
  // Predicated region
  $region10: #{_forward_core.3} parent=0 // pred_check
    _
  $region11: #{_forward_core.3} parent=0 // pred_check_branch
    %15 = sbr.rel (0) target = $region13
  $region12: #{_forward_core.3} parent=0 // pred_region
    _
  $region13: #{_forward_core.3} parent=0 // pred_fallthru
    _
  // Predicated region
  $region14: #{_forward_core.3} parent=0 // pred_check
    _
  $region15: #{_forward_core.3} parent=0 // pred_check_branch
    %17 = sbr.rel (0) target = $region17
  $region16: #{_forward_core.3} parent=0 // pred_region
    _
  $region17: #{_forward_core.3} parent=0 // pred_fallthru
    _
  // Predicated region
  $region18: #{_forward_core.3} parent=0 // pred_check
    _
  $region19: #{_forward_core.3} parent=0 // pred_check_branch
    %19 = sbr.rel (0) target = $region21
  $region20: #{_forward_core.3} parent=0 // pred_region
    _
  $region21: #{_forward_core.3} parent=0 // pred_fallthru
    _
  %v20 = vld [vmem:[%s0] sm:$0xff]
  %v21 = vld [vmem:[%s0 + $0x8] sm:$0xff]
  %vm22 = vcmask 195584
  %v23 = vsel %vm22, %v20, 0.0
  %24 = vadd.xlane.f32.xlu0 %v23
  %v25 = vpop.xlane.xlu0 %24
  %v26 = vsel %vm22, %v21, 0.0
  %27 = vadd.xlane.f32.xlu0 %v26
  %v28 = vpop.xlane.xlu0 %27
  %v29 = vrcp.pop 24.0
  %v30 = vmul.f32 %v25, %v29
  %v31 = vmul.f32 %v28, %v29
  %v32 = vsub.f32 %v20, %v30
  %v33 = vsub.f32 %v21, %v31
  %v34 = vmul.f32 %v32, %v32
  %v35 = vmul.f32 %v33, %v33
  %v36 = vsel %vm22, %v34, 0.0
  %37 = vadd.xlane.f32.xlu0 %v36
  %v38 = vpop.xlane.xlu0 %37
  %v39 = vsel %vm22, %v35, 0.0
  %40 = vadd.xlane.f32.xlu0 %v39
  %v41 = vpop.xlane.xlu0 %40
  %v42 = vmul.f32 %v38, %v29
  %v43 = vmul.f32 %v41, %v29
  %v44 = vadd.f32 %v42, 1e-05
  %v45 = vadd.f32 %v43, 1e-05
  %v46 = vrsqrt.pop %v44
  %v47 = vrsqrt.pop %v45
  %v48 = vmul.f32 %v32, %v46
  %v49 = vmul.f32 %v33, %v47
  %v50 = vld [vmem:[%s1] sm:$0xff]
  %v51 = vld [vmem:[%s1 + $0x8] sm:$0xff]
  %v52 = vld [vmem:[%s1 + $0x10] sm:$0xff]
  %v53 = vld [vmem:[%s2] sm:$0x1]
  %v55 = vlaneseq
  %v56 = vshrl.u32 %v55, 7
  %v57 = vsub.s32 0, %v56
  %v58 = vrot.slane %v53, %v57
  %v61 = vsel %vm22, %v48, 0
  %v64 = vsel %vm22, %v49, 0
  %66 = vmatprep.subr.mxu0 0.0
  %67 = vmatpush1.msra.mxu0 %v50
  %68 = vmatprep.subr.mxu0 0.0
  %69 = vmatpush1.msra.mxu0 %v51
  %70 = vmatprep.subr.mxu0 0.0
  %71 = vmatpush1.msra.mxu0 %v52
  %72 = vmatprep.subr.mxu0 0.0
  %73 = vmatpush1.msra.mxu0 0.0
  %74 = vmatprep.subr.mxu0 0.0
  %75 = vmatpush1.msra.mxu0 0.0
  %76 = vmatprep.subr.mxu0 0.0
  %77 = vmatpush1.msra.mxu0 0.0
  %78 = vmatprep.subr.mxu0 0.0
  %79 = vmatpush1.msra.mxu0 0.0
  %80 = vmatprep.subr.mxu0 0.0
  %81 = vmatpush1.msra.mxu0 0.0
  %82 = vmatprep.subr.mxu0 0.0
  %83 = vmatpush1.msra.mxu0 0.0
  %84 = vmatprep.subr.mxu0 0.0
  %85 = vmatpush1.msra.mxu0 0.0
  %86 = vmatprep.subr.mxu0 0.0
  %87 = vmatpush1.msra.mxu0 0.0
  %88 = vmatprep.subr.mxu0 0.0
  %89 = vmatpush1.msra.mxu0 0.0
  %90 = vmatprep.subr.mxu0 0.0
  %91 = vmatpush1.msra.mxu0 0.0
  %92 = vmatprep.subr.mxu0 0.0
  %93 = vmatpush1.msra.mxu0 0.0
  %94 = vmatprep.subr.mxu0 0.0
  %95 = vmatpush1.msra.mxu0 0.0
  %96 = vmatprep.subr.mxu0 0.0
  %97 = vmatpush1.msra.mxu0 0.0
  %98 = vmatprep.subr.mxu0 0.0
  %99 = vmatpush1.msra.mxu0 0.0
  %100 = vmatprep.subr.mxu0 0.0
  %101 = vmatpush1.msra.mxu0 0.0
  %102 = vmatprep.subr.mxu0 0.0
  %103 = vmatpush1.msra.mxu0 0.0
  %104 = vmatprep.subr.mxu0 0.0
  %105 = vmatpush1.msra.mxu0 0.0
  %106 = vmatprep.subr.mxu0 0.0
  %107 = vmatpush1.msra.mxu0 0.0
  %108 = vmatprep.subr.mxu0 0.0
  %109 = vmatpush1.msra.mxu0 0.0
  %110 = vmatprep.subr.mxu0 0.0
  %111 = vmatpush1.msra.mxu0 0.0
  %112 = vmatprep.subr.mxu0 0.0
  %113 = vmatpush1.msra.mxu0 0.0
  %114 = vmatprep.subr.mxu0 0.0
  %115 = vmatpush1.msra.mxu0 0.0
  %116 = vmatprep.subr.mxu0 0.0
  %117 = vmatpush1.msra.mxu0 0.0
  %118 = vmatprep.subr.mxu0 0.0
  %119 = vmatpush1.msra.mxu0 0.0
  %120 = vmatprep.subr.mxu0 0.0
  %121 = vmatpush1.msra.mxu0 0.0
  %122 = vmatprep.subr.mxu0 0.0
  %123 = vmatpush1.msra.mxu0 0.0
  %124 = vmatprep.subr.mxu0 0.0
  %125 = vmatpush1.msra.mxu0 0.0
  %126 = vmatprep.subr.mxu0 0.0
  %127 = vmatpush1.msra.mxu0 0.0
  %128 = vmatprep.subr.mxu0 0.0
  %129 = vmatpush1.msra.mxu0 0.0
  %130 = vmatprep.mubr.f32.mxu0 0.0
  %131 = vmatmul.mubr.f32.gmra.mrb[0].mxu0 %v61
  %v132 = vpop.f32.mrb[0].mxu0
  %v133 = vadd.f32 %v58, %v132
  %v134 = vpop.f32.mrb[0].mxu0
  %135 = vmatprep.mubr.f32.mxu0 0.0
  %136 = vmatmul.mubr.f32.gmra.mrb[0].mxu0 %v64
  %v137 = vpop.f32.mrb[0].mxu0
  %v138 = vadd.f32 %v58, %v137
  %v139 = vpop.f32.mrb[0].mxu0
  %140 = vdwg.mxu0
  %vm141 = vcmask 261120
  %v142 = vsel %vm141, %v133, 0.0
  %143 = vadd.xlane.f32.xlu0 %v142
  %v144 = vpop.xlane.xlu0 %143
  %v145 = vsel %vm141, %v138, 0.0
  %146 = vadd.xlane.f32.xlu0 %v145
  %v147 = vpop.xlane.xlu0 %146
  %v148 = vrcp.pop 32.0
  %v149 = vmul.f32 %v144, %v148
  %v150 = vmul.f32 %v147, %v148
  %v151 = vsub.f32 %v133, %v149
  %v152 = vsub.f32 %v138, %v150
  %v153 = vmul.f32 %v151, %v151
  %v154 = vmul.f32 %v152, %v152
  %v155 = vsel %vm141, %v153, 0.0
  %156 = vadd.xlane.f32.xlu0 %v155
  %v157 = vpop.xlane.xlu0 %156
  %v158 = vsel %vm141, %v154, 0.0
  %159 = vadd.xlane.f32.xlu0 %v158
  %v160 = vpop.xlane.xlu0 %159
  %v161 = vmul.f32 %v157, %v148
  %v162 = vmul.f32 %v160, %v148
  %v163 = vadd.f32 %v161, 1e-05
  %v164 = vadd.f32 %v162, 1e-05
  %v165 = vrsqrt.pop %v163
  %v166 = vrsqrt.pop %v164
  %v167 = vmul.f32 %v151, %v165
  %v168 = vmul.f32 %v152, %v166
  %v169 = vld [vmem:[%s3] sm:$0x1]
  %v171 = vlaneseq
  %v172 = vshrl.u32 %v171, 7
  %v173 = vsub.s32 0, %v172
  %v174 = vrot.slane %v169, %v173
  %v176 = vmul.f32 %v167, %v174
  %v177 = vmul.f32 %v168, %v174
  %v178 = vld [vmem:[%s4] sm:$0x1]
  %v180 = vlaneseq
  %v181 = vshrl.u32 %v180, 7
  %v182 = vsub.s32 0, %v181
  %v183 = vrot.slane %v178, %v182
  %v185 = vadd.f32 %v176, %v183
  %v186 = vadd.f32 %v177, %v183
  %187 = vst.msk [vmem:[%s5] sm:$0xff] %vm141, %v185
  %188 = vst.msk [vmem:[%s5 + $0x8] sm:$0xff] %vm141, %v186
  // Predicated region
  $region22: #{_forward_core.3} parent=0 // pred_check
    _
  $region23: #{_forward_core.3} parent=0 // pred_check_branch
    %190 = sbr.rel (0) target = $region25
  $region24: #{_forward_core.3} parent=0 // pred_region
    _
  $region25: #{_forward_core.3} parent=0 // pred_fallthru
    _
  // Predicated region
  $region26: #{_forward_core.3} parent=0 // pred_check
    _
  $region27: #{_forward_core.3} parent=0 // pred_check_branch
    %192 = sbr.rel (0) target = $region29
  $region28: #{_forward_core.3} parent=0 // pred_region
    _
  $region29: #{_forward_core.3} parent=0 // pred_fallthru
    _

// kernel: _forward_core.4
$region0: #{_forward_core.4}
  #allocation0 [shape = 'u32[]', space=smem, size = 0x4, offset = 0x4, fixed_abs, tag = 'smem constant byte address 0x4 - core index']
  #allocation1 [shape = 'u32[144,128]{1,0:T(1,128)}', space=vmem, size = 0x12000, scoped, tag = 'internal scratch']
  #allocation2 [shape = 'f32[9,32]{1,0:T(8,128)}', space=vmem, size = 0x2000, scoped, tag = 'scratch operand']
  %s0 = inlined_call_operand.vmem [shape: f32[2,9,32], index: 0, kind: input, shape index: {}]
  %s1 = inlined_call_operand.vmem [shape: f32[2,32,96], index: 1, kind: input, shape index: {}]
  %s2 = inlined_call_operand.vmem [shape: f32[2,1,96], index: 2, kind: input, shape index: {}]
  %s3 = inlined_call_operand.vmem [shape: f32[2,32,32], index: 3, kind: input, shape index: {}]
  %s4 = inlined_call_operand.vmem [shape: f32[2,1,32], index: 4, kind: input, shape index: {}]
  %s5 = inlined_call_operand.vmem [shape: f32[2,32,128], index: 5, kind: input, shape index: {}]
  %s6 = inlined_call_operand.vmem [shape: f32[2,1,128], index: 6, kind: input, shape index: {}]
  %s7 = inlined_call_operand.vmem [shape: f32[2,128,32], index: 7, kind: input, shape index: {}]
  %s8 = inlined_call_operand.vmem [shape: f32[2,1,32], index: 8, kind: input, shape index: {}]
  %s9 = inlined_call_operand.vmem [shape: f32[32,32], index: 9, kind: input, shape index: {}]
  %s10 = inlined_call_operand.vmem [shape: f32[1,32], index: 10, kind: input, shape index: {}]
  %s11 = inlined_call_operand.vmem [shape: f32[2,9,32], index: 11, kind: output, shape index: {0}]
  %s12 = inlined_call_operand.vmem [shape: f32[2,9,32], index: 12, kind: output, shape index: {1}]
  %13 = xla_tuple %s11, %s12
  %s14 = sld [smem:[#allocation0]]
  $region85: #{_forward_core.4} parent=0
    _
  %s16 = ssub.s32 1, %s14
  %s17 = scalar_select 0, %s16, %s14
  loop: start=0, step=1, limit=4
  $region2: #{_forward_core.4} parent=0 // loop_pre_header
    _
  $region3: #{_forward_core.4} parent=0 // loop_header
    %s19 = sphi 0, %s23
    %p20 = scmp.ge.s32.totalorder %s19, 4
    %s29 = sphi 0, %s31
    %s32 = sphi 0, %s29
    %s33 = sphi 0, %s32
    %s49 = sphi 0, %s33
    %s53 = sphi 0, %s53
    %s55 = sphi 0, %s53
    %s56 = sphi 0, %s55
    %s70 = sphi 0, %s56
    %s74 = sphi 0, %s74
    %s76 = sphi 0, %s74
    %s77 = sphi 0, %s76
    %s91 = sphi 0, %s77
    %s95 = sphi 0, %s95
    %s97 = sphi 0, %s95
    %s98 = sphi 0, %s97
    %s112 = sphi 0, %s98
    %s116 = sphi 0, %s116
    %s118 = sphi 0, %s116
    %s119 = sphi 0, %s118
    %s133 = sphi 0, %s119
    %s137 = sphi 0, %s137
    %s139 = sphi 0, %s137
    %s140 = sphi 0, %s139
    %s154 = sphi 0, %s140
    %s158 = sphi 0, %s158
    %s160 = sphi 0, %s158
    %s161 = sphi 0, %s160
    %s175 = sphi 0, %s161
    %s179 = sphi 0, %s179
    %s181 = sphi 0, %s179
    %s182 = sphi 0, %s181
    %s196 = sphi 0, %s182
    %s200 = sphi 0, %s200
    %s202 = sphi 0, %s200
    %s203 = sphi 0, %s202
    %s217 = sphi 0, %s203
    %s221 = sphi 0, %s221
    %s223 = sphi 0, %s221
    %s224 = sphi 0, %s223
    %s238 = sphi 0, %s224
    %s242 = sphi 0, %s242
    %s244 = sphi 0, %s242
    %s245 = sphi 0, %s244
    %s259 = sphi 0, %s245
    %s265 = sphi 0, %s267
    %s268 = sphi 0, %s265
    %s269 = sphi 0, %s268
    %s285 = sphi 0, %s269
    %s291 = sphi 0, %s293
    %s294 = sphi 0, %s291
    %s295 = sphi 0, %s294
    %s311 = sphi 0, %s295
  $region4: #{_forward_core.4} parent=0 // loop_header_branch
    %22 = sbr.rel (%p20) target = $region8
  $region5: #{_forward_core.4} parent=0 // loop_body
    %s24 = ssub.s32 %s19, 1
    %s25 = ssub.s32 %s19, 2
    %s26 = sadd.s32 %s19, 1
    %s27 = ssub.s32 %s19, %s26
    %p28 = scmp.eq.s32.totalorder %s27, 0
    %s30 = sadd.s32 %s29, 1
    %s31 = scalar_select %p28, %s29, %s30
    %p34 = pneg %p28
    %p35 = scmp.eq.s32.totalorder %s19, 1
    %p36 = por %p34, %p35
    %p37 = scmp.ne.s32.totalorder %s29, %s32
    %p38 = scmp.eq.s32.totalorder %s19, 0
    %p39 = por %p37, %p38
    %p40 = scmp.ne.s32.totalorder %s29, %s32
    %p41 = scmp.eq.s32.totalorder %s24, 1
    %p42 = por %p40, %p41
    %p43 = scmp.ne.s32.totalorder %s32, %s33
    %p44 = scmp.eq.s32.totalorder %s24, 0
    %p45 = por %p43, %p44
    %p46 = scmp.ne.s32.totalorder %s32, %s33
    %p47 = scmp.eq.s32.totalorder %s25, 1
    %p48 = por %p46, %p47
    %p50 = scmp.ne.s32.totalorder %s33, %s49
    %p51 = scmp.eq.s32.totalorder %s25, 0
    %p52 = por %p50, %p51
    %s54 = sadd.s32 %s53, 1
    %p57 = scmp.eq.s32.totalorder %s19, 1
    %p58 = scmp.ne.s32.totalorder %s53, %s55
    %p59 = scmp.eq.s32.totalorder %s19, 0
    %p60 = por %p58, %p59
    %p61 = scmp.ne.s32.totalorder %s53, %s55
    %p62 = scmp.eq.s32.totalorder %s24, 1
    %p63 = por %p61, %p62
    %p64 = scmp.ne.s32.totalorder %s55, %s56
    %p65 = scmp.eq.s32.totalorder %s24, 0
    %p66 = por %p64, %p65
    %p67 = scmp.ne.s32.totalorder %s55, %s56
    %p68 = scmp.eq.s32.totalorder %s25, 1
    %p69 = por %p67, %p68
    %p71 = scmp.ne.s32.totalorder %s56, %s70
    %p72 = scmp.eq.s32.totalorder %s25, 0
    %p73 = por %p71, %p72
    %s75 = sadd.s32 %s74, 1
    %p78 = scmp.eq.s32.totalorder %s19, 1
    %p79 = scmp.ne.s32.totalorder %s74, %s76
    %p80 = scmp.eq.s32.totalorder %s19, 0
    %p81 = por %p79, %p80
    %p82 = scmp.ne.s32.totalorder %s74, %s76
    %p83 = scmp.eq.s32.totalorder %s24, 1
    %p84 = por %p82, %p83
    %p85 = scmp.ne.s32.totalorder %s76, %s77
    %p86 = scmp.eq.s32.totalorder %s24, 0
    %p87 = por %p85, %p86
    %p88 = scmp.ne.s32.totalorder %s76, %s77
    %p89 = scmp.eq.s32.totalorder %s25, 1
    %p90 = por %p88, %p89
    %p92 = scmp.ne.s32.totalorder %s77, %s91
    %p93 = scmp.eq.s32.totalorder %s25, 0
    %p94 = por %p92, %p93
    %s96 = sadd.s32 %s95, 1
    %p99 = scmp.eq.s32.totalorder %s19, 1
    %p100 = scmp.ne.s32.totalorder %s95, %s97
    %p101 = scmp.eq.s32.totalorder %s19, 0
    %p102 = por %p100, %p101
    %p103 = scmp.ne.s32.totalorder %s95, %s97
    %p104 = scmp.eq.s32.totalorder %s24, 1
    %p105 = por %p103, %p104
    %p106 = scmp.ne.s32.totalorder %s97, %s98
    %p107 = scmp.eq.s32.totalorder %s24, 0
    %p108 = por %p106, %p107
    %p109 = scmp.ne.s32.totalorder %s97, %s98
    %p110 = scmp.eq.s32.totalorder %s25, 1
    %p111 = por %p109, %p110
    %p113 = scmp.ne.s32.totalorder %s98, %s112
    %p114 = scmp.eq.s32.totalorder %s25, 0
    %p115 = por %p113, %p114
    %s117 = sadd.s32 %s116, 1
    %p120 = scmp.eq.s32.totalorder %s19, 1
    %p121 = scmp.ne.s32.totalorder %s116, %s118
    %p122 = scmp.eq.s32.totalorder %s19, 0
    %p123 = por %p121, %p122
    %p124 = scmp.ne.s32.totalorder %s116, %s118
    %p125 = scmp.eq.s32.totalorder %s24, 1
    %p126 = por %p124, %p125
    %p127 = scmp.ne.s32.totalorder %s118, %s119
    %p128 = scmp.eq.s32.totalorder %s24, 0
    %p129 = por %p127, %p128
    %p130 = scmp.ne.s32.totalorder %s118, %s119
    %p131 = scmp.eq.s32.totalorder %s25, 1
    %p132 = por %p130, %p131
    %p134 = scmp.ne.s32.totalorder %s119, %s133
    %p135 = scmp.eq.s32.totalorder %s25, 0
    %p136 = por %p134, %p135
    %s138 = sadd.s32 %s137, 1
    %p141 = scmp.eq.s32.totalorder %s19, 1
    %p142 = scmp.ne.s32.totalorder %s137, %s139
    %p143 = scmp.eq.s32.totalorder %s19, 0
    %p144 = por %p142, %p143
    %p145 = scmp.ne.s32.totalorder %s137, %s139
    %p146 = scmp.eq.s32.totalorder %s24, 1
    %p147 = por %p145, %p146
    %p148 = scmp.ne.s32.totalorder %s139, %s140
    %p149 = scmp.eq.s32.totalorder %s24, 0
    %p150 = por %p148, %p149
    %p151 = scmp.ne.s32.totalorder %s139, %s140
    %p152 = scmp.eq.s32.totalorder %s25, 1
    %p153 = por %p151, %p152
    %p155 = scmp.ne.s32.totalorder %s140, %s154
    %p156 = scmp.eq.s32.totalorder %s25, 0
    %p157 = por %p155, %p156
    %s159 = sadd.s32 %s158, 1
    %p162 = scmp.eq.s32.totalorder %s19, 1
    %p163 = scmp.ne.s32.totalorder %s158, %s160
    %p164 = scmp.eq.s32.totalorder %s19, 0
    %p165 = por %p163, %p164
    %p166 = scmp.ne.s32.totalorder %s158, %s160
    %p167 = scmp.eq.s32.totalorder %s24, 1
    %p168 = por %p166, %p167
    %p169 = scmp.ne.s32.totalorder %s160, %s161
    %p170 = scmp.eq.s32.totalorder %s24, 0
    %p171 = por %p169, %p170
    %p172 = scmp.ne.s32.totalorder %s160, %s161
    %p173 = scmp.eq.s32.totalorder %s25, 1
    %p174 = por %p172, %p173
    %p176 = scmp.ne.s32.totalorder %s161, %s175
    %p177 = scmp.eq.s32.totalorder %s25, 0
    %p178 = por %p176, %p177
    %s180 = sadd.s32 %s179, 1
    %p183 = scmp.eq.s32.totalorder %s19, 1
    %p184 = scmp.ne.s32.totalorder %s179, %s181
    %p185 = scmp.eq.s32.totalorder %s19, 0
    %p186 = por %p184, %p185
    %p187 = scmp.ne.s32.totalorder %s179, %s181
    %p188 = scmp.eq.s32.totalorder %s24, 1
    %p189 = por %p187, %p188
    %p190 = scmp.ne.s32.totalorder %s181, %s182
    %p191 = scmp.eq.s32.totalorder %s24, 0
    %p192 = por %p190, %p191
    %p193 = scmp.ne.s32.totalorder %s181, %s182
    %p194 = scmp.eq.s32.totalorder %s25, 1
    %p195 = por %p193, %p194
    %p197 = scmp.ne.s32.totalorder %s182, %s196
    %p198 = scmp.eq.s32.totalorder %s25, 0
    %p199 = por %p197, %p198
    %s201 = sadd.s32 %s200, 1
    %p204 = scmp.eq.s32.totalorder %s19, 1
    %p205 = scmp.ne.s32.totalorder %s200, %s202
    %p206 = scmp.eq.s32.totalorder %s19, 0
    %p207 = por %p205, %p206
    %p208 = scmp.ne.s32.totalorder %s200, %s202
    %p209 = scmp.eq.s32.totalorder %s24, 1
    %p210 = por %p208, %p209
    %p211 = scmp.ne.s32.totalorder %s202, %s203
    %p212 = scmp.eq.s32.totalorder %s24, 0
    %p213 = por %p211, %p212
    %p214 = scmp.ne.s32.totalorder %s202, %s203
    %p215 = scmp.eq.s32.totalorder %s25, 1
    %p216 = por %p214, %p215
    %p218 = scmp.ne.s32.totalorder %s203, %s217
    %p219 = scmp.eq.s32.totalorder %s25, 0
    %p220 = por %p218, %p219
    %s222 = sadd.s32 %s221, 1
    %p225 = scmp.eq.s32.totalorder %s19, 1
    %p226 = scmp.ne.s32.totalorder %s221, %s223
    %p227 = scmp.eq.s32.totalorder %s19, 0
    %p228 = por %p226, %p227
    %p229 = scmp.ne.s32.totalorder %s221, %s223
    %p230 = scmp.eq.s32.totalorder %s24, 1
    %p231 = por %p229, %p230
    %p232 = scmp.ne.s32.totalorder %s223, %s224
    %p233 = scmp.eq.s32.totalorder %s24, 0
    %p234 = por %p232, %p233
    %p235 = scmp.ne.s32.totalorder %s223, %s224
    %p236 = scmp.eq.s32.totalorder %s25, 1
    %p237 = por %p235, %p236
    %p239 = scmp.ne.s32.totalorder %s224, %s238
    %p240 = scmp.eq.s32.totalorder %s25, 0
    %p241 = por %p239, %p240
    %s243 = sadd.s32 %s242, 1
    %p246 = scmp.eq.s32.totalorder %s19, 1
    %p247 = scmp.ne.s32.totalorder %s242, %s244
    %p248 = scmp.eq.s32.totalorder %s19, 0
    %p249 = por %p247, %p248
    %p250 = scmp.ne.s32.totalorder %s242, %s244
    %p251 = scmp.eq.s32.totalorder %s24, 1
    %p252 = por %p250, %p251
    %p253 = scmp.ne.s32.totalorder %s244, %s245
    %p254 = scmp.eq.s32.totalorder %s24, 0
    %p255 = por %p253, %p254
    %p256 = scmp.ne.s32.totalorder %s244, %s245
    %p257 = scmp.eq.s32.totalorder %s25, 1
    %p258 = por %p256, %p257
    %p260 = scmp.ne.s32.totalorder %s245, %s259
    %p261 = scmp.eq.s32.totalorder %s25, 0
    %p262 = por %p260, %p261
    %s263 = ssub.s32 %s19, %s26
    %p264 = scmp.eq.s32.totalorder %s263, 0
    %s266 = sadd.s32 %s265, 1
    %s267 = scalar_select %p264, %s265, %s266
    %p270 = pneg %p264
    %p271 = scmp.eq.s32.totalorder %s19, 1
    %p272 = por %p270, %p271
    %p273 = scmp.ne.s32.totalorder %s265, %s268
    %p274 = scmp.eq.s32.totalorder %s19, 0
    %p275 = por %p273, %p274
    %p276 = scmp.ne.s32.totalorder %s265, %s268
    %p277 = scmp.eq.s32.totalorder %s24, 1
    %p278 = por %p276, %p277
    %p279 = scmp.ne.s32.totalorder %s268, %s269
    %p280 = scmp.eq.s32.totalorder %s24, 0
    %p281 = por %p279, %p280
    %p282 = scmp.ne.s32.totalorder %s268, %s269
    %p283 = scmp.eq.s32.totalorder %s25, 1
    %p284 = por %p282, %p283
    %p286 = scmp.ne.s32.totalorder %s269, %s285
    %p287 = scmp.eq.s32.totalorder %s25, 0
    %p288 = por %p286, %p287
    %s289 = ssub.s32 %s19, %s26
    %p290 = scmp.eq.s32.totalorder %s289, 0
    %s292 = sadd.s32 %s291, 1
    %s293 = scalar_select %p290, %s291, %s292
    %p296 = pneg %p290
    %p297 = scmp.eq.s32.totalorder %s19, 1
    %p298 = por %p296, %p297
    %p299 = scmp.ne.s32.totalorder %s291, %s294
    %p300 = scmp.eq.s32.totalorder %s19, 0
    %p301 = por %p299, %p300
    %p302 = scmp.ne.s32.totalorder %s291, %s294
    %p303 = scmp.eq.s32.totalorder %s24, 1
    %p304 = por %p302, %p303
    %p305 = scmp.ne.s32.totalorder %s294, %s295
    %p306 = scmp.eq.s32.totalorder %s24, 0
    %p307 = por %p305, %p306
    %p308 = scmp.ne.s32.totalorder %s294, %s295
    %p309 = scmp.eq.s32.totalorder %s25, 1
    %p310 = por %p308, %p309
    %p312 = scmp.ne.s32.totalorder %s295, %s311
    %p313 = scmp.eq.s32.totalorder %s25, 0
    %p314 = por %p312, %p313
    %p315 = scmp.le.s32.totalorder 1, %s19
    %p316 = scmp.lt.s32.totalorder %s19, 3
    %p317 = pnand %p315, %p316
    %p318 = pneg %p317
    // Predicated region
    $region9: #{_forward_core.4} parent=5 // pred_check
      _
    $region10: #{_forward_core.4} parent=5 // pred_check_branch
      %320 = sbr.rel (%p317) target = $region12
    $region11: #{_forward_core.4} parent=5 // pred_region
      %s321 = ssub.s32 %s19, 1
      // Predicated region
      $region13: #{_forward_core.4} parent=11 // pred_check
        %p322 = pneg %p66
      $region14: #{_forward_core.4} parent=11 // pred_check_branch
        %324 = sbr.rel (%p322) target = $region16
      $region15: #{_forward_core.4} parent=11 // pred_region
        _
      $region16: #{_forward_core.4} parent=11 // pred_fallthru
        _
      // Predicated region
      $region17: #{_forward_core.4} parent=11 // pred_check
        %p325 = pneg %p87
      $region18: #{_forward_core.4} parent=11 // pred_check_branch
        %327 = sbr.rel (%p325) target = $region20
      $region19: #{_forward_core.4} parent=11 // pred_region
        _
      $region20: #{_forward_core.4} parent=11 // pred_fallthru
        _
      // Predicated region
      $region21: #{_forward_core.4} parent=11 // pred_check
        %p328 = pneg %p108
      $region22: #{_forward_core.4} parent=11 // pred_check_branch
        %330 = sbr.rel (%p328) target = $region24
      $region23: #{_forward_core.4} parent=11 // pred_region
        _
      $region24: #{_forward_core.4} parent=11 // pred_fallthru
        _
      // Predicated region
      $region25: #{_forward_core.4} parent=11 // pred_check
        %p331 = pneg %p129
      $region26: #{_forward_core.4} parent=11 // pred_check_branch
        %333 = sbr.rel (%p331) target = $region28
      $region27: #{_forward_core.4} parent=11 // pred_region
        _
      $region28: #{_forward_core.4} parent=11 // pred_fallthru
        _
      // Predicated region
      $region29: #{_forward_core.4} parent=11 // pred_check
        %p334 = pneg %p150
      $region30: #{_forward_core.4} parent=11 // pred_check_branch
        %336 = sbr.rel (%p334) target = $region32
      $region31: #{_forward_core.4} parent=11 // pred_region
        _
      $region32: #{_forward_core.4} parent=11 // pred_fallthru
        _
      // Predicated region
      $region33: #{_forward_core.4} parent=11 // pred_check
        %p337 = pneg %p171
      $region34: #{_forward_core.4} parent=11 // pred_check_branch
        %339 = sbr.rel (%p337) target = $region36
      $region35: #{_forward_core.4} parent=11 // pred_region
        _
      $region36: #{_forward_core.4} parent=11 // pred_fallthru
        _
      // Predicated region
      $region37: #{_forward_core.4} parent=11 // pred_check
        %p340 = pneg %p192
      $region38: #{_forward_core.4} parent=11 // pred_check_branch
        %342 = sbr.rel (%p340) target = $region40
      $region39: #{_forward_core.4} parent=11 // pred_region
        _
      $region40: #{_forward_core.4} parent=11 // pred_fallthru
        _
      // Predicated region
      $region41: #{_forward_core.4} parent=11 // pred_check
        %p343 = pneg %p213
      $region42: #{_forward_core.4} parent=11 // pred_check_branch
        %345 = sbr.rel (%p343) target = $region44
      $region43: #{_forward_core.4} parent=11 // pred_region
        _
      $region44: #{_forward_core.4} parent=11 // pred_fallthru
        _
      // Predicated region
      $region45: #{_forward_core.4} parent=11 // pred_check
        %p346 = pneg %p234
      $region46: #{_forward_core.4} parent=11 // pred_check_branch
        %348 = sbr.rel (%p346) target = $region48
      $region47: #{_forward_core.4} parent=11 // pred_region
        _
      $region48: #{_forward_core.4} parent=11 // pred_fallthru
        _
      // Predicated region
      $region49: #{_forward_core.4} parent=11 // pred_check
        %p349 = pneg %p255
      $region50: #{_forward_core.4} parent=11 // pred_check_branch
        %351 = sbr.rel (%p349) target = $region52
      $region51: #{_forward_core.4} parent=11 // pred_region
        _
      $region52: #{_forward_core.4} parent=11 // pred_fallthru
        _
    $region12: #{_forward_core.4} parent=5 // pred_fallthru
      _
    %p352 = scmp.lt.s32.totalorder %s19, 2
    // Predicated region
    $region53: #{_forward_core.4} parent=5 // pred_check
      %p353 = pneg %p352
    $region54: #{_forward_core.4} parent=5 // pred_check_branch
      %355 = sbr.rel (%p353) target = $region56
    $region55: #{_forward_core.4} parent=5 // pred_region
      // Predicated region
      $region57: #{_forward_core.4} parent=55 // pred_check
        %p356 = pneg %p39
      $region58: #{_forward_core.4} parent=55 // pred_check_branch
        %358 = sbr.rel (%p356) target = $region60
      $region59: #{_forward_core.4} parent=55 // pred_region
        %p359 = scmp.lt.s32.totalorder %s19, 1
        %s360 = scalar_select %p359, %s19, 1
        %s361 = smul.addr %s360, 2
        %s362 = smul.addr %s361, 8
        %s363 = scalar_lea.vmem %s0, %s362
      $region60: #{_forward_core.4} parent=55 // pred_fallthru
        _
    $region56: #{_forward_core.4} parent=5 // pred_fallthru
      _
    %p364 = scmp.le.s32.totalorder 1, %s19
    %p365 = scmp.lt.s32.totalorder %s19, 3
    %p366 = pnand %p364, %p365
    %p367 = pneg %p366
    // Predicated region
    $region61: #{_forward_core.4} parent=5 // pred_check
      _
    $region62: #{_forward_core.4} parent=5 // pred_check_branch
      %369 = sbr.rel (%p366) target = $region64
    $region63: #{_forward_core.4} parent=5 // pred_region
      %s370 = ssub.s32 %s19, 1
      %p371 = scmp.lt.s32.totalorder %s24, 1
      %s372 = scalar_select %p371, %s24, 1
      %s373 = smul.addr %s372, 2
      %s374 = smul.addr %s373, 8
      %s375 = scalar_lea.vmem %s0, %s374
      %p376 = pneg %p45
      %p377 = pneg %p42
      %p378 = pneg %p66
      %p379 = pneg %p63
      %p380 = pneg %p87
      %p381 = pneg %p84
      %p382 = pneg %p108
      %p383 = pneg %p105
      %p384 = pneg %p129
      %p385 = pneg %p126
      %p386 = pneg %p150
      %p387 = pneg %p147
      %p388 = pneg %p171
      %p389 = pneg %p168
      %p390 = pneg %p192
      %p391 = pneg %p189
      %p392 = pneg %p213
      %p393 = pneg %p210
      %p394 = pneg %p234
      %p395 = pneg %p231
      %p396 = pneg %p255
      %p397 = pneg %p252
      %p398 = pneg %p281
      %p399 = pneg %p278
      %p400 = scmp.lt.s32.totalorder %s24, 1
      %s401 = scalar_select %p400, %s24, 1
      %s402 = smul.addr %s401, 2
      %s403 = smul.addr %s402, 8
      %s404 = scalar_lea.vmem %s11, %s403
      %p405 = pneg %p307
      %p406 = pneg %p304
      %p407 = scmp.lt.s32.totalorder %s24, 1
      %s408 = scalar_select %p407, %s24, 1
      %s409 = smul.addr %s408, 2
      %s410 = smul.addr %s409, 8
      %s411 = scalar_lea.vmem %s12, %s410
      %p412 = scmp.lt.s32.totalorder %s24, 1
      %s413 = scalar_select %p412, %s24, 1
      %s414 = smul.addr %s413, 2
      %s415 = smul.addr %s414, 8
      %s416 = scalar_lea.vmem %s0, %s415
      %p417 = scmp.lt.s32.totalorder %s24, 1
      %s418 = scalar_select %p417, %s24, 1
      %s419 = smul.addr %s418, 2
      %s420 = smul.addr %s419, 8
      %s421 = scalar_lea.vmem %s11, %s420
      %p422 = scmp.lt.s32.totalorder %s24, 1
      %s423 = scalar_select %p422, %s24, 1
      %s424 = smul.addr %s423, 2
      %s425 = smul.addr %s424, 8
      %s426 = scalar_lea.vmem %s12, %s425
      %v427 = vld [vmem:[%s416] sm:$0xff]
      %v428 = vld [vmem:[%s416 + $0x8] sm:$0x1]
      %v429 = vld [vmem:[%s1] sm:$0xff]
      %v430 = vld [vmem:[%s1 + $0x8] sm:$0xff]
      %v431 = vld [vmem:[%s1 + $0x10] sm:$0xff]
      %v432 = vld [vmem:[%s1 + $0x18] sm:$0xff]
      %v433 = vld [vmem:[%s2] sm:$0x1]
      %v434 = vld [vmem:[%s3] sm:$0xff]
      %v435 = vld [vmem:[%s3 + $0x8] sm:$0xff]
      %v436 = vld [vmem:[%s3 + $0x10] sm:$0xff]
      %v437 = vld [vmem:[%s3 + $0x18] sm:$0xff]
      %v438 = vld [vmem:[%s4] sm:$0x1]
      %v439 = vld [vmem:[%s5] sm:$0xff]
      %v440 = vld [vmem:[%s5 + $0x8] sm:$0xff]
      %v441 = vld [vmem:[%s5 + $0x10] sm:$0xff]
      %v442 = vld [vmem:[%s5 + $0x18] sm:$0xff]
      %v443 = vld [vmem:[%s6] sm:$0x1]
      %v444 = vld [vmem:[%s7] sm:$0xff]
      %v445 = vld [vmem:[%s7 + $0x8] sm:$0xff]
      %v446 = vld [vmem:[%s7 + $0x10] sm:$0xff]
      %v447 = vld [vmem:[%s7 + $0x18] sm:$0xff]
      %v448 = vld [vmem:[%s7 + $0x20] sm:$0xff]
      %v449 = vld [vmem:[%s7 + $0x28] sm:$0xff]
      %v450 = vld [vmem:[%s7 + $0x30] sm:$0xff]
      %v451 = vld [vmem:[%s7 + $0x38] sm:$0xff]
      %v452 = vld [vmem:[%s7 + $0x40] sm:$0xff]
      %v453 = vld [vmem:[%s7 + $0x48] sm:$0xff]
      %v454 = vld [vmem:[%s7 + $0x50] sm:$0xff]
      %v455 = vld [vmem:[%s7 + $0x58] sm:$0xff]
      %v456 = vld [vmem:[%s7 + $0x60] sm:$0xff]
      %v457 = vld [vmem:[%s7 + $0x68] sm:$0xff]
      %v458 = vld [vmem:[%s7 + $0x70] sm:$0xff]
      %v459 = vld [vmem:[%s7 + $0x78] sm:$0xff]
      %v460 = vld [vmem:[%s8] sm:$0x1]
      %vm461 = vcmask 261120
      %v462 = vsel %vm461, %v427, 0.0
      %463 = vadd.xlane.f32.xlu0 %v462
      %v464 = vpop.xlane.xlu0 %463
      %vm465 = vcmask 253952
      %v466 = vsel %vm465, %v428, 0.0
      %467 = vadd.xlane.f32.xlu0 %v466
      %v468 = vpop.xlane.xlu0 %467
      %v469 = vrcp.pop 32.0
      %v470 = vmul.f32 %v464, %v469
      %v471 = vmul.f32 %v468, %v469
      %v472 = vsub.f32 %v427, %v470
      %v473 = vsub.f32 %v428, %v471
      %v474 = vmul.f32 %v472, %v472
      %v475 = vmul.f32 %v473, %v473
      %v476 = vsel %vm461, %v474, 0.0
      %477 = vadd.xlane.f32.xlu0 %v476
      %v478 = vpop.xlane.xlu0 %477
      %v479 = vsel %vm465, %v475, 0.0
      %480 = vadd.xlane.f32.xlu0 %v479
      %v481 = vpop.xlane.xlu0 %480
      %v482 = vmul.f32 %v478, %v469
      %v483 = vmul.f32 %v481, %v469
      %v484 = vadd.f32 %v482, 1e-05
      %v485 = vadd.f32 %v483, 1e-05
      %v486 = vrsqrt.pop %v484
      %v487 = vrsqrt.pop %v485
      %v488 = vmul.f32 %v472, %v486
      %v489 = vmul.f32 %v473, %v487
      %v491 = vlaneseq
      %v492 = vshrl.u32 %v491, 7
      %v493 = vsub.s32 0, %v492
      %v494 = vrot.slane %v433, %v493
      %v497 = vsel %vm461, %v488, 0
      %v500 = vsel %vm461, %v489, 0
      %502 = vmatprep.subr.mxu0 0.0
      %503 = vmatpush1.msra.mxu0 %v429
      %504 = vmatprep.subr.mxu0 0.0
      %505 = vmatpush1.msra.mxu0 %v430
      %506 = vmatprep.subr.mxu0 0.0
      %507 = vmatpush1.msra.mxu0 %v431
      %508 = vmatprep.subr.mxu0 0.0
      %509 = vmatpush1.msra.mxu0 %v432
      %510 = vmatprep.subr.mxu0 0.0
      %511 = vmatpush1.msra.mxu0 0.0
      %512 = vmatprep.subr.mxu0 0.0
      %513 = vmatpush1.msra.mxu0 0.0
      %514 = vmatprep.subr.mxu0 0.0
      %515 = vmatpush1.msra.mxu0 0.0
      %516 = vmatprep.subr.mxu0 0.0
      %517 = vmatpush1.msra.mxu0 0.0
      %518 = vmatprep.subr.mxu0 0.0
      %519 = vmatpush1.msra.mxu0 0.0
      %520 = vmatprep.subr.mxu0 0.0
      %521 = vmatpush1.msra.mxu0 0.0
      %522 = vmatprep.subr.mxu0 0.0
      %523 = vmatpush1.msra.mxu0 0.0
      %524 = vmatprep.subr.mxu0 0.0
      %525 = vmatpush1.msra.mxu0 0.0
      %526 = vmatprep.subr.mxu0 0.0
      %527 = vmatpush1.msra.mxu0 0.0
      %528 = vmatprep.subr.mxu0 0.0
      %529 = vmatpush1.msra.mxu0 0.0
      %530 = vmatprep.subr.mxu0 0.0
      %531 = vmatpush1.msra.mxu0 0.0
      %532 = vmatprep.subr.mxu0 0.0
      %533 = vmatpush1.msra.mxu0 0.0
      %534 = vmatprep.subr.mxu0 0.0
      %535 = vmatpush1.msra.mxu0 0.0
      %536 = vmatprep.subr.mxu0 0.0
      %537 = vmatpush1.msra.mxu0 0.0
      %538 = vmatprep.subr.mxu0 0.0
      %539 = vmatpush1.msra.mxu0 0.0
      %540 = vmatprep.subr.mxu0 0.0
      %541 = vmatpush1.msra.mxu0 0.0
      %542 = vmatprep.subr.mxu0 0.0
      %543 = vmatpush1.msra.mxu0 0.0
      %544 = vmatprep.subr.mxu0 0.0
      %545 = vmatpush1.msra.mxu0 0.0
      %546 = vmatprep.subr.mxu0 0.0
      %547 = vmatpush1.msra.mxu0 0.0
      %548 = vmatprep.subr.mxu0 0.0
      %549 = vmatpush1.msra.mxu0 0.0
      %550 = vmatprep.subr.mxu0 0.0
      %551 = vmatpush1.msra.mxu0 0.0
      %552 = vmatprep.subr.mxu0 0.0
      %553 = vmatpush1.msra.mxu0 0.0
      %554 = vmatprep.subr.mxu0 0.0
      %555 = vmatpush1.msra.mxu0 0.0
      %556 = vmatprep.subr.mxu0 0.0
      %557 = vmatpush1.msra.mxu0 0.0
      %558 = vmatprep.subr.mxu0 0.0
      %559 = vmatpush1.msra.mxu0 0.0
      %560 = vmatprep.subr.mxu0 0.0
      %561 = vmatpush1.msra.mxu0 0.0
      %562 = vmatprep.subr.mxu0 0.0
      %563 = vmatpush1.msra.mxu0 0.0
      %564 = vmatprep.subr.mxu0 0.0
      %565 = vmatpush1.msra.mxu0 0.0
      %566 = vmatprep.mubr.f32.mxu0 0.0
      %567 = vmatmul.mubr.f32.gmra.mrb[0].mxu0 %v497
      %v568 = vpop.f32.mrb[0].mxu0
      %v569 = vadd.f32 %v494, %v568
      %v570 = vpop.f32.mrb[0].mxu0
      %571 = vmatprep.mubr.f32.mxu0 0.0
      %572 = vmatmul.mubr.f32.gmra.mrb[0].mxu0 %v500
      %v573 = vpop.f32.mrb[0].mxu0
      %v574 = vadd.f32 %v494, %v573
      %v575 = vpop.f32.mrb[0].mxu0
      %576 = vdwg.mxu0
      %579 = vrot.lane.b32.xlu0 %v569, 96
      %v580 = vpop.permute.xlu0 %579
      %581 = vrot.lane.b32.xlu0 %v574, 96
      %v582 = vpop.permute.xlu0 %581
      %vm583 = vcmask 31744
      %v584 = vsel %vm583, %v569, 0
      %v586 = vsel %vm583, %v574, 0
      %v588 = vsel %vm583, %v580, 0
      %v590 = vsel %vm583, %v582, 0
      %592 = vmatprep.subr.mxu0 0.0
      %593 = vmatpush1.xpose.msra.mxu0 %v588
      %594 = vmatprep.subr.mxu0 0.0
      %595 = vmatpush1.xpose.msra.mxu0 %v590
      %596 = vmatprep.subr.mxu0 0.0
      %597 = vmatpush1.xpose.msra.mxu0 0.0
      %598 = vmatprep.subr.mxu0 0.0
      %599 = vmatpush1.xpose.msra.mxu0 0.0
      %600 = vmatprep.subr.mxu0 0.0
      %601 = vmatpush1.xpose.msra.mxu0 0.0
      %602 = vmatprep.subr.mxu0 0.0
      %603 = vmatpush1.xpose.msra.mxu0 0.0
      %604 = vmatprep.subr.mxu0 0.0
      %605 = vmatpush1.xpose.msra.mxu0 0.0
      %606 = vmatprep.subr.mxu0 0.0
      %607 = vmatpush1.xpose.msra.mxu0 0.0
      %608 = vmatprep.subr.mxu0 0.0
      %609 = vmatpush1.xpose.msra.mxu0 0.0
      %610 = vmatprep.subr.mxu0 0.0
      %611 = vmatpush1.xpose.msra.mxu0 0.0
      %612 = vmatprep.subr.mxu0 0.0
      %613 = vmatpush1.xpose.msra.mxu0 0.0
      %614 = vmatprep.subr.mxu0 0.0
      %615 = vmatpush1.xpose.msra.mxu0 0.0
      %616 = vmatprep.subr.mxu0 0.0
      %617 = vmatpush1.xpose.msra.mxu0 0.0
      %618 = vmatprep.subr.mxu0 0.0
      %619 = vmatpush1.xpose.msra.mxu0 0.0
      %620 = vmatprep.subr.mxu0 0.0
      %621 = vmatpush1.xpose.msra.mxu0 0.0
      %622 = vmatprep.subr.mxu0 0.0
      %623 = vmatpush1.xpose.msra.mxu0 0.0
      %624 = vmatprep.subr.mxu0 0.0
      %625 = vmatpush1.xpose.msra.mxu0 0.0
      %626 = vmatprep.subr.mxu0 0.0
      %627 = vmatpush1.xpose.msra.mxu0 0.0
      %628 = vmatprep.subr.mxu0 0.0
      %629 = vmatpush1.xpose.msra.mxu0 0.0
      %630 = vmatprep.subr.mxu0 0.0
      %631 = vmatpush1.xpose.msra.mxu0 0.0
      %632 = vmatprep.subr.mxu0 0.0
      %633 = vmatpush1.xpose.msra.mxu0 0.0
      %634 = vmatprep.subr.mxu0 0.0
      %635 = vmatpush1.xpose.msra.mxu0 0.0
      %636 = vmatprep.subr.mxu0 0.0
      %637 = vmatpush1.xpose.msra.mxu0 0.0
      %638 = vmatprep.subr.mxu0 0.0
      %639 = vmatpush1.xpose.msra.mxu0 0.0
      %640 = vmatprep.subr.mxu0 0.0
      %641 = vmatpush1.xpose.msra.mxu0 0.0
      %642 = vmatprep.subr.mxu0 0.0
      %643 = vmatpush1.xpose.msra.mxu0 0.0
      %644 = vmatprep.subr.mxu0 0.0
      %645 = vmatpush1.xpose.msra.mxu0 0.0
      %646 = vmatprep.subr.mxu0 0.0
      %647 = vmatpush1.xpose.msra.mxu0 0.0
      %648 = vmatprep.subr.mxu0 0.0
      %649 = vmatpush1.xpose.msra.mxu0 0.0
      %650 = vmatprep.subr.mxu0 0.0
      %651 = vmatpush1.xpose.msra.mxu0 0.0
      %652 = vmatprep.subr.mxu0 0.0
      %653 = vmatpush1.xpose.msra.mxu0 0.0
      %654 = vmatprep.subr.mxu0 0.0
      %655 = vmatpush1.xpose.msra.mxu0 0.0
      %656 = vmatprep.mubr.f32.mxu0 0.0
      %657 = vmatmul.mubr.f32.gmra.mrb[0].mxu0 %v584
      %v658 = vpop.f32.mrb[0].mxu0
      %v659 = vadd.f32 0.0, %v658
      %v660 = vpop.f32.mrb[0].mxu0
      %661 = vmatprep.mubr.f32.mxu0 0.0
      %662 = vmatmul.mubr.f32.gmra.mrb[0].mxu0 %v586
      %v663 = vpop.f32.mrb[0].mxu0
      %v664 = vadd.f32 0.0, %v663
      %v665 = vpop.f32.mrb[0].mxu0
      %666 = vdwg.mxu0
      %vm667 = vcmask 72704
      %v668 = vsel %vm667, %v659, -inf
      %669 = vmax.xlane.f32.xlu0 %v668
      %v670 = vpop.xlane.xlu0 %669
      %vm671 = vcmask 65536
      %v672 = vsel %vm671, %v664, -inf
      %673 = vmax.xlane.f32.xlu0 %v672
      %v674 = vpop.xlane.xlu0 %673
      %v675 = vsub.f32 %v659, %v670
      %v676 = vsub.f32 %v664, %v674
      %v677 = vmul.f32 %v675, 1.442695
      %v678 = vpow.pop %v677
      %v679 = vmul.f32 %v676, 1.442695
      %v680 = vpow.pop %v679
      %v681 = vsel %vm667, %v678, 0.0
      %682 = vadd.xlane.f32.xlu0 %v681
      %v683 = vpop.xlane.xlu0 %682
      %v684 = vsel %vm671, %v680, 0.0
      %685 = vadd.xlane.f32.xlu0 %v684
      %v686 = vpop.xlane.xlu0 %685
      %v687 = vrcp.pop %v683
      %v688 = vrcp.pop %v686
      %v689 = vmul.f32 %v678, %v687
      %v690 = vmul.f32 %v680, %v688
      %691 = vrot.lane.b32.xlu0 %v569, 64
      %v692 = vpop.permute.xlu0 %691
      %693 = vrot.lane.b32.xlu0 %v574, 64
      %v694 = vpop.permute.xlu0 %693
      %v697 = vsel %vm667, %v689, 0
      %v700 = vsel %vm667, %v690, 0
      %vm702 = vcmask 1040384
      %v703 = vsel %vm702, %v694, 0
      %705 = vmatprep.subr.mxu0 0.0
      %706 = vmatpush1.msra.mxu0 %v692
      %707 = vmatprep.subr.mxu0 0.0
      %708 = vmatpush1.msra.mxu0 %v703
      %709 = vmatprep.subr.mxu0 0.0
      %710 = vmatpush1.msra.mxu0 0.0
      %711 = vmatprep.subr.mxu0 0.0
      %712 = vmatpush1.msra.mxu0 0.0
      %713 = vmatprep.subr.mxu0 0.0
      %714 = vmatpush1.msra.mxu0 0.0
      %715 = vmatprep.subr.mxu0 0.0
      %716 = vmatpush1.msra.mxu0 0.0
      %717 = vmatprep.subr.mxu0 0.0
      %718 = vmatpush1.msra.mxu0 0.0
      %719 = vmatprep.subr.mxu0 0.0
      %720 = vmatpush1.msra.mxu0 0.0
      %721 = vmatprep.subr.mxu0 0.0
      %722 = vmatpush1.msra.mxu0 0.0
      %723 = vmatprep.subr.mxu0 0.0
      %724 = vmatpush1.msra.mxu0 0.0
      %725 = vmatprep.subr.mxu0 0.0
      %726 = vmatpush1.msra.mxu0 0.0
      %727 = vmatprep.subr.mxu0 0.0
      %728 = vmatpush1.msra.mxu0 0.0
      %729 = vmatprep.subr.mxu0 0.0
      %730 = vmatpush1.msra.mxu0 0.0
      %731 = vmatprep.subr.mxu0 0.0
      %732 = vmatpush1.msra.mxu0 0.0
      %733 = vmatprep.subr.mxu0 0.0
      %734 = vmatpush1.msra.mxu0 0.0
      %735 = vmatprep.subr.mxu0 0.0
      %736 = vmatpush1.msra.mxu0 0.0
      %737 = vmatprep.subr.mxu0 0.0
      %738 = vmatpush1.msra.mxu0 0.0
      %739 = vmatprep.subr.mxu0 0.0
      %740 = vmatpush1.msra.mxu0 0.0
      %741 = vmatprep.subr.mxu0 0.0
      %742 = vmatpush1.msra.mxu0 0.0
      %743 = vmatprep.subr.mxu0 0.0
      %744 = vmatpush1.msra.mxu0 0.0
      %745 = vmatprep.subr.mxu0 0.0
      %746 = vmatpush1.msra.mxu0 0.0
      %747 = vmatprep.subr.mxu0 0.0
      %748 = vmatpush1.msra.mxu0 0.0
      %749 = vmatprep.subr.mxu0 0.0
      %750 = vmatpush1.msra.mxu0 0.0
      %751 = vmatprep.subr.mxu0 0.0
      %752 = vmatpush1.msra.mxu0 0.0
      %753 = vmatprep.subr.mxu0 0.0
      %754 = vmatpush1.msra.mxu0 0.0
      %755 = vmatprep.subr.mxu0 0.0
      %756 = vmatpush1.msra.mxu0 0.0
      %757 = vmatprep.subr.mxu0 0.0
      %758 = vmatpush1.msra.mxu0 0.0
      %759 = vmatprep.subr.mxu0 0.0
      %760 = vmatpush1.msra.mxu0 0.0
      %761 = vmatprep.subr.mxu0 0.0
      %762 = vmatpush1.msra.mxu0 0.0
      %763 = vmatprep.subr.mxu0 0.0
      %764 = vmatpush1.msra.mxu0 0.0
      %765 = vmatprep.subr.mxu0 0.0
      %766 = vmatpush1.msra.mxu0 0.0
      %767 = vmatprep.subr.mxu0 0.0
      %768 = vmatpush1.msra.mxu0 0.0
      %769 = vmatprep.mubr.f32.mxu0 0.0
      %770 = vmatmul.mubr.f32.gmra.mrb[0].mxu0 %v697
      %v771 = vpop.f32.mrb[0].mxu0
      %v772 = vadd.f32 0.0, %v771
      %v773 = vpop.f32.mrb[0].mxu0
      %774 = vmatprep.mubr.f32.mxu0 0.0
      %775 = vmatmul.mubr.f32.gmra.mrb[0].mxu0 %v700
      %v776 = vpop.f32.mrb[0].mxu0
      %v777 = vadd.f32 0.0, %v776
      %v778 = vpop.f32.mrb[0].mxu0
      %779 = vdwg.mxu0
      %780 = vst.msk [vmem:[#allocation2] sm:$0xff] %vm583, %v772
      %vm781 = vcmask 24576
      %782 = vst.msk [vmem:[#allocation2 + $0x8] sm:$0x1] %vm781, %v777
      %783 = vrot.lane.b32.xlu0 %v569, 124
      %v784 = vpop.permute.xlu0 %783
      %785 = vrot.lane.b32.xlu0 %v574, 124
      %v786 = vpop.permute.xlu0 %785
      %787 = vrot.lane.b32.xlu0 %v569, 92
      %v788 = vpop.permute.xlu0 %787
      %789 = vrot.lane.b32.xlu0 %v574, 92
      %v790 = vpop.permute.xlu0 %789
      %v791 = vsel %vm583, %v784, 0
      %v793 = vsel %vm583, %v786, 0
      %v795 = vsel %vm583, %v788, 0
      %v797 = vsel %vm583, %v790, 0
      %799 = vmatprep.subr.mxu0 0.0
      %800 = vmatpush1.xpose.msra.mxu0 %v795
      %801 = vmatprep.subr.mxu0 0.0
      %802 = vmatpush1.xpose.msra.mxu0 %v797
      %803 = vmatprep.subr.mxu0 0.0
      %804 = vmatpush1.xpose.msra.mxu0 0.0
      %805 = vmatprep.subr.mxu0 0.0
      %806 = vmatpush1.xpose.msra.mxu0 0.0
      %807 = vmatprep.subr.mxu0 0.0
      %808 = vmatpush1.xpose.msra.mxu0 0.0
      %809 = vmatprep.subr.mxu0 0.0
      %810 = vmatpush1.xpose.msra.mxu0 0.0
      %811 = vmatprep.subr.mxu0 0.0
      %812 = vmatpush1.xpose.msra.mxu0 0.0
      %813 = vmatprep.subr.mxu0 0.0
      %814 = vmatpush1.xpose.msra.mxu0 0.0
      %815 = vmatprep.subr.mxu0 0.0
      %816 = vmatpush1.xpose.msra.mxu0 0.0
      %817 = vmatprep.subr.mxu0 0.0
      %818 = vmatpush1.xpose.msra.mxu0 0.0
      %819 = vmatprep.subr.mxu0 0.0
      %820 = vmatpush1.xpose.msra.mxu0 0.0
      %821 = vmatprep.subr.mxu0 0.0
      %822 = vmatpush1.xpose.msra.mxu0 0.0
      %823 = vmatprep.subr.mxu0 0.0
      %824 = vmatpush1.xpose.msra.mxu0 0.0
      %825 = vmatprep.subr.mxu0 0.0
      %826 = vmatpush1.xpose.msra.mxu0 0.0
      %827 = vmatprep.subr.mxu0 0.0
      %828 = vmatpush1.xpose.msra.mxu0 0.0
      %829 = vmatprep.subr.mxu0 0.0
      %830 = vmatpush1.xpose.msra.mxu0 0.0
      %831 = vmatprep.subr.mxu0 0.0
      %832 = vmatpush1.xpose.msra.mxu0 0.0
      %833 = vmatprep.subr.mxu0 0.0
      %834 = vmatpush1.xpose.msra.mxu0 0.0
      %835 = vmatprep.subr.mxu0 0.0
      %836 = vmatpush1.xpose.msra.mxu0 0.0
      %837 = vmatprep.subr.mxu0 0.0
      %838 = vmatpush1.xpose.msra.mxu0 0.0
      %839 = vmatprep.subr.mxu0 0.0
      %840 = vmatpush1.xpose.msra.mxu0 0.0
      %841 = vmatprep.subr.mxu0 0.0
      %842 = vmatpush1.xpose.msra.mxu0 0.0
      %843 = vmatprep.subr.mxu0 0.0
      %844 = vmatpush1.xpose.msra.mxu0 0.0
      %845 = vmatprep.subr.mxu0 0.0
      %846 = vmatpush1.xpose.msra.mxu0 0.0
      %847 = vmatprep.subr.mxu0 0.0
      %848 = vmatpush1.xpose.msra.mxu0 0.0
      %849 = vmatprep.subr.mxu0 0.0
      %850 = vmatpush1.xpose.msra.mxu0 0.0
      %851 = vmatprep.subr.mxu0 0.0
      %852 = vmatpush1.xpose.msra.mxu0 0.0
      %853 = vmatprep.subr.mxu0 0.0
      %854 = vmatpush1.xpose.msra.mxu0 0.0
      %855 = vmatprep.subr.mxu0 0.0
      %856 = vmatpush1.xpose.msra.mxu0 0.0
      %857 = vmatprep.subr.mxu0 0.0
      %858 = vmatpush1.xpose.msra.mxu0 0.0
      %859 = vmatprep.subr.mxu0 0.0
      %860 = vmatpush1.xpose.msra.mxu0 0.0
      %861 = vmatprep.subr.mxu0 0.0
      %862 = vmatpush1.xpose.msra.mxu0 0.0
      %863 = vmatprep.mubr.f32.mxu0 0.0
      %864 = vmatmul.mubr.f32.gmra.mrb[0].mxu0 %v791
      %v865 = vpop.f32.mrb[0].mxu0
      %v866 = vadd.f32 0.0, %v865
      %v867 = vpop.f32.mrb[0].mxu0
      %868 = vmatprep.mubr.f32.mxu0 0.0
      %869 = vmatmul.mubr.f32.gmra.mrb[0].mxu0 %v793
      %v870 = vpop.f32.mrb[0].mxu0
      %v871 = vadd.f32 0.0, %v870
      %v872 = vpop.f32.mrb[0].mxu0
      %873 = vdwg.mxu0
      %v874 = vsel %vm667, %v866, -inf
      %875 = vmax.xlane.f32.xlu0 %v874
      %v876 = vpop.xlane.xlu0 %875
      %v877 = vsel %vm671, %v871, -inf
      %878 = vmax.xlane.f32.xlu0 %v877
      %v879 = vpop.xlane.xlu0 %878
      %v880 = vsub.f32 %v866, %v876
      %v881 = vsub.f32 %v871, %v879
      %v882 = vmul.f32 %v880, 1.442695
      %v883 = vpow.pop %v882
      %v884 = vmul.f32 %v881, 1.442695
      %v885 = vpow.pop %v884
      %v886 = vsel %vm667, %v883, 0.0
      %887 = vadd.xlane.f32.xlu0 %v886
      %v888 = vpop.xlane.xlu0 %887
      %v889 = vsel %vm671, %v885, 0.0
      %890 = vadd.xlane.f32.xlu0 %v889
      %v891 = vpop.xlane.xlu0 %890
      %v892 = vrcp.pop %v888
      %v893 = vrcp.pop %v891
      %v894 = vmul.f32 %v883, %v892
      %v895 = vmul.f32 %v885, %v893
      %896 = vrot.lane.b32.xlu0 %v569, 60
      %v897 = vpop.permute.xlu0 %896
      %898 = vrot.lane.b32.xlu0 %v574, 60
      %v899 = vpop.permute.xlu0 %898
      %v902 = vsel %vm667, %v894, 0
      %v905 = vsel %vm667, %v895, 0
      %v907 = vsel %vm702, %v899, 0
      %909 = vmatprep.subr.mxu0 0.0
      %910 = vmatpush1.msra.mxu0 %v897
      %911 = vmatprep.subr.mxu0 0.0
      %912 = vmatpush1.msra.mxu0 %v907
      %913 = vmatprep.subr.mxu0 0.0
      %914 = vmatpush1.msra.mxu0 0.0
      %915 = vmatprep.subr.mxu0 0.0
      %916 = vmatpush1.msra.mxu0 0.0
      %917 = vmatprep.subr.mxu0 0.0
      %918 = vmatpush1.msra.mxu0 0.0
      %919 = vmatprep.subr.mxu0 0.0
      %920 = vmatpush1.msra.mxu0 0.0
      %921 = vmatprep.subr.mxu0 0.0
      %922 = vmatpush1.msra.mxu0 0.0
      %923 = vmatprep.subr.mxu0 0.0
      %924 = vmatpush1.msra.mxu0 0.0
      %925 = vmatprep.subr.mxu0 0.0
      %926 = vmatpush1.msra.mxu0 0.0
      %927 = vmatprep.subr.mxu0 0.0
      %928 = vmatpush1.msra.mxu0 0.0
      %929 = vmatprep.subr.mxu0 0.0
      %930 = vmatpush1.msra.mxu0 0.0
      %931 = vmatprep.subr.mxu0 0.0
      %932 = vmatpush1.msra.mxu0 0.0
      %933 = vmatprep.subr.mxu0 0.0
      %934 = vmatpush1.msra.mxu0 0.0
      %935 = vmatprep.subr.mxu0 0.0
      %936 = vmatpush1.msra.mxu0 0.0
      %937 = vmatprep.subr.mxu0 0.0
      %938 = vmatpush1.msra.mxu0 0.0
      %939 = vmatprep.subr.mxu0 0.0
      %940 = vmatpush1.msra.mxu0 0.0
      %941 = vmatprep.subr.mxu0 0.0
      %942 = vmatpush1.msra.mxu0 0.0
      %943 = vmatprep.subr.mxu0 0.0
      %944 = vmatpush1.msra.mxu0 0.0
      %945 = vmatprep.subr.mxu0 0.0
      %946 = vmatpush1.msra.mxu0 0.0
      %947 = vmatprep.subr.mxu0 0.0
      %948 = vmatpush1.msra.mxu0 0.0
      %949 = vmatprep.subr.mxu0 0.0
      %950 = vmatpush1.msra.mxu0 0.0
      %951 = vmatprep.subr.mxu0 0.0
      %952 = vmatpush1.msra.mxu0 0.0
      %953 = vmatprep.subr.mxu0 0.0
      %954 = vmatpush1.msra.mxu0 0.0
      %955 = vmatprep.subr.mxu0 0.0
      %956 = vmatpush1.msra.mxu0 0.0
      %957 = vmatprep.subr.mxu0 0.0
      %958 = vmatpush1.msra.mxu0 0.0
      %959 = vmatprep.subr.mxu0 0.0
      %960 = vmatpush1.msra.mxu0 0.0
      %961 = vmatprep.subr.mxu0 0.0
      %962 = vmatpush1.msra.mxu0 0.0
      %963 = vmatprep.subr.mxu0 0.0
      %964 = vmatpush1.msra.mxu0 0.0
      %965 = vmatprep.subr.mxu0 0.0
      %966 = vmatpush1.msra.mxu0 0.0
      %967 = vmatprep.subr.mxu0 0.0
      %968 = vmatpush1.msra.mxu0 0.0
      %969 = vmatprep.subr.mxu0 0.0
      %970 = vmatpush1.msra.mxu0 0.0
      %971 = vmatprep.subr.mxu0 0.0
      %972 = vmatpush1.msra.mxu0 0.0
      %973 = vmatprep.mubr.f32.mxu0 0.0
      %974 = vmatmul.mubr.f32.gmra.mrb[0].mxu0 %v902
      %v975 = vpop.f32.mrb[0].mxu0
      %v976 = vadd.f32 0.0, %v975
      %v977 = vpop.f32.mrb[0].mxu0
      %978 = vmatprep.mubr.f32.mxu0 0.0
      %979 = vmatmul.mubr.f32.gmra.mrb[0].mxu0 %v905
      %v980 = vpop.f32.mrb[0].mxu0
      %v981 = vadd.f32 0.0, %v980
      %v982 = vpop.f32.mrb[0].mxu0
      %983 = vdwg.mxu0
      %986 = vrot.lane.b32.xlu0 %v976, 4
      %v987 = vpop.permute.xlu0 %986
      %988 = vrot.lane.b32.xlu0 %v981, 4
      %v989 = vpop.permute.xlu0 %988
      %vm992 = vcmask 64544
      %993 = vst.msk [vmem:[#allocation2] sm:$0xff] %vm992, %v987
      %vm994 = vcmask 57376
      %995 = vst.msk [vmem:[#allocation2 + $0x8] sm:$0x1] %vm994, %v989
      %996 = vrot.lane.b32.xlu0 %v569, 120
      %v997 = vpop.permute.xlu0 %996
      %998 = vrot.lane.b32.xlu0 %v574, 120
      %v999 = vpop.permute.xlu0 %998
      %1000 = vrot.lane.b32.xlu0 %v569, 88
      %v1001 = vpop.permute.xlu0 %1000
      %1002 = vrot.lane.b32.xlu0 %v574, 88
      %v1003 = vpop.permute.xlu0 %1002
      %v1004 = vsel %vm583, %v997, 0
      %v1006 = vsel %vm583, %v999, 0
      %v1008 = vsel %vm583, %v1001, 0
      %v1010 = vsel %vm583, %v1003, 0
      %1012 = vmatprep.subr.mxu0 0.0
      %1013 = vmatpush1.xpose.msra.mxu0 %v1008
      %1014 = vmatprep.subr.mxu0 0.0
      %1015 = vmatpush1.xpose.msra.mxu0 %v1010
      %1016 = vmatprep.subr.mxu0 0.0
      %1017 = vmatpush1.xpose.msra.mxu0 0.0
      %1018 = vmatprep.subr.mxu0 0.0
      %1019 = vmatpush1.xpose.msra.mxu0 0.0
      %1020 = vmatprep.subr.mxu0 0.0
      %1021 = vmatpush1.xpose.msra.mxu0 0.0
      %1022 = vmatprep.subr.mxu0 0.0
      %1023 = vmatpush1.xpose.msra.mxu0 0.0
      %1024 = vmatprep.subr.mxu0 0.0
      %1025 = vmatpush1.xpose.msra.mxu0 0.0
      %1026 = vmatprep.subr.mxu0 0.0
      %1027 = vmatpush1.xpose.msra.mxu0 0.0
      %1028 = vmatprep.subr.mxu0 0.0
      %1029 = vmatpush1.xpose.msra.mxu0 0.0
      %1030 = vmatprep.subr.mxu0 0.0
      %1031 = vmatpush1.xpose.msra.mxu0 0.0
      %1032 = vmatprep.subr.mxu0 0.0
      %1033 = vmatpush1.xpose.msra.mxu0 0.0
      %1034 = vmatprep.subr.mxu0 0.0
      %1035 = vmatpush1.xpose.msra.mxu0 0.0
      %1036 = vmatprep.subr.mxu0 0.0
      %1037 = vmatpush1.xpose.msra.mxu0 0.0
      %1038 = vmatprep.subr.mxu0 0.0
      %1039 = vmatpush1.xpose.msra.mxu0 0.0
      %1040 = vmatprep.subr.mxu0 0.0
      %1041 = vmatpush1.xpose.msra.mxu0 0.0
      %1042 = vmatprep.subr.mxu0 0.0
      %1043 = vmatpush1.xpose.msra.mxu0 0.0
      %1044 = vmatprep.subr.mxu0 0.0
      %1045 = vmatpush1.xpose.msra.mxu0 0.0
      %1046 = vmatprep.subr.mxu0 0.0
      %1047 = vmatpush1.xpose.msra.mxu0 0.0
      %1048 = vmatprep.subr.mxu0 0.0
      %1049 = vmatpush1.xpose.msra.mxu0 0.0
      %1050 = vmatprep.subr.mxu0 0.0
      %1051 = vmatpush1.xpose.msra.mxu0 0.0
      %1052 = vmatprep.subr.mxu0 0.0
      %1053 = vmatpush1.xpose.msra.mxu0 0.0
      %1054 = vmatprep.subr.mxu0 0.0
      %1055 = vmatpush1.xpose.msra.mxu0 0.0
      %1056 = vmatprep.subr.mxu0 0.0
      %1057 = vmatpush1.xpose.msra.mxu0 0.0
      %1058 = vmatprep.subr.mxu0 0.0
      %1059 = vmatpush1.xpose.msra.mxu0 0.0
      %1060 = vmatprep.subr.mxu0 0.0
      %1061 = vmatpush1.xpose.msra.mxu0 0.0
      %1062 = vmatprep.subr.mxu0 0.0
      %1063 = vmatpush1.xpose.msra.mxu0 0.0
      %1064 = vmatprep.subr.mxu0 0.0
      %1065 = vmatpush1.xpose.msra.mxu0 0.0
      %1066 = vmatprep.subr.mxu0 0.0
      %1067 = vmatpush1.xpose.msra.mxu0 0.0
      %1068 = vmatprep.subr.mxu0 0.0
      %1069 = vmatpush1.xpose.msra.mxu0 0.0
      %1070 = vmatprep.subr.mxu0 0.0
      %1071 = vmatpush1.xpose.msra.mxu0 0.0
      %1072 = vmatprep.subr.mxu0 0.0
      %1073 = vmatpush1.xpose.msra.mxu0 0.0
      %1074 = vmatprep.subr.mxu0 0.0
      %1075 = vmatpush1.xpose.msra.mxu0 0.0
      %1076 = vmatprep.mubr.f32.mxu0 0.0
      %1077 = vmatmul.mubr.f32.gmra.mrb[0].mxu0 %v1004
      %v1078 = vpop.f32.mrb[0].mxu0
      %v1079 = vadd.f32 0.0, %v1078
      %v1080 = vpop.f32.mrb[0].mxu0
      %1081 = vmatprep.mubr.f32.mxu0 0.0
      %1082 = vmatmul.mubr.f32.gmra.mrb[0].mxu0 %v1006
      %v1083 = vpop.f32.mrb[0].mxu0
      %v1084 = vadd.f32 0.0, %v1083
      %v1085 = vpop.f32.mrb[0].mxu0
      %1086 = vdwg.mxu0
      %v1087 = vsel %vm667, %v1079, -inf
      %1088 = vmax.xlane.f32.xlu0 %v1087
      %v1089 = vpop.xlane.xlu0 %1088
      %v1090 = vsel %vm671, %v1084, -inf
      %1091 = vmax.xlane.f32.xlu0 %v1090
      %v1092 = vpop.xlane.xlu0 %1091
      %v1093 = vsub.f32 %v1079, %v1089
      %v1094 = vsub.f32 %v1084, %v1092
      %v1095 = vmul.f32 %v1093, 1.442695
      %v1096 = vpow.pop %v1095
      %v1097 = vmul.f32 %v1094, 1.442695
      %v1098 = vpow.pop %v1097
      %v1099 = vsel %vm667, %v1096, 0.0
      %1100 = vadd.xlane.f32.xlu0 %v1099
      %v1101 = vpop.xlane.xlu0 %1100
      %v1102 = vsel %vm671, %v1098, 0.0
      %1103 = vadd.xlane.f32.xlu0 %v1102
      %v1104 = vpop.xlane.xlu0 %1103
      %v1105 = vrcp.pop %v1101
      %v1106 = vrcp.pop %v1104
      %v1107 = vmul.f32 %v1096, %v1105
      %v1108 = vmul.f32 %v1098, %v1106
      %1109 = vrot.lane.b32.xlu0 %v569, 56
      %v1110 = vpop.permute.xlu0 %1109
      %1111 = vrot.lane.b32.xlu0 %v574, 56
      %v1112 = vpop.permute.xlu0 %1111
      %v1115 = vsel %vm667, %v1107, 0
      %v1118 = vsel %vm667, %v1108, 0
      %v1120 = vsel %vm702, %v1112, 0
      %1122 = vmatprep.subr.mxu0 0.0
      %1123 = vmatpush1.msra.mxu0 %v1110
      %1124 = vmatprep.subr.mxu0 0.0
      %1125 = vmatpush1.msra.mxu0 %v1120
      %1126 = vmatprep.subr.mxu0 0.0
      %1127 = vmatpush1.msra.mxu0 0.0
      %1128 = vmatprep.subr.mxu0 0.0
      %1129 = vmatpush1.msra.mxu0 0.0
      %1130 = vmatprep.subr.mxu0 0.0
      %1131 = vmatpush1.msra.mxu0 0.0
      %1132 = vmatprep.subr.mxu0 0.0
      %1133 = vmatpush1.msra.mxu0 0.0
      %1134 = vmatprep.subr.mxu0 0.0
      %1135 = vmatpush1.msra.mxu0 0.0
      %1136 = vmatprep.subr.mxu0 0.0
      %1137 = vmatpush1.msra.mxu0 0.0
      %1138 = vmatprep.subr.mxu0 0.0
      %1139 = vmatpush1.msra.mxu0 0.0
      %1140 = vmatprep.subr.mxu0 0.0
      %1141 = vmatpush1.msra.mxu0 0.0
      %1142 = vmatprep.subr.mxu0 0.0
      %1143 = vmatpush1.msra.mxu0 0.0
      %1144 = vmatprep.subr.mxu0 0.0
      %1145 = vmatpush1.msra.mxu0 0.0
      %1146 = vmatprep.subr.mxu0 0.0
      %1147 = vmatpush1.msra.mxu0 0.0
      %1148 = vmatprep.subr.mxu0 0.0
      %1149 = vmatpush1.msra.mxu0 0.0
      %1150 = vmatprep.subr.mxu0 0.0
      %1151 = vmatpush1.msra.mxu0 0.0
      %1152 = vmatprep.subr.mxu0 0.0
      %1153 = vmatpush1.msra.mxu0 0.0
      %1154 = vmatprep.subr.mxu0 0.0
      %1155 = vmatpush1.msra.mxu0 0.0
      %1156 = vmatprep.subr.mxu0 0.0
      %1157 = vmatpush1.msra.mxu0 0.0
      %1158 = vmatprep.subr.mxu0 0.0
      %1159 = vmatpush1.msra.mxu0 0.0
      %1160 = vmatprep.subr.mxu0 0.0
      %1161 = vmatpush1.msra.mxu0 0.0
      %1162 = vmatprep.subr.mxu0 0.0
      %1163 = vmatpush1.msra.mxu0 0.0
      %1164 = vmatprep.subr.mxu0 0.0
      %1165 = vmatpush1.msra.mxu0 0.0
      %1166 = vmatprep.subr.mxu0 0.0
      %1167 = vmatpush1.msra.mxu0 0.0
      %1168 = vmatprep.subr.mxu0 0.0
      %1169 = vmatpush1.msra.mxu0 0.0
      %1170 = vmatprep.subr.mxu0 0.0
      %1171 = vmatpush1.msra.mxu0 0.0
      %1172 = vmatprep.subr.mxu0 0.0
      %1173 = vmatpush1.msra.mxu0 0.0
      %1174 = vmatprep.subr.mxu0 0.0
      %1175 = vmatpush1.msra.mxu0 0.0
      %1176 = vmatprep.subr.mxu0 0.0
      %1177 = vmatpush1.msra.mxu0 0.0
      %1178 = vmatprep.subr.mxu0 0.0
      %1179 = vmatpush1.msra.mxu0 0.0
      %1180 = vmatprep.subr.mxu0 0.0
      %1181 = vmatpush1.msra.mxu0 0.0
      %1182 = vmatprep.subr.mxu0 0.0
      %1183 = vmatpush1.msra.mxu0 0.0
      %1184 = vmatprep.subr.mxu0 0.0
      %1185 = vmatpush1.msra.mxu0 0.0
      %1186 = vmatprep.mubr.f32.mxu0 0.0
      %1187 = vmatmul.mubr.f32.gmra.mrb[0].mxu0 %v1115
      %v1188 = vpop.f32.mrb[0].mxu0
      %v1189 = vadd.f32 0.0, %v1188
      %v1190 = vpop.f32.mrb[0].mxu0
      %1191 = vmatprep.mubr.f32.mxu0 0.0
      %1192 = vmatmul.mubr.f32.gmra.mrb[0].mxu0 %v1118
      %v1193 = vpop.f32.mrb[0].mxu0
      %v1194 = vadd.f32 0.0, %v1193
      %v1195 = vpop.f32.mrb[0].mxu0
      %1196 = vdwg.mxu0
      %1199 = vrot.lane.b32.xlu0 %v1189, 8
      %v1200 = vpop.permute.xlu0 %1199
      %1201 = vrot.lane.b32.xlu0 %v1194, 8
      %v1202 = vpop.permute.xlu0 %1201
      %vm1205 = vcmask 97344
      %1206 = vst.msk [vmem:[#allocation2] sm:$0xff] %vm1205, %v1200
      %vm1207 = vcmask 90176
      %1208 = vst.msk [vmem:[#allocation2 + $0x8] sm:$0x1] %vm1207, %v1202
      %1209 = vrot.lane.b32.xlu0 %v569, 116
      %v1210 = vpop.permute.xlu0 %1209
      %1211 = vrot.lane.b32.xlu0 %v574, 116
      %v1212 = vpop.permute.xlu0 %1211
      %1213 = vrot.lane.b32.xlu0 %v569, 84
      %v1214 = vpop.permute.xlu0 %1213
      %1215 = vrot.lane.b32.xlu0 %v574, 84
      %v1216 = vpop.permute.xlu0 %1215
      %v1217 = vsel %vm583, %v1210, 0
      %v1219 = vsel %vm583, %v1212, 0
      %v1221 = vsel %vm583, %v1214, 0
      %v1223 = vsel %vm583, %v1216, 0
      %1225 = vmatprep.subr.mxu0 0.0
      %1226 = vmatpush1.xpose.msra.mxu0 %v1221
      %1227 = vmatprep.subr.mxu0 0.0
      %1228 = vmatpush1.xpose.msra.mxu0 %v1223
      %1229 = vmatprep.subr.mxu0 0.0
      %1230 = vmatpush1.xpose.msra.mxu0 0.0
      %1231 = vmatprep.subr.mxu0 0.0
      %1232 = vmatpush1.xpose.msra.mxu0 0.0
      %1233 = vmatprep.subr.mxu0 0.0
      %1234 = vmatpush1.xpose.msra.mxu0 0.0
      %1235 = vmatprep.subr.mxu0 0.0
      %1236 = vmatpush1.xpose.msra.mxu0 0.0
      %1237 = vmatprep.subr.mxu0 0.0
      %1238 = vmatpush1.xpose.msra.mxu0 0.0
      %1239 = vmatprep.subr.mxu0 0.0
      %1240 = vmatpush1.xpose.msra.mxu0 0.0
      %1241 = vmatprep.subr.mxu0 0.0
      %1242 = vmatpush1.xpose.msra.mxu0 0.0
      %1243 = vmatprep.subr.mxu0 0.0
      %1244 = vmatpush1.xpose.msra.mxu0 0.0
      %1245 = vmatprep.subr.mxu0 0.0
      %1246 = vmatpush1.xpose.msra.mxu0 0.0
      %1247 = vmatprep.subr.mxu0 0.0
      %1248 = vmatpush1.xpose.msra.mxu0 0.0
      %1249 = vmatprep.subr.mxu0 0.0
      %1250 = vmatpush1.xpose.msra.mxu0 0.0
      %1251 = vmatprep.subr.mxu0 0.0
      %1252 = vmatpush1.xpose.msra.mxu0 0.0
      %1253 = vmatprep.subr.mxu0 0.0
      %1254 = vmatpush1.xpose.msra.mxu0 0.0
      %1255 = vmatprep.subr.mxu0 0.0
      %1256 = vmatpush1.xpose.msra.mxu0 0.0
      %1257 = vmatprep.subr.mxu0 0.0
      %1258 = vmatpush1.xpose.msra.mxu0 0.0
      %1259 = vmatprep.subr.mxu0 0.0
      %1260 = vmatpush1.xpose.msra.mxu0 0.0
      %1261 = vmatprep.subr.mxu0 0.0
      %1262 = vmatpush1.xpose.msra.mxu0 0.0
      %1263 = vmatprep.subr.mxu0 0.0
      %1264 = vmatpush1.xpose.msra.mxu0 0.0
      %1265 = vmatprep.subr.mxu0 0.0
      %1266 = vmatpush1.xpose.msra.mxu0 0.0
      %1267 = vmatprep.subr.mxu0 0.0
      %1268 = vmatpush1.xpose.msra.mxu0 0.0
      %1269 = vmatprep.subr.mxu0 0.0
      %1270 = vmatpush1.xpose.msra.mxu0 0.0
      %1271 = vmatprep.subr.mxu0 0.0
      %1272 = vmatpush1.xpose.msra.mxu0 0.0
      %1273 = vmatprep.subr.mxu0 0.0
      %1274 = vmatpush1.xpose.msra.mxu0 0.0
      %1275 = vmatprep.subr.mxu0 0.0
      %1276 = vmatpush1.xpose.msra.mxu0 0.0
      %1277 = vmatprep.subr.mxu0 0.0
      %1278 = vmatpush1.xpose.msra.mxu0 0.0
      %1279 = vmatprep.subr.mxu0 0.0
      %1280 = vmatpush1.xpose.msra.mxu0 0.0
      %1281 = vmatprep.subr.mxu0 0.0
      %1282 = vmatpush1.xpose.msra.mxu0 0.0
      %1283 = vmatprep.subr.mxu0 0.0
      %1284 = vmatpush1.xpose.msra.mxu0 0.0
      %1285 = vmatprep.subr.mxu0 0.0
      %1286 = vmatpush1.xpose.msra.mxu0 0.0
      %1287 = vmatprep.subr.mxu0 0.0
      %1288 = vmatpush1.xpose.msra.mxu0 0.0
      %1289 = vmatprep.mubr.f32.mxu0 0.0
      %1290 = vmatmul.mubr.f32.gmra.mrb[0].mxu0 %v1217
      %v1291 = vpop.f32.mrb[0].mxu0
      %v1292 = vadd.f32 0.0, %v1291
      %v1293 = vpop.f32.mrb[0].mxu0
      %1294 = vmatprep.mubr.f32.mxu0 0.0
      %1295 = vmatmul.mubr.f32.gmra.mrb[0].mxu0 %v1219
      %v1296 = vpop.f32.mrb[0].mxu0
      %v1297 = vadd.f32 0.0, %v1296
      %v1298 = vpop.f32.mrb[0].mxu0
      %1299 = vdwg.mxu0
      %v1300 = vsel %vm667, %v1292, -inf
      %1301 = vmax.xlane.f32.xlu0 %v1300
      %v1302 = vpop.xlane.xlu0 %1301
      %v1303 = vsel %vm671, %v1297, -inf
      %1304 = vmax.xlane.f32.xlu0 %v1303
      %v1305 = vpop.xlane.xlu0 %1304
      %v1306 = vsub.f32 %v1292, %v1302
      %v1307 = vsub.f32 %v1297, %v1305
      %v1308 = vmul.f32 %v1306, 1.442695
      %v1309 = vpow.pop %v1308
      %v1310 = vmul.f32 %v1307, 1.442695
      %v1311 = vpow.pop %v1310
      %v1312 = vsel %vm667, %v1309, 0.0
      %1313 = vadd.xlane.f32.xlu0 %v1312
      %v1314 = vpop.xlane.xlu0 %1313
      %v1315 = vsel %vm671, %v1311, 0.0
      %1316 = vadd.xlane.f32.xlu0 %v1315
      %v1317 = vpop.xlane.xlu0 %1316
      %v1318 = vrcp.pop %v1314
      %v1319 = vrcp.pop %v1317
      %v1320 = vmul.f32 %v1309, %v1318
      %v1321 = vmul.f32 %v1311, %v1319
      %1322 = vrot.lane.b32.xlu0 %v569, 52
      %v1323 = vpop.permute.xlu0 %1322
      %1324 = vrot.lane.b32.xlu0 %v574, 52
      %v1325 = vpop.permute.xlu0 %1324
      %v1328 = vsel %vm667, %v1320, 0
      %v1331 = vsel %vm667, %v1321, 0
      %v1333 = vsel %vm702, %v1325, 0
      %1335 = vmatprep.subr.mxu0 0.0
      %1336 = vmatpush1.msra.mxu0 %v1323
      %1337 = vmatprep.subr.mxu0 0.0
      %1338 = vmatpush1.msra.mxu0 %v1333
      %1339 = vmatprep.subr.mxu0 0.0
      %1340 = vmatpush1.msra.mxu0 0.0
      %1341 = vmatprep.subr.mxu0 0.0
      %1342 = vmatpush1.msra.mxu0 0.0
      %1343 = vmatprep.subr.mxu0 0.0
      %1344 = vmatpush1.msra.mxu0 0.0
      %1345 = vmatprep.subr.mxu0 0.0
      %1346 = vmatpush1.msra.mxu0 0.0
      %1347 = vmatprep.subr.mxu0 0.0
      %1348 = vmatpush1.msra.mxu0 0.0
      %1349 = vmatprep.subr.mxu0 0.0
      %1350 = vmatpush1.msra.mxu0 0.0
      %1351 = vmatprep.subr.mxu0 0.0
      %1352 = vmatpush1.msra.mxu0 0.0
      %1353 = vmatprep.subr.mxu0 0.0
      %1354 = vmatpush1.msra.mxu0 0.0
      %1355 = vmatprep.subr.mxu0 0.0
      %1356 = vmatpush1.msra.mxu0 0.0
      %1357 = vmatprep.subr.mxu0 0.0
      %1358 = vmatpush1.msra.mxu0 0.0
      %1359 = vmatprep.subr.mxu0 0.0
      %1360 = vmatpush1.msra.mxu0 0.0
      %1361 = vmatprep.subr.mxu0 0.0
      %1362 = vmatpush1.msra.mxu0 0.0
      %1363 = vmatprep.subr.mxu0 0.0
      %1364 = vmatpush1.msra.mxu0 0.0
      %1365 = vmatprep.subr.mxu0 0.0
      %1366 = vmatpush1.msra.mxu0 0.0
      %1367 = vmatprep.subr.mxu0 0.0
      %1368 = vmatpush1.msra.mxu0 0.0
      %1369 = vmatprep.subr.mxu0 0.0
      %1370 = vmatpush1.msra.mxu0 0.0
      %1371 = vmatprep.subr.mxu0 0.0
      %1372 = vmatpush1.msra.mxu0 0.0
      %1373 = vmatprep.subr.mxu0 0.0
      %1374 = vmatpush1.msra.mxu0 0.0
      %1375 = vmatprep.subr.mxu0 0.0
      %1376 = vmatpush1.msra.mxu0 0.0
      %1377 = vmatprep.subr.mxu0 0.0
      %1378 = vmatpush1.msra.mxu0 0.0
      %1379 = vmatprep.subr.mxu0 0.0
      %1380 = vmatpush1.msra.mxu0 0.0
      %1381 = vmatprep.subr.mxu0 0.0
      %1382 = vmatpush1.msra.mxu0 0.0
      %1383 = vmatprep.subr.mxu0 0.0
      %1384 = vmatpush1.msra.mxu0 0.0
      %1385 = vmatprep.subr.mxu0 0.0
      %1386 = vmatpush1.msra.mxu0 0.0
      %1387 = vmatprep.subr.mxu0 0.0
      %1388 = vmatpush1.msra.mxu0 0.0
      %1389 = vmatprep.subr.mxu0 0.0
      %1390 = vmatpush1.msra.mxu0 0.0
      %1391 = vmatprep.subr.mxu0 0.0
      %1392 = vmatpush1.msra.mxu0 0.0
      %1393 = vmatprep.subr.mxu0 0.0
      %1394 = vmatpush1.msra.mxu0 0.0
      %1395 = vmatprep.subr.mxu0 0.0
      %1396 = vmatpush1.msra.mxu0 0.0
      %1397 = vmatprep.subr.mxu0 0.0
      %1398 = vmatpush1.msra.mxu0 0.0
      %1399 = vmatprep.mubr.f32.mxu0 0.0
      %1400 = vmatmul.mubr.f32.gmra.mrb[0].mxu0 %v1328
      %v1401 = vpop.f32.mrb[0].mxu0
      %v1402 = vadd.f32 0.0, %v1401
      %v1403 = vpop.f32.mrb[0].mxu0
      %1404 = vmatprep.mubr.f32.mxu0 0.0
      %1405 = vmatmul.mubr.f32.gmra.mrb[0].mxu0 %v1331
      %v1406 = vpop.f32.mrb[0].mxu0
      %v1407 = vadd.f32 0.0, %v1406
      %v1408 = vpop.f32.mrb[0].mxu0
      %1409 = vdwg.mxu0
      %1412 = vrot.lane.b32.xlu0 %v1402, 12
      %v1413 = vpop.permute.xlu0 %1412
      %1414 = vrot.lane.b32.xlu0 %v1407, 12
      %v1415 = vpop.permute.xlu0 %1414
      %vm1418 = vcmask 130144
      %1419 = vst.msk [vmem:[#allocation2] sm:$0xff] %vm1418, %v1413
      %vm1420 = vcmask 122976
      %1421 = vst.msk [vmem:[#allocation2 + $0x8] sm:$0x1] %vm1420, %v1415
      %1422 = vrot.lane.b32.xlu0 %v569, 112
      %v1423 = vpop.permute.xlu0 %1422
      %1424 = vrot.lane.b32.xlu0 %v574, 112
      %v1425 = vpop.permute.xlu0 %1424
      %1426 = vrot.lane.b32.xlu0 %v569, 80
      %v1427 = vpop.permute.xlu0 %1426
      %1428 = vrot.lane.b32.xlu0 %v574, 80
      %v1429 = vpop.permute.xlu0 %1428
      %v1430 = vsel %vm583, %v1423, 0
      %v1432 = vsel %vm583, %v1425, 0
      %v1434 = vsel %vm583, %v1427, 0
      %v1436 = vsel %vm583, %v1429, 0
      %1438 = vmatprep.subr.mxu0 0.0
      %1439 = vmatpush1.xpose.msra.mxu0 %v1434
      %1440 = vmatprep.subr.mxu0 0.0
      %1441 = vmatpush1.xpose.msra.mxu0 %v1436
      %1442 = vmatprep.subr.mxu0 0.0
      %1443 = vmatpush1.xpose.msra.mxu0 0.0
      %1444 = vmatprep.subr.mxu0 0.0
      %1445 = vmatpush1.xpose.msra.mxu0 0.0
      %1446 = vmatprep.subr.mxu0 0.0
      %1447 = vmatpush1.xpose.msra.mxu0 0.0
      %1448 = vmatprep.subr.mxu0 0.0
      %1449 = vmatpush1.xpose.msra.mxu0 0.0
      %1450 = vmatprep.subr.mxu0 0.0
      %1451 = vmatpush1.xpose.msra.mxu0 0.0
      %1452 = vmatprep.subr.mxu0 0.0
      %1453 = vmatpush1.xpose.msra.mxu0 0.0
      %1454 = vmatprep.subr.mxu0 0.0
      %1455 = vmatpush1.xpose.msra.mxu0 0.0
      %1456 = vmatprep.subr.mxu0 0.0
      %1457 = vmatpush1.xpose.msra.mxu0 0.0
      %1458 = vmatprep.subr.mxu0 0.0
      %1459 = vmatpush1.xpose.msra.mxu0 0.0
      %1460 = vmatprep.subr.mxu0 0.0
      %1461 = vmatpush1.xpose.msra.mxu0 0.0
      %1462 = vmatprep.subr.mxu0 0.0
      %1463 = vmatpush1.xpose.msra.mxu0 0.0
      %1464 = vmatprep.subr.mxu0 0.0
      %1465 = vmatpush1.xpose.msra.mxu0 0.0
      %1466 = vmatprep.subr.mxu0 0.0
      %1467 = vmatpush1.xpose.msra.mxu0 0.0
      %1468 = vmatprep.subr.mxu0 0.0
      %1469 = vmatpush1.xpose.msra.mxu0 0.0
      %1470 = vmatprep.subr.mxu0 0.0
      %1471 = vmatpush1.xpose.msra.mxu0 0.0
      %1472 = vmatprep.subr.mxu0 0.0
      %1473 = vmatpush1.xpose.msra.mxu0 0.0
      %1474 = vmatprep.subr.mxu0 0.0
      %1475 = vmatpush1.xpose.msra.mxu0 0.0
      %1476 = vmatprep.subr.mxu0 0.0
      %1477 = vmatpush1.xpose.msra.mxu0 0.0
      %1478 = vmatprep.subr.mxu0 0.0
      %1479 = vmatpush1.xpose.msra.mxu0 0.0
      %1480 = vmatprep.subr.mxu0 0.0
      %1481 = vmatpush1.xpose.msra.mxu0 0.0
      %1482 = vmatprep.subr.mxu0 0.0
      %1483 = vmatpush1.xpose.msra.mxu0 0.0
      %1484 = vmatprep.subr.mxu0 0.0
      %1485 = vmatpush1.xpose.msra.mxu0 0.0
      %1486 = vmatprep.subr.mxu0 0.0
      %1487 = vmatpush1.xpose.msra.mxu0 0.0
      %1488 = vmatprep.subr.mxu0 0.0
      %1489 = vmatpush1.xpose.msra.mxu0 0.0
      %1490 = vmatprep.subr.mxu0 0.0
      %1491 = vmatpush1.xpose.msra.mxu0 0.0
      %1492 = vmatprep.subr.mxu0 0.0
      %1493 = vmatpush1.xpose.msra.mxu0 0.0
      %1494 = vmatprep.subr.mxu0 0.0
      %1495 = vmatpush1.xpose.msra.mxu0 0.0
      %1496 = vmatprep.subr.mxu0 0.0
      %1497 = vmatpush1.xpose.msra.mxu0 0.0
      %1498 = vmatprep.subr.mxu0 0.0
      %1499 = vmatpush1.xpose.msra.mxu0 0.0
      %1500 = vmatprep.subr.mxu0 0.0
      %1501 = vmatpush1.xpose.msra.mxu0 0.0
      %1502 = vmatprep.mubr.f32.mxu0 0.0
      %1503 = vmatmul.mubr.f32.gmra.mrb[0].mxu0 %v1430
      %v1504 = vpop.f32.mrb[0].mxu0
      %v1505 = vadd.f32 0.0, %v1504
      %v1506 = vpop.f32.mrb[0].mxu0
      %1507 = vmatprep.mubr.f32.mxu0 0.0
      %1508 = vmatmul.mubr.f32.gmra.mrb[0].mxu0 %v1432
      %v1509 = vpop.f32.mrb[0].mxu0
      %v1510 = vadd.f32 0.0, %v1509
      %v1511 = vpop.f32.mrb[0].mxu0
      %1512 = vdwg.mxu0
      %v1513 = vsel %vm667, %v1505, -inf
      %1514 = vmax.xlane.f32.xlu0 %v1513
      %v1515 = vpop.xlane.xlu0 %1514
      %v1516 = vsel %vm671, %v1510, -inf
      %1517 = vmax.xlane.f32.xlu0 %v1516
      %v1518 = vpop.xlane.xlu0 %1517
      %v1519 = vsub.f32 %v1505, %v1515
      %v1520 = vsub.f32 %v1510, %v1518
      %v1521 = vmul.f32 %v1519, 1.442695
      %v1522 = vpow.pop %v1521
      %v1523 = vmul.f32 %v1520, 1.442695
      %v1524 = vpow.pop %v1523
      %v1525 = vsel %vm667, %v1522, 0.0
      %1526 = vadd.xlane.f32.xlu0 %v1525
      %v1527 = vpop.xlane.xlu0 %1526
      %v1528 = vsel %vm671, %v1524, 0.0
      %1529 = vadd.xlane.f32.xlu0 %v1528
      %v1530 = vpop.xlane.xlu0 %1529
      %v1531 = vrcp.pop %v1527
      %v1532 = vrcp.pop %v1530
      %v1533 = vmul.f32 %v1522, %v1531
      %v1534 = vmul.f32 %v1524, %v1532
      %1535 = vrot.lane.b32.xlu0 %v569, 48
      %v1536 = vpop.permute.xlu0 %1535
      %1537 = vrot.lane.b32.xlu0 %v574, 48
      %v1538 = vpop.permute.xlu0 %1537
      %v1541 = vsel %vm667, %v1533, 0
      %v1544 = vsel %vm667, %v1534, 0
      %v1546 = vsel %vm702, %v1538, 0
      %1548 = vmatprep.subr.mxu0 0.0
      %1549 = vmatpush1.msra.mxu0 %v1536
      %1550 = vmatprep.subr.mxu0 0.0
      %1551 = vmatpush1.msra.mxu0 %v1546
      %1552 = vmatprep.subr.mxu0 0.0
      %1553 = vmatpush1.msra.mxu0 0.0
      %1554 = vmatprep.subr.mxu0 0.0
      %1555 = vmatpush1.msra.mxu0 0.0
      %1556 = vmatprep.subr.mxu0 0.0
      %1557 = vmatpush1.msra.mxu0 0.0
      %1558 = vmatprep.subr.mxu0 0.0
      %1559 = vmatpush1.msra.mxu0 0.0
      %1560 = vmatprep.subr.mxu0 0.0
      %1561 = vmatpush1.msra.mxu0 0.0
      %1562 = vmatprep.subr.mxu0 0.0
      %1563 = vmatpush1.msra.mxu0 0.0
      %1564 = vmatprep.subr.mxu0 0.0
      %1565 = vmatpush1.msra.mxu0 0.0
      %1566 = vmatprep.subr.mxu0 0.0
      %1567 = vmatpush1.msra.mxu0 0.0
      %1568 = vmatprep.subr.mxu0 0.0
      %1569 = vmatpush1.msra.mxu0 0.0
      %1570 = vmatprep.subr.mxu0 0.0
      %1571 = vmatpush1.msra.mxu0 0.0
      %1572 = vmatprep.subr.mxu0 0.0
      %1573 = vmatpush1.msra.mxu0 0.0
      %1574 = vmatprep.subr.mxu0 0.0
      %1575 = vmatpush1.msra.mxu0 0.0
      %1576 = vmatprep.subr.mxu0 0.0
      %1577 = vmatpush1.msra.mxu0 0.0
      %1578 = vmatprep.subr.mxu0 0.0
      %1579 = vmatpush1.msra.mxu0 0.0
      %1580 = vmatprep.subr.mxu0 0.0
      %1581 = vmatpush1.msra.mxu0 0.0
      %1582 = vmatprep.subr.mxu0 0.0
      %1583 = vmatpush1.msra.mxu0 0.0
      %1584 = vmatprep.subr.mxu0 0.0
      %1585 = vmatpush1.msra.mxu0 0.0
      %1586 = vmatprep.subr.mxu0 0.0
      %1587 = vmatpush1.msra.mxu0 0.0
      %1588 = vmatprep.subr.mxu0 0.0
      %1589 = vmatpush1.msra.mxu0 0.0
      %1590 = vmatprep.subr.mxu0 0.0
      %1591 = vmatpush1.msra.mxu0 0.0
      %1592 = vmatprep.subr.mxu0 0.0
      %1593 = vmatpush1.msra.mxu0 0.0
      %1594 = vmatprep.subr.mxu0 0.0
      %1595 = vmatpush1.msra.mxu0 0.0
      %1596 = vmatprep.subr.mxu0 0.0
      %1597 = vmatpush1.msra.mxu0 0.0
      %1598 = vmatprep.subr.mxu0 0.0
      %1599 = vmatpush1.msra.mxu0 0.0
      %1600 = vmatprep.subr.mxu0 0.0
      %1601 = vmatpush1.msra.mxu0 0.0
      %1602 = vmatprep.subr.mxu0 0.0
      %1603 = vmatpush1.msra.mxu0 0.0
      %1604 = vmatprep.subr.mxu0 0.0
      %1605 = vmatpush1.msra.mxu0 0.0
      %1606 = vmatprep.subr.mxu0 0.0
      %1607 = vmatpush1.msra.mxu0 0.0
      %1608 = vmatprep.subr.mxu0 0.0
      %1609 = vmatpush1.msra.mxu0 0.0
      %1610 = vmatprep.subr.mxu0 0.0
      %1611 = vmatpush1.msra.mxu0 0.0
      %1612 = vmatprep.mubr.f32.mxu0 0.0
      %1613 = vmatmul.mubr.f32.gmra.mrb[0].mxu0 %v1541
      %v1614 = vpop.f32.mrb[0].mxu0
      %v1615 = vadd.f32 0.0, %v1614
      %v1616 = vpop.f32.mrb[0].mxu0
      %1617 = vmatprep.mubr.f32.mxu0 0.0
      %1618 = vmatmul.mubr.f32.gmra.mrb[0].mxu0 %v1544
      %v1619 = vpop.f32.mrb[0].mxu0
      %v1620 = vadd.f32 0.0, %v1619
      %v1621 = vpop.f32.mrb[0].mxu0
      %1622 = vdwg.mxu0
      %1625 = vrot.lane.b32.xlu0 %v1615, 16
      %v1626 = vpop.permute.xlu0 %1625
      %1627 = vrot.lane.b32.xlu0 %v1620, 16
      %v1628 = vpop.permute.xlu0 %1627
      %vm1631 = vcmask 162944
      %1632 = vst.msk [vmem:[#allocation2] sm:$0xff] %vm1631, %v1626
      %vm1633 = vcmask 155776
      %1634 = vst.msk [vmem:[#allocation2 + $0x8] sm:$0x1] %vm1633, %v1628
      %1635 = vrot.lane.b32.xlu0 %v569, 108
      %v1636 = vpop.permute.xlu0 %1635
      %1637 = vrot.lane.b32.xlu0 %v574, 108
      %v1638 = vpop.permute.xlu0 %1637
      %1639 = vrot.lane.b32.xlu0 %v569, 76
      %v1640 = vpop.permute.xlu0 %1639
      %1641 = vrot.lane.b32.xlu0 %v574, 76
      %v1642 = vpop.permute.xlu0 %1641
      %v1643 = vsel %vm583, %v1636, 0
      %v1645 = vsel %vm583, %v1638, 0
      %v1647 = vsel %vm583, %v1640, 0
      %v1649 = vsel %vm583, %v1642, 0
      %1651 = vmatprep.subr.mxu0 0.0
      %1652 = vmatpush1.xpose.msra.mxu0 %v1647
      %1653 = vmatprep.subr.mxu0 0.0
      %1654 = vmatpush1.xpose.msra.mxu0 %v1649
      %1655 = vmatprep.subr.mxu0 0.0
      %1656 = vmatpush1.xpose.msra.mxu0 0.0
      %1657 = vmatprep.subr.mxu0 0.0
      %1658 = vmatpush1.xpose.msra.mxu0 0.0
      %1659 = vmatprep.subr.mxu0 0.0
      %1660 = vmatpush1.xpose.msra.mxu0 0.0
      %1661 = vmatprep.subr.mxu0 0.0
      %1662 = vmatpush1.xpose.msra.mxu0 0.0
      %1663 = vmatprep.subr.mxu0 0.0
      %1664 = vmatpush1.xpose.msra.mxu0 0.0
      %1665 = vmatprep.subr.mxu0 0.0
      %1666 = vmatpush1.xpose.msra.mxu0 0.0
      %1667 = vmatprep.subr.mxu0 0.0
      %1668 = vmatpush1.xpose.msra.mxu0 0.0
      %1669 = vmatprep.subr.mxu0 0.0
      %1670 = vmatpush1.xpose.msra.mxu0 0.0
      %1671 = vmatprep.subr.mxu0 0.0
      %1672 = vmatpush1.xpose.msra.mxu0 0.0
      %1673 = vmatprep.subr.mxu0 0.0
      %1674 = vmatpush1.xpose.msra.mxu0 0.0
      %1675 = vmatprep.subr.mxu0 0.0
      %1676 = vmatpush1.xpose.msra.mxu0 0.0
      %1677 = vmatprep.subr.mxu0 0.0
      %1678 = vmatpush1.xpose.msra.mxu0 0.0
      %1679 = vmatprep.subr.mxu0 0.0
      %1680 = vmatpush1.xpose.msra.mxu0 0.0
      %1681 = vmatprep.subr.mxu0 0.0
      %1682 = vmatpush1.xpose.msra.mxu0 0.0
      %1683 = vmatprep.subr.mxu0 0.0
      %1684 = vmatpush1.xpose.msra.mxu0 0.0
      %1685 = vmatprep.subr.mxu0 0.0
      %1686 = vmatpush1.xpose.msra.mxu0 0.0
      %1687 = vmatprep.subr.mxu0 0.0
      %1688 = vmatpush1.xpose.msra.mxu0 0.0
      %1689 = vmatprep.subr.mxu0 0.0
      %1690 = vmatpush1.xpose.msra.mxu0 0.0
      %1691 = vmatprep.subr.mxu0 0.0
      %1692 = vmatpush1.xpose.msra.mxu0 0.0
      %1693 = vmatprep.subr.mxu0 0.0
      %1694 = vmatpush1.xpose.msra.mxu0 0.0
      %1695 = vmatprep.subr.mxu0 0.0
      %1696 = vmatpush1.xpose.msra.mxu0 0.0
      %1697 = vmatprep.subr.mxu0 0.0
      %1698 = vmatpush1.xpose.msra.mxu0 0.0
      %1699 = vmatprep.subr.mxu0 0.0
      %1700 = vmatpush1.xpose.msra.mxu0 0.0
      %1701 = vmatprep.subr.mxu0 0.0
      %1702 = vmatpush1.xpose.msra.mxu0 0.0
      %1703 = vmatprep.subr.mxu0 0.0
      %1704 = vmatpush1.xpose.msra.mxu0 0.0
      %1705 = vmatprep.subr.mxu0 0.0
      %1706 = vmatpush1.xpose.msra.mxu0 0.0
      %1707 = vmatprep.subr.mxu0 0.0
      %1708 = vmatpush1.xpose.msra.mxu0 0.0
      %1709 = vmatprep.subr.mxu0 0.0
      %1710 = vmatpush1.xpose.msra.mxu0 0.0
      %1711 = vmatprep.subr.mxu0 0.0
      %1712 = vmatpush1.xpose.msra.mxu0 0.0
      %1713 = vmatprep.subr.mxu0 0.0
      %1714 = vmatpush1.xpose.msra.mxu0 0.0
      %1715 = vmatprep.mubr.f32.mxu0 0.0
      %1716 = vmatmul.mubr.f32.gmra.mrb[0].mxu0 %v1643
      %v1717 = vpop.f32.mrb[0].mxu0
      %v1718 = vadd.f32 0.0, %v1717
      %v1719 = vpop.f32.mrb[0].mxu0
      %1720 = vmatprep.mubr.f32.mxu0 0.0
      %1721 = vmatmul.mubr.f32.gmra.mrb[0].mxu0 %v1645
      %v1722 = vpop.f32.mrb[0].mxu0
      %v1723 = vadd.f32 0.0, %v1722
      %v1724 = vpop.f32.mrb[0].mxu0
      %1725 = vdwg.mxu0
      %v1726 = vsel %vm667, %v1718, -inf
      %1727 = vmax.xlane.f32.xlu0 %v1726
      %v1728 = vpop.xlane.xlu0 %1727
      %v1729 = vsel %vm671, %v1723, -inf
      %1730 = vmax.xlane.f32.xlu0 %v1729
      %v1731 = vpop.xlane.xlu0 %1730
      %v1732 = vsub.f32 %v1718, %v1728
      %v1733 = vsub.f32 %v1723, %v1731
      %v1734 = vmul.f32 %v1732, 1.442695
      %v1735 = vpow.pop %v1734
      %v1736 = vmul.f32 %v1733, 1.442695
      %v1737 = vpow.pop %v1736
      %v1738 = vsel %vm667, %v1735, 0.0
      %1739 = vadd.xlane.f32.xlu0 %v1738
      %v1740 = vpop.xlane.xlu0 %1739
      %v1741 = vsel %vm671, %v1737, 0.0
      %1742 = vadd.xlane.f32.xlu0 %v1741
      %v1743 = vpop.xlane.xlu0 %1742
      %v1744 = vrcp.pop %v1740
      %v1745 = vrcp.pop %v1743
      %v1746 = vmul.f32 %v1735, %v1744
      %v1747 = vmul.f32 %v1737, %v1745
      %1748 = vrot.lane.b32.xlu0 %v569, 44
      %v1749 = vpop.permute.xlu0 %1748
      %1750 = vrot.lane.b32.xlu0 %v574, 44
      %v1751 = vpop.permute.xlu0 %1750
      %v1754 = vsel %vm667, %v1746, 0
      %v1757 = vsel %vm667, %v1747, 0
      %v1759 = vsel %vm702, %v1751, 0
      %1761 = vmatprep.subr.mxu0 0.0
      %1762 = vmatpush1.msra.mxu0 %v1749
      %1763 = vmatprep.subr.mxu0 0.0
      %1764 = vmatpush1.msra.mxu0 %v1759
      %1765 = vmatprep.subr.mxu0 0.0
      %1766 = vmatpush1.msra.mxu0 0.0
      %1767 = vmatprep.subr.mxu0 0.0
      %1768 = vmatpush1.msra.mxu0 0.0
      %1769 = vmatprep.subr.mxu0 0.0
      %1770 = vmatpush1.msra.mxu0 0.0
      %1771 = vmatprep.subr.mxu0 0.0
      %1772 = vmatpush1.msra.mxu0 0.0
      %1773 = vmatprep.subr.mxu0 0.0
      %1774 = vmatpush1.msra.mxu0 0.0
      %1775 = vmatprep.subr.mxu0 0.0
      %1776 = vmatpush1.msra.mxu0 0.0
      %1777 = vmatprep.subr.mxu0 0.0
      %1778 = vmatpush1.msra.mxu0 0.0
      %1779 = vmatprep.subr.mxu0 0.0
      %1780 = vmatpush1.msra.mxu0 0.0
      %1781 = vmatprep.subr.mxu0 0.0
      %1782 = vmatpush1.msra.mxu0 0.0
      %1783 = vmatprep.subr.mxu0 0.0
      %1784 = vmatpush1.msra.mxu0 0.0
      %1785 = vmatprep.subr.mxu0 0.0
      %1786 = vmatpush1.msra.mxu0 0.0
      %1787 = vmatprep.subr.mxu0 0.0
      %1788 = vmatpush1.msra.mxu0 0.0
      %1789 = vmatprep.subr.mxu0 0.0
      %1790 = vmatpush1.msra.mxu0 0.0
      %1791 = vmatprep.subr.mxu0 0.0
      %1792 = vmatpush1.msra.mxu0 0.0
      %1793 = vmatprep.subr.mxu0 0.0
      %1794 = vmatpush1.msra.mxu0 0.0
      %1795 = vmatprep.subr.mxu0 0.0
      %1796 = vmatpush1.msra.mxu0 0.0
      %1797 = vmatprep.subr.mxu0 0.0
      %1798 = vmatpush1.msra.mxu0 0.0
      %1799 = vmatprep.subr.mxu0 0.0
      %1800 = vmatpush1.msra.mxu0 0.0
      %1801 = vmatprep.subr.mxu0 0.0
      %1802 = vmatpush1.msra.mxu0 0.0
      %1803 = vmatprep.subr.mxu0 0.0
      %1804 = vmatpush1.msra.mxu0 0.0
      %1805 = vmatprep.subr.mxu0 0.0
      %1806 = vmatpush1.msra.mxu0 0.0
      %1807 = vmatprep.subr.mxu0 0.0
      %1808 = vmatpush1.msra.mxu0 0.0
      %1809 = vmatprep.subr.mxu0 0.0
      %1810 = vmatpush1.msra.mxu0 0.0
      %1811 = vmatprep.subr.mxu0 0.0
      %1812 = vmatpush1.msra.mxu0 0.0
      %1813 = vmatprep.subr.mxu0 0.0
      %1814 = vmatpush1.msra.mxu0 0.0
      %1815 = vmatprep.subr.mxu0 0.0
      %1816 = vmatpush1.msra.mxu0 0.0
      %1817 = vmatprep.subr.mxu0 0.0
      %1818 = vmatpush1.msra.mxu0 0.0
      %1819 = vmatprep.subr.mxu0 0.0
      %1820 = vmatpush1.msra.mxu0 0.0
      %1821 = vmatprep.subr.mxu0 0.0
      %1822 = vmatpush1.msra.mxu0 0.0
      %1823 = vmatprep.subr.mxu0 0.0
      %1824 = vmatpush1.msra.mxu0 0.0
      %1825 = vmatprep.mubr.f32.mxu0 0.0
      %1826 = vmatmul.mubr.f32.gmra.mrb[0].mxu0 %v1754
      %v1827 = vpop.f32.mrb[0].mxu0
      %v1828 = vadd.f32 0.0, %v1827
      %v1829 = vpop.f32.mrb[0].mxu0
      %1830 = vmatprep.mubr.f32.mxu0 0.0
      %1831 = vmatmul.mubr.f32.gmra.mrb[0].mxu0 %v1757
      %v1832 = vpop.f32.mrb[0].mxu0
      %v1833 = vadd.f32 0.0, %v1832
      %v1834 = vpop.f32.mrb[0].mxu0
      %1835 = vdwg.mxu0
      %1838 = vrot.lane.b32.xlu0 %v1828, 20
      %v1839 = vpop.permute.xlu0 %1838
      %1840 = vrot.lane.b32.xlu0 %v1833, 20
      %v1841 = vpop.permute.xlu0 %1840
      %vm1844 = vcmask 195744
      %1845 = vst.msk [vmem:[#allocation2] sm:$0xff] %vm1844, %v1839
      %vm1846 = vcmask 188576
      %1847 = vst.msk [vmem:[#allocation2 + $0x8] sm:$0x1] %vm1846, %v1841
      %1848 = vrot.lane.b32.xlu0 %v569, 104
      %v1849 = vpop.permute.xlu0 %1848
      %1850 = vrot.lane.b32.xlu0 %v574, 104
      %v1851 = vpop.permute.xlu0 %1850
      %1852 = vrot.lane.b32.xlu0 %v569, 72
      %v1853 = vpop.permute.xlu0 %1852
      %1854 = vrot.lane.b32.xlu0 %v574, 72
      %v1855 = vpop.permute.xlu0 %1854
      %v1856 = vsel %vm583, %v1849, 0
      %v1858 = vsel %vm583, %v1851, 0
      %v1860 = vsel %vm583, %v1853, 0
      %v1862 = vsel %vm583, %v1855, 0
      %1864 = vmatprep.subr.mxu0 0.0
      %1865 = vmatpush1.xpose.msra.mxu0 %v1860
      %1866 = vmatprep.subr.mxu0 0.0
      %1867 = vmatpush1.xpose.msra.mxu0 %v1862
      %1868 = vmatprep.subr.mxu0 0.0
      %1869 = vmatpush1.xpose.msra.mxu0 0.0
      %1870 = vmatprep.subr.mxu0 0.0
      %1871 = vmatpush1.xpose.msra.mxu0 0.0
      %1872 = vmatprep.subr.mxu0 0.0
      %1873 = vmatpush1.xpose.msra.mxu0 0.0
      %1874 = vmatprep.subr.mxu0 0.0
      %1875 = vmatpush1.xpose.msra.mxu0 0.0
      %1876 = vmatprep.subr.mxu0 0.0
      %1877 = vmatpush1.xpose.msra.mxu0 0.0
      %1878 = vmatprep.subr.mxu0 0.0
      %1879 = vmatpush1.xpose.msra.mxu0 0.0
      %1880 = vmatprep.subr.mxu0 0.0
      %1881 = vmatpush1.xpose.msra.mxu0 0.0
      %1882 = vmatprep.subr.mxu0 0.0
      %1883 = vmatpush1.xpose.msra.mxu0 0.0
      %1884 = vmatprep.subr.mxu0 0.0
      %1885 = vmatpush1.xpose.msra.mxu0 0.0
      %1886 = vmatprep.subr.mxu0 0.0
      %1887 = vmatpush1.xpose.msra.mxu0 0.0
      %1888 = vmatprep.subr.mxu0 0.0
      %1889 = vmatpush1.xpose.msra.mxu0 0.0
      %1890 = vmatprep.subr.mxu0 0.0
      %1891 = vmatpush1.xpose.msra.mxu0 0.0
      %1892 = vmatprep.subr.mxu0 0.0
      %1893 = vmatpush1.xpose.msra.mxu0 0.0
      %1894 = vmatprep.subr.mxu0 0.0
      %1895 = vmatpush1.xpose.msra.mxu0 0.0
      %1896 = vmatprep.subr.mxu0 0.0
      %1897 = vmatpush1.xpose.msra.mxu0 0.0
      %1898 = vmatprep.subr.mxu0 0.0
      %1899 = vmatpush1.xpose.msra.mxu0 0.0
      %1900 = vmatprep.subr.mxu0 0.0
      %1901 = vmatpush1.xpose.msra.mxu0 0.0
      %1902 = vmatprep.subr.mxu0 0.0
      %1903 = vmatpush1.xpose.msra.mxu0 0.0
      %1904 = vmatprep.subr.mxu0 0.0
      %1905 = vmatpush1.xpose.msra.mxu0 0.0
      %1906 = vmatprep.subr.mxu0 0.0
      %1907 = vmatpush1.xpose.msra.mxu0 0.0
      %1908 = vmatprep.subr.mxu0 0.0
      %1909 = vmatpush1.xpose.msra.mxu0 0.0
      %1910 = vmatprep.subr.mxu0 0.0
      %1911 = vmatpush1.xpose.msra.mxu0 0.0
      %1912 = vmatprep.subr.mxu0 0.0
      %1913 = vmatpush1.xpose.msra.mxu0 0.0
      %1914 = vmatprep.subr.mxu0 0.0
      %1915 = vmatpush1.xpose.msra.mxu0 0.0
      %1916 = vmatprep.subr.mxu0 0.0
      %1917 = vmatpush1.xpose.msra.mxu0 0.0
      %1918 = vmatprep.subr.mxu0 0.0
      %1919 = vmatpush1.xpose.msra.mxu0 0.0
      %1920 = vmatprep.subr.mxu0 0.0
      %1921 = vmatpush1.xpose.msra.mxu0 0.0
      %1922 = vmatprep.subr.mxu0 0.0
      %1923 = vmatpush1.xpose.msra.mxu0 0.0
      %1924 = vmatprep.subr.mxu0 0.0
      %1925 = vmatpush1.xpose.msra.mxu0 0.0
      %1926 = vmatprep.subr.mxu0 0.0
      %1927 = vmatpush1.xpose.msra.mxu0 0.0
      %1928 = vmatprep.mubr.f32.mxu0 0.0
      %1929 = vmatmul.mubr.f32.gmra.mrb[0].mxu0 %v1856
      %v1930 = vpop.f32.mrb[0].mxu0
      %v1931 = vadd.f32 0.0, %v1930
      %v1932 = vpop.f32.mrb[0].mxu0
      %1933 = vmatprep.mubr.f32.mxu0 0.0
      %1934 = vmatmul.mubr.f32.gmra.mrb[0].mxu0 %v1858
      %v1935 = vpop.f32.mrb[0].mxu0
      %v1936 = vadd.f32 0.0, %v1935
      %v1937 = vpop.f32.mrb[0].mxu0
      %1938 = vdwg.mxu0
      %v1939 = vsel %vm667, %v1931, -inf
      %1940 = vmax.xlane.f32.xlu0 %v1939
      %v1941 = vpop.xlane.xlu0 %1940
      %v1942 = vsel %vm671, %v1936, -inf
      %1943 = vmax.xlane.f32.xlu0 %v1942
      %v1944 = vpop.xlane.xlu0 %1943
      %v1945 = vsub.f32 %v1931, %v1941
      %v1946 = vsub.f32 %v1936, %v1944
      %v1947 = vmul.f32 %v1945, 1.442695
      %v1948 = vpow.pop %v1947
      %v1949 = vmul.f32 %v1946, 1.442695
      %v1950 = vpow.pop %v1949
      %v1951 = vsel %vm667, %v1948, 0.0
      %1952 = vadd.xlane.f32.xlu0 %v1951
      %v1953 = vpop.xlane.xlu0 %1952
      %v1954 = vsel %vm671, %v1950, 0.0
      %1955 = vadd.xlane.f32.xlu0 %v1954
      %v1956 = vpop.xlane.xlu0 %1955
      %v1957 = vrcp.pop %v1953
      %v1958 = vrcp.pop %v1956
      %v1959 = vmul.f32 %v1948, %v1957
      %v1960 = vmul.f32 %v1950, %v1958
      %1961 = vrot.lane.b32.xlu0 %v569, 40
      %v1962 = vpop.permute.xlu0 %1961
      %1963 = vrot.lane.b32.xlu0 %v574, 40
      %v1964 = vpop.permute.xlu0 %1963
      %v1967 = vsel %vm667, %v1959, 0
      %v1970 = vsel %vm667, %v1960, 0
      %v1972 = vsel %vm702, %v1964, 0
      %1974 = vmatprep.subr.mxu0 0.0
      %1975 = vmatpush1.msra.mxu0 %v1962
      %1976 = vmatprep.subr.mxu0 0.0
      %1977 = vmatpush1.msra.mxu0 %v1972
      %1978 = vmatprep.subr.mxu0 0.0
      %1979 = vmatpush1.msra.mxu0 0.0
      %1980 = vmatprep.subr.mxu0 0.0
      %1981 = vmatpush1.msra.mxu0 0.0
      %1982 = vmatprep.subr.mxu0 0.0
      %1983 = vmatpush1.msra.mxu0 0.0
      %1984 = vmatprep.subr.mxu0 0.0
      %1985 = vmatpush1.msra.mxu0 0.0
      %1986 = vmatprep.subr.mxu0 0.0
      %1987 = vmatpush1.msra.mxu0 0.0
      %1988 = vmatprep.subr.mxu0 0.0
      %1989 = vmatpush1.msra.mxu0 0.0
      %1990 = vmatprep.subr.mxu0 0.0
      %1991 = vmatpush1.msra.mxu0 0.0
      %1992 = vmatprep.subr.mxu0 0.0
      %1993 = vmatpush1.msra.mxu0 0.0
      %1994 = vmatprep.subr.mxu0 0.0
      %1995 = vmatpush1.msra.mxu0 0.0
      %1996 = vmatprep.subr.mxu0 0.0
      %1997 = vmatpush1.msra.mxu0 0.0
      %1998 = vmatprep.subr.mxu0 0.0
      %1999 = vmatpush1.msra.mxu0 0.0
      %2000 = vmatprep.subr.mxu0 0.0
      %2001 = vmatpush1.msra.mxu0 0.0
      %2002 = vmatprep.subr.mxu0 0.0
      %2003 = vmatpush1.msra.mxu0 0.0
      %2004 = vmatprep.subr.mxu0 0.0
      %2005 = vmatpush1.msra.mxu0 0.0
      %2006 = vmatprep.subr.mxu0 0.0
      %2007 = vmatpush1.msra.mxu0 0.0
      %2008 = vmatprep.subr.mxu0 0.0
      %2009 = vmatpush1.msra.mxu0 0.0
      %2010 = vmatprep.subr.mxu0 0.0
      %2011 = vmatpush1.msra.mxu0 0.0
      %2012 = vmatprep.subr.mxu0 0.0
      %2013 = vmatpush1.msra.mxu0 0.0
      %2014 = vmatprep.subr.mxu0 0.0
      %2015 = vmatpush1.msra.mxu0 0.0
      %2016 = vmatprep.subr.mxu0 0.0
      %2017 = vmatpush1.msra.mxu0 0.0
      %2018 = vmatprep.subr.mxu0 0.0
      %2019 = vmatpush1.msra.mxu0 0.0
      %2020 = vmatprep.subr.mxu0 0.0
      %2021 = vmatpush1.msra.mxu0 0.0
      %2022 = vmatprep.subr.mxu0 0.0
      %2023 = vmatpush1.msra.mxu0 0.0
      %2024 = vmatprep.subr.mxu0 0.0
      %2025 = vmatpush1.msra.mxu0 0.0
      %2026 = vmatprep.subr.mxu0 0.0
      %2027 = vmatpush1.msra.mxu0 0.0
      %2028 = vmatprep.subr.mxu0 0.0
      %2029 = vmatpush1.msra.mxu0 0.0
      %2030 = vmatprep.subr.mxu0 0.0
      %2031 = vmatpush1.msra.mxu0 0.0
      %2032 = vmatprep.subr.mxu0 0.0
      %2033 = vmatpush1.msra.mxu0 0.0
      %2034 = vmatprep.subr.mxu0 0.0
      %2035 = vmatpush1.msra.mxu0 0.0
      %2036 = vmatprep.subr.mxu0 0.0
      %2037 = vmatpush1.msra.mxu0 0.0
      %2038 = vmatprep.mubr.f32.mxu0 0.0
      %2039 = vmatmul.mubr.f32.gmra.mrb[0].mxu0 %v1967
      %v2040 = vpop.f32.mrb[0].mxu0
      %v2041 = vadd.f32 0.0, %v2040
      %v2042 = vpop.f32.mrb[0].mxu0
      %2043 = vmatprep.mubr.f32.mxu0 0.0
      %2044 = vmatmul.mubr.f32.gmra.mrb[0].mxu0 %v1970
      %v2045 = vpop.f32.mrb[0].mxu0
      %v2046 = vadd.f32 0.0, %v2045
      %v2047 = vpop.f32.mrb[0].mxu0
      %2048 = vdwg.mxu0
      %2051 = vrot.lane.b32.xlu0 %v2041, 24
      %v2052 = vpop.permute.xlu0 %2051
      %2053 = vrot.lane.b32.xlu0 %v2046, 24
      %v2054 = vpop.permute.xlu0 %2053
      %vm2057 = vcmask 228544
      %2058 = vst.msk [vmem:[#allocation2] sm:$0xff] %vm2057, %v2052
      %vm2059 = vcmask 221376
      %2060 = vst.msk [vmem:[#allocation2 + $0x8] sm:$0x1] %vm2059, %v2054
      %2061 = vrot.lane.b32.xlu0 %v569, 100
      %v2062 = vpop.permute.xlu0 %2061
      %2063 = vrot.lane.b32.xlu0 %v574, 100
      %v2064 = vpop.permute.xlu0 %2063
      %2065 = vrot.lane.b32.xlu0 %v569, 68
      %v2066 = vpop.permute.xlu0 %2065
      %2067 = vrot.lane.b32.xlu0 %v574, 68
      %v2068 = vpop.permute.xlu0 %2067
      %v2069 = vsel %vm583, %v2062, 0
      %v2071 = vsel %vm583, %v2064, 0
      %v2073 = vsel %vm583, %v2066, 0
      %v2075 = vsel %vm583, %v2068, 0
      %2077 = vmatprep.subr.mxu0 0.0
      %2078 = vmatpush1.xpose.msra.mxu0 %v2073
      %2079 = vmatprep.subr.mxu0 0.0
      %2080 = vmatpush1.xpose.msra.mxu0 %v2075
      %2081 = vmatprep.subr.mxu0 0.0
      %2082 = vmatpush1.xpose.msra.mxu0 0.0
      %2083 = vmatprep.subr.mxu0 0.0
      %2084 = vmatpush1.xpose.msra.mxu0 0.0
      %2085 = vmatprep.subr.mxu0 0.0
      %2086 = vmatpush1.xpose.msra.mxu0 0.0
      %2087 = vmatprep.subr.mxu0 0.0
      %2088 = vmatpush1.xpose.msra.mxu0 0.0
      %2089 = vmatprep.subr.mxu0 0.0
      %2090 = vmatpush1.xpose.msra.mxu0 0.0
      %2091 = vmatprep.subr.mxu0 0.0
      %2092 = vmatpush1.xpose.msra.mxu0 0.0
      %2093 = vmatprep.subr.mxu0 0.0
      %2094 = vmatpush1.xpose.msra.mxu0 0.0
      %2095 = vmatprep.subr.mxu0 0.0
      %2096 = vmatpush1.xpose.msra.mxu0 0.0
      %2097 = vmatprep.subr.mxu0 0.0
      %2098 = vmatpush1.xpose.msra.mxu0 0.0
      %2099 = vmatprep.subr.mxu0 0.0
      %2100 = vmatpush1.xpose.msra.mxu0 0.0
      %2101 = vmatprep.subr.mxu0 0.0
      %2102 = vmatpush1.xpose.msra.mxu0 0.0
      %2103 = vmatprep.subr.mxu0 0.0
      %2104 = vmatpush1.xpose.msra.mxu0 0.0
      %2105 = vmatprep.subr.mxu0 0.0
      %2106 = vmatpush1.xpose.msra.mxu0 0.0
      %2107 = vmatprep.subr.mxu0 0.0
      %2108 = vmatpush1.xpose.msra.mxu0 0.0
      %2109 = vmatprep.subr.mxu0 0.0
      %2110 = vmatpush1.xpose.msra.mxu0 0.0
      %2111 = vmatprep.subr.mxu0 0.0
      %2112 = vmatpush1.xpose.msra.mxu0 0.0
      %2113 = vmatprep.subr.mxu0 0.0
      %2114 = vmatpush1.xpose.msra.mxu0 0.0
      %2115 = vmatprep.subr.mxu0 0.0
      %2116 = vmatpush1.xpose.msra.mxu0 0.0
      %2117 = vmatprep.subr.mxu0 0.0
      %2118 = vmatpush1.xpose.msra.mxu0 0.0
      %2119 = vmatprep.subr.mxu0 0.0
      %2120 = vmatpush1.xpose.msra.mxu0 0.0
      %2121 = vmatprep.subr.mxu0 0.0
      %2122 = vmatpush1.xpose.msra.mxu0 0.0
      %2123 = vmatprep.subr.mxu0 0.0
      %2124 = vmatpush1.xpose.msra.mxu0 0.0
      %2125 = vmatprep.subr.mxu0 0.0
      %2126 = vmatpush1.xpose.msra.mxu0 0.0
      %2127 = vmatprep.subr.mxu0 0.0
      %2128 = vmatpush1.xpose.msra.mxu0 0.0
      %2129 = vmatprep.subr.mxu0 0.0
      %2130 = vmatpush1.xpose.msra.mxu0 0.0
      %2131 = vmatprep.subr.mxu0 0.0
      %2132 = vmatpush1.xpose.msra.mxu0 0.0
      %2133 = vmatprep.subr.mxu0 0.0
      %2134 = vmatpush1.xpose.msra.mxu0 0.0
      %2135 = vmatprep.subr.mxu0 0.0
      %2136 = vmatpush1.xpose.msra.mxu0 0.0
      %2137 = vmatprep.subr.mxu0 0.0
      %2138 = vmatpush1.xpose.msra.mxu0 0.0
      %2139 = vmatprep.subr.mxu0 0.0
      %2140 = vmatpush1.xpose.msra.mxu0 0.0
      %2141 = vmatprep.mubr.f32.mxu0 0.0
      %2142 = vmatmul.mubr.f32.gmra.mrb[0].mxu0 %v2069
      %v2143 = vpop.f32.mrb[0].mxu0
      %v2144 = vadd.f32 0.0, %v2143
      %v2145 = vpop.f32.mrb[0].mxu0
      %2146 = vmatprep.mubr.f32.mxu0 0.0
      %2147 = vmatmul.mubr.f32.gmra.mrb[0].mxu0 %v2071
      %v2148 = vpop.f32.mrb[0].mxu0
      %v2149 = vadd.f32 0.0, %v2148
      %v2150 = vpop.f32.mrb[0].mxu0
      %2151 = vdwg.mxu0
      %v2152 = vsel %vm667, %v2144, -inf
      %2153 = vmax.xlane.f32.xlu0 %v2152
      %v2154 = vpop.xlane.xlu0 %2153
      %v2155 = vsel %vm671, %v2149, -inf
      %2156 = vmax.xlane.f32.xlu0 %v2155
      %v2157 = vpop.xlane.xlu0 %2156
      %v2158 = vsub.f32 %v2144, %v2154
      %v2159 = vsub.f32 %v2149, %v2157
      %v2160 = vmul.f32 %v2158, 1.442695
      %v2161 = vpow.pop %v2160
      %v2162 = vmul.f32 %v2159, 1.442695
      %v2163 = vpow.pop %v2162
      %v2164 = vsel %vm667, %v2161, 0.0
      %2165 = vadd.xlane.f32.xlu0 %v2164
      %v2166 = vpop.xlane.xlu0 %2165
      %v2167 = vsel %vm671, %v2163, 0.0
      %2168 = vadd.xlane.f32.xlu0 %v2167
      %v2169 = vpop.xlane.xlu0 %2168
      %v2170 = vrcp.pop %v2166
      %v2171 = vrcp.pop %v2169
      %v2172 = vmul.f32 %v2161, %v2170
      %v2173 = vmul.f32 %v2163, %v2171
      %2174 = vrot.lane.b32.xlu0 %v569, 36
      %v2175 = vpop.permute.xlu0 %2174
      %2176 = vrot.lane.b32.xlu0 %v574, 36
      %v2177 = vpop.permute.xlu0 %2176
      %v2180 = vsel %vm667, %v2172, 0
      %v2183 = vsel %vm667, %v2173, 0
      %v2185 = vsel %vm702, %v2177, 0
      %2187 = vmatprep.subr.mxu0 0.0
      %2188 = vmatpush1.msra.mxu0 %v2175
      %2189 = vmatprep.subr.mxu0 0.0
      %2190 = vmatpush1.msra.mxu0 %v2185
      %2191 = vmatprep.subr.mxu0 0.0
      %2192 = vmatpush1.msra.mxu0 0.0
      %2193 = vmatprep.subr.mxu0 0.0
      %2194 = vmatpush1.msra.mxu0 0.0
      %2195 = vmatprep.subr.mxu0 0.0
      %2196 = vmatpush1.msra.mxu0 0.0
      %2197 = vmatprep.subr.mxu0 0.0
      %2198 = vmatpush1.msra.mxu0 0.0
      %2199 = vmatprep.subr.mxu0 0.0
      %2200 = vmatpush1.msra.mxu0 0.0
      %2201 = vmatprep.subr.mxu0 0.0
      %2202 = vmatpush1.msra.mxu0 0.0
      %2203 = vmatprep.subr.mxu0 0.0
      %2204 = vmatpush1.msra.mxu0 0.0
      %2205 = vmatprep.subr.mxu0 0.0
      %2206 = vmatpush1.msra.mxu0 0.0
      %2207 = vmatprep.subr.mxu0 0.0
      %2208 = vmatpush1.msra.mxu0 0.0
      %2209 = vmatprep.subr.mxu0 0.0
      %2210 = vmatpush1.msra.mxu0 0.0
      %2211 = vmatprep.subr.mxu0 0.0
      %2212 = vmatpush1.msra.mxu0 0.0
      %2213 = vmatprep.subr.mxu0 0.0
      %2214 = vmatpush1.msra.mxu0 0.0
      %2215 = vmatprep.subr.mxu0 0.0
      %2216 = vmatpush1.msra.mxu0 0.0
      %2217 = vmatprep.subr.mxu0 0.0
      %2218 = vmatpush1.msra.mxu0 0.0
      %2219 = vmatprep.subr.mxu0 0.0
      %2220 = vmatpush1.msra.mxu0 0.0
      %2221 = vmatprep.subr.mxu0 0.0
      %2222 = vmatpush1.msra.mxu0 0.0
      %2223 = vmatprep.subr.mxu0 0.0
      %2224 = vmatpush1.msra.mxu0 0.0
      %2225 = vmatprep.subr.mxu0 0.0
      %2226 = vmatpush1.msra.mxu0 0.0
      %2227 = vmatprep.subr.mxu0 0.0
      %2228 = vmatpush1.msra.mxu0 0.0
      %2229 = vmatprep.subr.mxu0 0.0
      %2230 = vmatpush1.msra.mxu0 0.0
      %2231 = vmatprep.subr.mxu0 0.0
      %2232 = vmatpush1.msra.mxu0 0.0
      %2233 = vmatprep.subr.mxu0 0.0
      %2234 = vmatpush1.msra.mxu0 0.0
      %2235 = vmatprep.subr.mxu0 0.0
      %2236 = vmatpush1.msra.mxu0 0.0
      %2237 = vmatprep.subr.mxu0 0.0
      %2238 = vmatpush1.msra.mxu0 0.0
      %2239 = vmatprep.subr.mxu0 0.0
      %2240 = vmatpush1.msra.mxu0 0.0
      %2241 = vmatprep.subr.mxu0 0.0
      %2242 = vmatpush1.msra.mxu0 0.0
      %2243 = vmatprep.subr.mxu0 0.0
      %2244 = vmatpush1.msra.mxu0 0.0
      %2245 = vmatprep.subr.mxu0 0.0
      %2246 = vmatpush1.msra.mxu0 0.0
      %2247 = vmatprep.subr.mxu0 0.0
      %2248 = vmatpush1.msra.mxu0 0.0
      %2249 = vmatprep.subr.mxu0 0.0
      %2250 = vmatpush1.msra.mxu0 0.0
      %2251 = vmatprep.mubr.f32.mxu0 0.0
      %2252 = vmatmul.mubr.f32.gmra.mrb[0].mxu0 %v2180
      %v2253 = vpop.f32.mrb[0].mxu0
      %v2254 = vadd.f32 0.0, %v2253
      %v2255 = vpop.f32.mrb[0].mxu0
      %2256 = vmatprep.mubr.f32.mxu0 0.0
      %2257 = vmatmul.mubr.f32.gmra.mrb[0].mxu0 %v2183
      %v2258 = vpop.f32.mrb[0].mxu0
      %v2259 = vadd.f32 0.0, %v2258
      %v2260 = vpop.f32.mrb[0].mxu0
      %2261 = vdwg.mxu0
      %2264 = vrot.lane.b32.xlu0 %v2254, 28
      %v2265 = vpop.permute.xlu0 %2264
      %2266 = vrot.lane.b32.xlu0 %v2259, 28
      %v2267 = vpop.permute.xlu0 %2266
      %vm2270 = vcmask 261344
      %2271 = vst.msk [vmem:[#allocation2] sm:$0xff] %vm2270, %v2265
      %vm2272 = vcmask 254176
      %2273 = vst.msk [vmem:[#allocation2 + $0x8] sm:$0x1] %vm2272, %v2267
      %v2274 = vld [vmem:[#allocation2] sm:$0xff]
      %v2275 = vld [vmem:[#allocation2 + $0x8] sm:$0x1]
      %v2277 = vsel %vm461, %v2274, 0
      %v2280 = vsel %vm461, %v2275, 0
      %2282 = vmatprep.subr.mxu0 0.0
      %2283 = vmatpush1.msra.mxu0 %v434
      %2284 = vmatprep.subr.mxu0 0.0
      %2285 = vmatpush1.msra.mxu0 %v435
      %2286 = vmatprep.subr.mxu0 0.0
      %2287 = vmatpush1.msra.mxu0 %v436
      %2288 = vmatprep.subr.mxu0 0.0
      %2289 = vmatpush1.msra.mxu0 %v437
      %2290 = vmatprep.subr.mxu0 0.0
      %2291 = vmatpush1.msra.mxu0 0.0
      %2292 = vmatprep.subr.mxu0 0.0
      %2293 = vmatpush1.msra.mxu0 0.0
      %2294 = vmatprep.subr.mxu0 0.0
      %2295 = vmatpush1.msra.mxu0 0.0
      %2296 = vmatprep.subr.mxu0 0.0
      %2297 = vmatpush1.msra.mxu0 0.0
      %2298 = vmatprep.subr.mxu0 0.0
      %2299 = vmatpush1.msra.mxu0 0.0
      %2300 = vmatprep.subr.mxu0 0.0
      %2301 = vmatpush1.msra.mxu0 0.0
      %2302 = vmatprep.subr.mxu0 0.0
      %2303 = vmatpush1.msra.mxu0 0.0
      %2304 = vmatprep.subr.mxu0 0.0
      %2305 = vmatpush1.msra.mxu0 0.0
      %2306 = vmatprep.subr.mxu0 0.0
      %2307 = vmatpush1.msra.mxu0 0.0
      %2308 = vmatprep.subr.mxu0 0.0
      %2309 = vmatpush1.msra.mxu0 0.0
      %2310 = vmatprep.subr.mxu0 0.0
      %2311 = vmatpush1.msra.mxu0 0.0
      %2312 = vmatprep.subr.mxu0 0.0
      %2313 = vmatpush1.msra.mxu0 0.0
      %2314 = vmatprep.subr.mxu0 0.0
      %2315 = vmatpush1.msra.mxu0 0.0
      %2316 = vmatprep.subr.mxu0 0.0
      %2317 = vmatpush1.msra.mxu0 0.0
      %2318 = vmatprep.subr.mxu0 0.0
      %2319 = vmatpush1.msra.mxu0 0.0
      %2320 = vmatprep.subr.mxu0 0.0
      %2321 = vmatpush1.msra.mxu0 0.0
      %2322 = vmatprep.subr.mxu0 0.0
      %2323 = vmatpush1.msra.mxu0 0.0
      %2324 = vmatprep.subr.mxu0 0.0
      %2325 = vmatpush1.msra.mxu0 0.0
      %2326 = vmatprep.subr.mxu0 0.0
      %2327 = vmatpush1.msra.mxu0 0.0
      %2328 = vmatprep.subr.mxu0 0.0
      %2329 = vmatpush1.msra.mxu0 0.0
      %2330 = vmatprep.subr.mxu0 0.0
      %2331 = vmatpush1.msra.mxu0 0.0
      %2332 = vmatprep.subr.mxu0 0.0
      %2333 = vmatpush1.msra.mxu0 0.0
      %2334 = vmatprep.subr.mxu0 0.0
      %2335 = vmatpush1.msra.mxu0 0.0
      %2336 = vmatprep.subr.mxu0 0.0
      %2337 = vmatpush1.msra.mxu0 0.0
      %2338 = vmatprep.subr.mxu0 0.0
      %2339 = vmatpush1.msra.mxu0 0.0
      %2340 = vmatprep.subr.mxu0 0.0
      %2341 = vmatpush1.msra.mxu0 0.0
      %2342 = vmatprep.subr.mxu0 0.0
      %2343 = vmatpush1.msra.mxu0 0.0
      %2344 = vmatprep.subr.mxu0 0.0
      %2345 = vmatpush1.msra.mxu0 0.0
      %2346 = vmatprep.mubr.f32.mxu0 0.0
      %2347 = vmatmul.mubr.f32.gmra.mrb[0].mxu0 %v2277
      %v2348 = vpop.f32.mrb[0].mxu0
      %v2349 = vadd.f32 0.0, %v2348
      %v2350 = vpop.f32.mrb[0].mxu0
      %2351 = vmatprep.mubr.f32.mxu0 0.0
      %2352 = vmatmul.mubr.f32.gmra.mrb[0].mxu0 %v2280
      %v2353 = vpop.f32.mrb[0].mxu0
      %v2354 = vadd.f32 0.0, %v2353
      %v2355 = vpop.f32.mrb[0].mxu0
      %2356 = vdwg.mxu0
      %v2357 = vadd.f32 %v427, %v2349
      %v2358 = vadd.f32 %v428, %v2354
      %v2360 = vlaneseq
      %v2361 = vshrl.u32 %v2360, 7
      %v2362 = vsub.s32 0, %v2361
      %v2363 = vrot.slane %v438, %v2362
      %v2365 = vadd.f32 %v2357, %v2363
      %v2366 = vadd.f32 %v2358, %v2363
      %v2367 = vsel %vm461, %v2365, 0.0
      %2368 = vadd.xlane.f32.xlu0 %v2367
      %v2369 = vpop.xlane.xlu0 %2368
      %v2370 = vsel %vm465, %v2366, 0.0
      %2371 = vadd.xlane.f32.xlu0 %v2370
      %v2372 = vpop.xlane.xlu0 %2371
      %v2373 = vmul.f32 %v2369, %v469
      %v2374 = vmul.f32 %v2372, %v469
      %v2375 = vsub.f32 %v2365, %v2373
      %v2376 = vsub.f32 %v2366, %v2374
      %v2377 = vmul.f32 %v2375, %v2375
      %v2378 = vmul.f32 %v2376, %v2376
      %v2379 = vsel %vm461, %v2377, 0.0
      %2380 = vadd.xlane.f32.xlu0 %v2379
      %v2381 = vpop.xlane.xlu0 %2380
      %v2382 = vsel %vm465, %v2378, 0.0
      %2383 = vadd.xlane.f32.xlu0 %v2382
      %v2384 = vpop.xlane.xlu0 %2383
      %v2385 = vmul.f32 %v2381, %v469
      %v2386 = vmul.f32 %v2384, %v469
      %v2387 = vadd.f32 %v2385, 1e-05
      %v2388 = vadd.f32 %v2386, 1e-05
      %v2389 = vrsqrt.pop %v2387
      %v2390 = vrsqrt.pop %v2388
      %v2391 = vmul.f32 %v2375, %v2389
      %v2392 = vmul.f32 %v2376, %v2390
      %v2394 = vlaneseq
      %v2395 = vshrl.u32 %v2394, 7
      %v2396 = vsub.s32 0, %v2395
      %v2397 = vrot.slane %v443, %v2396
      %v2400 = vsel %vm461, %v2391, 0
      %v2403 = vsel %vm461, %v2392, 0
      %2405 = vmatprep.subr.mxu0 0.0
      %2406 = vmatpush1.msra.mxu0 %v439
      %2407 = vmatprep.subr.mxu0 0.0
      %2408 = vmatpush1.msra.mxu0 %v440
      %2409 = vmatprep.subr.mxu0 0.0
      %2410 = vmatpush1.msra.mxu0 %v441
      %2411 = vmatprep.subr.mxu0 0.0
      %2412 = vmatpush1.msra.mxu0 %v442
      %2413 = vmatprep.subr.mxu0 0.0
      %2414 = vmatpush1.msra.mxu0 0.0
      %2415 = vmatprep.subr.mxu0 0.0
      %2416 = vmatpush1.msra.mxu0 0.0
      %2417 = vmatprep.subr.mxu0 0.0
      %2418 = vmatpush1.msra.mxu0 0.0
      %2419 = vmatprep.subr.mxu0 0.0
      %2420 = vmatpush1.msra.mxu0 0.0
      %2421 = vmatprep.subr.mxu0 0.0
      %2422 = vmatpush1.msra.mxu0 0.0
      %2423 = vmatprep.subr.mxu0 0.0
      %2424 = vmatpush1.msra.mxu0 0.0
      %2425 = vmatprep.subr.mxu0 0.0
      %2426 = vmatpush1.msra.mxu0 0.0
      %2427 = vmatprep.subr.mxu0 0.0
      %2428 = vmatpush1.msra.mxu0 0.0
      %2429 = vmatprep.subr.mxu0 0.0
      %2430 = vmatpush1.msra.mxu0 0.0
      %2431 = vmatprep.subr.mxu0 0.0
      %2432 = vmatpush1.msra.mxu0 0.0
      %2433 = vmatprep.subr.mxu0 0.0
      %2434 = vmatpush1.msra.mxu0 0.0
      %2435 = vmatprep.subr.mxu0 0.0
      %2436 = vmatpush1.msra.mxu0 0.0
      %2437 = vmatprep.subr.mxu0 0.0
      %2438 = vmatpush1.msra.mxu0 0.0
      %2439 = vmatprep.subr.mxu0 0.0
      %2440 = vmatpush1.msra.mxu0 0.0
      %2441 = vmatprep.subr.mxu0 0.0
      %2442 = vmatpush1.msra.mxu0 0.0
      %2443 = vmatprep.subr.mxu0 0.0
      %2444 = vmatpush1.msra.mxu0 0.0
      %2445 = vmatprep.subr.mxu0 0.0
      %2446 = vmatpush1.msra.mxu0 0.0
      %2447 = vmatprep.subr.mxu0 0.0
      %2448 = vmatpush1.msra.mxu0 0.0
      %2449 = vmatprep.subr.mxu0 0.0
      %2450 = vmatpush1.msra.mxu0 0.0
      %2451 = vmatprep.subr.mxu0 0.0
      %2452 = vmatpush1.msra.mxu0 0.0
      %2453 = vmatprep.subr.mxu0 0.0
      %2454 = vmatpush1.msra.mxu0 0.0
      %2455 = vmatprep.subr.mxu0 0.0
      %2456 = vmatpush1.msra.mxu0 0.0
      %2457 = vmatprep.subr.mxu0 0.0
      %2458 = vmatpush1.msra.mxu0 0.0
      %2459 = vmatprep.subr.mxu0 0.0
      %2460 = vmatpush1.msra.mxu0 0.0
      %2461 = vmatprep.subr.mxu0 0.0
      %2462 = vmatpush1.msra.mxu0 0.0
      %2463 = vmatprep.subr.mxu0 0.0
      %2464 = vmatpush1.msra.mxu0 0.0
      %2465 = vmatprep.subr.mxu0 0.0
      %2466 = vmatpush1.msra.mxu0 0.0
      %2467 = vmatprep.subr.mxu0 0.0
      %2468 = vmatpush1.msra.mxu0 0.0
      %2469 = vmatprep.mubr.f32.mxu0 0.0
      %2470 = vmatmul.mubr.f32.gmra.mrb[0].mxu0 %v2400
      %v2471 = vpop.f32.mrb[0].mxu0
      %v2472 = vadd.f32 %v2397, %v2471
      %v2473 = vpop.f32.mrb[0].mxu0
      %2474 = vmatprep.mubr.f32.mxu0 0.0
      %2475 = vmatmul.mubr.f32.gmra.mrb[0].mxu0 %v2403
      %v2476 = vpop.f32.mrb[0].mxu0
      %v2477 = vadd.f32 %v2397, %v2476
      %v2478 = vpop.f32.mrb[0].mxu0
      %2479 = vdwg.mxu0
      %v2480 = vmul.f32 %v2472, 0.5
      %v2481 = vmul.f32 %v2477, 0.5
      %v2482 = vmul.f32 %v2472, 0.70710677
      %v2483 = vmul.f32 %v2477, 0.70710677
      %v2484 = verf.f32.pop %v2482
      %v2485 = verf.f32.pop %v2483
      %v2486 = vadd.f32 %v2484, 1.0
      %v2487 = vadd.f32 %v2485, 1.0
      %v2488 = vmul.f32 %v2480, %v2486
      %v2489 = vmul.f32 %v2481, %v2487
      %v2491 = vlaneseq
      %v2492 = vshrl.u32 %v2491, 7
      %v2493 = vsub.s32 0, %v2492
      %v2494 = vrot.slane %v460, %v2493
      %2496 = vmatprep.subr.mxu0 0.0
      %2497 = vmatpush1.msra.mxu0 %v444
      %2498 = vmatprep.subr.mxu0 0.0
      %2499 = vmatpush1.msra.mxu0 %v445
      %2500 = vmatprep.subr.mxu0 0.0
      %2501 = vmatpush1.msra.mxu0 %v446
      %2502 = vmatprep.subr.mxu0 0.0
      %2503 = vmatpush1.msra.mxu0 %v447
      %2504 = vmatprep.subr.mxu0 0.0
      %2505 = vmatpush1.msra.mxu0 %v448
      %2506 = vmatprep.subr.mxu0 0.0
      %2507 = vmatpush1.msra.mxu0 %v449
      %2508 = vmatprep.subr.mxu0 0.0
      %2509 = vmatpush1.msra.mxu0 %v450
      %2510 = vmatprep.subr.mxu0 0.0
      %2511 = vmatpush1.msra.mxu0 %v451
      %2512 = vmatprep.subr.mxu0 0.0
      %2513 = vmatpush1.msra.mxu0 %v452
      %2514 = vmatprep.subr.mxu0 0.0
      %2515 = vmatpush1.msra.mxu0 %v453
      %2516 = vmatprep.subr.mxu0 0.0
      %2517 = vmatpush1.msra.mxu0 %v454
      %2518 = vmatprep.subr.mxu0 0.0
      %2519 = vmatpush1.msra.mxu0 %v455
      %2520 = vmatprep.subr.mxu0 0.0
      %2521 = vmatpush1.msra.mxu0 %v456
      %2522 = vmatprep.subr.mxu0 0.0
      %2523 = vmatpush1.msra.mxu0 %v457
      %2524 = vmatprep.subr.mxu0 0.0
      %2525 = vmatpush1.msra.mxu0 %v458
      %2526 = vmatprep.subr.mxu0 0.0
      %2527 = vmatpush1.msra.mxu0 %v459
      %2528 = vmatprep.subr.mxu0 0.0
      %2529 = vmatpush1.msra.mxu0 0.0
      %2530 = vmatprep.subr.mxu0 0.0
      %2531 = vmatpush1.msra.mxu0 0.0
      %2532 = vmatprep.subr.mxu0 0.0
      %2533 = vmatpush1.msra.mxu0 0.0
      %2534 = vmatprep.subr.mxu0 0.0
      %2535 = vmatpush1.msra.mxu0 0.0
      %2536 = vmatprep.subr.mxu0 0.0
      %2537 = vmatpush1.msra.mxu0 0.0
      %2538 = vmatprep.subr.mxu0 0.0
      %2539 = vmatpush1.msra.mxu0 0.0
      %2540 = vmatprep.subr.mxu0 0.0
      %2541 = vmatpush1.msra.mxu0 0.0
      %2542 = vmatprep.subr.mxu0 0.0
      %2543 = vmatpush1.msra.mxu0 0.0
      %2544 = vmatprep.subr.mxu0 0.0
      %2545 = vmatpush1.msra.mxu0 0.0
      %2546 = vmatprep.subr.mxu0 0.0
      %2547 = vmatpush1.msra.mxu0 0.0
      %2548 = vmatprep.subr.mxu0 0.0
      %2549 = vmatpush1.msra.mxu0 0.0
      %2550 = vmatprep.subr.mxu0 0.0
      %2551 = vmatpush1.msra.mxu0 0.0
      %2552 = vmatprep.subr.mxu0 0.0
      %2553 = vmatpush1.msra.mxu0 0.0
      %2554 = vmatprep.subr.mxu0 0.0
      %2555 = vmatpush1.msra.mxu0 0.0
      %2556 = vmatprep.subr.mxu0 0.0
      %2557 = vmatpush1.msra.mxu0 0.0
      %2558 = vmatprep.subr.mxu0 0.0
      %2559 = vmatpush1.msra.mxu0 0.0
      %2560 = vmatprep.mubr.f32.mxu0 0.0
      %2561 = vmatmul.mubr.f32.gmra.mrb[0].mxu0 %v2488
      %v2562 = vpop.f32.mrb[0].mxu0
      %v2563 = vadd.f32 %v2494, %v2562
      %v2564 = vpop.f32.mrb[0].mxu0
      %2565 = vmatprep.mubr.f32.mxu0 0.0
      %2566 = vmatmul.mubr.f32.gmra.mrb[0].mxu0 %v2489
      %v2567 = vpop.f32.mrb[0].mxu0
      %v2568 = vadd.f32 %v2494, %v2567
      %v2569 = vpop.f32.mrb[0].mxu0
      %2570 = vdwg.mxu0
      %v2571 = vadd.f32 %v2365, %v2563
      %v2572 = vadd.f32 %v2366, %v2568
      %s2573 = scalar_lea.vmem %s1, 32
      %v2574 = vld [vmem:[%s2573] sm:$0xff]
      %v2575 = vld [vmem:[%s2573 + $0x8] sm:$0xff]
      %v2576 = vld [vmem:[%s2573 + $0x10] sm:$0xff]
      %v2577 = vld [vmem:[%s2573 + $0x18] sm:$0xff]
      %s2578 = scalar_lea.vmem %s2, 1
      %v2579 = vld [vmem:[%s2578] sm:$0x1]
      %s2580 = scalar_lea.vmem %s3, 32
      %v2581 = vld [vmem:[%s2580] sm:$0xff]
      %v2582 = vld [vmem:[%s2580 + $0x8] sm:$0xff]
      %v2583 = vld [vmem:[%s2580 + $0x10] sm:$0xff]
      %v2584 = vld [vmem:[%s2580 + $0x18] sm:$0xff]
      %s2585 = scalar_lea.vmem %s4, 1
      %v2586 = vld [vmem:[%s2585] sm:$0x1]
      %s2587 = scalar_lea.vmem %s5, 32
      %v2588 = vld [vmem:[%s2587] sm:$0xff]
      %v2589 = vld [vmem:[%s2587 + $0x8] sm:$0xff]
      %v2590 = vld [vmem:[%s2587 + $0x10] sm:$0xff]
      %v2591 = vld [vmem:[%s2587 + $0x18] sm:$0xff]
      %s2592 = scalar_lea.vmem %s6, 1
      %v2593 = vld [vmem:[%s2592] sm:$0x1]
      %s2594 = scalar_lea.vmem %s7, 128
      %v2595 = vld [vmem:[%s2594] sm:$0xff]
      %v2596 = vld [vmem:[%s2594 + $0x8] sm:$0xff]
      %v2597 = vld [vmem:[%s2594 + $0x10] sm:$0xff]
      %v2598 = vld [vmem:[%s2594 + $0x18] sm:$0xff]
      %v2599 = vld [vmem:[%s2594 + $0x20] sm:$0xff]
      %v2600 = vld [vmem:[%s2594 + $0x28] sm:$0xff]
      %v2601 = vld [vmem:[%s2594 + $0x30] sm:$0xff]
      %v2602 = vld [vmem:[%s2594 + $0x38] sm:$0xff]
      %v2603 = vld [vmem:[%s2594 + $0x40] sm:$0xff]
      %v2604 = vld [vmem:[%s2594 + $0x48] sm:$0xff]
      %v2605 = vld [vmem:[%s2594 + $0x50] sm:$0xff]
      %v2606 = vld [vmem:[%s2594 + $0x58] sm:$0xff]
      %v2607 = vld [vmem:[%s2594 + $0x60] sm:$0xff]
      %v2608 = vld [vmem:[%s2594 + $0x68] sm:$0xff]
      %v2609 = vld [vmem:[%s2594 + $0x70] sm:$0xff]
      %v2610 = vld [vmem:[%s2594 + $0x78] sm:$0xff]
      %s2611 = scalar_lea.vmem %s8, 1
      %v2612 = vld [vmem:[%s2611] sm:$0x1]
      %v2613 = vsel %vm461, %v2571, 0.0
      %2614 = vadd.xlane.f32.xlu0 %v2613
      %v2615 = vpop.xlane.xlu0 %2614
      %v2616 = vsel %vm465, %v2572, 0.0
      %2617 = vadd.xlane.f32.xlu0 %v2616
      %v2618 = vpop.xlane.xlu0 %2617
      %v2619 = vmul.f32 %v2615, %v469
      %v2620 = vmul.f32 %v2618, %v469
      %v2621 = vsub.f32 %v2571, %v2619
      %v2622 = vsub.f32 %v2572, %v2620
      %v2623 = vmul.f32 %v2621, %v2621
      %v2624 = vmul.f32 %v2622, %v2622
      %v2625 = vsel %vm461, %v2623, 0.0
      %2626 = vadd.xlane.f32.xlu0 %v2625
      %v2627 = vpop.xlane.xlu0 %2626
      %v2628 = vsel %vm465, %v2624, 0.0
      %2629 = vadd.xlane.f32.xlu0 %v2628
      %v2630 = vpop.xlane.xlu0 %2629
      %v2631 = vmul.f32 %v2627, %v469
      %v2632 = vmul.f32 %v2630, %v469
      %v2633 = vadd.f32 %v2631, 1e-05
      %v2634 = vadd.f32 %v2632, 1e-05
      %v2635 = vrsqrt.pop %v2633
      %v2636 = vrsqrt.pop %v2634
      %v2637 = vmul.f32 %v2621, %v2635
      %v2638 = vmul.f32 %v2622, %v2636
      %v2640 = vlaneseq
      %v2641 = vshrl.u32 %v2640, 7
      %v2642 = vsub.s32 0, %v2641
      %v2643 = vrot.slane %v2579, %v2642
      %v2646 = vsel %vm461, %v2637, 0
      %v2649 = vsel %vm461, %v2638, 0
      %2651 = vmatprep.subr.mxu0 0.0
      %2652 = vmatpush1.msra.mxu0 %v2574
      %2653 = vmatprep.subr.mxu0 0.0
      %2654 = vmatpush1.msra.mxu0 %v2575
      %2655 = vmatprep.subr.mxu0 0.0
      %2656 = vmatpush1.msra.mxu0 %v2576
      %2657 = vmatprep.subr.mxu0 0.0
      %2658 = vmatpush1.msra.mxu0 %v2577
      %2659 = vmatprep.subr.mxu0 0.0
      %2660 = vmatpush1.msra.mxu0 0.0
      %2661 = vmatprep.subr.mxu0 0.0
      %2662 = vmatpush1.msra.mxu0 0.0
      %2663 = vmatprep.subr.mxu0 0.0
      %2664 = vmatpush1.msra.mxu0 0.0
      %2665 = vmatprep.subr.mxu0 0.0
      %2666 = vmatpush1.msra.mxu0 0.0
      %2667 = vmatprep.subr.mxu0 0.0
      %2668 = vmatpush1.msra.mxu0 0.0
      %2669 = vmatprep.subr.mxu0 0.0
      %2670 = vmatpush1.msra.mxu0 0.0
      %2671 = vmatprep.subr.mxu0 0.0
      %2672 = vmatpush1.msra.mxu0 0.0
      %2673 = vmatprep.subr.mxu0 0.0
      %2674 = vmatpush1.msra.mxu0 0.0
      %2675 = vmatprep.subr.mxu0 0.0
      %2676 = vmatpush1.msra.mxu0 0.0
      %2677 = vmatprep.subr.mxu0 0.0
      %2678 = vmatpush1.msra.mxu0 0.0
      %2679 = vmatprep.subr.mxu0 0.0
      %2680 = vmatpush1.msra.mxu0 0.0
      %2681 = vmatprep.subr.mxu0 0.0
      %2682 = vmatpush1.msra.mxu0 0.0
      %2683 = vmatprep.subr.mxu0 0.0
      %2684 = vmatpush1.msra.mxu0 0.0
      %2685 = vmatprep.subr.mxu0 0.0
      %2686 = vmatpush1.msra.mxu0 0.0
      %2687 = vmatprep.subr.mxu0 0.0
      %2688 = vmatpush1.msra.mxu0 0.0
      %2689 = vmatprep.subr.mxu0 0.0
      %2690 = vmatpush1.msra.mxu0 0.0
      %2691 = vmatprep.subr.mxu0 0.0
      %2692 = vmatpush1.msra.mxu0 0.0
      %2693 = vmatprep.subr.mxu0 0.0
      %2694 = vmatpush1.msra.mxu0 0.0
      %2695 = vmatprep.subr.mxu0 0.0
      %2696 = vmatpush1.msra.mxu0 0.0
      %2697 = vmatprep.subr.mxu0 0.0
      %2698 = vmatpush1.msra.mxu0 0.0
      %2699 = vmatprep.subr.mxu0 0.0
      %2700 = vmatpush1.msra.mxu0 0.0
      %2701 = vmatprep.subr.mxu0 0.0
      %2702 = vmatpush1.msra.mxu0 0.0
      %2703 = vmatprep.subr.mxu0 0.0
      %2704 = vmatpush1.msra.mxu0 0.0
      %2705 = vmatprep.subr.mxu0 0.0
      %2706 = vmatpush1.msra.mxu0 0.0
      %2707 = vmatprep.subr.mxu0 0.0
      %2708 = vmatpush1.msra.mxu0 0.0
      %2709 = vmatprep.subr.mxu0 0.0
      %2710 = vmatpush1.msra.mxu0 0.0
      %2711 = vmatprep.subr.mxu0 0.0
      %2712 = vmatpush1.msra.mxu0 0.0
      %2713 = vmatprep.subr.mxu0 0.0
      %2714 = vmatpush1.msra.mxu0 0.0
      %2715 = vmatprep.mubr.f32.mxu0 0.0
      %2716 = vmatmul.mubr.f32.gmra.mrb[0].mxu0 %v2646
      %v2717 = vpop.f32.mrb[0].mxu0
      %v2718 = vadd.f32 %v2643, %v2717
      %v2719 = vpop.f32.mrb[0].mxu0
      %2720 = vmatprep.mubr.f32.mxu0 0.0
      %2721 = vmatmul.mubr.f32.gmra.mrb[0].mxu0 %v2649
      %v2722 = vpop.f32.mrb[0].mxu0
      %v2723 = vadd.f32 %v2643, %v2722
      %v2724 = vpop.f32.mrb[0].mxu0
      %2725 = vdwg.mxu0
      %2728 = vrot.lane.b32.xlu0 %v2718, 96
      %v2729 = vpop.permute.xlu0 %2728
      %2730 = vrot.lane.b32.xlu0 %v2723, 96
      %v2731 = vpop.permute.xlu0 %2730
      %v2732 = vsel %vm583, %v2718, 0
      %v2734 = vsel %vm583, %v2723, 0
      %v2736 = vsel %vm583, %v2729, 0
      %v2738 = vsel %vm583, %v2731, 0
      %2740 = vmatprep.subr.mxu0 0.0
      %2741 = vmatpush1.xpose.msra.mxu0 %v2736
      %2742 = vmatprep.subr.mxu0 0.0
      %2743 = vmatpush1.xpose.msra.mxu0 %v2738
      %2744 = vmatprep.subr.mxu0 0.0
      %2745 = vmatpush1.xpose.msra.mxu0 0.0
      %2746 = vmatprep.subr.mxu0 0.0
      %2747 = vmatpush1.xpose.msra.mxu0 0.0
      %2748 = vmatprep.subr.mxu0 0.0
      %2749 = vmatpush1.xpose.msra.mxu0 0.0
      %2750 = vmatprep.subr.mxu0 0.0
      %2751 = vmatpush1.xpose.msra.mxu0 0.0
      %2752 = vmatprep.subr.mxu0 0.0
      %2753 = vmatpush1.xpose.msra.mxu0 0.0
      %2754 = vmatprep.subr.mxu0 0.0
      %2755 = vmatpush1.xpose.msra.mxu0 0.0
      %2756 = vmatprep.subr.mxu0 0.0
      %2757 = vmatpush1.xpose.msra.mxu0 0.0
      %2758 = vmatprep.subr.mxu0 0.0
      %2759 = vmatpush1.xpose.msra.mxu0 0.0
      %2760 = vmatprep.subr.mxu0 0.0
      %2761 = vmatpush1.xpose.msra.mxu0 0.0
      %2762 = vmatprep.subr.mxu0 0.0
      %2763 = vmatpush1.xpose.msra.mxu0 0.0
      %2764 = vmatprep.subr.mxu0 0.0
      %2765 = vmatpush1.xpose.msra.mxu0 0.0
      %2766 = vmatprep.subr.mxu0 0.0
      %2767 = vmatpush1.xpose.msra.mxu0 0.0
      %2768 = vmatprep.subr.mxu0 0.0
      %2769 = vmatpush1.xpose.msra.mxu0 0.0
      %2770 = vmatprep.subr.mxu0 0.0
      %2771 = vmatpush1.xpose.msra.mxu0 0.0
      %2772 = vmatprep.subr.mxu0 0.0
      %2773 = vmatpush1.xpose.msra.mxu0 0.0
      %2774 = vmatprep.subr.mxu0 0.0
      %2775 = vmatpush1.xpose.msra.mxu0 0.0
      %2776 = vmatprep.subr.mxu0 0.0
      %2777 = vmatpush1.xpose.msra.mxu0 0.0
      %2778 = vmatprep.subr.mxu0 0.0
      %2779 = vmatpush1.xpose.msra.mxu0 0.0
      %2780 = vmatprep.subr.mxu0 0.0
      %2781 = vmatpush1.xpose.msra.mxu0 0.0
      %2782 = vmatprep.subr.mxu0 0.0
      %2783 = vmatpush1.xpose.msra.mxu0 0.0
      %2784 = vmatprep.subr.mxu0 0.0
      %2785 = vmatpush1.xpose.msra.mxu0 0.0
      %2786 = vmatprep.subr.mxu0 0.0
      %2787 = vmatpush1.xpose.msra.mxu0 0.0
      %2788 = vmatprep.subr.mxu0 0.0
      %2789 = vmatpush1.xpose.msra.mxu0 0.0
      %2790 = vmatprep.subr.mxu0 0.0
      %2791 = vmatpush1.xpose.msra.mxu0 0.0
      %2792 = vmatprep.subr.mxu0 0.0
      %2793 = vmatpush1.xpose.msra.mxu0 0.0
      %2794 = vmatprep.subr.mxu0 0.0
      %2795 = vmatpush1.xpose.msra.mxu0 0.0
      %2796 = vmatprep.subr.mxu0 0.0
      %2797 = vmatpush1.xpose.msra.mxu0 0.0
      %2798 = vmatprep.subr.mxu0 0.0
      %2799 = vmatpush1.xpose.msra.mxu0 0.0
      %2800 = vmatprep.subr.mxu0 0.0
      %2801 = vmatpush1.xpose.msra.mxu0 0.0
      %2802 = vmatprep.subr.mxu0 0.0
      %2803 = vmatpush1.xpose.msra.mxu0 0.0
      %2804 = vmatprep.mubr.f32.mxu0 0.0
      %2805 = vmatmul.mubr.f32.gmra.mrb[0].mxu0 %v2732
      %v2806 = vpop.f32.mrb[0].mxu0
      %v2807 = vadd.f32 0.0, %v2806
      %v2808 = vpop.f32.mrb[0].mxu0
      %2809 = vmatprep.mubr.f32.mxu0 0.0
      %2810 = vmatmul.mubr.f32.gmra.mrb[0].mxu0 %v2734
      %v2811 = vpop.f32.mrb[0].mxu0
      %v2812 = vadd.f32 0.0, %v2811
      %v2813 = vpop.f32.mrb[0].mxu0
      %2814 = vdwg.mxu0
      %v2815 = vsel %vm667, %v2807, -inf
      %2816 = vmax.xlane.f32.xlu0 %v2815
      %v2817 = vpop.xlane.xlu0 %2816
      %v2818 = vsel %vm671, %v2812, -inf
      %2819 = vmax.xlane.f32.xlu0 %v2818
      %v2820 = vpop.xlane.xlu0 %2819
      %v2821 = vsub.f32 %v2807, %v2817
      %v2822 = vsub.f32 %v2812, %v2820
      %v2823 = vmul.f32 %v2821, 1.442695
      %v2824 = vpow.pop %v2823
      %v2825 = vmul.f32 %v2822, 1.442695
      %v2826 = vpow.pop %v2825
      %v2827 = vsel %vm667, %v2824, 0.0
      %2828 = vadd.xlane.f32.xlu0 %v2827
      %v2829 = vpop.xlane.xlu0 %2828
      %v2830 = vsel %vm671, %v2826, 0.0
      %2831 = vadd.xlane.f32.xlu0 %v2830
      %v2832 = vpop.xlane.xlu0 %2831
      %v2833 = vrcp.pop %v2829
      %v2834 = vrcp.pop %v2832
      %v2835 = vmul.f32 %v2824, %v2833
      %v2836 = vmul.f32 %v2826, %v2834
      %2837 = vrot.lane.b32.xlu0 %v2718, 64
      %v2838 = vpop.permute.xlu0 %2837
      %2839 = vrot.lane.b32.xlu0 %v2723, 64
      %v2840 = vpop.permute.xlu0 %2839
      %v2843 = vsel %vm667, %v2835, 0
      %v2846 = vsel %vm667, %v2836, 0
      %v2848 = vsel %vm702, %v2840, 0
      %2850 = vmatprep.subr.mxu0 0.0
      %2851 = vmatpush1.msra.mxu0 %v2838
      %2852 = vmatprep.subr.mxu0 0.0
      %2853 = vmatpush1.msra.mxu0 %v2848
      %2854 = vmatprep.subr.mxu0 0.0
      %2855 = vmatpush1.msra.mxu0 0.0
      %2856 = vmatprep.subr.mxu0 0.0
      %2857 = vmatpush1.msra.mxu0 0.0
      %2858 = vmatprep.subr.mxu0 0.0
      %2859 = vmatpush1.msra.mxu0 0.0
      %2860 = vmatprep.subr.mxu0 0.0
      %2861 = vmatpush1.msra.mxu0 0.0
      %2862 = vmatprep.subr.mxu0 0.0
      %2863 = vmatpush1.msra.mxu0 0.0
      %2864 = vmatprep.subr.mxu0 0.0
      %2865 = vmatpush1.msra.mxu0 0.0
      %2866 = vmatprep.subr.mxu0 0.0
      %2867 = vmatpush1.msra.mxu0 0.0
      %2868 = vmatprep.subr.mxu0 0.0
      %2869 = vmatpush1.msra.mxu0 0.0
      %2870 = vmatprep.subr.mxu0 0.0
      %2871 = vmatpush1.msra.mxu0 0.0
      %2872 = vmatprep.subr.mxu0 0.0
      %2873 = vmatpush1.msra.mxu0 0.0
      %2874 = vmatprep.subr.mxu0 0.0
      %2875 = vmatpush1.msra.mxu0 0.0
      %2876 = vmatprep.subr.mxu0 0.0
      %2877 = vmatpush1.msra.mxu0 0.0
      %2878 = vmatprep.subr.mxu0 0.0
      %2879 = vmatpush1.msra.mxu0 0.0
      %2880 = vmatprep.subr.mxu0 0.0
      %2881 = vmatpush1.msra.mxu0 0.0
      %2882 = vmatprep.subr.mxu0 0.0
      %2883 = vmatpush1.msra.mxu0 0.0
      %2884 = vmatprep.subr.mxu0 0.0
      %2885 = vmatpush1.msra.mxu0 0.0
      %2886 = vmatprep.subr.mxu0 0.0
      %2887 = vmatpush1.msra.mxu0 0.0
      %2888 = vmatprep.subr.mxu0 0.0
      %2889 = vmatpush1.msra.mxu0 0.0
      %2890 = vmatprep.subr.mxu0 0.0
      %2891 = vmatpush1.msra.mxu0 0.0
      %2892 = vmatprep.subr.mxu0 0.0
      %2893 = vmatpush1.msra.mxu0 0.0
      %2894 = vmatprep.subr.mxu0 0.0
      %2895 = vmatpush1.msra.mxu0 0.0
      %2896 = vmatprep.subr.mxu0 0.0
      %2897 = vmatpush1.msra.mxu0 0.0
      %2898 = vmatprep.subr.mxu0 0.0
      %2899 = vmatpush1.msra.mxu0 0.0
      %2900 = vmatprep.subr.mxu0 0.0
      %2901 = vmatpush1.msra.mxu0 0.0
      %2902 = vmatprep.subr.mxu0 0.0
      %2903 = vmatpush1.msra.mxu0 0.0
      %2904 = vmatprep.subr.mxu0 0.0
      %2905 = vmatpush1.msra.mxu0 0.0
      %2906 = vmatprep.subr.mxu0 0.0
      %2907 = vmatpush1.msra.mxu0 0.0
      %2908 = vmatprep.subr.mxu0 0.0
      %2909 = vmatpush1.msra.mxu0 0.0
      %2910 = vmatprep.subr.mxu0 0.0
      %2911 = vmatpush1.msra.mxu0 0.0
      %2912 = vmatprep.subr.mxu0 0.0
      %2913 = vmatpush1.msra.mxu0 0.0
      %2914 = vmatprep.mubr.f32.mxu0 0.0
      %2915 = vmatmul.mubr.f32.gmra.mrb[0].mxu0 %v2843
      %v2916 = vpop.f32.mrb[0].mxu0
      %v2917 = vadd.f32 0.0, %v2916
      %v2918 = vpop.f32.mrb[0].mxu0
      %2919 = vmatprep.mubr.f32.mxu0 0.0
      %2920 = vmatmul.mubr.f32.gmra.mrb[0].mxu0 %v2846
      %v2921 = vpop.f32.mrb[0].mxu0
      %v2922 = vadd.f32 0.0, %v2921
      %v2923 = vpop.f32.mrb[0].mxu0
      %2924 = vdwg.mxu0
      %2925 = vst.msk [vmem:[#allocation2] sm:$0xff] %vm583, %v2917
      %2926 = vst.msk [vmem:[#allocation2 + $0x8] sm:$0x1] %vm781, %v2922
      %2927 = vrot.lane.b32.xlu0 %v2718, 124
      %v2928 = vpop.permute.xlu0 %2927
      %2929 = vrot.lane.b32.xlu0 %v2723, 124
      %v2930 = vpop.permute.xlu0 %2929
      %2931 = vrot.lane.b32.xlu0 %v2718, 92
      %v2932 = vpop.permute.xlu0 %2931
      %2933 = vrot.lane.b32.xlu0 %v2723, 92
      %v2934 = vpop.permute.xlu0 %2933
      %v2935 = vsel %vm583, %v2928, 0
      %v2937 = vsel %vm583, %v2930, 0
      %v2939 = vsel %vm583, %v2932, 0
      %v2941 = vsel %vm583, %v2934, 0
      %2943 = vmatprep.subr.mxu0 0.0
      %2944 = vmatpush1.xpose.msra.mxu0 %v2939
      %2945 = vmatprep.subr.mxu0 0.0
      %2946 = vmatpush1.xpose.msra.mxu0 %v2941
      %2947 = vmatprep.subr.mxu0 0.0
      %2948 = vmatpush1.xpose.msra.mxu0 0.0
      %2949 = vmatprep.subr.mxu0 0.0
      %2950 = vmatpush1.xpose.msra.mxu0 0.0
      %2951 = vmatprep.subr.mxu0 0.0
      %2952 = vmatpush1.xpose.msra.mxu0 0.0
      %2953 = vmatprep.subr.mxu0 0.0
      %2954 = vmatpush1.xpose.msra.mxu0 0.0
      %2955 = vmatprep.subr.mxu0 0.0
      %2956 = vmatpush1.xpose.msra.mxu0 0.0
      %2957 = vmatprep.subr.mxu0 0.0
      %2958 = vmatpush1.xpose.msra.mxu0 0.0
      %2959 = vmatprep.subr.mxu0 0.0
      %2960 = vmatpush1.xpose.msra.mxu0 0.0
      %2961 = vmatprep.subr.mxu0 0.0
      %2962 = vmatpush1.xpose.msra.mxu0 0.0
      %2963 = vmatprep.subr.mxu0 0.0
      %2964 = vmatpush1.xpose.msra.mxu0 0.0
      %2965 = vmatprep.subr.mxu0 0.0
      %2966 = vmatpush1.xpose.msra.mxu0 0.0
      %2967 = vmatprep.subr.mxu0 0.0
      %2968 = vmatpush1.xpose.msra.mxu0 0.0
      %2969 = vmatprep.subr.mxu0 0.0
      %2970 = vmatpush1.xpose.msra.mxu0 0.0
      %2971 = vmatprep.subr.mxu0 0.0
      %2972 = vmatpush1.xpose.msra.mxu0 0.0
      %2973 = vmatprep.subr.mxu0 0.0
      %2974 = vmatpush1.xpose.msra.mxu0 0.0
      %2975 = vmatprep.subr.mxu0 0.0
      %2976 = vmatpush1.xpose.msra.mxu0 0.0
      %2977 = vmatprep.subr.mxu0 0.0
      %2978 = vmatpush1.xpose.msra.mxu0 0.0
      %2979 = vmatprep.subr.mxu0 0.0
      %2980 = vmatpush1.xpose.msra.mxu0 0.0
      %2981 = vmatprep.subr.mxu0 0.0
      %2982 = vmatpush1.xpose.msra.mxu0 0.0
      %2983 = vmatprep.subr.mxu0 0.0
      %2984 = vmatpush1.xpose.msra.mxu0 0.0
      %2985 = vmatprep.subr.mxu0 0.0
      %2986 = vmatpush1.xpose.msra.mxu0 0.0
      %2987 = vmatprep.subr.mxu0 0.0
      %2988 = vmatpush1.xpose.msra.mxu0 0.0
      %2989 = vmatprep.subr.mxu0 0.0
      %2990 = vmatpush1.xpose.msra.mxu0 0.0
      %2991 = vmatprep.subr.mxu0 0.0
      %2992 = vmatpush1.xpose.msra.mxu0 0.0
      %2993 = vmatprep.subr.mxu0 0.0
      %2994 = vmatpush1.xpose.msra.mxu0 0.0
      %2995 = vmatprep.subr.mxu0 0.0
      %2996 = vmatpush1.xpose.msra.mxu0 0.0
      %2997 = vmatprep.subr.mxu0 0.0
      %2998 = vmatpush1.xpose.msra.mxu0 0.0
      %2999 = vmatprep.subr.mxu0 0.0
      %3000 = vmatpush1.xpose.msra.mxu0 0.0
      %3001 = vmatprep.subr.mxu0 0.0
      %3002 = vmatpush1.xpose.msra.mxu0 0.0
      %3003 = vmatprep.subr.mxu0 0.0
      %3004 = vmatpush1.xpose.msra.mxu0 0.0
      %3005 = vmatprep.subr.mxu0 0.0
      %3006 = vmatpush1.xpose.msra.mxu0 0.0
      %3007 = vmatprep.mubr.f32.mxu0 0.0
      %3008 = vmatmul.mubr.f32.gmra.mrb[0].mxu0 %v2935
      %v3009 = vpop.f32.mrb[0].mxu0
      %v3010 = vadd.f32 0.0, %v3009
      %v3011 = vpop.f32.mrb[0].mxu0
      %3012 = vmatprep.mubr.f32.mxu0 0.0
      %3013 = vmatmul.mubr.f32.gmra.mrb[0].mxu0 %v2937
      %v3014 = vpop.f32.mrb[0].mxu0
      %v3015 = vadd.f32 0.0, %v3014
      %v3016 = vpop.f32.mrb[0].mxu0
      %3017 = vdwg.mxu0
      %v3018 = vsel %vm667, %v3010, -inf
      %3019 = vmax.xlane.f32.xlu0 %v3018
      %v3020 = vpop.xlane.xlu0 %3019
      %v3021 = vsel %vm671, %v3015, -inf
      %3022 = vmax.xlane.f32.xlu0 %v3021
      %v3023 = vpop.xlane.xlu0 %3022
      %v3024 = vsub.f32 %v3010, %v3020
      %v3025 = vsub.f32 %v3015, %v3023
      %v3026 = vmul.f32 %v3024, 1.442695
      %v3027 = vpow.pop %v3026
      %v3028 = vmul.f32 %v3025, 1.442695
      %v3029 = vpow.pop %v3028
      %v3030 = vsel %vm667, %v3027, 0.0
      %3031 = vadd.xlane.f32.xlu0 %v3030
      %v3032 = vpop.xlane.xlu0 %3031
      %v3033 = vsel %vm671, %v3029, 0.0
      %3034 = vadd.xlane.f32.xlu0 %v3033
      %v3035 = vpop.xlane.xlu0 %3034
      %v3036 = vrcp.pop %v3032
      %v3037 = vrcp.pop %v3035
      %v3038 = vmul.f32 %v3027, %v3036
      %v3039 = vmul.f32 %v3029, %v3037
      %3040 = vrot.lane.b32.xlu0 %v2718, 60
      %v3041 = vpop.permute.xlu0 %3040
      %3042 = vrot.lane.b32.xlu0 %v2723, 60
      %v3043 = vpop.permute.xlu0 %3042
      %v3046 = vsel %vm667, %v3038, 0
      %v3049 = vsel %vm667, %v3039, 0
      %v3051 = vsel %vm702, %v3043, 0
      %3053 = vmatprep.subr.mxu0 0.0
      %3054 = vmatpush1.msra.mxu0 %v3041
      %3055 = vmatprep.subr.mxu0 0.0
      %3056 = vmatpush1.msra.mxu0 %v3051
      %3057 = vmatprep.subr.mxu0 0.0
      %3058 = vmatpush1.msra.mxu0 0.0
      %3059 = vmatprep.subr.mxu0 0.0
      %3060 = vmatpush1.msra.mxu0 0.0
      %3061 = vmatprep.subr.mxu0 0.0
      %3062 = vmatpush1.msra.mxu0 0.0
      %3063 = vmatprep.subr.mxu0 0.0
      %3064 = vmatpush1.msra.mxu0 0.0
      %3065 = vmatprep.subr.mxu0 0.0
      %3066 = vmatpush1.msra.mxu0 0.0
      %3067 = vmatprep.subr.mxu0 0.0
      %3068 = vmatpush1.msra.mxu0 0.0
      %3069 = vmatprep.subr.mxu0 0.0
      %3070 = vmatpush1.msra.mxu0 0.0
      %3071 = vmatprep.subr.mxu0 0.0
      %3072 = vmatpush1.msra.mxu0 0.0
      %3073 = vmatprep.subr.mxu0 0.0
      %3074 = vmatpush1.msra.mxu0 0.0
      %3075 = vmatprep.subr.mxu0 0.0
      %3076 = vmatpush1.msra.mxu0 0.0
      %3077 = vmatprep.subr.mxu0 0.0
      %3078 = vmatpush1.msra.mxu0 0.0
      %3079 = vmatprep.subr.mxu0 0.0
      %3080 = vmatpush1.msra.mxu0 0.0
      %3081 = vmatprep.subr.mxu0 0.0
      %3082 = vmatpush1.msra.mxu0 0.0
      %3083 = vmatprep.subr.mxu0 0.0
      %3084 = vmatpush1.msra.mxu0 0.0
      %3085 = vmatprep.subr.mxu0 0.0
      %3086 = vmatpush1.msra.mxu0 0.0
      %3087 = vmatprep.subr.mxu0 0.0
      %3088 = vmatpush1.msra.mxu0 0.0
      %3089 = vmatprep.subr.mxu0 0.0
      %3090 = vmatpush1.msra.mxu0 0.0
      %3091 = vmatprep.subr.mxu0 0.0
      %3092 = vmatpush1.msra.mxu0 0.0
      %3093 = vmatprep.subr.mxu0 0.0
      %3094 = vmatpush1.msra.mxu0 0.0
      %3095 = vmatprep.subr.mxu0 0.0
      %3096 = vmatpush1.msra.mxu0 0.0
      %3097 = vmatprep.subr.mxu0 0.0
      %3098 = vmatpush1.msra.mxu0 0.0
      %3099 = vmatprep.subr.mxu0 0.0
      %3100 = vmatpush1.msra.mxu0 0.0
      %3101 = vmatprep.subr.mxu0 0.0
      %3102 = vmatpush1.msra.mxu0 0.0
      %3103 = vmatprep.subr.mxu0 0.0
      %3104 = vmatpush1.msra.mxu0 0.0
      %3105 = vmatprep.subr.mxu0 0.0
      %3106 = vmatpush1.msra.mxu0 0.0
      %3107 = vmatprep.subr.mxu0 0.0
      %3108 = vmatpush1.msra.mxu0 0.0
      %3109 = vmatprep.subr.mxu0 0.0
      %3110 = vmatpush1.msra.mxu0 0.0
      %3111 = vmatprep.subr.mxu0 0.0
      %3112 = vmatpush1.msra.mxu0 0.0
      %3113 = vmatprep.subr.mxu0 0.0
      %3114 = vmatpush1.msra.mxu0 0.0
      %3115 = vmatprep.subr.mxu0 0.0
      %3116 = vmatpush1.msra.mxu0 0.0
      %3117 = vmatprep.mubr.f32.mxu0 0.0
      %3118 = vmatmul.mubr.f32.gmra.mrb[0].mxu0 %v3046
      %v3119 = vpop.f32.mrb[0].mxu0
      %v3120 = vadd.f32 0.0, %v3119
      %v3121 = vpop.f32.mrb[0].mxu0
      %3122 = vmatprep.mubr.f32.mxu0 0.0
      %3123 = vmatmul.mubr.f32.gmra.mrb[0].mxu0 %v3049
      %v3124 = vpop.f32.mrb[0].mxu0
      %v3125 = vadd.f32 0.0, %v3124
      %v3126 = vpop.f32.mrb[0].mxu0
      %3127 = vdwg.mxu0
      %3130 = vrot.lane.b32.xlu0 %v3120, 4
      %v3131 = vpop.permute.xlu0 %3130
      %3132 = vrot.lane.b32.xlu0 %v3125, 4
      %v3133 = vpop.permute.xlu0 %3132
      %3136 = vst.msk [vmem:[#allocation2] sm:$0xff] %vm992, %v3131
      %3137 = vst.msk [vmem:[#allocation2 + $0x8] sm:$0x1] %vm994, %v3133
      %3138 = vrot.lane.b32.xlu0 %v2718, 120
      %v3139 = vpop.permute.xlu0 %3138
      %3140 = vrot.lane.b32.xlu0 %v2723, 120
      %v3141 = vpop.permute.xlu0 %3140
      %3142 = vrot.lane.b32.xlu0 %v2718, 88
      %v3143 = vpop.permute.xlu0 %3142
      %3144 = vrot.lane.b32.xlu0 %v2723, 88
      %v3145 = vpop.permute.xlu0 %3144
      %v3146 = vsel %vm583, %v3139, 0
      %v3148 = vsel %vm583, %v3141, 0
      %v3150 = vsel %vm583, %v3143, 0
      %v3152 = vsel %vm583, %v3145, 0
      %3154 = vmatprep.subr.mxu0 0.0
      %3155 = vmatpush1.xpose.msra.mxu0 %v3150
      %3156 = vmatprep.subr.mxu0 0.0
      %3157 = vmatpush1.xpose.msra.mxu0 %v3152
      %3158 = vmatprep.subr.mxu0 0.0
      %3159 = vmatpush1.xpose.msra.mxu0 0.0
      %3160 = vmatprep.subr.mxu0 0.0
      %3161 = vmatpush1.xpose.msra.mxu0 0.0
      %3162 = vmatprep.subr.mxu0 0.0
      %3163 = vmatpush1.xpose.msra.mxu0 0.0
      %3164 = vmatprep.subr.mxu0 0.0
      %3165 = vmatpush1.xpose.msra.mxu0 0.0
      %3166 = vmatprep.subr.mxu0 0.0
      %3167 = vmatpush1.xpose.msra.mxu0 0.0
      %3168 = vmatprep.subr.mxu0 0.0
      %3169 = vmatpush1.xpose.msra.mxu0 0.0
      %3170 = vmatprep.subr.mxu0 0.0
      %3171 = vmatpush1.xpose.msra.mxu0 0.0
      %3172 = vmatprep.subr.mxu0 0.0
      %3173 = vmatpush1.xpose.msra.mxu0 0.0
      %3174 = vmatprep.subr.mxu0 0.0
      %3175 = vmatpush1.xpose.msra.mxu0 0.0
      %3176 = vmatprep.subr.mxu0 0.0
      %3177 = vmatpush1.xpose.msra.mxu0 0.0
      %3178 = vmatprep.subr.mxu0 0.0
      %3179 = vmatpush1.xpose.msra.mxu0 0.0
      %3180 = vmatprep.subr.mxu0 0.0
      %3181 = vmatpush1.xpose.msra.mxu0 0.0
      %3182 = vmatprep.subr.mxu0 0.0
      %3183 = vmatpush1.xpose.msra.mxu0 0.0
      %3184 = vmatprep.subr.mxu0 0.0
      %3185 = vmatpush1.xpose.msra.mxu0 0.0
      %3186 = vmatprep.subr.mxu0 0.0
      %3187 = vmatpush1.xpose.msra.mxu0 0.0
      %3188 = vmatprep.subr.mxu0 0.0
      %3189 = vmatpush1.xpose.msra.mxu0 0.0
      %3190 = vmatprep.subr.mxu0 0.0
      %3191 = vmatpush1.xpose.msra.mxu0 0.0
      %3192 = vmatprep.subr.mxu0 0.0
      %3193 = vmatpush1.xpose.msra.mxu0 0.0
      %3194 = vmatprep.subr.mxu0 0.0
      %3195 = vmatpush1.xpose.msra.mxu0 0.0
      %3196 = vmatprep.subr.mxu0 0.0
      %3197 = vmatpush1.xpose.msra.mxu0 0.0
      %3198 = vmatprep.subr.mxu0 0.0
      %3199 = vmatpush1.xpose.msra.mxu0 0.0
      %3200 = vmatprep.subr.mxu0 0.0
      %3201 = vmatpush1.xpose.msra.mxu0 0.0
      %3202 = vmatprep.subr.mxu0 0.0
      %3203 = vmatpush1.xpose.msra.mxu0 0.0
      %3204 = vmatprep.subr.mxu0 0.0
      %3205 = vmatpush1.xpose.msra.mxu0 0.0
      %3206 = vmatprep.subr.mxu0 0.0
      %3207 = vmatpush1.xpose.msra.mxu0 0.0
      %3208 = vmatprep.subr.mxu0 0.0
      %3209 = vmatpush1.xpose.msra.mxu0 0.0
      %3210 = vmatprep.subr.mxu0 0.0
      %3211 = vmatpush1.xpose.msra.mxu0 0.0
      %3212 = vmatprep.subr.mxu0 0.0
      %3213 = vmatpush1.xpose.msra.mxu0 0.0
      %3214 = vmatprep.subr.mxu0 0.0
      %3215 = vmatpush1.xpose.msra.mxu0 0.0
      %3216 = vmatprep.subr.mxu0 0.0
      %3217 = vmatpush1.xpose.msra.mxu0 0.0
      %3218 = vmatprep.mubr.f32.mxu0 0.0
      %3219 = vmatmul.mubr.f32.gmra.mrb[0].mxu0 %v3146
      %v3220 = vpop.f32.mrb[0].mxu0
      %v3221 = vadd.f32 0.0, %v3220
      %v3222 = vpop.f32.mrb[0].mxu0
      %3223 = vmatprep.mubr.f32.mxu0 0.0
      %3224 = vmatmul.mubr.f32.gmra.mrb[0].mxu0 %v3148
      %v3225 = vpop.f32.mrb[0].mxu0
      %v3226 = vadd.f32 0.0, %v3225
      %v3227 = vpop.f32.mrb[0].mxu0
      %3228 = vdwg.mxu0
      %v3229 = vsel %vm667, %v3221, -inf
      %3230 = vmax.xlane.f32.xlu0 %v3229
      %v3231 = vpop.xlane.xlu0 %3230
      %v3232 = vsel %vm671, %v3226, -inf
      %3233 = vmax.xlane.f32.xlu0 %v3232
      %v3234 = vpop.xlane.xlu0 %3233
      %v3235 = vsub.f32 %v3221, %v3231
      %v3236 = vsub.f32 %v3226, %v3234
      %v3237 = vmul.f32 %v3235, 1.442695
      %v3238 = vpow.pop %v3237
      %v3239 = vmul.f32 %v3236, 1.442695
      %v3240 = vpow.pop %v3239
      %v3241 = vsel %vm667, %v3238, 0.0
      %3242 = vadd.xlane.f32.xlu0 %v3241
      %v3243 = vpop.xlane.xlu0 %3242
      %v3244 = vsel %vm671, %v3240, 0.0
      %3245 = vadd.xlane.f32.xlu0 %v3244
      %v3246 = vpop.xlane.xlu0 %3245
      %v3247 = vrcp.pop %v3243
      %v3248 = vrcp.pop %v3246
      %v3249 = vmul.f32 %v3238, %v3247
      %v3250 = vmul.f32 %v3240, %v3248
      %3251 = vrot.lane.b32.xlu0 %v2718, 56
      %v3252 = vpop.permute.xlu0 %3251
      %3253 = vrot.lane.b32.xlu0 %v2723, 56
      %v3254 = vpop.permute.xlu0 %3253
      %v3257 = vsel %vm667, %v3249, 0
      %v3260 = vsel %vm667, %v3250, 0
      %v3262 = vsel %vm702, %v3254, 0
      %3264 = vmatprep.subr.mxu0 0.0
      %3265 = vmatpush1.msra.mxu0 %v3252
      %3266 = vmatprep.subr.mxu0 0.0
      %3267 = vmatpush1.msra.mxu0 %v3262
      %3268 = vmatprep.subr.mxu0 0.0
      %3269 = vmatpush1.msra.mxu0 0.0
      %3270 = vmatprep.subr.mxu0 0.0
      %3271 = vmatpush1.msra.mxu0 0.0
      %3272 = vmatprep.subr.mxu0 0.0
      %3273 = vmatpush1.msra.mxu0 0.0
      %3274 = vmatprep.subr.mxu0 0.0
      %3275 = vmatpush1.msra.mxu0 0.0
      %3276 = vmatprep.subr.mxu0 0.0
      %3277 = vmatpush1.msra.mxu0 0.0
      %3278 = vmatprep.subr.mxu0 0.0
      %3279 = vmatpush1.msra.mxu0 0.0
      %3280 = vmatprep.subr.mxu0 0.0
      %3281 = vmatpush1.msra.mxu0 0.0
      %3282 = vmatprep.subr.mxu0 0.0
      %3283 = vmatpush1.msra.mxu0 0.0
      %3284 = vmatprep.subr.mxu0 0.0
      %3285 = vmatpush1.msra.mxu0 0.0
      %3286 = vmatprep.subr.mxu0 0.0
      %3287 = vmatpush1.msra.mxu0 0.0
      %3288 = vmatprep.subr.mxu0 0.0
      %3289 = vmatpush1.msra.mxu0 0.0
      %3290 = vmatprep.subr.mxu0 0.0
      %3291 = vmatpush1.msra.mxu0 0.0
      %3292 = vmatprep.subr.mxu0 0.0
      %3293 = vmatpush1.msra.mxu0 0.0
      %3294 = vmatprep.subr.mxu0 0.0
      %3295 = vmatpush1.msra.mxu0 0.0
      %3296 = vmatprep.subr.mxu0 0.0
      %3297 = vmatpush1.msra.mxu0 0.0
      %3298 = vmatprep.subr.mxu0 0.0
      %3299 = vmatpush1.msra.mxu0 0.0
      %3300 = vmatprep.subr.mxu0 0.0
      %3301 = vmatpush1.msra.mxu0 0.0
      %3302 = vmatprep.subr.mxu0 0.0
      %3303 = vmatpush1.msra.mxu0 0.0
      %3304 = vmatprep.subr.mxu0 0.0
      %3305 = vmatpush1.msra.mxu0 0.0
      %3306 = vmatprep.subr.mxu0 0.0
      %3307 = vmatpush1.msra.mxu0 0.0
      %3308 = vmatprep.subr.mxu0 0.0
      %3309 = vmatpush1.msra.mxu0 0.0
      %3310 = vmatprep.subr.mxu0 0.0
      %3311 = vmatpush1.msra.mxu0 0.0
      %3312 = vmatprep.subr.mxu0 0.0
      %3313 = vmatpush1.msra.mxu0 0.0
      %3314 = vmatprep.subr.mxu0 0.0
      %3315 = vmatpush1.msra.mxu0 0.0
      %3316 = vmatprep.subr.mxu0 0.0
      %3317 = vmatpush1.msra.mxu0 0.0
      %3318 = vmatprep.subr.mxu0 0.0
      %3319 = vmatpush1.msra.mxu0 0.0
      %3320 = vmatprep.subr.mxu0 0.0
      %3321 = vmatpush1.msra.mxu0 0.0
      %3322 = vmatprep.subr.mxu0 0.0
      %3323 = vmatpush1.msra.mxu0 0.0
      %3324 = vmatprep.subr.mxu0 0.0
      %3325 = vmatpush1.msra.mxu0 0.0
      %3326 = vmatprep.subr.mxu0 0.0
      %3327 = vmatpush1.msra.mxu0 0.0
      %3328 = vmatprep.mubr.f32.mxu0 0.0
      %3329 = vmatmul.mubr.f32.gmra.mrb[0].mxu0 %v3257
      %v3330 = vpop.f32.mrb[0].mxu0
      %v3331 = vadd.f32 0.0, %v3330
      %v3332 = vpop.f32.mrb[0].mxu0
      %3333 = vmatprep.mubr.f32.mxu0 0.0
      %3334 = vmatmul.mubr.f32.gmra.mrb[0].mxu0 %v3260
      %v3335 = vpop.f32.mrb[0].mxu0
      %v3336 = vadd.f32 0.0, %v3335
      %v3337 = vpop.f32.mrb[0].mxu0
      %3338 = vdwg.mxu0
      %3341 = vrot.lane.b32.xlu0 %v3331, 8
      %v3342 = vpop.permute.xlu0 %3341
      %3343 = vrot.lane.b32.xlu0 %v3336, 8
      %v3344 = vpop.permute.xlu0 %3343
      %3347 = vst.msk [vmem:[#allocation2] sm:$0xff] %vm1205, %v3342
      %3348 = vst.msk [vmem:[#allocation2 + $0x8] sm:$0x1] %vm1207, %v3344
      %3349 = vrot.lane.b32.xlu0 %v2718, 116
      %v3350 = vpop.permute.xlu0 %3349
      %3351 = vrot.lane.b32.xlu0 %v2723, 116
      %v3352 = vpop.permute.xlu0 %3351
      %3353 = vrot.lane.b32.xlu0 %v2718, 84
      %v3354 = vpop.permute.xlu0 %3353
      %3355 = vrot.lane.b32.xlu0 %v2723, 84
      %v3356 = vpop.permute.xlu0 %3355
      %v3357 = vsel %vm583, %v3350, 0
      %v3359 = vsel %vm583, %v3352, 0
      %v3361 = vsel %vm583, %v3354, 0
      %v3363 = vsel %vm583, %v3356, 0
      %3365 = vmatprep.subr.mxu0 0.0
      %3366 = vmatpush1.xpose.msra.mxu0 %v3361
      %3367 = vmatprep.subr.mxu0 0.0
      %3368 = vmatpush1.xpose.msra.mxu0 %v3363
      %3369 = vmatprep.subr.mxu0 0.0
      %3370 = vmatpush1.xpose.msra.mxu0 0.0
      %3371 = vmatprep.subr.mxu0 0.0
      %3372 = vmatpush1.xpose.msra.mxu0 0.0
      %3373 = vmatprep.subr.mxu0 0.0
      %3374 = vmatpush1.xpose.msra.mxu0 0.0
      %3375 = vmatprep.subr.mxu0 0.0
      %3376 = vmatpush1.xpose.msra.mxu0 0.0
      %3377 = vmatprep.subr.mxu0 0.0
      %3378 = vmatpush1.xpose.msra.mxu0 0.0
      %3379 = vmatprep.subr.mxu0 0.0
      %3380 = vmatpush1.xpose.msra.mxu0 0.0
      %3381 = vmatprep.subr.mxu0 0.0
      %3382 = vmatpush1.xpose.msra.mxu0 0.0
      %3383 = vmatprep.subr.mxu0 0.0
      %3384 = vmatpush1.xpose.msra.mxu0 0.0
      %3385 = vmatprep.subr.mxu0 0.0
      %3386 = vmatpush1.xpose.msra.mxu0 0.0
      %3387 = vmatprep.subr.mxu0 0.0
      %3388 = vmatpush1.xpose.msra.mxu0 0.0
      %3389 = vmatprep.subr.mxu0 0.0
      %3390 = vmatpush1.xpose.msra.mxu0 0.0
      %3391 = vmatprep.subr.mxu0 0.0
      %3392 = vmatpush1.xpose.msra.mxu0 0.0
      %3393 = vmatprep.subr.mxu0 0.0
      %3394 = vmatpush1.xpose.msra.mxu0 0.0
      %3395 = vmatprep.subr.mxu0 0.0
      %3396 = vmatpush1.xpose.msra.mxu0 0.0
      %3397 = vmatprep.subr.mxu0 0.0
      %3398 = vmatpush1.xpose.msra.mxu0 0.0
      %3399 = vmatprep.subr.mxu0 0.0
      %3400 = vmatpush1.xpose.msra.mxu0 0.0
      %3401 = vmatprep.subr.mxu0 0.0
      %3402 = vmatpush1.xpose.msra.mxu0 0.0
      %3403 = vmatprep.subr.mxu0 0.0
      %3404 = vmatpush1.xpose.msra.mxu0 0.0
      %3405 = vmatprep.subr.mxu0 0.0
      %3406 = vmatpush1.xpose.msra.mxu0 0.0
      %3407 = vmatprep.subr.mxu0 0.0
      %3408 = vmatpush1.xpose.msra.mxu0 0.0
      %3409 = vmatprep.subr.mxu0 0.0
      %3410 = vmatpush1.xpose.msra.mxu0 0.0
      %3411 = vmatprep.subr.mxu0 0.0
      %3412 = vmatpush1.xpose.msra.mxu0 0.0
      %3413 = vmatprep.subr.mxu0 0.0
      %3414 = vmatpush1.xpose.msra.mxu0 0.0
      %3415 = vmatprep.subr.mxu0 0.0
      %3416 = vmatpush1.xpose.msra.mxu0 0.0
      %3417 = vmatprep.subr.mxu0 0.0
      %3418 = vmatpush1.xpose.msra.mxu0 0.0
      %3419 = vmatprep.subr.mxu0 0.0
      %3420 = vmatpush1.xpose.msra.mxu0 0.0
      %3421 = vmatprep.subr.mxu0 0.0
      %3422 = vmatpush1.xpose.msra.mxu0 0.0
      %3423 = vmatprep.subr.mxu0 0.0
      %3424 = vmatpush1.xpose.msra.mxu0 0.0
      %3425 = vmatprep.subr.mxu0 0.0
      %3426 = vmatpush1.xpose.msra.mxu0 0.0
      %3427 = vmatprep.subr.mxu0 0.0
      %3428 = vmatpush1.xpose.msra.mxu0 0.0
      %3429 = vmatprep.mubr.f32.mxu0 0.0
      %3430 = vmatmul.mubr.f32.gmra.mrb[0].mxu0 %v3357
      %v3431 = vpop.f32.mrb[0].mxu0
      %v3432 = vadd.f32 0.0, %v3431
      %v3433 = vpop.f32.mrb[0].mxu0
      %3434 = vmatprep.mubr.f32.mxu0 0.0
      %3435 = vmatmul.mubr.f32.gmra.mrb[0].mxu0 %v3359
      %v3436 = vpop.f32.mrb[0].mxu0
      %v3437 = vadd.f32 0.0, %v3436
      %v3438 = vpop.f32.mrb[0].mxu0
      %3439 = vdwg.mxu0
      %v3440 = vsel %vm667, %v3432, -inf
      %3441 = vmax.xlane.f32.xlu0 %v3440
      %v3442 = vpop.xlane.xlu0 %3441
      %v3443 = vsel %vm671, %v3437, -inf
      %3444 = vmax.xlane.f32.xlu0 %v3443
      %v3445 = vpop.xlane.xlu0 %3444
      %v3446 = vsub.f32 %v3432, %v3442
      %v3447 = vsub.f32 %v3437, %v3445
      %v3448 = vmul.f32 %v3446, 1.442695
      %v3449 = vpow.pop %v3448
      %v3450 = vmul.f32 %v3447, 1.442695
      %v3451 = vpow.pop %v3450
      %v3452 = vsel %vm667, %v3449, 0.0
      %3453 = vadd.xlane.f32.xlu0 %v3452
      %v3454 = vpop.xlane.xlu0 %3453
      %v3455 = vsel %vm671, %v3451, 0.0
      %3456 = vadd.xlane.f32.xlu0 %v3455
      %v3457 = vpop.xlane.xlu0 %3456
      %v3458 = vrcp.pop %v3454
      %v3459 = vrcp.pop %v3457
      %v3460 = vmul.f32 %v3449, %v3458
      %v3461 = vmul.f32 %v3451, %v3459
      %3462 = vrot.lane.b32.xlu0 %v2718, 52
      %v3463 = vpop.permute.xlu0 %3462
      %3464 = vrot.lane.b32.xlu0 %v2723, 52
      %v3465 = vpop.permute.xlu0 %3464
      %v3468 = vsel %vm667, %v3460, 0
      %v3471 = vsel %vm667, %v3461, 0
      %v3473 = vsel %vm702, %v3465, 0
      %3475 = vmatprep.subr.mxu0 0.0
      %3476 = vmatpush1.msra.mxu0 %v3463
      %3477 = vmatprep.subr.mxu0 0.0
      %3478 = vmatpush1.msra.mxu0 %v3473
      %3479 = vmatprep.subr.mxu0 0.0
      %3480 = vmatpush1.msra.mxu0 0.0
      %3481 = vmatprep.subr.mxu0 0.0
      %3482 = vmatpush1.msra.mxu0 0.0
      %3483 = vmatprep.subr.mxu0 0.0
      %3484 = vmatpush1.msra.mxu0 0.0
      %3485 = vmatprep.subr.mxu0 0.0
      %3486 = vmatpush1.msra.mxu0 0.0
      %3487 = vmatprep.subr.mxu0 0.0
      %3488 = vmatpush1.msra.mxu0 0.0
      %3489 = vmatprep.subr.mxu0 0.0
      %3490 = vmatpush1.msra.mxu0 0.0
      %3491 = vmatprep.subr.mxu0 0.0
      %3492 = vmatpush1.msra.mxu0 0.0
      %3493 = vmatprep.subr.mxu0 0.0
      %3494 = vmatpush1.msra.mxu0 0.0
      %3495 = vmatprep.subr.mxu0 0.0
      %3496 = vmatpush1.msra.mxu0 0.0
      %3497 = vmatprep.subr.mxu0 0.0
      %3498 = vmatpush1.msra.mxu0 0.0
      %3499 = vmatprep.subr.mxu0 0.0
      %3500 = vmatpush1.msra.mxu0 0.0
      %3501 = vmatprep.subr.mxu0 0.0
      %3502 = vmatpush1.msra.mxu0 0.0
      %3503 = vmatprep.subr.mxu0 0.0
      %3504 = vmatpush1.msra.mxu0 0.0
      %3505 = vmatprep.subr.mxu0 0.0
      %3506 = vmatpush1.msra.mxu0 0.0
      %3507 = vmatprep.subr.mxu0 0.0
      %3508 = vmatpush1.msra.mxu0 0.0
      %3509 = vmatprep.subr.mxu0 0.0
      %3510 = vmatpush1.msra.mxu0 0.0
      %3511 = vmatprep.subr.mxu0 0.0
      %3512 = vmatpush1.msra.mxu0 0.0
      %3513 = vmatprep.subr.mxu0 0.0
      %3514 = vmatpush1.msra.mxu0 0.0
      %3515 = vmatprep.subr.mxu0 0.0
      %3516 = vmatpush1.msra.mxu0 0.0
      %3517 = vmatprep.subr.mxu0 0.0
      %3518 = vmatpush1.msra.mxu0 0.0
      %3519 = vmatprep.subr.mxu0 0.0
      %3520 = vmatpush1.msra.mxu0 0.0
      %3521 = vmatprep.subr.mxu0 0.0
      %3522 = vmatpush1.msra.mxu0 0.0
      %3523 = vmatprep.subr.mxu0 0.0
      %3524 = vmatpush1.msra.mxu0 0.0
      %3525 = vmatprep.subr.mxu0 0.0
      %3526 = vmatpush1.msra.mxu0 0.0
      %3527 = vmatprep.subr.mxu0 0.0
      %3528 = vmatpush1.msra.mxu0 0.0
      %3529 = vmatprep.subr.mxu0 0.0
      %3530 = vmatpush1.msra.mxu0 0.0
      %3531 = vmatprep.subr.mxu0 0.0
      %3532 = vmatpush1.msra.mxu0 0.0
      %3533 = vmatprep.subr.mxu0 0.0
      %3534 = vmatpush1.msra.mxu0 0.0
      %3535 = vmatprep.subr.mxu0 0.0
      %3536 = vmatpush1.msra.mxu0 0.0
      %3537 = vmatprep.subr.mxu0 0.0
      %3538 = vmatpush1.msra.mxu0 0.0
      %3539 = vmatprep.mubr.f32.mxu0 0.0
      %3540 = vmatmul.mubr.f32.gmra.mrb[0].mxu0 %v3468
      %v3541 = vpop.f32.mrb[0].mxu0
      %v3542 = vadd.f32 0.0, %v3541
      %v3543 = vpop.f32.mrb[0].mxu0
      %3544 = vmatprep.mubr.f32.mxu0 0.0
      %3545 = vmatmul.mubr.f32.gmra.mrb[0].mxu0 %v3471
      %v3546 = vpop.f32.mrb[0].mxu0
      %v3547 = vadd.f32 0.0, %v3546
      %v3548 = vpop.f32.mrb[0].mxu0
      %3549 = vdwg.mxu0
      %3552 = vrot.lane.b32.xlu0 %v3542, 12
      %v3553 = vpop.permute.xlu0 %3552
      %3554 = vrot.lane.b32.xlu0 %v3547, 12
      %v3555 = vpop.permute.xlu0 %3554
      %3558 = vst.msk [vmem:[#allocation2] sm:$0xff] %vm1418, %v3553
      %3559 = vst.msk [vmem:[#allocation2 + $0x8] sm:$0x1] %vm1420, %v3555
      %3560 = vrot.lane.b32.xlu0 %v2718, 112
      %v3561 = vpop.permute.xlu0 %3560
      %3562 = vrot.lane.b32.xlu0 %v2723, 112
      %v3563 = vpop.permute.xlu0 %3562
      %3564 = vrot.lane.b32.xlu0 %v2718, 80
      %v3565 = vpop.permute.xlu0 %3564
      %3566 = vrot.lane.b32.xlu0 %v2723, 80
      %v3567 = vpop.permute.xlu0 %3566
      %v3568 = vsel %vm583, %v3561, 0
      %v3570 = vsel %vm583, %v3563, 0
      %v3572 = vsel %vm583, %v3565, 0
      %v3574 = vsel %vm583, %v3567, 0
      %3576 = vmatprep.subr.mxu0 0.0
      %3577 = vmatpush1.xpose.msra.mxu0 %v3572
      %3578 = vmatprep.subr.mxu0 0.0
      %3579 = vmatpush1.xpose.msra.mxu0 %v3574
      %3580 = vmatprep.subr.mxu0 0.0
      %3581 = vmatpush1.xpose.msra.mxu0 0.0
      %3582 = vmatprep.subr.mxu0 0.0
      %3583 = vmatpush1.xpose.msra.mxu0 0.0
      %3584 = vmatprep.subr.mxu0 0.0
      %3585 = vmatpush1.xpose.msra.mxu0 0.0
      %3586 = vmatprep.subr.mxu0 0.0
      %3587 = vmatpush1.xpose.msra.mxu0 0.0
      %3588 = vmatprep.subr.mxu0 0.0
      %3589 = vmatpush1.xpose.msra.mxu0 0.0
      %3590 = vmatprep.subr.mxu0 0.0
      %3591 = vmatpush1.xpose.msra.mxu0 0.0
      %3592 = vmatprep.subr.mxu0 0.0
      %3593 = vmatpush1.xpose.msra.mxu0 0.0
      %3594 = vmatprep.subr.mxu0 0.0
      %3595 = vmatpush1.xpose.msra.mxu0 0.0
      %3596 = vmatprep.subr.mxu0 0.0
      %3597 = vmatpush1.xpose.msra.mxu0 0.0
      %3598 = vmatprep.subr.mxu0 0.0
      %3599 = vmatpush1.xpose.msra.mxu0 0.0
      %3600 = vmatprep.subr.mxu0 0.0
      %3601 = vmatpush1.xpose.msra.mxu0 0.0
      %3602 = vmatprep.subr.mxu0 0.0
      %3603 = vmatpush1.xpose.msra.mxu0 0.0
      %3604 = vmatprep.subr.mxu0 0.0
      %3605 = vmatpush1.xpose.msra.mxu0 0.0
      %3606 = vmatprep.subr.mxu0 0.0
      %3607 = vmatpush1.xpose.msra.mxu0 0.0
      %3608 = vmatprep.subr.mxu0 0.0
      %3609 = vmatpush1.xpose.msra.mxu0 0.0
      %3610 = vmatprep.subr.mxu0 0.0
      %3611 = vmatpush1.xpose.msra.mxu0 0.0
      %3612 = vmatprep.subr.mxu0 0.0
      %3613 = vmatpush1.xpose.msra.mxu0 0.0
      %3614 = vmatprep.subr.mxu0 0.0
      %3615 = vmatpush1.xpose.msra.mxu0 0.0
      %3616 = vmatprep.subr.mxu0 0.0
      %3617 = vmatpush1.xpose.msra.mxu0 0.0
      %3618 = vmatprep.subr.mxu0 0.0
      %3619 = vmatpush1.xpose.msra.mxu0 0.0
      %3620 = vmatprep.subr.mxu0 0.0
      %3621 = vmatpush1.xpose.msra.mxu0 0.0
      %3622 = vmatprep.subr.mxu0 0.0
      %3623 = vmatpush1.xpose.msra.mxu0 0.0
      %3624 = vmatprep.subr.mxu0 0.0
      %3625 = vmatpush1.xpose.msra.mxu0 0.0
      %3626 = vmatprep.subr.mxu0 0.0
      %3627 = vmatpush1.xpose.msra.mxu0 0.0
      %3628 = vmatprep.subr.mxu0 0.0
      %3629 = vmatpush1.xpose.msra.mxu0 0.0
      %3630 = vmatprep.subr.mxu0 0.0
      %3631 = vmatpush1.xpose.msra.mxu0 0.0
      %3632 = vmatprep.subr.mxu0 0.0
      %3633 = vmatpush1.xpose.msra.mxu0 0.0
      %3634 = vmatprep.subr.mxu0 0.0
      %3635 = vmatpush1.xpose.msra.mxu0 0.0
      %3636 = vmatprep.subr.mxu0 0.0
      %3637 = vmatpush1.xpose.msra.mxu0 0.0
      %3638 = vmatprep.subr.mxu0 0.0
      %3639 = vmatpush1.xpose.msra.mxu0 0.0
      %3640 = vmatprep.mubr.f32.mxu0 0.0
      %3641 = vmatmul.mubr.f32.gmra.mrb[0].mxu0 %v3568
      %v3642 = vpop.f32.mrb[0].mxu0
      %v3643 = vadd.f32 0.0, %v3642
      %v3644 = vpop.f32.mrb[0].mxu0
      %3645 = vmatprep.mubr.f32.mxu0 0.0
      %3646 = vmatmul.mubr.f32.gmra.mrb[0].mxu0 %v3570
      %v3647 = vpop.f32.mrb[0].mxu0
      %v3648 = vadd.f32 0.0, %v3647
      %v3649 = vpop.f32.mrb[0].mxu0
      %3650 = vdwg.mxu0
      %v3651 = vsel %vm667, %v3643, -inf
      %3652 = vmax.xlane.f32.xlu0 %v3651
      %v3653 = vpop.xlane.xlu0 %3652
      %v3654 = vsel %vm671, %v3648, -inf
      %3655 = vmax.xlane.f32.xlu0 %v3654
      %v3656 = vpop.xlane.xlu0 %3655
      %v3657 = vsub.f32 %v3643, %v3653
      %v3658 = vsub.f32 %v3648, %v3656
      %v3659 = vmul.f32 %v3657, 1.442695
      %v3660 = vpow.pop %v3659
      %v3661 = vmul.f32 %v3658, 1.442695
      %v3662 = vpow.pop %v3661
      %v3663 = vsel %vm667, %v3660, 0.0
      %3664 = vadd.xlane.f32.xlu0 %v3663
      %v3665 = vpop.xlane.xlu0 %3664
      %v3666 = vsel %vm671, %v3662, 0.0
      %3667 = vadd.xlane.f32.xlu0 %v3666
      %v3668 = vpop.xlane.xlu0 %3667
      %v3669 = vrcp.pop %v3665
      %v3670 = vrcp.pop %v3668
      %v3671 = vmul.f32 %v3660, %v3669
      %v3672 = vmul.f32 %v3662, %v3670
      %3673 = vrot.lane.b32.xlu0 %v2718, 48
      %v3674 = vpop.permute.xlu0 %3673
      %3675 = vrot.lane.b32.xlu0 %v2723, 48
      %v3676 = vpop.permute.xlu0 %3675
      %v3679 = vsel %vm667, %v3671, 0
      %v3682 = vsel %vm667, %v3672, 0
      %v3684 = vsel %vm702, %v3676, 0
      %3686 = vmatprep.subr.mxu0 0.0
      %3687 = vmatpush1.msra.mxu0 %v3674
      %3688 = vmatprep.subr.mxu0 0.0
      %3689 = vmatpush1.msra.mxu0 %v3684
      %3690 = vmatprep.subr.mxu0 0.0
      %3691 = vmatpush1.msra.mxu0 0.0
      %3692 = vmatprep.subr.mxu0 0.0
      %3693 = vmatpush1.msra.mxu0 0.0
      %3694 = vmatprep.subr.mxu0 0.0
      %3695 = vmatpush1.msra.mxu0 0.0
      %3696 = vmatprep.subr.mxu0 0.0
      %3697 = vmatpush1.msra.mxu0 0.0
      %3698 = vmatprep.subr.mxu0 0.0
      %3699 = vmatpush1.msra.mxu0 0.0
      %3700 = vmatprep.subr.mxu0 0.0
      %3701 = vmatpush1.msra.mxu0 0.0
      %3702 = vmatprep.subr.mxu0 0.0
      %3703 = vmatpush1.msra.mxu0 0.0
      %3704 = vmatprep.subr.mxu0 0.0
      %3705 = vmatpush1.msra.mxu0 0.0
      %3706 = vmatprep.subr.mxu0 0.0
      %3707 = vmatpush1.msra.mxu0 0.0
      %3708 = vmatprep.subr.mxu0 0.0
      %3709 = vmatpush1.msra.mxu0 0.0
      %3710 = vmatprep.subr.mxu0 0.0
      %3711 = vmatpush1.msra.mxu0 0.0
      %3712 = vmatprep.subr.mxu0 0.0
      %3713 = vmatpush1.msra.mxu0 0.0
      %3714 = vmatprep.subr.mxu0 0.0
      %3715 = vmatpush1.msra.mxu0 0.0
      %3716 = vmatprep.subr.mxu0 0.0
      %3717 = vmatpush1.msra.mxu0 0.0
      %3718 = vmatprep.subr.mxu0 0.0
      %3719 = vmatpush1.msra.mxu0 0.0
      %3720 = vmatprep.subr.mxu0 0.0
      %3721 = vmatpush1.msra.mxu0 0.0
      %3722 = vmatprep.subr.mxu0 0.0
      %3723 = vmatpush1.msra.mxu0 0.0
      %3724 = vmatprep.subr.mxu0 0.0
      %3725 = vmatpush1.msra.mxu0 0.0
      %3726 = vmatprep.subr.mxu0 0.0
      %3727 = vmatpush1.msra.mxu0 0.0
      %3728 = vmatprep.subr.mxu0 0.0
      %3729 = vmatpush1.msra.mxu0 0.0
      %3730 = vmatprep.subr.mxu0 0.0
      %3731 = vmatpush1.msra.mxu0 0.0
      %3732 = vmatprep.subr.mxu0 0.0
      %3733 = vmatpush1.msra.mxu0 0.0
      %3734 = vmatprep.subr.mxu0 0.0
      %3735 = vmatpush1.msra.mxu0 0.0
      %3736 = vmatprep.subr.mxu0 0.0
      %3737 = vmatpush1.msra.mxu0 0.0
      %3738 = vmatprep.subr.mxu0 0.0
      %3739 = vmatpush1.msra.mxu0 0.0
      %3740 = vmatprep.subr.mxu0 0.0
      %3741 = vmatpush1.msra.mxu0 0.0
      %3742 = vmatprep.subr.mxu0 0.0
      %3743 = vmatpush1.msra.mxu0 0.0
      %3744 = vmatprep.subr.mxu0 0.0
      %3745 = vmatpush1.msra.mxu0 0.0
      %3746 = vmatprep.subr.mxu0 0.0
      %3747 = vmatpush1.msra.mxu0 0.0
      %3748 = vmatprep.subr.mxu0 0.0
      %3749 = vmatpush1.msra.mxu0 0.0
      %3750 = vmatprep.mubr.f32.mxu0 0.0
      %3751 = vmatmul.mubr.f32.gmra.mrb[0].mxu0 %v3679
      %v3752 = vpop.f32.mrb[0].mxu0
      %v3753 = vadd.f32 0.0, %v3752
      %v3754 = vpop.f32.mrb[0].mxu0
      %3755 = vmatprep.mubr.f32.mxu0 0.0
      %3756 = vmatmul.mubr.f32.gmra.mrb[0].mxu0 %v3682
      %v3757 = vpop.f32.mrb[0].mxu0
      %v3758 = vadd.f32 0.0, %v3757
      %v3759 = vpop.f32.mrb[0].mxu0
      %3760 = vdwg.mxu0
      %3763 = vrot.lane.b32.xlu0 %v3753, 16
      %v3764 = vpop.permute.xlu0 %3763
      %3765 = vrot.lane.b32.xlu0 %v3758, 16
      %v3766 = vpop.permute.xlu0 %3765
      %3769 = vst.msk [vmem:[#allocation2] sm:$0xff] %vm1631, %v3764
      %3770 = vst.msk [vmem:[#allocation2 + $0x8] sm:$0x1] %vm1633, %v3766
      %3771 = vrot.lane.b32.xlu0 %v2718, 108
      %v3772 = vpop.permute.xlu0 %3771
      %3773 = vrot.lane.b32.xlu0 %v2723, 108
      %v3774 = vpop.permute.xlu0 %3773
      %3775 = vrot.lane.b32.xlu0 %v2718, 76
      %v3776 = vpop.permute.xlu0 %3775
      %3777 = vrot.lane.b32.xlu0 %v2723, 76
      %v3778 = vpop.permute.xlu0 %3777
      %v3779 = vsel %vm583, %v3772, 0
      %v3781 = vsel %vm583, %v3774, 0
      %v3783 = vsel %vm583, %v3776, 0
      %v3785 = vsel %vm583, %v3778, 0
      %3787 = vmatprep.subr.mxu0 0.0
      %3788 = vmatpush1.xpose.msra.mxu0 %v3783
      %3789 = vmatprep.subr.mxu0 0.0
      %3790 = vmatpush1.xpose.msra.mxu0 %v3785
      %3791 = vmatprep.subr.mxu0 0.0
      %3792 = vmatpush1.xpose.msra.mxu0 0.0
      %3793 = vmatprep.subr.mxu0 0.0
      %3794 = vmatpush1.xpose.msra.mxu0 0.0
      %3795 = vmatprep.subr.mxu0 0.0
      %3796 = vmatpush1.xpose.msra.mxu0 0.0
      %3797 = vmatprep.subr.mxu0 0.0
      %3798 = vmatpush1.xpose.msra.mxu0 0.0
      %3799 = vmatprep.subr.mxu0 0.0
      %3800 = vmatpush1.xpose.msra.mxu0 0.0
      %3801 = vmatprep.subr.mxu0 0.0
      %3802 = vmatpush1.xpose.msra.mxu0 0.0
      %3803 = vmatprep.subr.mxu0 0.0
      %3804 = vmatpush1.xpose.msra.mxu0 0.0
      %3805 = vmatprep.subr.mxu0 0.0
      %3806 = vmatpush1.xpose.msra.mxu0 0.0
      %3807 = vmatprep.subr.mxu0 0.0
      %3808 = vmatpush1.xpose.msra.mxu0 0.0
      %3809 = vmatprep.subr.mxu0 0.0
      %3810 = vmatpush1.xpose.msra.mxu0 0.0
      %3811 = vmatprep.subr.mxu0 0.0
      %3812 = vmatpush1.xpose.msra.mxu0 0.0
      %3813 = vmatprep.subr.mxu0 0.0
      %3814 = vmatpush1.xpose.msra.mxu0 0.0
      %3815 = vmatprep.subr.mxu0 0.0
      %3816 = vmatpush1.xpose.msra.mxu0 0.0
      %3817 = vmatprep.subr.mxu0 0.0
      %3818 = vmatpush1.xpose.msra.mxu0 0.0
      %3819 = vmatprep.subr.mxu0 0.0
      %3820 = vmatpush1.xpose.msra.mxu0 0.0
      %3821 = vmatprep.subr.mxu0 0.0
      %3822 = vmatpush1.xpose.msra.mxu0 0.0
      %3823 = vmatprep.subr.mxu0 0.0
      %3824 = vmatpush1.xpose.msra.mxu0 0.0
      %3825 = vmatprep.subr.mxu0 0.0
      %3826 = vmatpush1.xpose.msra.mxu0 0.0
      %3827 = vmatprep.subr.mxu0 0.0
      %3828 = vmatpush1.xpose.msra.mxu0 0.0
      %3829 = vmatprep.subr.mxu0 0.0
      %3830 = vmatpush1.xpose.msra.mxu0 0.0
      %3831 = vmatprep.subr.mxu0 0.0
      %3832 = vmatpush1.xpose.msra.mxu0 0.0
      %3833 = vmatprep.subr.mxu0 0.0
      %3834 = vmatpush1.xpose.msra.mxu0 0.0
      %3835 = vmatprep.subr.mxu0 0.0
      %3836 = vmatpush1.xpose.msra.mxu0 0.0
      %3837 = vmatprep.subr.mxu0 0.0
      %3838 = vmatpush1.xpose.msra.mxu0 0.0
      %3839 = vmatprep.subr.mxu0 0.0
      %3840 = vmatpush1.xpose.msra.mxu0 0.0
      %3841 = vmatprep.subr.mxu0 0.0
      %3842 = vmatpush1.xpose.msra.mxu0 0.0
      %3843 = vmatprep.subr.mxu0 0.0
      %3844 = vmatpush1.xpose.msra.mxu0 0.0
      %3845 = vmatprep.subr.mxu0 0.0
      %3846 = vmatpush1.xpose.msra.mxu0 0.0
      %3847 = vmatprep.subr.mxu0 0.0
      %3848 = vmatpush1.xpose.msra.mxu0 0.0
      %3849 = vmatprep.subr.mxu0 0.0
      %3850 = vmatpush1.xpose.msra.mxu0 0.0
      %3851 = vmatprep.mubr.f32.mxu0 0.0
      %3852 = vmatmul.mubr.f32.gmra.mrb[0].mxu0 %v3779
      %v3853 = vpop.f32.mrb[0].mxu0
      %v3854 = vadd.f32 0.0, %v3853
      %v3855 = vpop.f32.mrb[0].mxu0
      %3856 = vmatprep.mubr.f32.mxu0 0.0
      %3857 = vmatmul.mubr.f32.gmra.mrb[0].mxu0 %v3781
      %v3858 = vpop.f32.mrb[0].mxu0
      %v3859 = vadd.f32 0.0, %v3858
      %v3860 = vpop.f32.mrb[0].mxu0
      %3861 = vdwg.mxu0
      %v3862 = vsel %vm667, %v3854, -inf
      %3863 = vmax.xlane.f32.xlu0 %v3862
      %v3864 = vpop.xlane.xlu0 %3863
      %v3865 = vsel %vm671, %v3859, -inf
      %3866 = vmax.xlane.f32.xlu0 %v3865
      %v3867 = vpop.xlane.xlu0 %3866
      %v3868 = vsub.f32 %v3854, %v3864
      %v3869 = vsub.f32 %v3859, %v3867
      %v3870 = vmul.f32 %v3868, 1.442695
      %v3871 = vpow.pop %v3870
      %v3872 = vmul.f32 %v3869, 1.442695
      %v3873 = vpow.pop %v3872
      %v3874 = vsel %vm667, %v3871, 0.0
      %3875 = vadd.xlane.f32.xlu0 %v3874
      %v3876 = vpop.xlane.xlu0 %3875
      %v3877 = vsel %vm671, %v3873, 0.0
      %3878 = vadd.xlane.f32.xlu0 %v3877
      %v3879 = vpop.xlane.xlu0 %3878
      %v3880 = vrcp.pop %v3876
      %v3881 = vrcp.pop %v3879
      %v3882 = vmul.f32 %v3871, %v3880
      %v3883 = vmul.f32 %v3873, %v3881
      %3884 = vrot.lane.b32.xlu0 %v2718, 44
      %v3885 = vpop.permute.xlu0 %3884
      %3886 = vrot.lane.b32.xlu0 %v2723, 44
      %v3887 = vpop.permute.xlu0 %3886
      %v3890 = vsel %vm667, %v3882, 0
      %v3893 = vsel %vm667, %v3883, 0
      %v3895 = vsel %vm702, %v3887, 0
      %3897 = vmatprep.subr.mxu0 0.0
      %3898 = vmatpush1.msra.mxu0 %v3885
      %3899 = vmatprep.subr.mxu0 0.0
      %3900 = vmatpush1.msra.mxu0 %v3895
      %3901 = vmatprep.subr.mxu0 0.0
      %3902 = vmatpush1.msra.mxu0 0.0
      %3903 = vmatprep.subr.mxu0 0.0
      %3904 = vmatpush1.msra.mxu0 0.0
      %3905 = vmatprep.subr.mxu0 0.0
      %3906 = vmatpush1.msra.mxu0 0.0
      %3907 = vmatprep.subr.mxu0 0.0
      %3908 = vmatpush1.msra.mxu0 0.0
      %3909 = vmatprep.subr.mxu0 0.0
      %3910 = vmatpush1.msra.mxu0 0.0
      %3911 = vmatprep.subr.mxu0 0.0
      %3912 = vmatpush1.msra.mxu0 0.0
      %3913 = vmatprep.subr.mxu0 0.0
      %3914 = vmatpush1.msra.mxu0 0.0
      %3915 = vmatprep.subr.mxu0 0.0
      %3916 = vmatpush1.msra.mxu0 0.0
      %3917 = vmatprep.subr.mxu0 0.0
      %3918 = vmatpush1.msra.mxu0 0.0
      %3919 = vmatprep.subr.mxu0 0.0
      %3920 = vmatpush1.msra.mxu0 0.0
      %3921 = vmatprep.subr.mxu0 0.0
      %3922 = vmatpush1.msra.mxu0 0.0
      %3923 = vmatprep.subr.mxu0 0.0
      %3924 = vmatpush1.msra.mxu0 0.0
      %3925 = vmatprep.subr.mxu0 0.0
      %3926 = vmatpush1.msra.mxu0 0.0
      %3927 = vmatprep.subr.mxu0 0.0
      %3928 = vmatpush1.msra.mxu0 0.0
      %3929 = vmatprep.subr.mxu0 0.0
      %3930 = vmatpush1.msra.mxu0 0.0
      %3931 = vmatprep.subr.mxu0 0.0
      %3932 = vmatpush1.msra.mxu0 0.0
      %3933 = vmatprep.subr.mxu0 0.0
      %3934 = vmatpush1.msra.mxu0 0.0
      %3935 = vmatprep.subr.mxu0 0.0
      %3936 = vmatpush1.msra.mxu0 0.0
      %3937 = vmatprep.subr.mxu0 0.0
      %3938 = vmatpush1.msra.mxu0 0.0
      %3939 = vmatprep.subr.mxu0 0.0
      %3940 = vmatpush1.msra.mxu0 0.0
      %3941 = vmatprep.subr.mxu0 0.0
      %3942 = vmatpush1.msra.mxu0 0.0
      %3943 = vmatprep.subr.mxu0 0.0
      %3944 = vmatpush1.msra.mxu0 0.0
      %3945 = vmatprep.subr.mxu0 0.0
      %3946 = vmatpush1.msra.mxu0 0.0
      %3947 = vmatprep.subr.mxu0 0.0
      %3948 = vmatpush1.msra.mxu0 0.0
      %3949 = vmatprep.subr.mxu0 0.0
      %3950 = vmatpush1.msra.mxu0 0.0
      %3951 = vmatprep.subr.mxu0 0.0
      %3952 = vmatpush1.msra.mxu0 0.0
      %3953 = vmatprep.subr.mxu0 0.0
      %3954 = vmatpush1.msra.mxu0 0.0
      %3955 = vmatprep.subr.mxu0 0.0
      %3956 = vmatpush1.msra.mxu0 0.0
      %3957 = vmatprep.subr.mxu0 0.0
      %3958 = vmatpush1.msra.mxu0 0.0
      %3959 = vmatprep.subr.mxu0 0.0
      %3960 = vmatpush1.msra.mxu0 0.0
      %3961 = vmatprep.mubr.f32.mxu0 0.0
      %3962 = vmatmul.mubr.f32.gmra.mrb[0].mxu0 %v3890
      %v3963 = vpop.f32.mrb[0].mxu0
      %v3964 = vadd.f32 0.0, %v3963
      %v3965 = vpop.f32.mrb[0].mxu0
      %3966 = vmatprep.mubr.f32.mxu0 0.0
      %3967 = vmatmul.mubr.f32.gmra.mrb[0].mxu0 %v3893
      %v3968 = vpop.f32.mrb[0].mxu0
      %v3969 = vadd.f32 0.0, %v3968
      %v3970 = vpop.f32.mrb[0].mxu0
      %3971 = vdwg.mxu0
      %3974 = vrot.lane.b32.xlu0 %v3964, 20
      %v3975 = vpop.permute.xlu0 %3974
      %3976 = vrot.lane.b32.xlu0 %v3969, 20
      %v3977 = vpop.permute.xlu0 %3976
      %3980 = vst.msk [vmem:[#allocation2] sm:$0xff] %vm1844, %v3975
      %3981 = vst.msk [vmem:[#allocation2 + $0x8] sm:$0x1] %vm1846, %v3977
      %3982 = vrot.lane.b32.xlu0 %v2718, 104
      %v3983 = vpop.permute.xlu0 %3982
      %3984 = vrot.lane.b32.xlu0 %v2723, 104
      %v3985 = vpop.permute.xlu0 %3984
      %3986 = vrot.lane.b32.xlu0 %v2718, 72
      %v3987 = vpop.permute.xlu0 %3986
      %3988 = vrot.lane.b32.xlu0 %v2723, 72
      %v3989 = vpop.permute.xlu0 %3988
      %v3990 = vsel %vm583, %v3983, 0
      %v3992 = vsel %vm583, %v3985, 0
      %v3994 = vsel %vm583, %v3987, 0
      %v3996 = vsel %vm583, %v3989, 0
      %3998 = vmatprep.subr.mxu0 0.0
      %3999 = vmatpush1.xpose.msra.mxu0 %v3994
      %4000 = vmatprep.subr.mxu0 0.0
      %4001 = vmatpush1.xpose.msra.mxu0 %v3996
      %4002 = vmatprep.subr.mxu0 0.0
      %4003 = vmatpush1.xpose.msra.mxu0 0.0
      %4004 = vmatprep.subr.mxu0 0.0
      %4005 = vmatpush1.xpose.msra.mxu0 0.0
      %4006 = vmatprep.subr.mxu0 0.0
      %4007 = vmatpush1.xpose.msra.mxu0 0.0
      %4008 = vmatprep.subr.mxu0 0.0
      %4009 = vmatpush1.xpose.msra.mxu0 0.0
      %4010 = vmatprep.subr.mxu0 0.0
      %4011 = vmatpush1.xpose.msra.mxu0 0.0
      %4012 = vmatprep.subr.mxu0 0.0
      %4013 = vmatpush1.xpose.msra.mxu0 0.0
      %4014 = vmatprep.subr.mxu0 0.0
      %4015 = vmatpush1.xpose.msra.mxu0 0.0
      %4016 = vmatprep.subr.mxu0 0.0
      %4017 = vmatpush1.xpose.msra.mxu0 0.0
      %4018 = vmatprep.subr.mxu0 0.0
      %4019 = vmatpush1.xpose.msra.mxu0 0.0
      %4020 = vmatprep.subr.mxu0 0.0
      %4021 = vmatpush1.xpose.msra.mxu0 0.0
      %4022 = vmatprep.subr.mxu0 0.0
      %4023 = vmatpush1.xpose.msra.mxu0 0.0
      %4024 = vmatprep.subr.mxu0 0.0
      %4025 = vmatpush1.xpose.msra.mxu0 0.0
      %4026 = vmatprep.subr.mxu0 0.0
      %4027 = vmatpush1.xpose.msra.mxu0 0.0
      %4028 = vmatprep.subr.mxu0 0.0
      %4029 = vmatpush1.xpose.msra.mxu0 0.0
      %4030 = vmatprep.subr.mxu0 0.0
      %4031 = vmatpush1.xpose.msra.mxu0 0.0
      %4032 = vmatprep.subr.mxu0 0.0
      %4033 = vmatpush1.xpose.msra.mxu0 0.0
      %4034 = vmatprep.subr.mxu0 0.0
      %4035 = vmatpush1.xpose.msra.mxu0 0.0
      %4036 = vmatprep.subr.mxu0 0.0
      %4037 = vmatpush1.xpose.msra.mxu0 0.0
      %4038 = vmatprep.subr.mxu0 0.0
      %4039 = vmatpush1.xpose.msra.mxu0 0.0
      %4040 = vmatprep.subr.mxu0 0.0
      %4041 = vmatpush1.xpose.msra.mxu0 0.0
      %4042 = vmatprep.subr.mxu0 0.0
      %4043 = vmatpush1.xpose.msra.mxu0 0.0
      %4044 = vmatprep.subr.mxu0 0.0
      %4045 = vmatpush1.xpose.msra.mxu0 0.0
      %4046 = vmatprep.subr.mxu0 0.0
      %4047 = vmatpush1.xpose.msra.mxu0 0.0
      %4048 = vmatprep.subr.mxu0 0.0
      %4049 = vmatpush1.xpose.msra.mxu0 0.0
      %4050 = vmatprep.subr.mxu0 0.0
      %4051 = vmatpush1.xpose.msra.mxu0 0.0
      %4052 = vmatprep.subr.mxu0 0.0
      %4053 = vmatpush1.xpose.msra.mxu0 0.0
      %4054 = vmatprep.subr.mxu0 0.0
      %4055 = vmatpush1.xpose.msra.mxu0 0.0
      %4056 = vmatprep.subr.mxu0 0.0
      %4057 = vmatpush1.xpose.msra.mxu0 0.0
      %4058 = vmatprep.subr.mxu0 0.0
      %4059 = vmatpush1.xpose.msra.mxu0 0.0
      %4060 = vmatprep.subr.mxu0 0.0
      %4061 = vmatpush1.xpose.msra.mxu0 0.0
      %4062 = vmatprep.mubr.f32.mxu0 0.0
      %4063 = vmatmul.mubr.f32.gmra.mrb[0].mxu0 %v3990
      %v4064 = vpop.f32.mrb[0].mxu0
      %v4065 = vadd.f32 0.0, %v4064
      %v4066 = vpop.f32.mrb[0].mxu0
      %4067 = vmatprep.mubr.f32.mxu0 0.0
      %4068 = vmatmul.mubr.f32.gmra.mrb[0].mxu0 %v3992
      %v4069 = vpop.f32.mrb[0].mxu0
      %v4070 = vadd.f32 0.0, %v4069
      %v4071 = vpop.f32.mrb[0].mxu0
      %4072 = vdwg.mxu0
      %v4073 = vsel %vm667, %v4065, -inf
      %4074 = vmax.xlane.f32.xlu0 %v4073
      %v4075 = vpop.xlane.xlu0 %4074
      %v4076 = vsel %vm671, %v4070, -inf
      %4077 = vmax.xlane.f32.xlu0 %v4076
      %v4078 = vpop.xlane.xlu0 %4077
      %v4079 = vsub.f32 %v4065, %v4075
      %v4080 = vsub.f32 %v4070, %v4078
      %v4081 = vmul.f32 %v4079, 1.442695
      %v4082 = vpow.pop %v4081
      %v4083 = vmul.f32 %v4080, 1.442695
      %v4084 = vpow.pop %v4083
      %v4085 = vsel %vm667, %v4082, 0.0
      %4086 = vadd.xlane.f32.xlu0 %v4085
      %v4087 = vpop.xlane.xlu0 %4086
      %v4088 = vsel %vm671, %v4084, 0.0
      %4089 = vadd.xlane.f32.xlu0 %v4088
      %v4090 = vpop.xlane.xlu0 %4089
      %v4091 = vrcp.pop %v4087
      %v4092 = vrcp.pop %v4090
      %v4093 = vmul.f32 %v4082, %v4091
      %v4094 = vmul.f32 %v4084, %v4092
      %4095 = vrot.lane.b32.xlu0 %v2718, 40
      %v4096 = vpop.permute.xlu0 %4095
      %4097 = vrot.lane.b32.xlu0 %v2723, 40
      %v4098 = vpop.permute.xlu0 %4097
      %v4101 = vsel %vm667, %v4093, 0
      %v4104 = vsel %vm667, %v4094, 0
      %v4106 = vsel %vm702, %v4098, 0
      %4108 = vmatprep.subr.mxu0 0.0
      %4109 = vmatpush1.msra.mxu0 %v4096
      %4110 = vmatprep.subr.mxu0 0.0
      %4111 = vmatpush1.msra.mxu0 %v4106
      %4112 = vmatprep.subr.mxu0 0.0
      %4113 = vmatpush1.msra.mxu0 0.0
      %4114 = vmatprep.subr.mxu0 0.0
      %4115 = vmatpush1.msra.mxu0 0.0
      %4116 = vmatprep.subr.mxu0 0.0
      %4117 = vmatpush1.msra.mxu0 0.0
      %4118 = vmatprep.subr.mxu0 0.0
      %4119 = vmatpush1.msra.mxu0 0.0
      %4120 = vmatprep.subr.mxu0 0.0
      %4121 = vmatpush1.msra.mxu0 0.0
      %4122 = vmatprep.subr.mxu0 0.0
      %4123 = vmatpush1.msra.mxu0 0.0
      %4124 = vmatprep.subr.mxu0 0.0
      %4125 = vmatpush1.msra.mxu0 0.0
      %4126 = vmatprep.subr.mxu0 0.0
      %4127 = vmatpush1.msra.mxu0 0.0
      %4128 = vmatprep.subr.mxu0 0.0
      %4129 = vmatpush1.msra.mxu0 0.0
      %4130 = vmatprep.subr.mxu0 0.0
      %4131 = vmatpush1.msra.mxu0 0.0
      %4132 = vmatprep.subr.mxu0 0.0
      %4133 = vmatpush1.msra.mxu0 0.0
      %4134 = vmatprep.subr.mxu0 0.0
      %4135 = vmatpush1.msra.mxu0 0.0
      %4136 = vmatprep.subr.mxu0 0.0
      %4137 = vmatpush1.msra.mxu0 0.0
      %4138 = vmatprep.subr.mxu0 0.0
      %4139 = vmatpush1.msra.mxu0 0.0
      %4140 = vmatprep.subr.mxu0 0.0
      %4141 = vmatpush1.msra.mxu0 0.0
      %4142 = vmatprep.subr.mxu0 0.0
      %4143 = vmatpush1.msra.mxu0 0.0
      %4144 = vmatprep.subr.mxu0 0.0
      %4145 = vmatpush1.msra.mxu0 0.0
      %4146 = vmatprep.subr.mxu0 0.0
      %4147 = vmatpush1.msra.mxu0 0.0
      %4148 = vmatprep.subr.mxu0 0.0
      %4149 = vmatpush1.msra.mxu0 0.0
      %4150 = vmatprep.subr.mxu0 0.0
      %4151 = vmatpush1.msra.mxu0 0.0
      %4152 = vmatprep.subr.mxu0 0.0
      %4153 = vmatpush1.msra.mxu0 0.0
      %4154 = vmatprep.subr.mxu0 0.0
      %4155 = vmatpush1.msra.mxu0 0.0
      %4156 = vmatprep.subr.mxu0 0.0
      %4157 = vmatpush1.msra.mxu0 0.0
      %4158 = vmatprep.subr.mxu0 0.0
      %4159 = vmatpush1.msra.mxu0 0.0
      %4160 = vmatprep.subr.mxu0 0.0
      %4161 = vmatpush1.msra.mxu0 0.0
      %4162 = vmatprep.subr.mxu0 0.0
      %4163 = vmatpush1.msra.mxu0 0.0
      %4164 = vmatprep.subr.mxu0 0.0
      %4165 = vmatpush1.msra.mxu0 0.0
      %4166 = vmatprep.subr.mxu0 0.0
      %4167 = vmatpush1.msra.mxu0 0.0
      %4168 = vmatprep.subr.mxu0 0.0
      %4169 = vmatpush1.msra.mxu0 0.0
      %4170 = vmatprep.subr.mxu0 0.0
      %4171 = vmatpush1.msra.mxu0 0.0
      %4172 = vmatprep.mubr.f32.mxu0 0.0
      %4173 = vmatmul.mubr.f32.gmra.mrb[0].mxu0 %v4101
      %v4174 = vpop.f32.mrb[0].mxu0
      %v4175 = vadd.f32 0.0, %v4174
      %v4176 = vpop.f32.mrb[0].mxu0
      %4177 = vmatprep.mubr.f32.mxu0 0.0
      %4178 = vmatmul.mubr.f32.gmra.mrb[0].mxu0 %v4104
      %v4179 = vpop.f32.mrb[0].mxu0
      %v4180 = vadd.f32 0.0, %v4179
      %v4181 = vpop.f32.mrb[0].mxu0
      %4182 = vdwg.mxu0
      %4185 = vrot.lane.b32.xlu0 %v4175, 24
      %v4186 = vpop.permute.xlu0 %4185
      %4187 = vrot.lane.b32.xlu0 %v4180, 24
      %v4188 = vpop.permute.xlu0 %4187
      %4191 = vst.msk [vmem:[#allocation2] sm:$0xff] %vm2057, %v4186
      %4192 = vst.msk [vmem:[#allocation2 + $0x8] sm:$0x1] %vm2059, %v4188
      %4193 = vrot.lane.b32.xlu0 %v2718, 100
      %v4194 = vpop.permute.xlu0 %4193
      %4195 = vrot.lane.b32.xlu0 %v2723, 100
      %v4196 = vpop.permute.xlu0 %4195
      %4197 = vrot.lane.b32.xlu0 %v2718, 68
      %v4198 = vpop.permute.xlu0 %4197
      %4199 = vrot.lane.b32.xlu0 %v2723, 68
      %v4200 = vpop.permute.xlu0 %4199
      %v4201 = vsel %vm583, %v4194, 0
      %v4203 = vsel %vm583, %v4196, 0
      %v4205 = vsel %vm583, %v4198, 0
      %v4207 = vsel %vm583, %v4200, 0
      %4209 = vmatprep.subr.mxu0 0.0
      %4210 = vmatpush1.xpose.msra.mxu0 %v4205
      %4211 = vmatprep.subr.mxu0 0.0
      %4212 = vmatpush1.xpose.msra.mxu0 %v4207
      %4213 = vmatprep.subr.mxu0 0.0
      %4214 = vmatpush1.xpose.msra.mxu0 0.0
      %4215 = vmatprep.subr.mxu0 0.0
      %4216 = vmatpush1.xpose.msra.mxu0 0.0
      %4217 = vmatprep.subr.mxu0 0.0
      %4218 = vmatpush1.xpose.msra.mxu0 0.0
      %4219 = vmatprep.subr.mxu0 0.0
      %4220 = vmatpush1.xpose.msra.mxu0 0.0
      %4221 = vmatprep.subr.mxu0 0.0
      %4222 = vmatpush1.xpose.msra.mxu0 0.0
      %4223 = vmatprep.subr.mxu0 0.0
      %4224 = vmatpush1.xpose.msra.mxu0 0.0
      %4225 = vmatprep.subr.mxu0 0.0
      %4226 = vmatpush1.xpose.msra.mxu0 0.0
      %4227 = vmatprep.subr.mxu0 0.0
      %4228 = vmatpush1.xpose.msra.mxu0 0.0
      %4229 = vmatprep.subr.mxu0 0.0
      %4230 = vmatpush1.xpose.msra.mxu0 0.0
      %4231 = vmatprep.subr.mxu0 0.0
      %4232 = vmatpush1.xpose.msra.mxu0 0.0
      %4233 = vmatprep.subr.mxu0 0.0
      %4234 = vmatpush1.xpose.msra.mxu0 0.0
      %4235 = vmatprep.subr.mxu0 0.0
      %4236 = vmatpush1.xpose.msra.mxu0 0.0
      %4237 = vmatprep.subr.mxu0 0.0
      %4238 = vmatpush1.xpose.msra.mxu0 0.0
      %4239 = vmatprep.subr.mxu0 0.0
      %4240 = vmatpush1.xpose.msra.mxu0 0.0
      %4241 = vmatprep.subr.mxu0 0.0
      %4242 = vmatpush1.xpose.msra.mxu0 0.0
      %4243 = vmatprep.subr.mxu0 0.0
      %4244 = vmatpush1.xpose.msra.mxu0 0.0
      %4245 = vmatprep.subr.mxu0 0.0
      %4246 = vmatpush1.xpose.msra.mxu0 0.0
      %4247 = vmatprep.subr.mxu0 0.0
      %4248 = vmatpush1.xpose.msra.mxu0 0.0
      %4249 = vmatprep.subr.mxu0 0.0
      %4250 = vmatpush1.xpose.msra.mxu0 0.0
      %4251 = vmatprep.subr.mxu0 0.0
      %4252 = vmatpush1.xpose.msra.mxu0 0.0
      %4253 = vmatprep.subr.mxu0 0.0
      %4254 = vmatpush1.xpose.msra.mxu0 0.0
      %4255 = vmatprep.subr.mxu0 0.0
      %4256 = vmatpush1.xpose.msra.mxu0 0.0
      %4257 = vmatprep.subr.mxu0 0.0
      %4258 = vmatpush1.xpose.msra.mxu0 0.0
      %4259 = vmatprep.subr.mxu0 0.0
      %4260 = vmatpush1.xpose.msra.mxu0 0.0
      %4261 = vmatprep.subr.mxu0 0.0
      %4262 = vmatpush1.xpose.msra.mxu0 0.0
      %4263 = vmatprep.subr.mxu0 0.0
      %4264 = vmatpush1.xpose.msra.mxu0 0.0
      %4265 = vmatprep.subr.mxu0 0.0
      %4266 = vmatpush1.xpose.msra.mxu0 0.0
      %4267 = vmatprep.subr.mxu0 0.0
      %4268 = vmatpush1.xpose.msra.mxu0 0.0
      %4269 = vmatprep.subr.mxu0 0.0
      %4270 = vmatpush1.xpose.msra.mxu0 0.0
      %4271 = vmatprep.subr.mxu0 0.0
      %4272 = vmatpush1.xpose.msra.mxu0 0.0
      %4273 = vmatprep.mubr.f32.mxu0 0.0
      %4274 = vmatmul.mubr.f32.gmra.mrb[0].mxu0 %v4201
      %v4275 = vpop.f32.mrb[0].mxu0
      %v4276 = vadd.f32 0.0, %v4275
      %v4277 = vpop.f32.mrb[0].mxu0
      %4278 = vmatprep.mubr.f32.mxu0 0.0
      %4279 = vmatmul.mubr.f32.gmra.mrb[0].mxu0 %v4203
      %v4280 = vpop.f32.mrb[0].mxu0
      %v4281 = vadd.f32 0.0, %v4280
      %v4282 = vpop.f32.mrb[0].mxu0
      %4283 = vdwg.mxu0
      %v4284 = vsel %vm667, %v4276, -inf
      %4285 = vmax.xlane.f32.xlu0 %v4284
      %v4286 = vpop.xlane.xlu0 %4285
      %v4287 = vsel %vm671, %v4281, -inf
      %4288 = vmax.xlane.f32.xlu0 %v4287
      %v4289 = vpop.xlane.xlu0 %4288
      %v4290 = vsub.f32 %v4276, %v4286
      %v4291 = vsub.f32 %v4281, %v4289
      %v4292 = vmul.f32 %v4290, 1.442695
      %v4293 = vpow.pop %v4292
      %v4294 = vmul.f32 %v4291, 1.442695
      %v4295 = vpow.pop %v4294
      %v4296 = vsel %vm667, %v4293, 0.0
      %4297 = vadd.xlane.f32.xlu0 %v4296
      %v4298 = vpop.xlane.xlu0 %4297
      %v4299 = vsel %vm671, %v4295, 0.0
      %4300 = vadd.xlane.f32.xlu0 %v4299
      %v4301 = vpop.xlane.xlu0 %4300
      %v4302 = vrcp.pop %v4298
      %v4303 = vrcp.pop %v4301
      %v4304 = vmul.f32 %v4293, %v4302
      %v4305 = vmul.f32 %v4295, %v4303
      %4306 = vrot.lane.b32.xlu0 %v2718, 36
      %v4307 = vpop.permute.xlu0 %4306
      %4308 = vrot.lane.b32.xlu0 %v2723, 36
      %v4309 = vpop.permute.xlu0 %4308
      %v4312 = vsel %vm667, %v4304, 0
      %v4315 = vsel %vm667, %v4305, 0
      %v4317 = vsel %vm702, %v4309, 0
      %4319 = vmatprep.subr.mxu0 0.0
      %4320 = vmatpush1.msra.mxu0 %v4307
      %4321 = vmatprep.subr.mxu0 0.0
      %4322 = vmatpush1.msra.mxu0 %v4317
      %4323 = vmatprep.subr.mxu0 0.0
      %4324 = vmatpush1.msra.mxu0 0.0
      %4325 = vmatprep.subr.mxu0 0.0
      %4326 = vmatpush1.msra.mxu0 0.0
      %4327 = vmatprep.subr.mxu0 0.0
      %4328 = vmatpush1.msra.mxu0 0.0
      %4329 = vmatprep.subr.mxu0 0.0
      %4330 = vmatpush1.msra.mxu0 0.0
      %4331 = vmatprep.subr.mxu0 0.0
      %4332 = vmatpush1.msra.mxu0 0.0
      %4333 = vmatprep.subr.mxu0 0.0
      %4334 = vmatpush1.msra.mxu0 0.0
      %4335 = vmatprep.subr.mxu0 0.0
      %4336 = vmatpush1.msra.mxu0 0.0
      %4337 = vmatprep.subr.mxu0 0.0
      %4338 = vmatpush1.msra.mxu0 0.0
      %4339 = vmatprep.subr.mxu0 0.0
      %4340 = vmatpush1.msra.mxu0 0.0
      %4341 = vmatprep.subr.mxu0 0.0
      %4342 = vmatpush1.msra.mxu0 0.0
      %4343 = vmatprep.subr.mxu0 0.0
      %4344 = vmatpush1.msra.mxu0 0.0
      %4345 = vmatprep.subr.mxu0 0.0
      %4346 = vmatpush1.msra.mxu0 0.0
      %4347 = vmatprep.subr.mxu0 0.0
      %4348 = vmatpush1.msra.mxu0 0.0
      %4349 = vmatprep.subr.mxu0 0.0
      %4350 = vmatpush1.msra.mxu0 0.0
      %4351 = vmatprep.subr.mxu0 0.0
      %4352 = vmatpush1.msra.mxu0 0.0
      %4353 = vmatprep.subr.mxu0 0.0
      %4354 = vmatpush1.msra.mxu0 0.0
      %4355 = vmatprep.subr.mxu0 0.0
      %4356 = vmatpush1.msra.mxu0 0.0
      %4357 = vmatprep.subr.mxu0 0.0
      %4358 = vmatpush1.msra.mxu0 0.0
      %4359 = vmatprep.subr.mxu0 0.0
      %4360 = vmatpush1.msra.mxu0 0.0
      %4361 = vmatprep.subr.mxu0 0.0
      %4362 = vmatpush1.msra.mxu0 0.0
      %4363 = vmatprep.subr.mxu0 0.0
      %4364 = vmatpush1.msra.mxu0 0.0
      %4365 = vmatprep.subr.mxu0 0.0
      %4366 = vmatpush1.msra.mxu0 0.0
      %4367 = vmatprep.subr.mxu0 0.0
      %4368 = vmatpush1.msra.mxu0 0.0
      %4369 = vmatprep.subr.mxu0 0.0
      %4370 = vmatpush1.msra.mxu0 0.0
      %4371 = vmatprep.subr.mxu0 0.0
      %4372 = vmatpush1.msra.mxu0 0.0
      %4373 = vmatprep.subr.mxu0 0.0
      %4374 = vmatpush1.msra.mxu0 0.0
      %4375 = vmatprep.subr.mxu0 0.0
      %4376 = vmatpush1.msra.mxu0 0.0
      %4377 = vmatprep.subr.mxu0 0.0
      %4378 = vmatpush1.msra.mxu0 0.0
      %4379 = vmatprep.subr.mxu0 0.0
      %4380 = vmatpush1.msra.mxu0 0.0
      %4381 = vmatprep.subr.mxu0 0.0
      %4382 = vmatpush1.msra.mxu0 0.0
      %4383 = vmatprep.mubr.f32.mxu0 0.0
      %4384 = vmatmul.mubr.f32.gmra.mrb[0].mxu0 %v4312
      %v4385 = vpop.f32.mrb[0].mxu0
      %v4386 = vadd.f32 0.0, %v4385
      %v4387 = vpop.f32.mrb[0].mxu0
      %4388 = vmatprep.mubr.f32.mxu0 0.0
      %4389 = vmatmul.mubr.f32.gmra.mrb[0].mxu0 %v4315
      %v4390 = vpop.f32.mrb[0].mxu0
      %v4391 = vadd.f32 0.0, %v4390
      %v4392 = vpop.f32.mrb[0].mxu0
      %4393 = vdwg.mxu0
      %4396 = vrot.lane.b32.xlu0 %v4386, 28
      %v4397 = vpop.permute.xlu0 %4396
      %4398 = vrot.lane.b32.xlu0 %v4391, 28
      %v4399 = vpop.permute.xlu0 %4398
      %4402 = vst.msk [vmem:[#allocation2] sm:$0xff] %vm2270, %v4397
      %4403 = vst.msk [vmem:[#allocation2 + $0x8] sm:$0x1] %vm2272, %v4399
      %v4404 = vld [vmem:[#allocation2] sm:$0xff]
      %v4405 = vld [vmem:[#allocation2 + $0x8] sm:$0x1]
      %v4407 = vsel %vm461, %v4404, 0
      %v4410 = vsel %vm461, %v4405, 0
      %4412 = vmatprep.subr.mxu0 0.0
      %4413 = vmatpush1.msra.mxu0 %v2581
      %4414 = vmatprep.subr.mxu0 0.0
      %4415 = vmatpush1.msra.mxu0 %v2582
      %4416 = vmatprep.subr.mxu0 0.0
      %4417 = vmatpush1.msra.mxu0 %v2583
      %4418 = vmatprep.subr.mxu0 0.0
      %4419 = vmatpush1.msra.mxu0 %v2584
      %4420 = vmatprep.subr.mxu0 0.0
      %4421 = vmatpush1.msra.mxu0 0.0
      %4422 = vmatprep.subr.mxu0 0.0
      %4423 = vmatpush1.msra.mxu0 0.0
      %4424 = vmatprep.subr.mxu0 0.0
      %4425 = vmatpush1.msra.mxu0 0.0
      %4426 = vmatprep.subr.mxu0 0.0
      %4427 = vmatpush1.msra.mxu0 0.0
      %4428 = vmatprep.subr.mxu0 0.0
      %4429 = vmatpush1.msra.mxu0 0.0
      %4430 = vmatprep.subr.mxu0 0.0
      %4431 = vmatpush1.msra.mxu0 0.0
      %4432 = vmatprep.subr.mxu0 0.0
      %4433 = vmatpush1.msra.mxu0 0.0
      %4434 = vmatprep.subr.mxu0 0.0
      %4435 = vmatpush1.msra.mxu0 0.0
      %4436 = vmatprep.subr.mxu0 0.0
      %4437 = vmatpush1.msra.mxu0 0.0
      %4438 = vmatprep.subr.mxu0 0.0
      %4439 = vmatpush1.msra.mxu0 0.0
      %4440 = vmatprep.subr.mxu0 0.0
      %4441 = vmatpush1.msra.mxu0 0.0
      %4442 = vmatprep.subr.mxu0 0.0
      %4443 = vmatpush1.msra.mxu0 0.0
      %4444 = vmatprep.subr.mxu0 0.0
      %4445 = vmatpush1.msra.mxu0 0.0
      %4446 = vmatprep.subr.mxu0 0.0
      %4447 = vmatpush1.msra.mxu0 0.0
      %4448 = vmatprep.subr.mxu0 0.0
      %4449 = vmatpush1.msra.mxu0 0.0
      %4450 = vmatprep.subr.mxu0 0.0
      %4451 = vmatpush1.msra.mxu0 0.0
      %4452 = vmatprep.subr.mxu0 0.0
      %4453 = vmatpush1.msra.mxu0 0.0
      %4454 = vmatprep.subr.mxu0 0.0
      %4455 = vmatpush1.msra.mxu0 0.0
      %4456 = vmatprep.subr.mxu0 0.0
      %4457 = vmatpush1.msra.mxu0 0.0
      %4458 = vmatprep.subr.mxu0 0.0
      %4459 = vmatpush1.msra.mxu0 0.0
      %4460 = vmatprep.subr.mxu0 0.0
      %4461 = vmatpush1.msra.mxu0 0.0
      %4462 = vmatprep.subr.mxu0 0.0
      %4463 = vmatpush1.msra.mxu0 0.0
      %4464 = vmatprep.subr.mxu0 0.0
      %4465 = vmatpush1.msra.mxu0 0.0
      %4466 = vmatprep.subr.mxu0 0.0
      %4467 = vmatpush1.msra.mxu0 0.0
      %4468 = vmatprep.subr.mxu0 0.0
      %4469 = vmatpush1.msra.mxu0 0.0
      %4470 = vmatprep.subr.mxu0 0.0
      %4471 = vmatpush1.msra.mxu0 0.0
      %4472 = vmatprep.subr.mxu0 0.0
      %4473 = vmatpush1.msra.mxu0 0.0
      %4474 = vmatprep.subr.mxu0 0.0
      %4475 = vmatpush1.msra.mxu0 0.0
      %4476 = vmatprep.mubr.f32.mxu0 0.0
      %4477 = vmatmul.mubr.f32.gmra.mrb[0].mxu0 %v4407
      %v4478 = vpop.f32.mrb[0].mxu0
      %v4479 = vadd.f32 0.0, %v4478
      %v4480 = vpop.f32.mrb[0].mxu0
      %4481 = vmatprep.mubr.f32.mxu0 0.0
      %4482 = vmatmul.mubr.f32.gmra.mrb[0].mxu0 %v4410
      %v4483 = vpop.f32.mrb[0].mxu0
      %v4484 = vadd.f32 0.0, %v4483
      %v4485 = vpop.f32.mrb[0].mxu0
      %4486 = vdwg.mxu0
      %v4487 = vadd.f32 %v2571, %v4479
      %v4488 = vadd.f32 %v2572, %v4484
      %v4490 = vlaneseq
      %v4491 = vshrl.u32 %v4490, 7
      %v4492 = vsub.s32 0, %v4491
      %v4493 = vrot.slane %v2586, %v4492
      %v4495 = vadd.f32 %v4487, %v4493
      %v4496 = vadd.f32 %v4488, %v4493
      %v4497 = vsel %vm461, %v4495, 0.0
      %4498 = vadd.xlane.f32.xlu0 %v4497
      %v4499 = vpop.xlane.xlu0 %4498
      %v4500 = vsel %vm465, %v4496, 0.0
      %4501 = vadd.xlane.f32.xlu0 %v4500
      %v4502 = vpop.xlane.xlu0 %4501
      %v4503 = vmul.f32 %v4499, %v469
      %v4504 = vmul.f32 %v4502, %v469
      %v4505 = vsub.f32 %v4495, %v4503
      %v4506 = vsub.f32 %v4496, %v4504
      %v4507 = vmul.f32 %v4505, %v4505
      %v4508 = vmul.f32 %v4506, %v4506
      %v4509 = vsel %vm461, %v4507, 0.0
      %4510 = vadd.xlane.f32.xlu0 %v4509
      %v4511 = vpop.xlane.xlu0 %4510
      %v4512 = vsel %vm465, %v4508, 0.0
      %4513 = vadd.xlane.f32.xlu0 %v4512
      %v4514 = vpop.xlane.xlu0 %4513
      %v4515 = vmul.f32 %v4511, %v469
      %v4516 = vmul.f32 %v4514, %v469
      %v4517 = vadd.f32 %v4515, 1e-05
      %v4518 = vadd.f32 %v4516, 1e-05
      %v4519 = vrsqrt.pop %v4517
      %v4520 = vrsqrt.pop %v4518
      %v4521 = vmul.f32 %v4505, %v4519
      %v4522 = vmul.f32 %v4506, %v4520
      %v4524 = vlaneseq
      %v4525 = vshrl.u32 %v4524, 7
      %v4526 = vsub.s32 0, %v4525
      %v4527 = vrot.slane %v2593, %v4526
      %v4530 = vsel %vm461, %v4521, 0
      %v4533 = vsel %vm461, %v4522, 0
      %4535 = vmatprep.subr.mxu0 0.0
      %4536 = vmatpush1.msra.mxu0 %v2588
      %4537 = vmatprep.subr.mxu0 0.0
      %4538 = vmatpush1.msra.mxu0 %v2589
      %4539 = vmatprep.subr.mxu0 0.0
      %4540 = vmatpush1.msra.mxu0 %v2590
      %4541 = vmatprep.subr.mxu0 0.0
      %4542 = vmatpush1.msra.mxu0 %v2591
      %4543 = vmatprep.subr.mxu0 0.0
      %4544 = vmatpush1.msra.mxu0 0.0
      %4545 = vmatprep.subr.mxu0 0.0
      %4546 = vmatpush1.msra.mxu0 0.0
      %4547 = vmatprep.subr.mxu0 0.0
      %4548 = vmatpush1.msra.mxu0 0.0
      %4549 = vmatprep.subr.mxu0 0.0
      %4550 = vmatpush1.msra.mxu0 0.0
      %4551 = vmatprep.subr.mxu0 0.0
      %4552 = vmatpush1.msra.mxu0 0.0
      %4553 = vmatprep.subr.mxu0 0.0
      %4554 = vmatpush1.msra.mxu0 0.0
      %4555 = vmatprep.subr.mxu0 0.0
      %4556 = vmatpush1.msra.mxu0 0.0
      %4557 = vmatprep.subr.mxu0 0.0
      %4558 = vmatpush1.msra.mxu0 0.0
      %4559 = vmatprep.subr.mxu0 0.0
      %4560 = vmatpush1.msra.mxu0 0.0
      %4561 = vmatprep.subr.mxu0 0.0
      %4562 = vmatpush1.msra.mxu0 0.0
      %4563 = vmatprep.subr.mxu0 0.0
      %4564 = vmatpush1.msra.mxu0 0.0
      %4565 = vmatprep.subr.mxu0 0.0
      %4566 = vmatpush1.msra.mxu0 0.0
      %4567 = vmatprep.subr.mxu0 0.0
      %4568 = vmatpush1.msra.mxu0 0.0
      %4569 = vmatprep.subr.mxu0 0.0
      %4570 = vmatpush1.msra.mxu0 0.0
      %4571 = vmatprep.subr.mxu0 0.0
      %4572 = vmatpush1.msra.mxu0 0.0
      %4573 = vmatprep.subr.mxu0 0.0
      %4574 = vmatpush1.msra.mxu0 0.0
      %4575 = vmatprep.subr.mxu0 0.0
      %4576 = vmatpush1.msra.mxu0 0.0
      %4577 = vmatprep.subr.mxu0 0.0
      %4578 = vmatpush1.msra.mxu0 0.0
      %4579 = vmatprep.subr.mxu0 0.0
      %4580 = vmatpush1.msra.mxu0 0.0
      %4581 = vmatprep.subr.mxu0 0.0
      %4582 = vmatpush1.msra.mxu0 0.0
      %4583 = vmatprep.subr.mxu0 0.0
      %4584 = vmatpush1.msra.mxu0 0.0
      %4585 = vmatprep.subr.mxu0 0.0
      %4586 = vmatpush1.msra.mxu0 0.0
      %4587 = vmatprep.subr.mxu0 0.0
      %4588 = vmatpush1.msra.mxu0 0.0
      %4589 = vmatprep.subr.mxu0 0.0
      %4590 = vmatpush1.msra.mxu0 0.0
      %4591 = vmatprep.subr.mxu0 0.0
      %4592 = vmatpush1.msra.mxu0 0.0
      %4593 = vmatprep.subr.mxu0 0.0
      %4594 = vmatpush1.msra.mxu0 0.0
      %4595 = vmatprep.subr.mxu0 0.0
      %4596 = vmatpush1.msra.mxu0 0.0
      %4597 = vmatprep.subr.mxu0 0.0
      %4598 = vmatpush1.msra.mxu0 0.0
      %4599 = vmatprep.mubr.f32.mxu0 0.0
      %4600 = vmatmul.mubr.f32.gmra.mrb[0].mxu0 %v4530
      %v4601 = vpop.f32.mrb[0].mxu0
      %v4602 = vadd.f32 %v4527, %v4601
      %v4603 = vpop.f32.mrb[0].mxu0
      %4604 = vmatprep.mubr.f32.mxu0 0.0
      %4605 = vmatmul.mubr.f32.gmra.mrb[0].mxu0 %v4533
      %v4606 = vpop.f32.mrb[0].mxu0
      %v4607 = vadd.f32 %v4527, %v4606
      %v4608 = vpop.f32.mrb[0].mxu0
      %4609 = vdwg.mxu0
      %v4610 = vmul.f32 %v4602, 0.5
      %v4611 = vmul.f32 %v4607, 0.5
      %v4612 = vmul.f32 %v4602, 0.70710677
      %v4613 = vmul.f32 %v4607, 0.70710677
      %v4614 = verf.f32.pop %v4612
      %v4615 = verf.f32.pop %v4613
      %v4616 = vadd.f32 %v4614, 1.0
      %v4617 = vadd.f32 %v4615, 1.0
      %v4618 = vmul.f32 %v4610, %v4616
      %v4619 = vmul.f32 %v4611, %v4617
      %v4621 = vlaneseq
      %v4622 = vshrl.u32 %v4621, 7
      %v4623 = vsub.s32 0, %v4622
      %v4624 = vrot.slane %v2612, %v4623
      %4626 = vmatprep.subr.mxu0 0.0
      %4627 = vmatpush1.msra.mxu0 %v2595
      %4628 = vmatprep.subr.mxu0 0.0
      %4629 = vmatpush1.msra.mxu0 %v2596
      %4630 = vmatprep.subr.mxu0 0.0
      %4631 = vmatpush1.msra.mxu0 %v2597
      %4632 = vmatprep.subr.mxu0 0.0
      %4633 = vmatpush1.msra.mxu0 %v2598
      %4634 = vmatprep.subr.mxu0 0.0
      %4635 = vmatpush1.msra.mxu0 %v2599
      %4636 = vmatprep.subr.mxu0 0.0
      %4637 = vmatpush1.msra.mxu0 %v2600
      %4638 = vmatprep.subr.mxu0 0.0
      %4639 = vmatpush1.msra.mxu0 %v2601
      %4640 = vmatprep.subr.mxu0 0.0
      %4641 = vmatpush1.msra.mxu0 %v2602
      %4642 = vmatprep.subr.mxu0 0.0
      %4643 = vmatpush1.msra.mxu0 %v2603
      %4644 = vmatprep.subr.mxu0 0.0
      %4645 = vmatpush1.msra.mxu0 %v2604
      %4646 = vmatprep.subr.mxu0 0.0
      %4647 = vmatpush1.msra.mxu0 %v2605
      %4648 = vmatprep.subr.mxu0 0.0
      %4649 = vmatpush1.msra.mxu0 %v2606
      %4650 = vmatprep.subr.mxu0 0.0
      %4651 = vmatpush1.msra.mxu0 %v2607
      %4652 = vmatprep.subr.mxu0 0.0
      %4653 = vmatpush1.msra.mxu0 %v2608
      %4654 = vmatprep.subr.mxu0 0.0
      %4655 = vmatpush1.msra.mxu0 %v2609
      %4656 = vmatprep.subr.mxu0 0.0
      %4657 = vmatpush1.msra.mxu0 %v2610
      %4658 = vmatprep.subr.mxu0 0.0
      %4659 = vmatpush1.msra.mxu0 0.0
      %4660 = vmatprep.subr.mxu0 0.0
      %4661 = vmatpush1.msra.mxu0 0.0
      %4662 = vmatprep.subr.mxu0 0.0
      %4663 = vmatpush1.msra.mxu0 0.0
      %4664 = vmatprep.subr.mxu0 0.0
      %4665 = vmatpush1.msra.mxu0 0.0
      %4666 = vmatprep.subr.mxu0 0.0
      %4667 = vmatpush1.msra.mxu0 0.0
      %4668 = vmatprep.subr.mxu0 0.0
      %4669 = vmatpush1.msra.mxu0 0.0
      %4670 = vmatprep.subr.mxu0 0.0
      %4671 = vmatpush1.msra.mxu0 0.0
      %4672 = vmatprep.subr.mxu0 0.0
      %4673 = vmatpush1.msra.mxu0 0.0
      %4674 = vmatprep.subr.mxu0 0.0
      %4675 = vmatpush1.msra.mxu0 0.0
      %4676 = vmatprep.subr.mxu0 0.0
      %4677 = vmatpush1.msra.mxu0 0.0
      %4678 = vmatprep.subr.mxu0 0.0
      %4679 = vmatpush1.msra.mxu0 0.0
      %4680 = vmatprep.subr.mxu0 0.0
      %4681 = vmatpush1.msra.mxu0 0.0
      %4682 = vmatprep.subr.mxu0 0.0
      %4683 = vmatpush1.msra.mxu0 0.0
      %4684 = vmatprep.subr.mxu0 0.0
      %4685 = vmatpush1.msra.mxu0 0.0
      %4686 = vmatprep.subr.mxu0 0.0
      %4687 = vmatpush1.msra.mxu0 0.0
      %4688 = vmatprep.subr.mxu0 0.0
      %4689 = vmatpush1.msra.mxu0 0.0
      %4690 = vmatprep.mubr.f32.mxu0 0.0
      %4691 = vmatmul.mubr.f32.gmra.mrb[0].mxu0 %v4618
      %v4692 = vpop.f32.mrb[0].mxu0
      %v4693 = vadd.f32 %v4624, %v4692
      %v4694 = vpop.f32.mrb[0].mxu0
      %4695 = vmatprep.mubr.f32.mxu0 0.0
      %4696 = vmatmul.mubr.f32.gmra.mrb[0].mxu0 %v4619
      %v4697 = vpop.f32.mrb[0].mxu0
      %v4698 = vadd.f32 %v4624, %v4697
      %v4699 = vpop.f32.mrb[0].mxu0
      %4700 = vdwg.mxu0
      %v4701 = vadd.f32 %v4495, %v4693
      %v4702 = vadd.f32 %v4496, %v4698
      %4703 = vst.msk [vmem:[%s421] sm:$0xff] %vm461, %v4701
      %4704 = vst.msk [vmem:[%s421 + $0x8] sm:$0x1] %vm465, %v4702
      %v4705 = vsel %vm461, %v4701, 0.0
      %4706 = vadd.xlane.f32.xlu0 %v4705
      %v4707 = vpop.xlane.xlu0 %4706
      %v4708 = vsel %vm465, %v4702, 0.0
      %4709 = vadd.xlane.f32.xlu0 %v4708
      %v4710 = vpop.xlane.xlu0 %4709
      %v4711 = vmul.f32 %v4707, %v469
      %v4712 = vmul.f32 %v4710, %v469
      %v4713 = vsub.f32 %v4701, %v4711
      %v4714 = vsub.f32 %v4702, %v4712
      %v4715 = vmul.f32 %v4713, %v4713
      %v4716 = vmul.f32 %v4714, %v4714
      %v4717 = vsel %vm461, %v4715, 0.0
      %4718 = vadd.xlane.f32.xlu0 %v4717
      %v4719 = vpop.xlane.xlu0 %4718
      %v4720 = vsel %vm465, %v4716, 0.0
      %4721 = vadd.xlane.f32.xlu0 %v4720
      %v4722 = vpop.xlane.xlu0 %4721
      %v4723 = vmul.f32 %v4719, %v469
      %v4724 = vmul.f32 %v4722, %v469
      %v4725 = vadd.f32 %v4723, 1e-05
      %v4726 = vadd.f32 %v4724, 1e-05
      %v4727 = vrsqrt.pop %v4725
      %v4728 = vrsqrt.pop %v4726
      %v4729 = vmul.f32 %v4713, %v4727
      %v4730 = vmul.f32 %v4714, %v4728
      %v4731 = vld [vmem:[%s9] sm:$0xff]
      %v4732 = vld [vmem:[%s9 + $0x8] sm:$0xff]
      %v4733 = vld [vmem:[%s9 + $0x10] sm:$0xff]
      %v4734 = vld [vmem:[%s9 + $0x18] sm:$0xff]
      %v4735 = vld [vmem:[%s10] sm:$0x1]
      %v4737 = vlaneseq
      %v4738 = vshrl.u32 %v4737, 7
      %v4739 = vsub.s32 0, %v4738
      %v4740 = vrot.slane %v4735, %v4739
      %v4743 = vsel %vm461, %v4729, 0
      %v4746 = vsel %vm461, %v4730, 0
      %4748 = vmatprep.subr.mxu0 0.0
      %4749 = vmatpush1.msra.mxu0 %v4731
      %4750 = vmatprep.subr.mxu0 0.0
      %4751 = vmatpush1.msra.mxu0 %v4732
      %4752 = vmatprep.subr.mxu0 0.0
      %4753 = vmatpush1.msra.mxu0 %v4733
      %4754 = vmatprep.subr.mxu0 0.0
      %4755 = vmatpush1.msra.mxu0 %v4734
      %4756 = vmatprep.subr.mxu0 0.0
      %4757 = vmatpush1.msra.mxu0 0.0
      %4758 = vmatprep.subr.mxu0 0.0
      %4759 = vmatpush1.msra.mxu0 0.0
      %4760 = vmatprep.subr.mxu0 0.0
      %4761 = vmatpush1.msra.mxu0 0.0
      %4762 = vmatprep.subr.mxu0 0.0
      %4763 = vmatpush1.msra.mxu0 0.0
      %4764 = vmatprep.subr.mxu0 0.0
      %4765 = vmatpush1.msra.mxu0 0.0
      %4766 = vmatprep.subr.mxu0 0.0
      %4767 = vmatpush1.msra.mxu0 0.0
      %4768 = vmatprep.subr.mxu0 0.0
      %4769 = vmatpush1.msra.mxu0 0.0
      %4770 = vmatprep.subr.mxu0 0.0
      %4771 = vmatpush1.msra.mxu0 0.0
      %4772 = vmatprep.subr.mxu0 0.0
      %4773 = vmatpush1.msra.mxu0 0.0
      %4774 = vmatprep.subr.mxu0 0.0
      %4775 = vmatpush1.msra.mxu0 0.0
      %4776 = vmatprep.subr.mxu0 0.0
      %4777 = vmatpush1.msra.mxu0 0.0
      %4778 = vmatprep.subr.mxu0 0.0
      %4779 = vmatpush1.msra.mxu0 0.0
      %4780 = vmatprep.subr.mxu0 0.0
      %4781 = vmatpush1.msra.mxu0 0.0
      %4782 = vmatprep.subr.mxu0 0.0
      %4783 = vmatpush1.msra.mxu0 0.0
      %4784 = vmatprep.subr.mxu0 0.0
      %4785 = vmatpush1.msra.mxu0 0.0
      %4786 = vmatprep.subr.mxu0 0.0
      %4787 = vmatpush1.msra.mxu0 0.0
      %4788 = vmatprep.subr.mxu0 0.0
      %4789 = vmatpush1.msra.mxu0 0.0
      %4790 = vmatprep.subr.mxu0 0.0
      %4791 = vmatpush1.msra.mxu0 0.0
      %4792 = vmatprep.subr.mxu0 0.0
      %4793 = vmatpush1.msra.mxu0 0.0
      %4794 = vmatprep.subr.mxu0 0.0
      %4795 = vmatpush1.msra.mxu0 0.0
      %4796 = vmatprep.subr.mxu0 0.0
      %4797 = vmatpush1.msra.mxu0 0.0
      %4798 = vmatprep.subr.mxu0 0.0
      %4799 = vmatpush1.msra.mxu0 0.0
      %4800 = vmatprep.subr.mxu0 0.0
      %4801 = vmatpush1.msra.mxu0 0.0
      %4802 = vmatprep.subr.mxu0 0.0
      %4803 = vmatpush1.msra.mxu0 0.0
      %4804 = vmatprep.subr.mxu0 0.0
      %4805 = vmatpush1.msra.mxu0 0.0
      %4806 = vmatprep.subr.mxu0 0.0
      %4807 = vmatpush1.msra.mxu0 0.0
      %4808 = vmatprep.subr.mxu0 0.0
      %4809 = vmatpush1.msra.mxu0 0.0
      %4810 = vmatprep.subr.mxu0 0.0
      %4811 = vmatpush1.msra.mxu0 0.0
      %4812 = vmatprep.mubr.f32.mxu0 0.0
      %4813 = vmatmul.mubr.f32.gmra.mrb[0].mxu0 %v4743
      %v4814 = vpop.f32.mrb[0].mxu0
      %v4815 = vadd.f32 %v4740, %v4814
      %v4816 = vpop.f32.mrb[0].mxu0
      %4817 = vmatprep.mubr.f32.mxu0 0.0
      %4818 = vmatmul.mubr.f32.gmra.mrb[0].mxu0 %v4746
      %v4819 = vpop.f32.mrb[0].mxu0
      %v4820 = vadd.f32 %v4740, %v4819
      %v4821 = vpop.f32.mrb[0].mxu0
      %4822 = vdwg.mxu0
      %4823 = vst.msk [vmem:[%s426] sm:$0xff] %vm461, %v4815
      %4824 = vst.msk [vmem:[%s426 + $0x8] sm:$0x1] %vm465, %v4820
      %p4825 = scmp.lt.s32.totalorder %s24, 1
      %s4826 = scalar_select %p4825, %s24, 1
      %s4827 = smul.addr %s4826, 2
      %s4828 = smul.addr %s4827, 8
      %s4829 = scalar_lea.vmem %s11, %s4828
      %p4830 = scmp.lt.s32.totalorder %s24, 1
      %s4831 = scalar_select %p4830, %s24, 1
      %s4832 = smul.addr %s4831, 2
      %s4833 = smul.addr %s4832, 8
      %s4834 = scalar_lea.vmem %s12, %s4833
      // Predicated region
      $region65: #{_forward_core.4} parent=63 // pred_check
        %p4835 = pneg %p278
      $region66: #{_forward_core.4} parent=63 // pred_check_branch
        %4837 = sbr.rel (%p4835) target = $region68
      $region67: #{_forward_core.4} parent=63 // pred_region
        _
      $region68: #{_forward_core.4} parent=63 // pred_fallthru
        _
      // Predicated region
      $region69: #{_forward_core.4} parent=63 // pred_check
        %p4838 = pneg %p304
      $region70: #{_forward_core.4} parent=63 // pred_check_branch
        %4840 = sbr.rel (%p4838) target = $region72
      $region71: #{_forward_core.4} parent=63 // pred_region
        _
      $region72: #{_forward_core.4} parent=63 // pred_fallthru
        _
    $region64: #{_forward_core.4} parent=5 // pred_fallthru
      _
    %p4841 = scmp.le.s32.totalorder 2, %s19
    // Predicated region
    $region73: #{_forward_core.4} parent=5 // pred_check
      %p4842 = pneg %p4841
    $region74: #{_forward_core.4} parent=5 // pred_check_branch
      %4844 = sbr.rel (%p4842) target = $region76
    $region75: #{_forward_core.4} parent=5 // pred_region
      %s4845 = ssub.s32 %s19, 2
      // Predicated region
      $region77: #{_forward_core.4} parent=75 // pred_check
        %p4846 = pneg %p284
      $region78: #{_forward_core.4} parent=75 // pred_check_branch
        %4848 = sbr.rel (%p4846) target = $region80
      $region79: #{_forward_core.4} parent=75 // pred_region
        %p4849 = scmp.lt.s32.totalorder %s25, 1
        %s4850 = scalar_select %p4849, %s25, 1
        %s4851 = smul.addr %s4850, 2
        %s4852 = smul.addr %s4851, 8
        %s4853 = scalar_lea.vmem %s11, %s4852
      $region80: #{_forward_core.4} parent=75 // pred_fallthru
        _
      // Predicated region
      $region81: #{_forward_core.4} parent=75 // pred_check
        %p4854 = pneg %p310
      $region82: #{_forward_core.4} parent=75 // pred_check_branch
        %4856 = sbr.rel (%p4854) target = $region84
      $region83: #{_forward_core.4} parent=75 // pred_region
        %p4857 = scmp.lt.s32.totalorder %s25, 1
        %s4858 = scalar_select %p4857, %s25, 1
        %s4859 = smul.addr %s4858, 2
        %s4860 = smul.addr %s4859, 8
        %s4861 = scalar_lea.vmem %s12, %s4860
      $region84: #{_forward_core.4} parent=75 // pred_fallthru
        _
    $region76: #{_forward_core.4} parent=5 // pred_fallthru
      _
  $region6: #{_forward_core.4} parent=0 // loop_footer
    %s23 = sadd.s32 1, %s19
  $region7: #{_forward_core.4} parent=0 // loop_footer_branch
    %18 = sbr.rel target = $region3
  $region8: #{_forward_core.4} parent=0 // loop_exit
    _

// kernel: _forward_core.5
$region0: #{_forward_core.5}
  #allocation0 [shape = 'u32[]', space=smem, size = 0x4, offset = 0x4, fixed_abs, tag = 'smem constant byte address 0x4 - core index']
  #allocation1 [shape = 'u32[144,128]{1,0:T(1,128)}', space=vmem, size = 0x12000, scoped, tag = 'internal scratch']
  #allocation2 [shape = 'f32[9,32]{1,0:T(8,128)}', space=vmem, size = 0x2000, scoped, tag = 'scratch operand']
  %s0 = inlined_call_operand.vmem [shape: f32[2,9,32], index: 0, kind: input, shape index: {}]
  %s1 = inlined_call_operand.vmem [shape: f32[1,32,96], index: 1, kind: input, shape index: {}]
  %s2 = inlined_call_operand.vmem [shape: f32[1,1,96], index: 2, kind: input, shape index: {}]
  %s3 = inlined_call_operand.vmem [shape: f32[1,32,32], index: 3, kind: input, shape index: {}]
  %s4 = inlined_call_operand.vmem [shape: f32[1,1,32], index: 4, kind: input, shape index: {}]
  %s5 = inlined_call_operand.vmem [shape: f32[1,32,128], index: 5, kind: input, shape index: {}]
  %s6 = inlined_call_operand.vmem [shape: f32[1,1,128], index: 6, kind: input, shape index: {}]
  %s7 = inlined_call_operand.vmem [shape: f32[1,128,32], index: 7, kind: input, shape index: {}]
  %s8 = inlined_call_operand.vmem [shape: f32[1,1,32], index: 8, kind: input, shape index: {}]
  %s9 = inlined_call_operand.vmem [shape: f32[32,48], index: 9, kind: input, shape index: {}]
  %s10 = inlined_call_operand.vmem [shape: f32[1,48], index: 10, kind: input, shape index: {}]
  %s11 = inlined_call_operand.vmem [shape: f32[2,9,32], index: 11, kind: output, shape index: {0}]
  %s12 = inlined_call_operand.vmem [shape: f32[2,9,48], index: 12, kind: output, shape index: {1}]
  %13 = xla_tuple %s11, %s12
  %s14 = sld [smem:[#allocation0]]
  $region85: #{_forward_core.5} parent=0
    _
  %s16 = ssub.s32 1, %s14
  %s17 = scalar_select 0, %s16, %s14
  loop: start=0, step=1, limit=4
  $region2: #{_forward_core.5} parent=0 // loop_pre_header
    _
  $region3: #{_forward_core.5} parent=0 // loop_header
    %s19 = sphi 0, %s23
    %p20 = scmp.ge.s32.totalorder %s19, 4
    %s29 = sphi 0, %s31
    %s32 = sphi 0, %s29
    %s33 = sphi 0, %s32
    %s49 = sphi 0, %s33
    %s53 = sphi 0, %s53
    %s55 = sphi 0, %s53
    %s56 = sphi 0, %s55
    %s70 = sphi 0, %s56
    %s74 = sphi 0, %s74
    %s76 = sphi 0, %s74
    %s77 = sphi 0, %s76
    %s91 = sphi 0, %s77
    %s95 = sphi 0, %s95
    %s97 = sphi 0, %s95
    %s98 = sphi 0, %s97
    %s112 = sphi 0, %s98
    %s116 = sphi 0, %s116
    %s118 = sphi 0, %s116
    %s119 = sphi 0, %s118
    %s133 = sphi 0, %s119
    %s137 = sphi 0, %s137
    %s139 = sphi 0, %s137
    %s140 = sphi 0, %s139
    %s154 = sphi 0, %s140
    %s158 = sphi 0, %s158
    %s160 = sphi 0, %s158
    %s161 = sphi 0, %s160
    %s175 = sphi 0, %s161
    %s179 = sphi 0, %s179
    %s181 = sphi 0, %s179
    %s182 = sphi 0, %s181
    %s196 = sphi 0, %s182
    %s200 = sphi 0, %s200
    %s202 = sphi 0, %s200
    %s203 = sphi 0, %s202
    %s217 = sphi 0, %s203
    %s221 = sphi 0, %s221
    %s223 = sphi 0, %s221
    %s224 = sphi 0, %s223
    %s238 = sphi 0, %s224
    %s242 = sphi 0, %s242
    %s244 = sphi 0, %s242
    %s245 = sphi 0, %s244
    %s259 = sphi 0, %s245
    %s265 = sphi 0, %s267
    %s268 = sphi 0, %s265
    %s269 = sphi 0, %s268
    %s285 = sphi 0, %s269
    %s291 = sphi 0, %s293
    %s294 = sphi 0, %s291
    %s295 = sphi 0, %s294
    %s311 = sphi 0, %s295
  $region4: #{_forward_core.5} parent=0 // loop_header_branch
    %22 = sbr.rel (%p20) target = $region8
  $region5: #{_forward_core.5} parent=0 // loop_body
    %s24 = ssub.s32 %s19, 1
    %s25 = ssub.s32 %s19, 2
    %s26 = sadd.s32 %s19, 1
    %s27 = ssub.s32 %s19, %s26
    %p28 = scmp.eq.s32.totalorder %s27, 0
    %s30 = sadd.s32 %s29, 1
    %s31 = scalar_select %p28, %s29, %s30
    %p34 = pneg %p28
    %p35 = scmp.eq.s32.totalorder %s19, 1
    %p36 = por %p34, %p35
    %p37 = scmp.ne.s32.totalorder %s29, %s32
    %p38 = scmp.eq.s32.totalorder %s19, 0
    %p39 = por %p37, %p38
    %p40 = scmp.ne.s32.totalorder %s29, %s32
    %p41 = scmp.eq.s32.totalorder %s24, 1
    %p42 = por %p40, %p41
    %p43 = scmp.ne.s32.totalorder %s32, %s33
    %p44 = scmp.eq.s32.totalorder %s24, 0
    %p45 = por %p43, %p44
    %p46 = scmp.ne.s32.totalorder %s32, %s33
    %p47 = scmp.eq.s32.totalorder %s25, 1
    %p48 = por %p46, %p47
    %p50 = scmp.ne.s32.totalorder %s33, %s49
    %p51 = scmp.eq.s32.totalorder %s25, 0
    %p52 = por %p50, %p51
    %s54 = sadd.s32 %s53, 1
    %p57 = scmp.eq.s32.totalorder %s19, 1
    %p58 = scmp.ne.s32.totalorder %s53, %s55
    %p59 = scmp.eq.s32.totalorder %s19, 0
    %p60 = por %p58, %p59
    %p61 = scmp.ne.s32.totalorder %s53, %s55
    %p62 = scmp.eq.s32.totalorder %s24, 1
    %p63 = por %p61, %p62
    %p64 = scmp.ne.s32.totalorder %s55, %s56
    %p65 = scmp.eq.s32.totalorder %s24, 0
    %p66 = por %p64, %p65
    %p67 = scmp.ne.s32.totalorder %s55, %s56
    %p68 = scmp.eq.s32.totalorder %s25, 1
    %p69 = por %p67, %p68
    %p71 = scmp.ne.s32.totalorder %s56, %s70
    %p72 = scmp.eq.s32.totalorder %s25, 0
    %p73 = por %p71, %p72
    %s75 = sadd.s32 %s74, 1
    %p78 = scmp.eq.s32.totalorder %s19, 1
    %p79 = scmp.ne.s32.totalorder %s74, %s76
    %p80 = scmp.eq.s32.totalorder %s19, 0
    %p81 = por %p79, %p80
    %p82 = scmp.ne.s32.totalorder %s74, %s76
    %p83 = scmp.eq.s32.totalorder %s24, 1
    %p84 = por %p82, %p83
    %p85 = scmp.ne.s32.totalorder %s76, %s77
    %p86 = scmp.eq.s32.totalorder %s24, 0
    %p87 = por %p85, %p86
    %p88 = scmp.ne.s32.totalorder %s76, %s77
    %p89 = scmp.eq.s32.totalorder %s25, 1
    %p90 = por %p88, %p89
    %p92 = scmp.ne.s32.totalorder %s77, %s91
    %p93 = scmp.eq.s32.totalorder %s25, 0
    %p94 = por %p92, %p93
    %s96 = sadd.s32 %s95, 1
    %p99 = scmp.eq.s32.totalorder %s19, 1
    %p100 = scmp.ne.s32.totalorder %s95, %s97
    %p101 = scmp.eq.s32.totalorder %s19, 0
    %p102 = por %p100, %p101
    %p103 = scmp.ne.s32.totalorder %s95, %s97
    %p104 = scmp.eq.s32.totalorder %s24, 1
    %p105 = por %p103, %p104
    %p106 = scmp.ne.s32.totalorder %s97, %s98
    %p107 = scmp.eq.s32.totalorder %s24, 0
    %p108 = por %p106, %p107
    %p109 = scmp.ne.s32.totalorder %s97, %s98
    %p110 = scmp.eq.s32.totalorder %s25, 1
    %p111 = por %p109, %p110
    %p113 = scmp.ne.s32.totalorder %s98, %s112
    %p114 = scmp.eq.s32.totalorder %s25, 0
    %p115 = por %p113, %p114
    %s117 = sadd.s32 %s116, 1
    %p120 = scmp.eq.s32.totalorder %s19, 1
    %p121 = scmp.ne.s32.totalorder %s116, %s118
    %p122 = scmp.eq.s32.totalorder %s19, 0
    %p123 = por %p121, %p122
    %p124 = scmp.ne.s32.totalorder %s116, %s118
    %p125 = scmp.eq.s32.totalorder %s24, 1
    %p126 = por %p124, %p125
    %p127 = scmp.ne.s32.totalorder %s118, %s119
    %p128 = scmp.eq.s32.totalorder %s24, 0
    %p129 = por %p127, %p128
    %p130 = scmp.ne.s32.totalorder %s118, %s119
    %p131 = scmp.eq.s32.totalorder %s25, 1
    %p132 = por %p130, %p131
    %p134 = scmp.ne.s32.totalorder %s119, %s133
    %p135 = scmp.eq.s32.totalorder %s25, 0
    %p136 = por %p134, %p135
    %s138 = sadd.s32 %s137, 1
    %p141 = scmp.eq.s32.totalorder %s19, 1
    %p142 = scmp.ne.s32.totalorder %s137, %s139
    %p143 = scmp.eq.s32.totalorder %s19, 0
    %p144 = por %p142, %p143
    %p145 = scmp.ne.s32.totalorder %s137, %s139
    %p146 = scmp.eq.s32.totalorder %s24, 1
    %p147 = por %p145, %p146
    %p148 = scmp.ne.s32.totalorder %s139, %s140
    %p149 = scmp.eq.s32.totalorder %s24, 0
    %p150 = por %p148, %p149
    %p151 = scmp.ne.s32.totalorder %s139, %s140
    %p152 = scmp.eq.s32.totalorder %s25, 1
    %p153 = por %p151, %p152
    %p155 = scmp.ne.s32.totalorder %s140, %s154
    %p156 = scmp.eq.s32.totalorder %s25, 0
    %p157 = por %p155, %p156
    %s159 = sadd.s32 %s158, 1
    %p162 = scmp.eq.s32.totalorder %s19, 1
    %p163 = scmp.ne.s32.totalorder %s158, %s160
    %p164 = scmp.eq.s32.totalorder %s19, 0
    %p165 = por %p163, %p164
    %p166 = scmp.ne.s32.totalorder %s158, %s160
    %p167 = scmp.eq.s32.totalorder %s24, 1
    %p168 = por %p166, %p167
    %p169 = scmp.ne.s32.totalorder %s160, %s161
    %p170 = scmp.eq.s32.totalorder %s24, 0
    %p171 = por %p169, %p170
    %p172 = scmp.ne.s32.totalorder %s160, %s161
    %p173 = scmp.eq.s32.totalorder %s25, 1
    %p174 = por %p172, %p173
    %p176 = scmp.ne.s32.totalorder %s161, %s175
    %p177 = scmp.eq.s32.totalorder %s25, 0
    %p178 = por %p176, %p177
    %s180 = sadd.s32 %s179, 1
    %p183 = scmp.eq.s32.totalorder %s19, 1
    %p184 = scmp.ne.s32.totalorder %s179, %s181
    %p185 = scmp.eq.s32.totalorder %s19, 0
    %p186 = por %p184, %p185
    %p187 = scmp.ne.s32.totalorder %s179, %s181
    %p188 = scmp.eq.s32.totalorder %s24, 1
    %p189 = por %p187, %p188
    %p190 = scmp.ne.s32.totalorder %s181, %s182
    %p191 = scmp.eq.s32.totalorder %s24, 0
    %p192 = por %p190, %p191
    %p193 = scmp.ne.s32.totalorder %s181, %s182
    %p194 = scmp.eq.s32.totalorder %s25, 1
    %p195 = por %p193, %p194
    %p197 = scmp.ne.s32.totalorder %s182, %s196
    %p198 = scmp.eq.s32.totalorder %s25, 0
    %p199 = por %p197, %p198
    %s201 = sadd.s32 %s200, 1
    %p204 = scmp.eq.s32.totalorder %s19, 1
    %p205 = scmp.ne.s32.totalorder %s200, %s202
    %p206 = scmp.eq.s32.totalorder %s19, 0
    %p207 = por %p205, %p206
    %p208 = scmp.ne.s32.totalorder %s200, %s202
    %p209 = scmp.eq.s32.totalorder %s24, 1
    %p210 = por %p208, %p209
    %p211 = scmp.ne.s32.totalorder %s202, %s203
    %p212 = scmp.eq.s32.totalorder %s24, 0
    %p213 = por %p211, %p212
    %p214 = scmp.ne.s32.totalorder %s202, %s203
    %p215 = scmp.eq.s32.totalorder %s25, 1
    %p216 = por %p214, %p215
    %p218 = scmp.ne.s32.totalorder %s203, %s217
    %p219 = scmp.eq.s32.totalorder %s25, 0
    %p220 = por %p218, %p219
    %s222 = sadd.s32 %s221, 1
    %p225 = scmp.eq.s32.totalorder %s19, 1
    %p226 = scmp.ne.s32.totalorder %s221, %s223
    %p227 = scmp.eq.s32.totalorder %s19, 0
    %p228 = por %p226, %p227
    %p229 = scmp.ne.s32.totalorder %s221, %s223
    %p230 = scmp.eq.s32.totalorder %s24, 1
    %p231 = por %p229, %p230
    %p232 = scmp.ne.s32.totalorder %s223, %s224
    %p233 = scmp.eq.s32.totalorder %s24, 0
    %p234 = por %p232, %p233
    %p235 = scmp.ne.s32.totalorder %s223, %s224
    %p236 = scmp.eq.s32.totalorder %s25, 1
    %p237 = por %p235, %p236
    %p239 = scmp.ne.s32.totalorder %s224, %s238
    %p240 = scmp.eq.s32.totalorder %s25, 0
    %p241 = por %p239, %p240
    %s243 = sadd.s32 %s242, 1
    %p246 = scmp.eq.s32.totalorder %s19, 1
    %p247 = scmp.ne.s32.totalorder %s242, %s244
    %p248 = scmp.eq.s32.totalorder %s19, 0
    %p249 = por %p247, %p248
    %p250 = scmp.ne.s32.totalorder %s242, %s244
    %p251 = scmp.eq.s32.totalorder %s24, 1
    %p252 = por %p250, %p251
    %p253 = scmp.ne.s32.totalorder %s244, %s245
    %p254 = scmp.eq.s32.totalorder %s24, 0
    %p255 = por %p253, %p254
    %p256 = scmp.ne.s32.totalorder %s244, %s245
    %p257 = scmp.eq.s32.totalorder %s25, 1
    %p258 = por %p256, %p257
    %p260 = scmp.ne.s32.totalorder %s245, %s259
    %p261 = scmp.eq.s32.totalorder %s25, 0
    %p262 = por %p260, %p261
    %s263 = ssub.s32 %s19, %s26
    %p264 = scmp.eq.s32.totalorder %s263, 0
    %s266 = sadd.s32 %s265, 1
    %s267 = scalar_select %p264, %s265, %s266
    %p270 = pneg %p264
    %p271 = scmp.eq.s32.totalorder %s19, 1
    %p272 = por %p270, %p271
    %p273 = scmp.ne.s32.totalorder %s265, %s268
    %p274 = scmp.eq.s32.totalorder %s19, 0
    %p275 = por %p273, %p274
    %p276 = scmp.ne.s32.totalorder %s265, %s268
    %p277 = scmp.eq.s32.totalorder %s24, 1
    %p278 = por %p276, %p277
    %p279 = scmp.ne.s32.totalorder %s268, %s269
    %p280 = scmp.eq.s32.totalorder %s24, 0
    %p281 = por %p279, %p280
    %p282 = scmp.ne.s32.totalorder %s268, %s269
    %p283 = scmp.eq.s32.totalorder %s25, 1
    %p284 = por %p282, %p283
    %p286 = scmp.ne.s32.totalorder %s269, %s285
    %p287 = scmp.eq.s32.totalorder %s25, 0
    %p288 = por %p286, %p287
    %s289 = ssub.s32 %s19, %s26
    %p290 = scmp.eq.s32.totalorder %s289, 0
    %s292 = sadd.s32 %s291, 1
    %s293 = scalar_select %p290, %s291, %s292
    %p296 = pneg %p290
    %p297 = scmp.eq.s32.totalorder %s19, 1
    %p298 = por %p296, %p297
    %p299 = scmp.ne.s32.totalorder %s291, %s294
    %p300 = scmp.eq.s32.totalorder %s19, 0
    %p301 = por %p299, %p300
    %p302 = scmp.ne.s32.totalorder %s291, %s294
    %p303 = scmp.eq.s32.totalorder %s24, 1
    %p304 = por %p302, %p303
    %p305 = scmp.ne.s32.totalorder %s294, %s295
    %p306 = scmp.eq.s32.totalorder %s24, 0
    %p307 = por %p305, %p306
    %p308 = scmp.ne.s32.totalorder %s294, %s295
    %p309 = scmp.eq.s32.totalorder %s25, 1
    %p310 = por %p308, %p309
    %p312 = scmp.ne.s32.totalorder %s295, %s311
    %p313 = scmp.eq.s32.totalorder %s25, 0
    %p314 = por %p312, %p313
    %p315 = scmp.le.s32.totalorder 1, %s19
    %p316 = scmp.lt.s32.totalorder %s19, 3
    %p317 = pnand %p315, %p316
    %p318 = pneg %p317
    // Predicated region
    $region9: #{_forward_core.5} parent=5 // pred_check
      _
    $region10: #{_forward_core.5} parent=5 // pred_check_branch
      %320 = sbr.rel (%p317) target = $region12
    $region11: #{_forward_core.5} parent=5 // pred_region
      %s321 = ssub.s32 %s19, 1
      // Predicated region
      $region13: #{_forward_core.5} parent=11 // pred_check
        %p322 = pneg %p66
      $region14: #{_forward_core.5} parent=11 // pred_check_branch
        %324 = sbr.rel (%p322) target = $region16
      $region15: #{_forward_core.5} parent=11 // pred_region
        _
      $region16: #{_forward_core.5} parent=11 // pred_fallthru
        _
      // Predicated region
      $region17: #{_forward_core.5} parent=11 // pred_check
        %p325 = pneg %p87
      $region18: #{_forward_core.5} parent=11 // pred_check_branch
        %327 = sbr.rel (%p325) target = $region20
      $region19: #{_forward_core.5} parent=11 // pred_region
        _
      $region20: #{_forward_core.5} parent=11 // pred_fallthru
        _
      // Predicated region
      $region21: #{_forward_core.5} parent=11 // pred_check
        %p328 = pneg %p108
      $region22: #{_forward_core.5} parent=11 // pred_check_branch
        %330 = sbr.rel (%p328) target = $region24
      $region23: #{_forward_core.5} parent=11 // pred_region
        _
      $region24: #{_forward_core.5} parent=11 // pred_fallthru
        _
      // Predicated region
      $region25: #{_forward_core.5} parent=11 // pred_check
        %p331 = pneg %p129
      $region26: #{_forward_core.5} parent=11 // pred_check_branch
        %333 = sbr.rel (%p331) target = $region28
      $region27: #{_forward_core.5} parent=11 // pred_region
        _
      $region28: #{_forward_core.5} parent=11 // pred_fallthru
        _
      // Predicated region
      $region29: #{_forward_core.5} parent=11 // pred_check
        %p334 = pneg %p150
      $region30: #{_forward_core.5} parent=11 // pred_check_branch
        %336 = sbr.rel (%p334) target = $region32
      $region31: #{_forward_core.5} parent=11 // pred_region
        _
      $region32: #{_forward_core.5} parent=11 // pred_fallthru
        _
      // Predicated region
      $region33: #{_forward_core.5} parent=11 // pred_check
        %p337 = pneg %p171
      $region34: #{_forward_core.5} parent=11 // pred_check_branch
        %339 = sbr.rel (%p337) target = $region36
      $region35: #{_forward_core.5} parent=11 // pred_region
        _
      $region36: #{_forward_core.5} parent=11 // pred_fallthru
        _
      // Predicated region
      $region37: #{_forward_core.5} parent=11 // pred_check
        %p340 = pneg %p192
      $region38: #{_forward_core.5} parent=11 // pred_check_branch
        %342 = sbr.rel (%p340) target = $region40
      $region39: #{_forward_core.5} parent=11 // pred_region
        _
      $region40: #{_forward_core.5} parent=11 // pred_fallthru
        _
      // Predicated region
      $region41: #{_forward_core.5} parent=11 // pred_check
        %p343 = pneg %p213
      $region42: #{_forward_core.5} parent=11 // pred_check_branch
        %345 = sbr.rel (%p343) target = $region44
      $region43: #{_forward_core.5} parent=11 // pred_region
        _
      $region44: #{_forward_core.5} parent=11 // pred_fallthru
        _
      // Predicated region
      $region45: #{_forward_core.5} parent=11 // pred_check
        %p346 = pneg %p234
      $region46: #{_forward_core.5} parent=11 // pred_check_branch
        %348 = sbr.rel (%p346) target = $region48
      $region47: #{_forward_core.5} parent=11 // pred_region
        _
      $region48: #{_forward_core.5} parent=11 // pred_fallthru
        _
      // Predicated region
      $region49: #{_forward_core.5} parent=11 // pred_check
        %p349 = pneg %p255
      $region50: #{_forward_core.5} parent=11 // pred_check_branch
        %351 = sbr.rel (%p349) target = $region52
      $region51: #{_forward_core.5} parent=11 // pred_region
        _
      $region52: #{_forward_core.5} parent=11 // pred_fallthru
        _
    $region12: #{_forward_core.5} parent=5 // pred_fallthru
      _
    %p352 = scmp.lt.s32.totalorder %s19, 2
    // Predicated region
    $region53: #{_forward_core.5} parent=5 // pred_check
      %p353 = pneg %p352
    $region54: #{_forward_core.5} parent=5 // pred_check_branch
      %355 = sbr.rel (%p353) target = $region56
    $region55: #{_forward_core.5} parent=5 // pred_region
      // Predicated region
      $region57: #{_forward_core.5} parent=55 // pred_check
        %p356 = pneg %p39
      $region58: #{_forward_core.5} parent=55 // pred_check_branch
        %358 = sbr.rel (%p356) target = $region60
      $region59: #{_forward_core.5} parent=55 // pred_region
        %p359 = scmp.lt.s32.totalorder %s19, 1
        %s360 = scalar_select %p359, %s19, 1
        %s361 = smul.addr %s360, 2
        %s362 = smul.addr %s361, 8
        %s363 = scalar_lea.vmem %s0, %s362
      $region60: #{_forward_core.5} parent=55 // pred_fallthru
        _
    $region56: #{_forward_core.5} parent=5 // pred_fallthru
      _
    %p364 = scmp.le.s32.totalorder 1, %s19
    %p365 = scmp.lt.s32.totalorder %s19, 3
    %p366 = pnand %p364, %p365
    %p367 = pneg %p366
    // Predicated region
    $region61: #{_forward_core.5} parent=5 // pred_check
      _
    $region62: #{_forward_core.5} parent=5 // pred_check_branch
      %369 = sbr.rel (%p366) target = $region64
    $region63: #{_forward_core.5} parent=5 // pred_region
      %s370 = ssub.s32 %s19, 1
      %p371 = scmp.lt.s32.totalorder %s24, 1
      %s372 = scalar_select %p371, %s24, 1
      %s373 = smul.addr %s372, 2
      %s374 = smul.addr %s373, 8
      %s375 = scalar_lea.vmem %s0, %s374
      %p376 = pneg %p45
      %p377 = pneg %p42
      %p378 = pneg %p66
      %p379 = pneg %p63
      %p380 = pneg %p87
      %p381 = pneg %p84
      %p382 = pneg %p108
      %p383 = pneg %p105
      %p384 = pneg %p129
      %p385 = pneg %p126
      %p386 = pneg %p150
      %p387 = pneg %p147
      %p388 = pneg %p171
      %p389 = pneg %p168
      %p390 = pneg %p192
      %p391 = pneg %p189
      %p392 = pneg %p213
      %p393 = pneg %p210
      %p394 = pneg %p234
      %p395 = pneg %p231
      %p396 = pneg %p255
      %p397 = pneg %p252
      %p398 = pneg %p281
      %p399 = pneg %p278
      %p400 = scmp.lt.s32.totalorder %s24, 1
      %s401 = scalar_select %p400, %s24, 1
      %s402 = smul.addr %s401, 2
      %s403 = smul.addr %s402, 8
      %s404 = scalar_lea.vmem %s11, %s403
      %p405 = pneg %p307
      %p406 = pneg %p304
      %p407 = scmp.lt.s32.totalorder %s24, 1
      %s408 = scalar_select %p407, %s24, 1
      %s409 = smul.addr %s408, 2
      %s410 = smul.addr %s409, 8
      %s411 = scalar_lea.vmem %s12, %s410
      %p412 = scmp.lt.s32.totalorder %s24, 1
      %s413 = scalar_select %p412, %s24, 1
      %s414 = smul.addr %s413, 2
      %s415 = smul.addr %s414, 8
      %s416 = scalar_lea.vmem %s0, %s415
      %p417 = scmp.lt.s32.totalorder %s24, 1
      %s418 = scalar_select %p417, %s24, 1
      %s419 = smul.addr %s418, 2
      %s420 = smul.addr %s419, 8
      %s421 = scalar_lea.vmem %s11, %s420
      %p422 = scmp.lt.s32.totalorder %s24, 1
      %s423 = scalar_select %p422, %s24, 1
      %s424 = smul.addr %s423, 2
      %s425 = smul.addr %s424, 8
      %s426 = scalar_lea.vmem %s12, %s425
      %v427 = vld [vmem:[%s416] sm:$0xff]
      %v428 = vld [vmem:[%s416 + $0x8] sm:$0x1]
      %v429 = vld [vmem:[%s1] sm:$0xff]
      %v430 = vld [vmem:[%s1 + $0x8] sm:$0xff]
      %v431 = vld [vmem:[%s1 + $0x10] sm:$0xff]
      %v432 = vld [vmem:[%s1 + $0x18] sm:$0xff]
      %v433 = vld [vmem:[%s2] sm:$0x1]
      %v434 = vld [vmem:[%s3] sm:$0xff]
      %v435 = vld [vmem:[%s3 + $0x8] sm:$0xff]
      %v436 = vld [vmem:[%s3 + $0x10] sm:$0xff]
      %v437 = vld [vmem:[%s3 + $0x18] sm:$0xff]
      %v438 = vld [vmem:[%s4] sm:$0x1]
      %v439 = vld [vmem:[%s5] sm:$0xff]
      %v440 = vld [vmem:[%s5 + $0x8] sm:$0xff]
      %v441 = vld [vmem:[%s5 + $0x10] sm:$0xff]
      %v442 = vld [vmem:[%s5 + $0x18] sm:$0xff]
      %v443 = vld [vmem:[%s6] sm:$0x1]
      %v444 = vld [vmem:[%s7] sm:$0xff]
      %v445 = vld [vmem:[%s7 + $0x8] sm:$0xff]
      %v446 = vld [vmem:[%s7 + $0x10] sm:$0xff]
      %v447 = vld [vmem:[%s7 + $0x18] sm:$0xff]
      %v448 = vld [vmem:[%s7 + $0x20] sm:$0xff]
      %v449 = vld [vmem:[%s7 + $0x28] sm:$0xff]
      %v450 = vld [vmem:[%s7 + $0x30] sm:$0xff]
      %v451 = vld [vmem:[%s7 + $0x38] sm:$0xff]
      %v452 = vld [vmem:[%s7 + $0x40] sm:$0xff]
      %v453 = vld [vmem:[%s7 + $0x48] sm:$0xff]
      %v454 = vld [vmem:[%s7 + $0x50] sm:$0xff]
      %v455 = vld [vmem:[%s7 + $0x58] sm:$0xff]
      %v456 = vld [vmem:[%s7 + $0x60] sm:$0xff]
      %v457 = vld [vmem:[%s7 + $0x68] sm:$0xff]
      %v458 = vld [vmem:[%s7 + $0x70] sm:$0xff]
      %v459 = vld [vmem:[%s7 + $0x78] sm:$0xff]
      %v460 = vld [vmem:[%s8] sm:$0x1]
      %vm461 = vcmask 261120
      %v462 = vsel %vm461, %v427, 0.0
      %463 = vadd.xlane.f32.xlu0 %v462
      %v464 = vpop.xlane.xlu0 %463
      %vm465 = vcmask 253952
      %v466 = vsel %vm465, %v428, 0.0
      %467 = vadd.xlane.f32.xlu0 %v466
      %v468 = vpop.xlane.xlu0 %467
      %v469 = vrcp.pop 32.0
      %v470 = vmul.f32 %v464, %v469
      %v471 = vmul.f32 %v468, %v469
      %v472 = vsub.f32 %v427, %v470
      %v473 = vsub.f32 %v428, %v471
      %v474 = vmul.f32 %v472, %v472
      %v475 = vmul.f32 %v473, %v473
      %v476 = vsel %vm461, %v474, 0.0
      %477 = vadd.xlane.f32.xlu0 %v476
      %v478 = vpop.xlane.xlu0 %477
      %v479 = vsel %vm465, %v475, 0.0
      %480 = vadd.xlane.f32.xlu0 %v479
      %v481 = vpop.xlane.xlu0 %480
      %v482 = vmul.f32 %v478, %v469
      %v483 = vmul.f32 %v481, %v469
      %v484 = vadd.f32 %v482, 1e-05
      %v485 = vadd.f32 %v483, 1e-05
      %v486 = vrsqrt.pop %v484
      %v487 = vrsqrt.pop %v485
      %v488 = vmul.f32 %v472, %v486
      %v489 = vmul.f32 %v473, %v487
      %v491 = vlaneseq
      %v492 = vshrl.u32 %v491, 7
      %v493 = vsub.s32 0, %v492
      %v494 = vrot.slane %v433, %v493
      %v497 = vsel %vm461, %v488, 0
      %v500 = vsel %vm461, %v489, 0
      %502 = vmatprep.subr.mxu0 0.0
      %503 = vmatpush1.msra.mxu0 %v429
      %504 = vmatprep.subr.mxu0 0.0
      %505 = vmatpush1.msra.mxu0 %v430
      %506 = vmatprep.subr.mxu0 0.0
      %507 = vmatpush1.msra.mxu0 %v431
      %508 = vmatprep.subr.mxu0 0.0
      %509 = vmatpush1.msra.mxu0 %v432
      %510 = vmatprep.subr.mxu0 0.0
      %511 = vmatpush1.msra.mxu0 0.0
      %512 = vmatprep.subr.mxu0 0.0
      %513 = vmatpush1.msra.mxu0 0.0
      %514 = vmatprep.subr.mxu0 0.0
      %515 = vmatpush1.msra.mxu0 0.0
      %516 = vmatprep.subr.mxu0 0.0
      %517 = vmatpush1.msra.mxu0 0.0
      %518 = vmatprep.subr.mxu0 0.0
      %519 = vmatpush1.msra.mxu0 0.0
      %520 = vmatprep.subr.mxu0 0.0
      %521 = vmatpush1.msra.mxu0 0.0
      %522 = vmatprep.subr.mxu0 0.0
      %523 = vmatpush1.msra.mxu0 0.0
      %524 = vmatprep.subr.mxu0 0.0
      %525 = vmatpush1.msra.mxu0 0.0
      %526 = vmatprep.subr.mxu0 0.0
      %527 = vmatpush1.msra.mxu0 0.0
      %528 = vmatprep.subr.mxu0 0.0
      %529 = vmatpush1.msra.mxu0 0.0
      %530 = vmatprep.subr.mxu0 0.0
      %531 = vmatpush1.msra.mxu0 0.0
      %532 = vmatprep.subr.mxu0 0.0
      %533 = vmatpush1.msra.mxu0 0.0
      %534 = vmatprep.subr.mxu0 0.0
      %535 = vmatpush1.msra.mxu0 0.0
      %536 = vmatprep.subr.mxu0 0.0
      %537 = vmatpush1.msra.mxu0 0.0
      %538 = vmatprep.subr.mxu0 0.0
      %539 = vmatpush1.msra.mxu0 0.0
      %540 = vmatprep.subr.mxu0 0.0
      %541 = vmatpush1.msra.mxu0 0.0
      %542 = vmatprep.subr.mxu0 0.0
      %543 = vmatpush1.msra.mxu0 0.0
      %544 = vmatprep.subr.mxu0 0.0
      %545 = vmatpush1.msra.mxu0 0.0
      %546 = vmatprep.subr.mxu0 0.0
      %547 = vmatpush1.msra.mxu0 0.0
      %548 = vmatprep.subr.mxu0 0.0
      %549 = vmatpush1.msra.mxu0 0.0
      %550 = vmatprep.subr.mxu0 0.0
      %551 = vmatpush1.msra.mxu0 0.0
      %552 = vmatprep.subr.mxu0 0.0
      %553 = vmatpush1.msra.mxu0 0.0
      %554 = vmatprep.subr.mxu0 0.0
      %555 = vmatpush1.msra.mxu0 0.0
      %556 = vmatprep.subr.mxu0 0.0
      %557 = vmatpush1.msra.mxu0 0.0
      %558 = vmatprep.subr.mxu0 0.0
      %559 = vmatpush1.msra.mxu0 0.0
      %560 = vmatprep.subr.mxu0 0.0
      %561 = vmatpush1.msra.mxu0 0.0
      %562 = vmatprep.subr.mxu0 0.0
      %563 = vmatpush1.msra.mxu0 0.0
      %564 = vmatprep.subr.mxu0 0.0
      %565 = vmatpush1.msra.mxu0 0.0
      %566 = vmatprep.mubr.f32.mxu0 0.0
      %567 = vmatmul.mubr.f32.gmra.mrb[0].mxu0 %v497
      %v568 = vpop.f32.mrb[0].mxu0
      %v569 = vadd.f32 %v494, %v568
      %v570 = vpop.f32.mrb[0].mxu0
      %571 = vmatprep.mubr.f32.mxu0 0.0
      %572 = vmatmul.mubr.f32.gmra.mrb[0].mxu0 %v500
      %v573 = vpop.f32.mrb[0].mxu0
      %v574 = vadd.f32 %v494, %v573
      %v575 = vpop.f32.mrb[0].mxu0
      %576 = vdwg.mxu0
      %579 = vrot.lane.b32.xlu0 %v569, 96
      %v580 = vpop.permute.xlu0 %579
      %581 = vrot.lane.b32.xlu0 %v574, 96
      %v582 = vpop.permute.xlu0 %581
      %vm583 = vcmask 31744
      %v584 = vsel %vm583, %v569, 0
      %v586 = vsel %vm583, %v574, 0
      %v588 = vsel %vm583, %v580, 0
      %v590 = vsel %vm583, %v582, 0
      %592 = vmatprep.subr.mxu0 0.0
      %593 = vmatpush1.xpose.msra.mxu0 %v588
      %594 = vmatprep.subr.mxu0 0.0
      %595 = vmatpush1.xpose.msra.mxu0 %v590
      %596 = vmatprep.subr.mxu0 0.0
      %597 = vmatpush1.xpose.msra.mxu0 0.0
      %598 = vmatprep.subr.mxu0 0.0
      %599 = vmatpush1.xpose.msra.mxu0 0.0
      %600 = vmatprep.subr.mxu0 0.0
      %601 = vmatpush1.xpose.msra.mxu0 0.0
      %602 = vmatprep.subr.mxu0 0.0
      %603 = vmatpush1.xpose.msra.mxu0 0.0
      %604 = vmatprep.subr.mxu0 0.0
      %605 = vmatpush1.xpose.msra.mxu0 0.0
      %606 = vmatprep.subr.mxu0 0.0
      %607 = vmatpush1.xpose.msra.mxu0 0.0
      %608 = vmatprep.subr.mxu0 0.0
      %609 = vmatpush1.xpose.msra.mxu0 0.0
      %610 = vmatprep.subr.mxu0 0.0
      %611 = vmatpush1.xpose.msra.mxu0 0.0
      %612 = vmatprep.subr.mxu0 0.0
      %613 = vmatpush1.xpose.msra.mxu0 0.0
      %614 = vmatprep.subr.mxu0 0.0
      %615 = vmatpush1.xpose.msra.mxu0 0.0
      %616 = vmatprep.subr.mxu0 0.0
      %617 = vmatpush1.xpose.msra.mxu0 0.0
      %618 = vmatprep.subr.mxu0 0.0
      %619 = vmatpush1.xpose.msra.mxu0 0.0
      %620 = vmatprep.subr.mxu0 0.0
      %621 = vmatpush1.xpose.msra.mxu0 0.0
      %622 = vmatprep.subr.mxu0 0.0
      %623 = vmatpush1.xpose.msra.mxu0 0.0
      %624 = vmatprep.subr.mxu0 0.0
      %625 = vmatpush1.xpose.msra.mxu0 0.0
      %626 = vmatprep.subr.mxu0 0.0
      %627 = vmatpush1.xpose.msra.mxu0 0.0
      %628 = vmatprep.subr.mxu0 0.0
      %629 = vmatpush1.xpose.msra.mxu0 0.0
      %630 = vmatprep.subr.mxu0 0.0
      %631 = vmatpush1.xpose.msra.mxu0 0.0
      %632 = vmatprep.subr.mxu0 0.0
      %633 = vmatpush1.xpose.msra.mxu0 0.0
      %634 = vmatprep.subr.mxu0 0.0
      %635 = vmatpush1.xpose.msra.mxu0 0.0
      %636 = vmatprep.subr.mxu0 0.0
      %637 = vmatpush1.xpose.msra.mxu0 0.0
      %638 = vmatprep.subr.mxu0 0.0
      %639 = vmatpush1.xpose.msra.mxu0 0.0
      %640 = vmatprep.subr.mxu0 0.0
      %641 = vmatpush1.xpose.msra.mxu0 0.0
      %642 = vmatprep.subr.mxu0 0.0
      %643 = vmatpush1.xpose.msra.mxu0 0.0
      %644 = vmatprep.subr.mxu0 0.0
      %645 = vmatpush1.xpose.msra.mxu0 0.0
      %646 = vmatprep.subr.mxu0 0.0
      %647 = vmatpush1.xpose.msra.mxu0 0.0
      %648 = vmatprep.subr.mxu0 0.0
      %649 = vmatpush1.xpose.msra.mxu0 0.0
      %650 = vmatprep.subr.mxu0 0.0
      %651 = vmatpush1.xpose.msra.mxu0 0.0
      %652 = vmatprep.subr.mxu0 0.0
      %653 = vmatpush1.xpose.msra.mxu0 0.0
      %654 = vmatprep.subr.mxu0 0.0
      %655 = vmatpush1.xpose.msra.mxu0 0.0
      %656 = vmatprep.mubr.f32.mxu0 0.0
      %657 = vmatmul.mubr.f32.gmra.mrb[0].mxu0 %v584
      %v658 = vpop.f32.mrb[0].mxu0
      %v659 = vadd.f32 0.0, %v658
      %v660 = vpop.f32.mrb[0].mxu0
      %661 = vmatprep.mubr.f32.mxu0 0.0
      %662 = vmatmul.mubr.f32.gmra.mrb[0].mxu0 %v586
      %v663 = vpop.f32.mrb[0].mxu0
      %v664 = vadd.f32 0.0, %v663
      %v665 = vpop.f32.mrb[0].mxu0
      %666 = vdwg.mxu0
      %vm667 = vcmask 72704
      %v668 = vsel %vm667, %v659, -inf
      %669 = vmax.xlane.f32.xlu0 %v668
      %v670 = vpop.xlane.xlu0 %669
      %vm671 = vcmask 65536
      %v672 = vsel %vm671, %v664, -inf
      %673 = vmax.xlane.f32.xlu0 %v672
      %v674 = vpop.xlane.xlu0 %673
      %v675 = vsub.f32 %v659, %v670
      %v676 = vsub.f32 %v664, %v674
      %v677 = vmul.f32 %v675, 1.442695
      %v678 = vpow.pop %v677
      %v679 = vmul.f32 %v676, 1.442695
      %v680 = vpow.pop %v679
      %v681 = vsel %vm667, %v678, 0.0
      %682 = vadd.xlane.f32.xlu0 %v681
      %v683 = vpop.xlane.xlu0 %682
      %v684 = vsel %vm671, %v680, 0.0
      %685 = vadd.xlane.f32.xlu0 %v684
      %v686 = vpop.xlane.xlu0 %685
      %v687 = vrcp.pop %v683
      %v688 = vrcp.pop %v686
      %v689 = vmul.f32 %v678, %v687
      %v690 = vmul.f32 %v680, %v688
      %691 = vrot.lane.b32.xlu0 %v569, 64
      %v692 = vpop.permute.xlu0 %691
      %693 = vrot.lane.b32.xlu0 %v574, 64
      %v694 = vpop.permute.xlu0 %693
      %v697 = vsel %vm667, %v689, 0
      %v700 = vsel %vm667, %v690, 0
      %vm702 = vcmask 1040384
      %v703 = vsel %vm702, %v694, 0
      %705 = vmatprep.subr.mxu0 0.0
      %706 = vmatpush1.msra.mxu0 %v692
      %707 = vmatprep.subr.mxu0 0.0
      %708 = vmatpush1.msra.mxu0 %v703
      %709 = vmatprep.subr.mxu0 0.0
      %710 = vmatpush1.msra.mxu0 0.0
      %711 = vmatprep.subr.mxu0 0.0
      %712 = vmatpush1.msra.mxu0 0.0
      %713 = vmatprep.subr.mxu0 0.0
      %714 = vmatpush1.msra.mxu0 0.0
      %715 = vmatprep.subr.mxu0 0.0
      %716 = vmatpush1.msra.mxu0 0.0
      %717 = vmatprep.subr.mxu0 0.0
      %718 = vmatpush1.msra.mxu0 0.0
      %719 = vmatprep.subr.mxu0 0.0
      %720 = vmatpush1.msra.mxu0 0.0
      %721 = vmatprep.subr.mxu0 0.0
      %722 = vmatpush1.msra.mxu0 0.0
      %723 = vmatprep.subr.mxu0 0.0
      %724 = vmatpush1.msra.mxu0 0.0
      %725 = vmatprep.subr.mxu0 0.0
      %726 = vmatpush1.msra.mxu0 0.0
      %727 = vmatprep.subr.mxu0 0.0
      %728 = vmatpush1.msra.mxu0 0.0
      %729 = vmatprep.subr.mxu0 0.0
      %730 = vmatpush1.msra.mxu0 0.0
      %731 = vmatprep.subr.mxu0 0.0
      %732 = vmatpush1.msra.mxu0 0.0
      %733 = vmatprep.subr.mxu0 0.0
      %734 = vmatpush1.msra.mxu0 0.0
      %735 = vmatprep.subr.mxu0 0.0
      %736 = vmatpush1.msra.mxu0 0.0
      %737 = vmatprep.subr.mxu0 0.0
      %738 = vmatpush1.msra.mxu0 0.0
      %739 = vmatprep.subr.mxu0 0.0
      %740 = vmatpush1.msra.mxu0 0.0
      %741 = vmatprep.subr.mxu0 0.0
      %742 = vmatpush1.msra.mxu0 0.0
      %743 = vmatprep.subr.mxu0 0.0
      %744 = vmatpush1.msra.mxu0 0.0
      %745 = vmatprep.subr.mxu0 0.0
      %746 = vmatpush1.msra.mxu0 0.0
      %747 = vmatprep.subr.mxu0 0.0
      %748 = vmatpush1.msra.mxu0 0.0
      %749 = vmatprep.subr.mxu0 0.0
      %750 = vmatpush1.msra.mxu0 0.0
      %751 = vmatprep.subr.mxu0 0.0
      %752 = vmatpush1.msra.mxu0 0.0
      %753 = vmatprep.subr.mxu0 0.0
      %754 = vmatpush1.msra.mxu0 0.0
      %755 = vmatprep.subr.mxu0 0.0
      %756 = vmatpush1.msra.mxu0 0.0
      %757 = vmatprep.subr.mxu0 0.0
      %758 = vmatpush1.msra.mxu0 0.0
      %759 = vmatprep.subr.mxu0 0.0
      %760 = vmatpush1.msra.mxu0 0.0
      %761 = vmatprep.subr.mxu0 0.0
      %762 = vmatpush1.msra.mxu0 0.0
      %763 = vmatprep.subr.mxu0 0.0
      %764 = vmatpush1.msra.mxu0 0.0
      %765 = vmatprep.subr.mxu0 0.0
      %766 = vmatpush1.msra.mxu0 0.0
      %767 = vmatprep.subr.mxu0 0.0
      %768 = vmatpush1.msra.mxu0 0.0
      %769 = vmatprep.mubr.f32.mxu0 0.0
      %770 = vmatmul.mubr.f32.gmra.mrb[0].mxu0 %v697
      %v771 = vpop.f32.mrb[0].mxu0
      %v772 = vadd.f32 0.0, %v771
      %v773 = vpop.f32.mrb[0].mxu0
      %774 = vmatprep.mubr.f32.mxu0 0.0
      %775 = vmatmul.mubr.f32.gmra.mrb[0].mxu0 %v700
      %v776 = vpop.f32.mrb[0].mxu0
      %v777 = vadd.f32 0.0, %v776
      %v778 = vpop.f32.mrb[0].mxu0
      %779 = vdwg.mxu0
      %780 = vst.msk [vmem:[#allocation2] sm:$0xff] %vm583, %v772
      %vm781 = vcmask 24576
      %782 = vst.msk [vmem:[#allocation2 + $0x8] sm:$0x1] %vm781, %v777
      %783 = vrot.lane.b32.xlu0 %v569, 124
      %v784 = vpop.permute.xlu0 %783
      %785 = vrot.lane.b32.xlu0 %v574, 124
      %v786 = vpop.permute.xlu0 %785
      %787 = vrot.lane.b32.xlu0 %v569, 92
      %v788 = vpop.permute.xlu0 %787
      %789 = vrot.lane.b32.xlu0 %v574, 92
      %v790 = vpop.permute.xlu0 %789
      %v791 = vsel %vm583, %v784, 0
      %v793 = vsel %vm583, %v786, 0
      %v795 = vsel %vm583, %v788, 0
      %v797 = vsel %vm583, %v790, 0
      %799 = vmatprep.subr.mxu0 0.0
      %800 = vmatpush1.xpose.msra.mxu0 %v795
      %801 = vmatprep.subr.mxu0 0.0
      %802 = vmatpush1.xpose.msra.mxu0 %v797
      %803 = vmatprep.subr.mxu0 0.0
      %804 = vmatpush1.xpose.msra.mxu0 0.0
      %805 = vmatprep.subr.mxu0 0.0
      %806 = vmatpush1.xpose.msra.mxu0 0.0
      %807 = vmatprep.subr.mxu0 0.0
      %808 = vmatpush1.xpose.msra.mxu0 0.0
      %809 = vmatprep.subr.mxu0 0.0
      %810 = vmatpush1.xpose.msra.mxu0 0.0
      %811 = vmatprep.subr.mxu0 0.0
      %812 = vmatpush1.xpose.msra.mxu0 0.0
      %813 = vmatprep.subr.mxu0 0.0
      %814 = vmatpush1.xpose.msra.mxu0 0.0
      %815 = vmatprep.subr.mxu0 0.0
      %816 = vmatpush1.xpose.msra.mxu0 0.0
      %817 = vmatprep.subr.mxu0 0.0
      %818 = vmatpush1.xpose.msra.mxu0 0.0
      %819 = vmatprep.subr.mxu0 0.0
      %820 = vmatpush1.xpose.msra.mxu0 0.0
      %821 = vmatprep.subr.mxu0 0.0
      %822 = vmatpush1.xpose.msra.mxu0 0.0
      %823 = vmatprep.subr.mxu0 0.0
      %824 = vmatpush1.xpose.msra.mxu0 0.0
      %825 = vmatprep.subr.mxu0 0.0
      %826 = vmatpush1.xpose.msra.mxu0 0.0
      %827 = vmatprep.subr.mxu0 0.0
      %828 = vmatpush1.xpose.msra.mxu0 0.0
      %829 = vmatprep.subr.mxu0 0.0
      %830 = vmatpush1.xpose.msra.mxu0 0.0
      %831 = vmatprep.subr.mxu0 0.0
      %832 = vmatpush1.xpose.msra.mxu0 0.0
      %833 = vmatprep.subr.mxu0 0.0
      %834 = vmatpush1.xpose.msra.mxu0 0.0
      %835 = vmatprep.subr.mxu0 0.0
      %836 = vmatpush1.xpose.msra.mxu0 0.0
      %837 = vmatprep.subr.mxu0 0.0
      %838 = vmatpush1.xpose.msra.mxu0 0.0
      %839 = vmatprep.subr.mxu0 0.0
      %840 = vmatpush1.xpose.msra.mxu0 0.0
      %841 = vmatprep.subr.mxu0 0.0
      %842 = vmatpush1.xpose.msra.mxu0 0.0
      %843 = vmatprep.subr.mxu0 0.0
      %844 = vmatpush1.xpose.msra.mxu0 0.0
      %845 = vmatprep.subr.mxu0 0.0
      %846 = vmatpush1.xpose.msra.mxu0 0.0
      %847 = vmatprep.subr.mxu0 0.0
      %848 = vmatpush1.xpose.msra.mxu0 0.0
      %849 = vmatprep.subr.mxu0 0.0
      %850 = vmatpush1.xpose.msra.mxu0 0.0
      %851 = vmatprep.subr.mxu0 0.0
      %852 = vmatpush1.xpose.msra.mxu0 0.0
      %853 = vmatprep.subr.mxu0 0.0
      %854 = vmatpush1.xpose.msra.mxu0 0.0
      %855 = vmatprep.subr.mxu0 0.0
      %856 = vmatpush1.xpose.msra.mxu0 0.0
      %857 = vmatprep.subr.mxu0 0.0
      %858 = vmatpush1.xpose.msra.mxu0 0.0
      %859 = vmatprep.subr.mxu0 0.0
      %860 = vmatpush1.xpose.msra.mxu0 0.0
      %861 = vmatprep.subr.mxu0 0.0
      %862 = vmatpush1.xpose.msra.mxu0 0.0
      %863 = vmatprep.mubr.f32.mxu0 0.0
      %864 = vmatmul.mubr.f32.gmra.mrb[0].mxu0 %v791
      %v865 = vpop.f32.mrb[0].mxu0
      %v866 = vadd.f32 0.0, %v865
      %v867 = vpop.f32.mrb[0].mxu0
      %868 = vmatprep.mubr.f32.mxu0 0.0
      %869 = vmatmul.mubr.f32.gmra.mrb[0].mxu0 %v793
      %v870 = vpop.f32.mrb[0].mxu0
      %v871 = vadd.f32 0.0, %v870
      %v872 = vpop.f32.mrb[0].mxu0
      %873 = vdwg.mxu0
      %v874 = vsel %vm667, %v866, -inf
      %875 = vmax.xlane.f32.xlu0 %v874
      %v876 = vpop.xlane.xlu0 %875
      %v877 = vsel %vm671, %v871, -inf
      %878 = vmax.xlane.f32.xlu0 %v877
      %v879 = vpop.xlane.xlu0 %878
      %v880 = vsub.f32 %v866, %v876
      %v881 = vsub.f32 %v871, %v879
      %v882 = vmul.f32 %v880, 1.442695
      %v883 = vpow.pop %v882
      %v884 = vmul.f32 %v881, 1.442695
      %v885 = vpow.pop %v884
      %v886 = vsel %vm667, %v883, 0.0
      %887 = vadd.xlane.f32.xlu0 %v886
      %v888 = vpop.xlane.xlu0 %887
      %v889 = vsel %vm671, %v885, 0.0
      %890 = vadd.xlane.f32.xlu0 %v889
      %v891 = vpop.xlane.xlu0 %890
      %v892 = vrcp.pop %v888
      %v893 = vrcp.pop %v891
      %v894 = vmul.f32 %v883, %v892
      %v895 = vmul.f32 %v885, %v893
      %896 = vrot.lane.b32.xlu0 %v569, 60
      %v897 = vpop.permute.xlu0 %896
      %898 = vrot.lane.b32.xlu0 %v574, 60
      %v899 = vpop.permute.xlu0 %898
      %v902 = vsel %vm667, %v894, 0
      %v905 = vsel %vm667, %v895, 0
      %v907 = vsel %vm702, %v899, 0
      %909 = vmatprep.subr.mxu0 0.0
      %910 = vmatpush1.msra.mxu0 %v897
      %911 = vmatprep.subr.mxu0 0.0
      %912 = vmatpush1.msra.mxu0 %v907
      %913 = vmatprep.subr.mxu0 0.0
      %914 = vmatpush1.msra.mxu0 0.0
      %915 = vmatprep.subr.mxu0 0.0
      %916 = vmatpush1.msra.mxu0 0.0
      %917 = vmatprep.subr.mxu0 0.0
      %918 = vmatpush1.msra.mxu0 0.0
      %919 = vmatprep.subr.mxu0 0.0
      %920 = vmatpush1.msra.mxu0 0.0
      %921 = vmatprep.subr.mxu0 0.0
      %922 = vmatpush1.msra.mxu0 0.0
      %923 = vmatprep.subr.mxu0 0.0
      %924 = vmatpush1.msra.mxu0 0.0
      %925 = vmatprep.subr.mxu0 0.0
      %926 = vmatpush1.msra.mxu0 0.0
      %927 = vmatprep.subr.mxu0 0.0
      %928 = vmatpush1.msra.mxu0 0.0
      %929 = vmatprep.subr.mxu0 0.0
      %930 = vmatpush1.msra.mxu0 0.0
      %931 = vmatprep.subr.mxu0 0.0
      %932 = vmatpush1.msra.mxu0 0.0
      %933 = vmatprep.subr.mxu0 0.0
      %934 = vmatpush1.msra.mxu0 0.0
      %935 = vmatprep.subr.mxu0 0.0
      %936 = vmatpush1.msra.mxu0 0.0
      %937 = vmatprep.subr.mxu0 0.0
      %938 = vmatpush1.msra.mxu0 0.0
      %939 = vmatprep.subr.mxu0 0.0
      %940 = vmatpush1.msra.mxu0 0.0
      %941 = vmatprep.subr.mxu0 0.0
      %942 = vmatpush1.msra.mxu0 0.0
      %943 = vmatprep.subr.mxu0 0.0
      %944 = vmatpush1.msra.mxu0 0.0
      %945 = vmatprep.subr.mxu0 0.0
      %946 = vmatpush1.msra.mxu0 0.0
      %947 = vmatprep.subr.mxu0 0.0
      %948 = vmatpush1.msra.mxu0 0.0
      %949 = vmatprep.subr.mxu0 0.0
      %950 = vmatpush1.msra.mxu0 0.0
      %951 = vmatprep.subr.mxu0 0.0
      %952 = vmatpush1.msra.mxu0 0.0
      %953 = vmatprep.subr.mxu0 0.0
      %954 = vmatpush1.msra.mxu0 0.0
      %955 = vmatprep.subr.mxu0 0.0
      %956 = vmatpush1.msra.mxu0 0.0
      %957 = vmatprep.subr.mxu0 0.0
      %958 = vmatpush1.msra.mxu0 0.0
      %959 = vmatprep.subr.mxu0 0.0
      %960 = vmatpush1.msra.mxu0 0.0
      %961 = vmatprep.subr.mxu0 0.0
      %962 = vmatpush1.msra.mxu0 0.0
      %963 = vmatprep.subr.mxu0 0.0
      %964 = vmatpush1.msra.mxu0 0.0
      %965 = vmatprep.subr.mxu0 0.0
      %966 = vmatpush1.msra.mxu0 0.0
      %967 = vmatprep.subr.mxu0 0.0
      %968 = vmatpush1.msra.mxu0 0.0
      %969 = vmatprep.subr.mxu0 0.0
      %970 = vmatpush1.msra.mxu0 0.0
      %971 = vmatprep.subr.mxu0 0.0
      %972 = vmatpush1.msra.mxu0 0.0
      %973 = vmatprep.mubr.f32.mxu0 0.0
      %974 = vmatmul.mubr.f32.gmra.mrb[0].mxu0 %v902
      %v975 = vpop.f32.mrb[0].mxu0
      %v976 = vadd.f32 0.0, %v975
      %v977 = vpop.f32.mrb[0].mxu0
      %978 = vmatprep.mubr.f32.mxu0 0.0
      %979 = vmatmul.mubr.f32.gmra.mrb[0].mxu0 %v905
      %v980 = vpop.f32.mrb[0].mxu0
      %v981 = vadd.f32 0.0, %v980
      %v982 = vpop.f32.mrb[0].mxu0
      %983 = vdwg.mxu0
      %986 = vrot.lane.b32.xlu0 %v976, 4
      %v987 = vpop.permute.xlu0 %986
      %988 = vrot.lane.b32.xlu0 %v981, 4
      %v989 = vpop.permute.xlu0 %988
      %vm992 = vcmask 64544
      %993 = vst.msk [vmem:[#allocation2] sm:$0xff] %vm992, %v987
      %vm994 = vcmask 57376
      %995 = vst.msk [vmem:[#allocation2 + $0x8] sm:$0x1] %vm994, %v989
      %996 = vrot.lane.b32.xlu0 %v569, 120
      %v997 = vpop.permute.xlu0 %996
      %998 = vrot.lane.b32.xlu0 %v574, 120
      %v999 = vpop.permute.xlu0 %998
      %1000 = vrot.lane.b32.xlu0 %v569, 88
      %v1001 = vpop.permute.xlu0 %1000
      %1002 = vrot.lane.b32.xlu0 %v574, 88
      %v1003 = vpop.permute.xlu0 %1002
      %v1004 = vsel %vm583, %v997, 0
      %v1006 = vsel %vm583, %v999, 0
      %v1008 = vsel %vm583, %v1001, 0
      %v1010 = vsel %vm583, %v1003, 0
      %1012 = vmatprep.subr.mxu0 0.0
      %1013 = vmatpush1.xpose.msra.mxu0 %v1008
      %1014 = vmatprep.subr.mxu0 0.0
      %1015 = vmatpush1.xpose.msra.mxu0 %v1010
      %1016 = vmatprep.subr.mxu0 0.0
      %1017 = vmatpush1.xpose.msra.mxu0 0.0
      %1018 = vmatprep.subr.mxu0 0.0
      %1019 = vmatpush1.xpose.msra.mxu0 0.0
      %1020 = vmatprep.subr.mxu0 0.0
      %1021 = vmatpush1.xpose.msra.mxu0 0.0
      %1022 = vmatprep.subr.mxu0 0.0
      %1023 = vmatpush1.xpose.msra.mxu0 0.0
      %1024 = vmatprep.subr.mxu0 0.0
      %1025 = vmatpush1.xpose.msra.mxu0 0.0
      %1026 = vmatprep.subr.mxu0 0.0
      %1027 = vmatpush1.xpose.msra.mxu0 0.0
      %1028 = vmatprep.subr.mxu0 0.0
      %1029 = vmatpush1.xpose.msra.mxu0 0.0
      %1030 = vmatprep.subr.mxu0 0.0
      %1031 = vmatpush1.xpose.msra.mxu0 0.0
      %1032 = vmatprep.subr.mxu0 0.0
      %1033 = vmatpush1.xpose.msra.mxu0 0.0
      %1034 = vmatprep.subr.mxu0 0.0
      %1035 = vmatpush1.xpose.msra.mxu0 0.0
      %1036 = vmatprep.subr.mxu0 0.0
      %1037 = vmatpush1.xpose.msra.mxu0 0.0
      %1038 = vmatprep.subr.mxu0 0.0
      %1039 = vmatpush1.xpose.msra.mxu0 0.0
      %1040 = vmatprep.subr.mxu0 0.0
      %1041 = vmatpush1.xpose.msra.mxu0 0.0
      %1042 = vmatprep.subr.mxu0 0.0
      %1043 = vmatpush1.xpose.msra.mxu0 0.0
      %1044 = vmatprep.subr.mxu0 0.0
      %1045 = vmatpush1.xpose.msra.mxu0 0.0
      %1046 = vmatprep.subr.mxu0 0.0
      %1047 = vmatpush1.xpose.msra.mxu0 0.0
      %1048 = vmatprep.subr.mxu0 0.0
      %1049 = vmatpush1.xpose.msra.mxu0 0.0
      %1050 = vmatprep.subr.mxu0 0.0
      %1051 = vmatpush1.xpose.msra.mxu0 0.0
      %1052 = vmatprep.subr.mxu0 0.0
      %1053 = vmatpush1.xpose.msra.mxu0 0.0
      %1054 = vmatprep.subr.mxu0 0.0
      %1055 = vmatpush1.xpose.msra.mxu0 0.0
      %1056 = vmatprep.subr.mxu0 0.0
      %1057 = vmatpush1.xpose.msra.mxu0 0.0
      %1058 = vmatprep.subr.mxu0 0.0
      %1059 = vmatpush1.xpose.msra.mxu0 0.0
      %1060 = vmatprep.subr.mxu0 0.0
      %1061 = vmatpush1.xpose.msra.mxu0 0.0
      %1062 = vmatprep.subr.mxu0 0.0
      %1063 = vmatpush1.xpose.msra.mxu0 0.0
      %1064 = vmatprep.subr.mxu0 0.0
      %1065 = vmatpush1.xpose.msra.mxu0 0.0
      %1066 = vmatprep.subr.mxu0 0.0
      %1067 = vmatpush1.xpose.msra.mxu0 0.0
      %1068 = vmatprep.subr.mxu0 0.0
      %1069 = vmatpush1.xpose.msra.mxu0 0.0
      %1070 = vmatprep.subr.mxu0 0.0
      %1071 = vmatpush1.xpose.msra.mxu0 0.0
      %1072 = vmatprep.subr.mxu0 0.0
      %1073 = vmatpush1.xpose.msra.mxu0 0.0
      %1074 = vmatprep.subr.mxu0 0.0
      %1075 = vmatpush1.xpose.msra.mxu0 0.0
      %1076 = vmatprep.mubr.f32.mxu0 0.0
      %1077 = vmatmul.mubr.f32.gmra.mrb[0].mxu0 %v1004
      %v1078 = vpop.f32.mrb[0].mxu0
      %v1079 = vadd.f32 0.0, %v1078
      %v1080 = vpop.f32.mrb[0].mxu0
      %1081 = vmatprep.mubr.f32.mxu0 0.0
      %1082 = vmatmul.mubr.f32.gmra.mrb[0].mxu0 %v1006
      %v1083 = vpop.f32.mrb[0].mxu0
      %v1084 = vadd.f32 0.0, %v1083
      %v1085 = vpop.f32.mrb[0].mxu0
      %1086 = vdwg.mxu0
      %v1087 = vsel %vm667, %v1079, -inf
      %1088 = vmax.xlane.f32.xlu0 %v1087
      %v1089 = vpop.xlane.xlu0 %1088
      %v1090 = vsel %vm671, %v1084, -inf
      %1091 = vmax.xlane.f32.xlu0 %v1090
      %v1092 = vpop.xlane.xlu0 %1091
      %v1093 = vsub.f32 %v1079, %v1089
      %v1094 = vsub.f32 %v1084, %v1092
      %v1095 = vmul.f32 %v1093, 1.442695
      %v1096 = vpow.pop %v1095
      %v1097 = vmul.f32 %v1094, 1.442695
      %v1098 = vpow.pop %v1097
      %v1099 = vsel %vm667, %v1096, 0.0
      %1100 = vadd.xlane.f32.xlu0 %v1099
      %v1101 = vpop.xlane.xlu0 %1100
      %v1102 = vsel %vm671, %v1098, 0.0
      %1103 = vadd.xlane.f32.xlu0 %v1102
      %v1104 = vpop.xlane.xlu0 %1103
      %v1105 = vrcp.pop %v1101
      %v1106 = vrcp.pop %v1104
      %v1107 = vmul.f32 %v1096, %v1105
      %v1108 = vmul.f32 %v1098, %v1106
      %1109 = vrot.lane.b32.xlu0 %v569, 56
      %v1110 = vpop.permute.xlu0 %1109
      %1111 = vrot.lane.b32.xlu0 %v574, 56
      %v1112 = vpop.permute.xlu0 %1111
      %v1115 = vsel %vm667, %v1107, 0
      %v1118 = vsel %vm667, %v1108, 0
      %v1120 = vsel %vm702, %v1112, 0
      %1122 = vmatprep.subr.mxu0 0.0
      %1123 = vmatpush1.msra.mxu0 %v1110
      %1124 = vmatprep.subr.mxu0 0.0
      %1125 = vmatpush1.msra.mxu0 %v1120
      %1126 = vmatprep.subr.mxu0 0.0
      %1127 = vmatpush1.msra.mxu0 0.0
      %1128 = vmatprep.subr.mxu0 0.0
      %1129 = vmatpush1.msra.mxu0 0.0
      %1130 = vmatprep.subr.mxu0 0.0
      %1131 = vmatpush1.msra.mxu0 0.0
      %1132 = vmatprep.subr.mxu0 0.0
      %1133 = vmatpush1.msra.mxu0 0.0
      %1134 = vmatprep.subr.mxu0 0.0
      %1135 = vmatpush1.msra.mxu0 0.0
      %1136 = vmatprep.subr.mxu0 0.0
      %1137 = vmatpush1.msra.mxu0 0.0
      %1138 = vmatprep.subr.mxu0 0.0
      %1139 = vmatpush1.msra.mxu0 0.0
      %1140 = vmatprep.subr.mxu0 0.0
      %1141 = vmatpush1.msra.mxu0 0.0
      %1142 = vmatprep.subr.mxu0 0.0
      %1143 = vmatpush1.msra.mxu0 0.0
      %1144 = vmatprep.subr.mxu0 0.0
      %1145 = vmatpush1.msra.mxu0 0.0
      %1146 = vmatprep.subr.mxu0 0.0
      %1147 = vmatpush1.msra.mxu0 0.0
      %1148 = vmatprep.subr.mxu0 0.0
      %1149 = vmatpush1.msra.mxu0 0.0
      %1150 = vmatprep.subr.mxu0 0.0
      %1151 = vmatpush1.msra.mxu0 0.0
      %1152 = vmatprep.subr.mxu0 0.0
      %1153 = vmatpush1.msra.mxu0 0.0
      %1154 = vmatprep.subr.mxu0 0.0
      %1155 = vmatpush1.msra.mxu0 0.0
      %1156 = vmatprep.subr.mxu0 0.0
      %1157 = vmatpush1.msra.mxu0 0.0
      %1158 = vmatprep.subr.mxu0 0.0
      %1159 = vmatpush1.msra.mxu0 0.0
      %1160 = vmatprep.subr.mxu0 0.0
      %1161 = vmatpush1.msra.mxu0 0.0
      %1162 = vmatprep.subr.mxu0 0.0
      %1163 = vmatpush1.msra.mxu0 0.0
      %1164 = vmatprep.subr.mxu0 0.0
      %1165 = vmatpush1.msra.mxu0 0.0
      %1166 = vmatprep.subr.mxu0 0.0
      %1167 = vmatpush1.msra.mxu0 0.0
      %1168 = vmatprep.subr.mxu0 0.0
      %1169 = vmatpush1.msra.mxu0 0.0
      %1170 = vmatprep.subr.mxu0 0.0
      %1171 = vmatpush1.msra.mxu0 0.0
      %1172 = vmatprep.subr.mxu0 0.0
      %1173 = vmatpush1.msra.mxu0 0.0
      %1174 = vmatprep.subr.mxu0 0.0
      %1175 = vmatpush1.msra.mxu0 0.0
      %1176 = vmatprep.subr.mxu0 0.0
      %1177 = vmatpush1.msra.mxu0 0.0
      %1178 = vmatprep.subr.mxu0 0.0
      %1179 = vmatpush1.msra.mxu0 0.0
      %1180 = vmatprep.subr.mxu0 0.0
      %1181 = vmatpush1.msra.mxu0 0.0
      %1182 = vmatprep.subr.mxu0 0.0
      %1183 = vmatpush1.msra.mxu0 0.0
      %1184 = vmatprep.subr.mxu0 0.0
      %1185 = vmatpush1.msra.mxu0 0.0
      %1186 = vmatprep.mubr.f32.mxu0 0.0
      %1187 = vmatmul.mubr.f32.gmra.mrb[0].mxu0 %v1115
      %v1188 = vpop.f32.mrb[0].mxu0
      %v1189 = vadd.f32 0.0, %v1188
      %v1190 = vpop.f32.mrb[0].mxu0
      %1191 = vmatprep.mubr.f32.mxu0 0.0
      %1192 = vmatmul.mubr.f32.gmra.mrb[0].mxu0 %v1118
      %v1193 = vpop.f32.mrb[0].mxu0
      %v1194 = vadd.f32 0.0, %v1193
      %v1195 = vpop.f32.mrb[0].mxu0
      %1196 = vdwg.mxu0
      %1199 = vrot.lane.b32.xlu0 %v1189, 8
      %v1200 = vpop.permute.xlu0 %1199
      %1201 = vrot.lane.b32.xlu0 %v1194, 8
      %v1202 = vpop.permute.xlu0 %1201
      %vm1205 = vcmask 97344
      %1206 = vst.msk [vmem:[#allocation2] sm:$0xff] %vm1205, %v1200
      %vm1207 = vcmask 90176
      %1208 = vst.msk [vmem:[#allocation2 + $0x8] sm:$0x1] %vm1207, %v1202
      %1209 = vrot.lane.b32.xlu0 %v569, 116
      %v1210 = vpop.permute.xlu0 %1209
      %1211 = vrot.lane.b32.xlu0 %v574, 116
      %v1212 = vpop.permute.xlu0 %1211
      %1213 = vrot.lane.b32.xlu0 %v569, 84
      %v1214 = vpop.permute.xlu0 %1213
      %1215 = vrot.lane.b32.xlu0 %v574, 84
      %v1216 = vpop.permute.xlu0 %1215
      %v1217 = vsel %vm583, %v1210, 0
      %v1219 = vsel %vm583, %v1212, 0
      %v1221 = vsel %vm583, %v1214, 0
      %v1223 = vsel %vm583, %v1216, 0
      %1225 = vmatprep.subr.mxu0 0.0
      %1226 = vmatpush1.xpose.msra.mxu0 %v1221
      %1227 = vmatprep.subr.mxu0 0.0
      %1228 = vmatpush1.xpose.msra.mxu0 %v1223
      %1229 = vmatprep.subr.mxu0 0.0
      %1230 = vmatpush1.xpose.msra.mxu0 0.0
      %1231 = vmatprep.subr.mxu0 0.0
      %1232 = vmatpush1.xpose.msra.mxu0 0.0
      %1233 = vmatprep.subr.mxu0 0.0
      %1234 = vmatpush1.xpose.msra.mxu0 0.0
      %1235 = vmatprep.subr.mxu0 0.0
      %1236 = vmatpush1.xpose.msra.mxu0 0.0
      %1237 = vmatprep.subr.mxu0 0.0
      %1238 = vmatpush1.xpose.msra.mxu0 0.0
      %1239 = vmatprep.subr.mxu0 0.0
      %1240 = vmatpush1.xpose.msra.mxu0 0.0
      %1241 = vmatprep.subr.mxu0 0.0
      %1242 = vmatpush1.xpose.msra.mxu0 0.0
      %1243 = vmatprep.subr.mxu0 0.0
      %1244 = vmatpush1.xpose.msra.mxu0 0.0
      %1245 = vmatprep.subr.mxu0 0.0
      %1246 = vmatpush1.xpose.msra.mxu0 0.0
      %1247 = vmatprep.subr.mxu0 0.0
      %1248 = vmatpush1.xpose.msra.mxu0 0.0
      %1249 = vmatprep.subr.mxu0 0.0
      %1250 = vmatpush1.xpose.msra.mxu0 0.0
      %1251 = vmatprep.subr.mxu0 0.0
      %1252 = vmatpush1.xpose.msra.mxu0 0.0
      %1253 = vmatprep.subr.mxu0 0.0
      %1254 = vmatpush1.xpose.msra.mxu0 0.0
      %1255 = vmatprep.subr.mxu0 0.0
      %1256 = vmatpush1.xpose.msra.mxu0 0.0
      %1257 = vmatprep.subr.mxu0 0.0
      %1258 = vmatpush1.xpose.msra.mxu0 0.0
      %1259 = vmatprep.subr.mxu0 0.0
      %1260 = vmatpush1.xpose.msra.mxu0 0.0
      %1261 = vmatprep.subr.mxu0 0.0
      %1262 = vmatpush1.xpose.msra.mxu0 0.0
      %1263 = vmatprep.subr.mxu0 0.0
      %1264 = vmatpush1.xpose.msra.mxu0 0.0
      %1265 = vmatprep.subr.mxu0 0.0
      %1266 = vmatpush1.xpose.msra.mxu0 0.0
      %1267 = vmatprep.subr.mxu0 0.0
      %1268 = vmatpush1.xpose.msra.mxu0 0.0
      %1269 = vmatprep.subr.mxu0 0.0
      %1270 = vmatpush1.xpose.msra.mxu0 0.0
      %1271 = vmatprep.subr.mxu0 0.0
      %1272 = vmatpush1.xpose.msra.mxu0 0.0
      %1273 = vmatprep.subr.mxu0 0.0
      %1274 = vmatpush1.xpose.msra.mxu0 0.0
      %1275 = vmatprep.subr.mxu0 0.0
      %1276 = vmatpush1.xpose.msra.mxu0 0.0
      %1277 = vmatprep.subr.mxu0 0.0
      %1278 = vmatpush1.xpose.msra.mxu0 0.0
      %1279 = vmatprep.subr.mxu0 0.0
      %1280 = vmatpush1.xpose.msra.mxu0 0.0
      %1281 = vmatprep.subr.mxu0 0.0
      %1282 = vmatpush1.xpose.msra.mxu0 0.0
      %1283 = vmatprep.subr.mxu0 0.0
      %1284 = vmatpush1.xpose.msra.mxu0 0.0
      %1285 = vmatprep.subr.mxu0 0.0
      %1286 = vmatpush1.xpose.msra.mxu0 0.0
      %1287 = vmatprep.subr.mxu0 0.0
      %1288 = vmatpush1.xpose.msra.mxu0 0.0
      %1289 = vmatprep.mubr.f32.mxu0 0.0
      %1290 = vmatmul.mubr.f32.gmra.mrb[0].mxu0 %v1217
      %v1291 = vpop.f32.mrb[0].mxu0
      %v1292 = vadd.f32 0.0, %v1291
      %v1293 = vpop.f32.mrb[0].mxu0
      %1294 = vmatprep.mubr.f32.mxu0 0.0
      %1295 = vmatmul.mubr.f32.gmra.mrb[0].mxu0 %v1219
      %v1296 = vpop.f32.mrb[0].mxu0
      %v1297 = vadd.f32 0.0, %v1296
      %v1298 = vpop.f32.mrb[0].mxu0
      %1299 = vdwg.mxu0
      %v1300 = vsel %vm667, %v1292, -inf
      %1301 = vmax.xlane.f32.xlu0 %v1300
      %v1302 = vpop.xlane.xlu0 %1301
      %v1303 = vsel %vm671, %v1297, -inf
      %1304 = vmax.xlane.f32.xlu0 %v1303
      %v1305 = vpop.xlane.xlu0 %1304
      %v1306 = vsub.f32 %v1292, %v1302
      %v1307 = vsub.f32 %v1297, %v1305
      %v1308 = vmul.f32 %v1306, 1.442695
      %v1309 = vpow.pop %v1308
      %v1310 = vmul.f32 %v1307, 1.442695
      %v1311 = vpow.pop %v1310
      %v1312 = vsel %vm667, %v1309, 0.0
      %1313 = vadd.xlane.f32.xlu0 %v1312
      %v1314 = vpop.xlane.xlu0 %1313
      %v1315 = vsel %vm671, %v1311, 0.0
      %1316 = vadd.xlane.f32.xlu0 %v1315
      %v1317 = vpop.xlane.xlu0 %1316
      %v1318 = vrcp.pop %v1314
      %v1319 = vrcp.pop %v1317
      %v1320 = vmul.f32 %v1309, %v1318
      %v1321 = vmul.f32 %v1311, %v1319
      %1322 = vrot.lane.b32.xlu0 %v569, 52
      %v1323 = vpop.permute.xlu0 %1322
      %1324 = vrot.lane.b32.xlu0 %v574, 52
      %v1325 = vpop.permute.xlu0 %1324
      %v1328 = vsel %vm667, %v1320, 0
      %v1331 = vsel %vm667, %v1321, 0
      %v1333 = vsel %vm702, %v1325, 0
      %1335 = vmatprep.subr.mxu0 0.0
      %1336 = vmatpush1.msra.mxu0 %v1323
      %1337 = vmatprep.subr.mxu0 0.0
      %1338 = vmatpush1.msra.mxu0 %v1333
      %1339 = vmatprep.subr.mxu0 0.0
      %1340 = vmatpush1.msra.mxu0 0.0
      %1341 = vmatprep.subr.mxu0 0.0
      %1342 = vmatpush1.msra.mxu0 0.0
      %1343 = vmatprep.subr.mxu0 0.0
      %1344 = vmatpush1.msra.mxu0 0.0
      %1345 = vmatprep.subr.mxu0 0.0
      %1346 = vmatpush1.msra.mxu0 0.0
      %1347 = vmatprep.subr.mxu0 0.0
      %1348 = vmatpush1.msra.mxu0 0.0
      %1349 = vmatprep.subr.mxu0 0.0
      %1350 = vmatpush1.msra.mxu0 0.0
      %1351 = vmatprep.subr.mxu0 0.0
      %1352 = vmatpush1.msra.mxu0 0.0
      %1353 = vmatprep.subr.mxu0 0.0
      %1354 = vmatpush1.msra.mxu0 0.0
      %1355 = vmatprep.subr.mxu0 0.0
      %1356 = vmatpush1.msra.mxu0 0.0
      %1357 = vmatprep.subr.mxu0 0.0
      %1358 = vmatpush1.msra.mxu0 0.0
      %1359 = vmatprep.subr.mxu0 0.0
      %1360 = vmatpush1.msra.mxu0 0.0
      %1361 = vmatprep.subr.mxu0 0.0
      %1362 = vmatpush1.msra.mxu0 0.0
      %1363 = vmatprep.subr.mxu0 0.0
      %1364 = vmatpush1.msra.mxu0 0.0
      %1365 = vmatprep.subr.mxu0 0.0
      %1366 = vmatpush1.msra.mxu0 0.0
      %1367 = vmatprep.subr.mxu0 0.0
      %1368 = vmatpush1.msra.mxu0 0.0
      %1369 = vmatprep.subr.mxu0 0.0
      %1370 = vmatpush1.msra.mxu0 0.0
      %1371 = vmatprep.subr.mxu0 0.0
      %1372 = vmatpush1.msra.mxu0 0.0
      %1373 = vmatprep.subr.mxu0 0.0
      %1374 = vmatpush1.msra.mxu0 0.0
      %1375 = vmatprep.subr.mxu0 0.0
      %1376 = vmatpush1.msra.mxu0 0.0
      %1377 = vmatprep.subr.mxu0 0.0
      %1378 = vmatpush1.msra.mxu0 0.0
      %1379 = vmatprep.subr.mxu0 0.0
      %1380 = vmatpush1.msra.mxu0 0.0
      %1381 = vmatprep.subr.mxu0 0.0
      %1382 = vmatpush1.msra.mxu0 0.0
      %1383 = vmatprep.subr.mxu0 0.0
      %1384 = vmatpush1.msra.mxu0 0.0
      %1385 = vmatprep.subr.mxu0 0.0
      %1386 = vmatpush1.msra.mxu0 0.0
      %1387 = vmatprep.subr.mxu0 0.0
      %1388 = vmatpush1.msra.mxu0 0.0
      %1389 = vmatprep.subr.mxu0 0.0
      %1390 = vmatpush1.msra.mxu0 0.0
      %1391 = vmatprep.subr.mxu0 0.0
      %1392 = vmatpush1.msra.mxu0 0.0
      %1393 = vmatprep.subr.mxu0 0.0
      %1394 = vmatpush1.msra.mxu0 0.0
      %1395 = vmatprep.subr.mxu0 0.0
      %1396 = vmatpush1.msra.mxu0 0.0
      %1397 = vmatprep.subr.mxu0 0.0
      %1398 = vmatpush1.msra.mxu0 0.0
      %1399 = vmatprep.mubr.f32.mxu0 0.0
      %1400 = vmatmul.mubr.f32.gmra.mrb[0].mxu0 %v1328
      %v1401 = vpop.f32.mrb[0].mxu0
      %v1402 = vadd.f32 0.0, %v1401
      %v1403 = vpop.f32.mrb[0].mxu0
      %1404 = vmatprep.mubr.f32.mxu0 0.0
      %1405 = vmatmul.mubr.f32.gmra.mrb[0].mxu0 %v1331
      %v1406 = vpop.f32.mrb[0].mxu0
      %v1407 = vadd.f32 0.0, %v1406
      %v1408 = vpop.f32.mrb[0].mxu0
      %1409 = vdwg.mxu0
      %1412 = vrot.lane.b32.xlu0 %v1402, 12
      %v1413 = vpop.permute.xlu0 %1412
      %1414 = vrot.lane.b32.xlu0 %v1407, 12
      %v1415 = vpop.permute.xlu0 %1414
      %vm1418 = vcmask 130144
      %1419 = vst.msk [vmem:[#allocation2] sm:$0xff] %vm1418, %v1413
      %vm1420 = vcmask 122976
      %1421 = vst.msk [vmem:[#allocation2 + $0x8] sm:$0x1] %vm1420, %v1415
      %1422 = vrot.lane.b32.xlu0 %v569, 112
      %v1423 = vpop.permute.xlu0 %1422
      %1424 = vrot.lane.b32.xlu0 %v574, 112
      %v1425 = vpop.permute.xlu0 %1424
      %1426 = vrot.lane.b32.xlu0 %v569, 80
      %v1427 = vpop.permute.xlu0 %1426
      %1428 = vrot.lane.b32.xlu0 %v574, 80
      %v1429 = vpop.permute.xlu0 %1428
      %v1430 = vsel %vm583, %v1423, 0
      %v1432 = vsel %vm583, %v1425, 0
      %v1434 = vsel %vm583, %v1427, 0
      %v1436 = vsel %vm583, %v1429, 0
      %1438 = vmatprep.subr.mxu0 0.0
      %1439 = vmatpush1.xpose.msra.mxu0 %v1434
      %1440 = vmatprep.subr.mxu0 0.0
      %1441 = vmatpush1.xpose.msra.mxu0 %v1436
      %1442 = vmatprep.subr.mxu0 0.0
      %1443 = vmatpush1.xpose.msra.mxu0 0.0
      %1444 = vmatprep.subr.mxu0 0.0
      %1445 = vmatpush1.xpose.msra.mxu0 0.0
      %1446 = vmatprep.subr.mxu0 0.0
      %1447 = vmatpush1.xpose.msra.mxu0 0.0
      %1448 = vmatprep.subr.mxu0 0.0
      %1449 = vmatpush1.xpose.msra.mxu0 0.0
      %1450 = vmatprep.subr.mxu0 0.0
      %1451 = vmatpush1.xpose.msra.mxu0 0.0
      %1452 = vmatprep.subr.mxu0 0.0
      %1453 = vmatpush1.xpose.msra.mxu0 0.0
      %1454 = vmatprep.subr.mxu0 0.0
      %1455 = vmatpush1.xpose.msra.mxu0 0.0
      %1456 = vmatprep.subr.mxu0 0.0
      %1457 = vmatpush1.xpose.msra.mxu0 0.0
      %1458 = vmatprep.subr.mxu0 0.0
      %1459 = vmatpush1.xpose.msra.mxu0 0.0
      %1460 = vmatprep.subr.mxu0 0.0
      %1461 = vmatpush1.xpose.msra.mxu0 0.0
      %1462 = vmatprep.subr.mxu0 0.0
      %1463 = vmatpush1.xpose.msra.mxu0 0.0
      %1464 = vmatprep.subr.mxu0 0.0
      %1465 = vmatpush1.xpose.msra.mxu0 0.0
      %1466 = vmatprep.subr.mxu0 0.0
      %1467 = vmatpush1.xpose.msra.mxu0 0.0
      %1468 = vmatprep.subr.mxu0 0.0
      %1469 = vmatpush1.xpose.msra.mxu0 0.0
      %1470 = vmatprep.subr.mxu0 0.0
      %1471 = vmatpush1.xpose.msra.mxu0 0.0
      %1472 = vmatprep.subr.mxu0 0.0
      %1473 = vmatpush1.xpose.msra.mxu0 0.0
      %1474 = vmatprep.subr.mxu0 0.0
      %1475 = vmatpush1.xpose.msra.mxu0 0.0
      %1476 = vmatprep.subr.mxu0 0.0
      %1477 = vmatpush1.xpose.msra.mxu0 0.0
      %1478 = vmatprep.subr.mxu0 0.0
      %1479 = vmatpush1.xpose.msra.mxu0 0.0
      %1480 = vmatprep.subr.mxu0 0.0
      %1481 = vmatpush1.xpose.msra.mxu0 0.0
      %1482 = vmatprep.subr.mxu0 0.0
      %1483 = vmatpush1.xpose.msra.mxu0 0.0
      %1484 = vmatprep.subr.mxu0 0.0
      %1485 = vmatpush1.xpose.msra.mxu0 0.0
      %1486 = vmatprep.subr.mxu0 0.0
      %1487 = vmatpush1.xpose.msra.mxu0 0.0
      %1488 = vmatprep.subr.mxu0 0.0
      %1489 = vmatpush1.xpose.msra.mxu0 0.0
      %1490 = vmatprep.subr.mxu0 0.0
      %1491 = vmatpush1.xpose.msra.mxu0 0.0
      %1492 = vmatprep.subr.mxu0 0.0
      %1493 = vmatpush1.xpose.msra.mxu0 0.0
      %1494 = vmatprep.subr.mxu0 0.0
      %1495 = vmatpush1.xpose.msra.mxu0 0.0
      %1496 = vmatprep.subr.mxu0 0.0
      %1497 = vmatpush1.xpose.msra.mxu0 0.0
      %1498 = vmatprep.subr.mxu0 0.0
      %1499 = vmatpush1.xpose.msra.mxu0 0.0
      %1500 = vmatprep.subr.mxu0 0.0
      %1501 = vmatpush1.xpose.msra.mxu0 0.0
      %1502 = vmatprep.mubr.f32.mxu0 0.0
      %1503 = vmatmul.mubr.f32.gmra.mrb[0].mxu0 %v1430
      %v1504 = vpop.f32.mrb[0].mxu0
      %v1505 = vadd.f32 0.0, %v1504
      %v1506 = vpop.f32.mrb[0].mxu0
      %1507 = vmatprep.mubr.f32.mxu0 0.0
      %1508 = vmatmul.mubr.f32.gmra.mrb[0].mxu0 %v1432
      %v1509 = vpop.f32.mrb[0].mxu0
      %v1510 = vadd.f32 0.0, %v1509
      %v1511 = vpop.f32.mrb[0].mxu0
      %1512 = vdwg.mxu0
      %v1513 = vsel %vm667, %v1505, -inf
      %1514 = vmax.xlane.f32.xlu0 %v1513
      %v1515 = vpop.xlane.xlu0 %1514
      %v1516 = vsel %vm671, %v1510, -inf
      %1517 = vmax.xlane.f32.xlu0 %v1516
      %v1518 = vpop.xlane.xlu0 %1517
      %v1519 = vsub.f32 %v1505, %v1515
      %v1520 = vsub.f32 %v1510, %v1518
      %v1521 = vmul.f32 %v1519, 1.442695
      %v1522 = vpow.pop %v1521
      %v1523 = vmul.f32 %v1520, 1.442695
      %v1524 = vpow.pop %v1523
      %v1525 = vsel %vm667, %v1522, 0.0
      %1526 = vadd.xlane.f32.xlu0 %v1525
      %v1527 = vpop.xlane.xlu0 %1526
      %v1528 = vsel %vm671, %v1524, 0.0
      %1529 = vadd.xlane.f32.xlu0 %v1528
      %v1530 = vpop.xlane.xlu0 %1529
      %v1531 = vrcp.pop %v1527
      %v1532 = vrcp.pop %v1530
      %v1533 = vmul.f32 %v1522, %v1531
      %v1534 = vmul.f32 %v1524, %v1532
      %1535 = vrot.lane.b32.xlu0 %v569, 48
      %v1536 = vpop.permute.xlu0 %1535
      %1537 = vrot.lane.b32.xlu0 %v574, 48
      %v1538 = vpop.permute.xlu0 %1537
      %v1541 = vsel %vm667, %v1533, 0
      %v1544 = vsel %vm667, %v1534, 0
      %v1546 = vsel %vm702, %v1538, 0
      %1548 = vmatprep.subr.mxu0 0.0
      %1549 = vmatpush1.msra.mxu0 %v1536
      %1550 = vmatprep.subr.mxu0 0.0
      %1551 = vmatpush1.msra.mxu0 %v1546
      %1552 = vmatprep.subr.mxu0 0.0
      %1553 = vmatpush1.msra.mxu0 0.0
      %1554 = vmatprep.subr.mxu0 0.0
      %1555 = vmatpush1.msra.mxu0 0.0
      %1556 = vmatprep.subr.mxu0 0.0
      %1557 = vmatpush1.msra.mxu0 0.0
      %1558 = vmatprep.subr.mxu0 0.0
      %1559 = vmatpush1.msra.mxu0 0.0
      %1560 = vmatprep.subr.mxu0 0.0
      %1561 = vmatpush1.msra.mxu0 0.0
      %1562 = vmatprep.subr.mxu0 0.0
      %1563 = vmatpush1.msra.mxu0 0.0
      %1564 = vmatprep.subr.mxu0 0.0
      %1565 = vmatpush1.msra.mxu0 0.0
      %1566 = vmatprep.subr.mxu0 0.0
      %1567 = vmatpush1.msra.mxu0 0.0
      %1568 = vmatprep.subr.mxu0 0.0
      %1569 = vmatpush1.msra.mxu0 0.0
      %1570 = vmatprep.subr.mxu0 0.0
      %1571 = vmatpush1.msra.mxu0 0.0
      %1572 = vmatprep.subr.mxu0 0.0
      %1573 = vmatpush1.msra.mxu0 0.0
      %1574 = vmatprep.subr.mxu0 0.0
      %1575 = vmatpush1.msra.mxu0 0.0
      %1576 = vmatprep.subr.mxu0 0.0
      %1577 = vmatpush1.msra.mxu0 0.0
      %1578 = vmatprep.subr.mxu0 0.0
      %1579 = vmatpush1.msra.mxu0 0.0
      %1580 = vmatprep.subr.mxu0 0.0
      %1581 = vmatpush1.msra.mxu0 0.0
      %1582 = vmatprep.subr.mxu0 0.0
      %1583 = vmatpush1.msra.mxu0 0.0
      %1584 = vmatprep.subr.mxu0 0.0
      %1585 = vmatpush1.msra.mxu0 0.0
      %1586 = vmatprep.subr.mxu0 0.0
      %1587 = vmatpush1.msra.mxu0 0.0
      %1588 = vmatprep.subr.mxu0 0.0
      %1589 = vmatpush1.msra.mxu0 0.0
      %1590 = vmatprep.subr.mxu0 0.0
      %1591 = vmatpush1.msra.mxu0 0.0
      %1592 = vmatprep.subr.mxu0 0.0
      %1593 = vmatpush1.msra.mxu0 0.0
      %1594 = vmatprep.subr.mxu0 0.0
      %1595 = vmatpush1.msra.mxu0 0.0
      %1596 = vmatprep.subr.mxu0 0.0
      %1597 = vmatpush1.msra.mxu0 0.0
      %1598 = vmatprep.subr.mxu0 0.0
      %1599 = vmatpush1.msra.mxu0 0.0
      %1600 = vmatprep.subr.mxu0 0.0
      %1601 = vmatpush1.msra.mxu0 0.0
      %1602 = vmatprep.subr.mxu0 0.0
      %1603 = vmatpush1.msra.mxu0 0.0
      %1604 = vmatprep.subr.mxu0 0.0
      %1605 = vmatpush1.msra.mxu0 0.0
      %1606 = vmatprep.subr.mxu0 0.0
      %1607 = vmatpush1.msra.mxu0 0.0
      %1608 = vmatprep.subr.mxu0 0.0
      %1609 = vmatpush1.msra.mxu0 0.0
      %1610 = vmatprep.subr.mxu0 0.0
      %1611 = vmatpush1.msra.mxu0 0.0
      %1612 = vmatprep.mubr.f32.mxu0 0.0
      %1613 = vmatmul.mubr.f32.gmra.mrb[0].mxu0 %v1541
      %v1614 = vpop.f32.mrb[0].mxu0
      %v1615 = vadd.f32 0.0, %v1614
      %v1616 = vpop.f32.mrb[0].mxu0
      %1617 = vmatprep.mubr.f32.mxu0 0.0
      %1618 = vmatmul.mubr.f32.gmra.mrb[0].mxu0 %v1544
      %v1619 = vpop.f32.mrb[0].mxu0
      %v1620 = vadd.f32 0.0, %v1619
      %v1621 = vpop.f32.mrb[0].mxu0
      %1622 = vdwg.mxu0
      %1625 = vrot.lane.b32.xlu0 %v1615, 16
      %v1626 = vpop.permute.xlu0 %1625
      %1627 = vrot.lane.b32.xlu0 %v1620, 16
      %v1628 = vpop.permute.xlu0 %1627
      %vm1631 = vcmask 162944
      %1632 = vst.msk [vmem:[#allocation2] sm:$0xff] %vm1631, %v1626
      %vm1633 = vcmask 155776
      %1634 = vst.msk [vmem:[#allocation2 + $0x8] sm:$0x1] %vm1633, %v1628
      %1635 = vrot.lane.b32.xlu0 %v569, 108
      %v1636 = vpop.permute.xlu0 %1635
      %1637 = vrot.lane.b32.xlu0 %v574, 108
      %v1638 = vpop.permute.xlu0 %1637
      %1639 = vrot.lane.b32.xlu0 %v569, 76
      %v1640 = vpop.permute.xlu0 %1639
      %1641 = vrot.lane.b32.xlu0 %v574, 76
      %v1642 = vpop.permute.xlu0 %1641
      %v1643 = vsel %vm583, %v1636, 0
      %v1645 = vsel %vm583, %v1638, 0
      %v1647 = vsel %vm583, %v1640, 0
      %v1649 = vsel %vm583, %v1642, 0
      %1651 = vmatprep.subr.mxu0 0.0
      %1652 = vmatpush1.xpose.msra.mxu0 %v1647
      %1653 = vmatprep.subr.mxu0 0.0
      %1654 = vmatpush1.xpose.msra.mxu0 %v1649
      %1655 = vmatprep.subr.mxu0 0.0
      %1656 = vmatpush1.xpose.msra.mxu0 0.0
      %1657 = vmatprep.subr.mxu0 0.0
      %1658 = vmatpush1.xpose.msra.mxu0 0.0
      %1659 = vmatprep.subr.mxu0 0.0
      %1660 = vmatpush1.xpose.msra.mxu0 0.0
      %1661 = vmatprep.subr.mxu0 0.0
      %1662 = vmatpush1.xpose.msra.mxu0 0.0
      %1663 = vmatprep.subr.mxu0 0.0
      %1664 = vmatpush1.xpose.msra.mxu0 0.0
      %1665 = vmatprep.subr.mxu0 0.0
      %1666 = vmatpush1.xpose.msra.mxu0 0.0
      %1667 = vmatprep.subr.mxu0 0.0
      %1668 = vmatpush1.xpose.msra.mxu0 0.0
      %1669 = vmatprep.subr.mxu0 0.0
      %1670 = vmatpush1.xpose.msra.mxu0 0.0
      %1671 = vmatprep.subr.mxu0 0.0
      %1672 = vmatpush1.xpose.msra.mxu0 0.0
      %1673 = vmatprep.subr.mxu0 0.0
      %1674 = vmatpush1.xpose.msra.mxu0 0.0
      %1675 = vmatprep.subr.mxu0 0.0
      %1676 = vmatpush1.xpose.msra.mxu0 0.0
      %1677 = vmatprep.subr.mxu0 0.0
      %1678 = vmatpush1.xpose.msra.mxu0 0.0
      %1679 = vmatprep.subr.mxu0 0.0
      %1680 = vmatpush1.xpose.msra.mxu0 0.0
      %1681 = vmatprep.subr.mxu0 0.0
      %1682 = vmatpush1.xpose.msra.mxu0 0.0
      %1683 = vmatprep.subr.mxu0 0.0
      %1684 = vmatpush1.xpose.msra.mxu0 0.0
      %1685 = vmatprep.subr.mxu0 0.0
      %1686 = vmatpush1.xpose.msra.mxu0 0.0
      %1687 = vmatprep.subr.mxu0 0.0
      %1688 = vmatpush1.xpose.msra.mxu0 0.0
      %1689 = vmatprep.subr.mxu0 0.0
      %1690 = vmatpush1.xpose.msra.mxu0 0.0
      %1691 = vmatprep.subr.mxu0 0.0
      %1692 = vmatpush1.xpose.msra.mxu0 0.0
      %1693 = vmatprep.subr.mxu0 0.0
      %1694 = vmatpush1.xpose.msra.mxu0 0.0
      %1695 = vmatprep.subr.mxu0 0.0
      %1696 = vmatpush1.xpose.msra.mxu0 0.0
      %1697 = vmatprep.subr.mxu0 0.0
      %1698 = vmatpush1.xpose.msra.mxu0 0.0
      %1699 = vmatprep.subr.mxu0 0.0
      %1700 = vmatpush1.xpose.msra.mxu0 0.0
      %1701 = vmatprep.subr.mxu0 0.0
      %1702 = vmatpush1.xpose.msra.mxu0 0.0
      %1703 = vmatprep.subr.mxu0 0.0
      %1704 = vmatpush1.xpose.msra.mxu0 0.0
      %1705 = vmatprep.subr.mxu0 0.0
      %1706 = vmatpush1.xpose.msra.mxu0 0.0
      %1707 = vmatprep.subr.mxu0 0.0
      %1708 = vmatpush1.xpose.msra.mxu0 0.0
      %1709 = vmatprep.subr.mxu0 0.0
      %1710 = vmatpush1.xpose.msra.mxu0 0.0
      %1711 = vmatprep.subr.mxu0 0.0
      %1712 = vmatpush1.xpose.msra.mxu0 0.0
      %1713 = vmatprep.subr.mxu0 0.0
      %1714 = vmatpush1.xpose.msra.mxu0 0.0
      %1715 = vmatprep.mubr.f32.mxu0 0.0
      %1716 = vmatmul.mubr.f32.gmra.mrb[0].mxu0 %v1643
      %v1717 = vpop.f32.mrb[0].mxu0
      %v1718 = vadd.f32 0.0, %v1717
      %v1719 = vpop.f32.mrb[0].mxu0
      %1720 = vmatprep.mubr.f32.mxu0 0.0
      %1721 = vmatmul.mubr.f32.gmra.mrb[0].mxu0 %v1645
      %v1722 = vpop.f32.mrb[0].mxu0
      %v1723 = vadd.f32 0.0, %v1722
      %v1724 = vpop.f32.mrb[0].mxu0
      %1725 = vdwg.mxu0
      %v1726 = vsel %vm667, %v1718, -inf
      %1727 = vmax.xlane.f32.xlu0 %v1726
      %v1728 = vpop.xlane.xlu0 %1727
      %v1729 = vsel %vm671, %v1723, -inf
      %1730 = vmax.xlane.f32.xlu0 %v1729
      %v1731 = vpop.xlane.xlu0 %1730
      %v1732 = vsub.f32 %v1718, %v1728
      %v1733 = vsub.f32 %v1723, %v1731
      %v1734 = vmul.f32 %v1732, 1.442695
      %v1735 = vpow.pop %v1734
      %v1736 = vmul.f32 %v1733, 1.442695
      %v1737 = vpow.pop %v1736
      %v1738 = vsel %vm667, %v1735, 0.0
      %1739 = vadd.xlane.f32.xlu0 %v1738
      %v1740 = vpop.xlane.xlu0 %1739
      %v1741 = vsel %vm671, %v1737, 0.0
      %1742 = vadd.xlane.f32.xlu0 %v1741
      %v1743 = vpop.xlane.xlu0 %1742
      %v1744 = vrcp.pop %v1740
      %v1745 = vrcp.pop %v1743
      %v1746 = vmul.f32 %v1735, %v1744
      %v1747 = vmul.f32 %v1737, %v1745
      %1748 = vrot.lane.b32.xlu0 %v569, 44
      %v1749 = vpop.permute.xlu0 %1748
      %1750 = vrot.lane.b32.xlu0 %v574, 44
      %v1751 = vpop.permute.xlu0 %1750
      %v1754 = vsel %vm667, %v1746, 0
      %v1757 = vsel %vm667, %v1747, 0
      %v1759 = vsel %vm702, %v1751, 0
      %1761 = vmatprep.subr.mxu0 0.0
      %1762 = vmatpush1.msra.mxu0 %v1749
      %1763 = vmatprep.subr.mxu0 0.0
      %1764 = vmatpush1.msra.mxu0 %v1759
      %1765 = vmatprep.subr.mxu0 0.0
      %1766 = vmatpush1.msra.mxu0 0.0
      %1767 = vmatprep.subr.mxu0 0.0
      %1768 = vmatpush1.msra.mxu0 0.0
      %1769 = vmatprep.subr.mxu0 0.0
      %1770 = vmatpush1.msra.mxu0 0.0
      %1771 = vmatprep.subr.mxu0 0.0
      %1772 = vmatpush1.msra.mxu0 0.0
      %1773 = vmatprep.subr.mxu0 0.0
      %1774 = vmatpush1.msra.mxu0 0.0
      %1775 = vmatprep.subr.mxu0 0.0
      %1776 = vmatpush1.msra.mxu0 0.0
      %1777 = vmatprep.subr.mxu0 0.0
      %1778 = vmatpush1.msra.mxu0 0.0
      %1779 = vmatprep.subr.mxu0 0.0
      %1780 = vmatpush1.msra.mxu0 0.0
      %1781 = vmatprep.subr.mxu0 0.0
      %1782 = vmatpush1.msra.mxu0 0.0
      %1783 = vmatprep.subr.mxu0 0.0
      %1784 = vmatpush1.msra.mxu0 0.0
      %1785 = vmatprep.subr.mxu0 0.0
      %1786 = vmatpush1.msra.mxu0 0.0
      %1787 = vmatprep.subr.mxu0 0.0
      %1788 = vmatpush1.msra.mxu0 0.0
      %1789 = vmatprep.subr.mxu0 0.0
      %1790 = vmatpush1.msra.mxu0 0.0
      %1791 = vmatprep.subr.mxu0 0.0
      %1792 = vmatpush1.msra.mxu0 0.0
      %1793 = vmatprep.subr.mxu0 0.0
      %1794 = vmatpush1.msra.mxu0 0.0
      %1795 = vmatprep.subr.mxu0 0.0
      %1796 = vmatpush1.msra.mxu0 0.0
      %1797 = vmatprep.subr.mxu0 0.0
      %1798 = vmatpush1.msra.mxu0 0.0
      %1799 = vmatprep.subr.mxu0 0.0
      %1800 = vmatpush1.msra.mxu0 0.0
      %1801 = vmatprep.subr.mxu0 0.0
      %1802 = vmatpush1.msra.mxu0 0.0
      %1803 = vmatprep.subr.mxu0 0.0
      %1804 = vmatpush1.msra.mxu0 0.0
      %1805 = vmatprep.subr.mxu0 0.0
      %1806 = vmatpush1.msra.mxu0 0.0
      %1807 = vmatprep.subr.mxu0 0.0
      %1808 = vmatpush1.msra.mxu0 0.0
      %1809 = vmatprep.subr.mxu0 0.0
      %1810 = vmatpush1.msra.mxu0 0.0
      %1811 = vmatprep.subr.mxu0 0.0
      %1812 = vmatpush1.msra.mxu0 0.0
      %1813 = vmatprep.subr.mxu0 0.0
      %1814 = vmatpush1.msra.mxu0 0.0
      %1815 = vmatprep.subr.mxu0 0.0
      %1816 = vmatpush1.msra.mxu0 0.0
      %1817 = vmatprep.subr.mxu0 0.0
      %1818 = vmatpush1.msra.mxu0 0.0
      %1819 = vmatprep.subr.mxu0 0.0
      %1820 = vmatpush1.msra.mxu0 0.0
      %1821 = vmatprep.subr.mxu0 0.0
      %1822 = vmatpush1.msra.mxu0 0.0
      %1823 = vmatprep.subr.mxu0 0.0
      %1824 = vmatpush1.msra.mxu0 0.0
      %1825 = vmatprep.mubr.f32.mxu0 0.0
      %1826 = vmatmul.mubr.f32.gmra.mrb[0].mxu0 %v1754
      %v1827 = vpop.f32.mrb[0].mxu0
      %v1828 = vadd.f32 0.0, %v1827
      %v1829 = vpop.f32.mrb[0].mxu0
      %1830 = vmatprep.mubr.f32.mxu0 0.0
      %1831 = vmatmul.mubr.f32.gmra.mrb[0].mxu0 %v1757
      %v1832 = vpop.f32.mrb[0].mxu0
      %v1833 = vadd.f32 0.0, %v1832
      %v1834 = vpop.f32.mrb[0].mxu0
      %1835 = vdwg.mxu0
      %1838 = vrot.lane.b32.xlu0 %v1828, 20
      %v1839 = vpop.permute.xlu0 %1838
      %1840 = vrot.lane.b32.xlu0 %v1833, 20
      %v1841 = vpop.permute.xlu0 %1840
      %vm1844 = vcmask 195744
      %1845 = vst.msk [vmem:[#allocation2] sm:$0xff] %vm1844, %v1839
      %vm1846 = vcmask 188576
      %1847 = vst.msk [vmem:[#allocation2 + $0x8] sm:$0x1] %vm1846, %v1841
      %1848 = vrot.lane.b32.xlu0 %v569, 104
      %v1849 = vpop.permute.xlu0 %1848
      %1850 = vrot.lane.b32.xlu0 %v574, 104
      %v1851 = vpop.permute.xlu0 %1850
      %1852 = vrot.lane.b32.xlu0 %v569, 72
      %v1853 = vpop.permute.xlu0 %1852
      %1854 = vrot.lane.b32.xlu0 %v574, 72
      %v1855 = vpop.permute.xlu0 %1854
      %v1856 = vsel %vm583, %v1849, 0
      %v1858 = vsel %vm583, %v1851, 0
      %v1860 = vsel %vm583, %v1853, 0
      %v1862 = vsel %vm583, %v1855, 0
      %1864 = vmatprep.subr.mxu0 0.0
      %1865 = vmatpush1.xpose.msra.mxu0 %v1860
      %1866 = vmatprep.subr.mxu0 0.0
      %1867 = vmatpush1.xpose.msra.mxu0 %v1862
      %1868 = vmatprep.subr.mxu0 0.0
      %1869 = vmatpush1.xpose.msra.mxu0 0.0
      %1870 = vmatprep.subr.mxu0 0.0
      %1871 = vmatpush1.xpose.msra.mxu0 0.0
      %1872 = vmatprep.subr.mxu0 0.0
      %1873 = vmatpush1.xpose.msra.mxu0 0.0
      %1874 = vmatprep.subr.mxu0 0.0
      %1875 = vmatpush1.xpose.msra.mxu0 0.0
      %1876 = vmatprep.subr.mxu0 0.0
      %1877 = vmatpush1.xpose.msra.mxu0 0.0
      %1878 = vmatprep.subr.mxu0 0.0
      %1879 = vmatpush1.xpose.msra.mxu0 0.0
      %1880 = vmatprep.subr.mxu0 0.0
      %1881 = vmatpush1.xpose.msra.mxu0 0.0
      %1882 = vmatprep.subr.mxu0 0.0
      %1883 = vmatpush1.xpose.msra.mxu0 0.0
      %1884 = vmatprep.subr.mxu0 0.0
      %1885 = vmatpush1.xpose.msra.mxu0 0.0
      %1886 = vmatprep.subr.mxu0 0.0
      %1887 = vmatpush1.xpose.msra.mxu0 0.0
      %1888 = vmatprep.subr.mxu0 0.0
      %1889 = vmatpush1.xpose.msra.mxu0 0.0
      %1890 = vmatprep.subr.mxu0 0.0
      %1891 = vmatpush1.xpose.msra.mxu0 0.0
      %1892 = vmatprep.subr.mxu0 0.0
      %1893 = vmatpush1.xpose.msra.mxu0 0.0
      %1894 = vmatprep.subr.mxu0 0.0
      %1895 = vmatpush1.xpose.msra.mxu0 0.0
      %1896 = vmatprep.subr.mxu0 0.0
      %1897 = vmatpush1.xpose.msra.mxu0 0.0
      %1898 = vmatprep.subr.mxu0 0.0
      %1899 = vmatpush1.xpose.msra.mxu0 0.0
      %1900 = vmatprep.subr.mxu0 0.0
      %1901 = vmatpush1.xpose.msra.mxu0 0.0
      %1902 = vmatprep.subr.mxu0 0.0
      %1903 = vmatpush1.xpose.msra.mxu0 0.0
      %1904 = vmatprep.subr.mxu0 0.0
      %1905 = vmatpush1.xpose.msra.mxu0 0.0
      %1906 = vmatprep.subr.mxu0 0.0
      %1907 = vmatpush1.xpose.msra.mxu0 0.0
      %1908 = vmatprep.subr.mxu0 0.0
      %1909 = vmatpush1.xpose.msra.mxu0 0.0
      %1910 = vmatprep.subr.mxu0 0.0
      %1911 = vmatpush1.xpose.msra.mxu0 0.0
      %1912 = vmatprep.subr.mxu0 0.0
      %1913 = vmatpush1.xpose.msra.mxu0 0.0
      %1914 = vmatprep.subr.mxu0 0.0
      %1915 = vmatpush1.xpose.msra.mxu0 0.0
      %1916 = vmatprep.subr.mxu0 0.0
      %1917 = vmatpush1.xpose.msra.mxu0 0.0
      %1918 = vmatprep.subr.mxu0 0.0
      %1919 = vmatpush1.xpose.msra.mxu0 0.0
      %1920 = vmatprep.subr.mxu0 0.0
      %1921 = vmatpush1.xpose.msra.mxu0 0.0
      %1922 = vmatprep.subr.mxu0 0.0
      %1923 = vmatpush1.xpose.msra.mxu0 0.0
      %1924 = vmatprep.subr.mxu0 0.0
      %1925 = vmatpush1.xpose.msra.mxu0 0.0
      %1926 = vmatprep.subr.mxu0 0.0
      %1927 = vmatpush1.xpose.msra.mxu0 0.0
      %1928 = vmatprep.mubr.f32.mxu0 0.0
      %1929 = vmatmul.mubr.f32.gmra.mrb[0].mxu0 %v1856
      %v1930 = vpop.f32.mrb[0].mxu0
      %v1931 = vadd.f32 0.0, %v1930
      %v1932 = vpop.f32.mrb[0].mxu0
      %1933 = vmatprep.mubr.f32.mxu0 0.0
      %1934 = vmatmul.mubr.f32.gmra.mrb[0].mxu0 %v1858
      %v1935 = vpop.f32.mrb[0].mxu0
      %v1936 = vadd.f32 0.0, %v1935
      %v1937 = vpop.f32.mrb[0].mxu0
      %1938 = vdwg.mxu0
      %v1939 = vsel %vm667, %v1931, -inf
      %1940 = vmax.xlane.f32.xlu0 %v1939
      %v1941 = vpop.xlane.xlu0 %1940
      %v1942 = vsel %vm671, %v1936, -inf
      %1943 = vmax.xlane.f32.xlu0 %v1942
      %v1944 = vpop.xlane.xlu0 %1943
      %v1945 = vsub.f32 %v1931, %v1941
      %v1946 = vsub.f32 %v1936, %v1944
      %v1947 = vmul.f32 %v1945, 1.442695
      %v1948 = vpow.pop %v1947
      %v1949 = vmul.f32 %v1946, 1.442695
      %v1950 = vpow.pop %v1949
      %v1951 = vsel %vm667, %v1948, 0.0
      %1952 = vadd.xlane.f32.xlu0 %v1951
      %v1953 = vpop.xlane.xlu0 %1952
      %v1954 = vsel %vm671, %v1950, 0.0
      %1955 = vadd.xlane.f32.xlu0 %v1954
      %v1956 = vpop.xlane.xlu0 %1955
      %v1957 = vrcp.pop %v1953
      %v1958 = vrcp.pop %v1956
      %v1959 = vmul.f32 %v1948, %v1957
      %v1960 = vmul.f32 %v1950, %v1958
      %1961 = vrot.lane.b32.xlu0 %v569, 40
      %v1962 = vpop.permute.xlu0 %1961
      %1963 = vrot.lane.b32.xlu0 %v574, 40
      %v1964 = vpop.permute.xlu0 %1963
      %v1967 = vsel %vm667, %v1959, 0
      %v1970 = vsel %vm667, %v1960, 0
      %v1972 = vsel %vm702, %v1964, 0
      %1974 = vmatprep.subr.mxu0 0.0
      %1975 = vmatpush1.msra.mxu0 %v1962
      %1976 = vmatprep.subr.mxu0 0.0
      %1977 = vmatpush1.msra.mxu0 %v1972
      %1978 = vmatprep.subr.mxu0 0.0
      %1979 = vmatpush1.msra.mxu0 0.0
      %1980 = vmatprep.subr.mxu0 0.0
      %1981 = vmatpush1.msra.mxu0 0.0
      %1982 = vmatprep.subr.mxu0 0.0
      %1983 = vmatpush1.msra.mxu0 0.0
      %1984 = vmatprep.subr.mxu0 0.0
      %1985 = vmatpush1.msra.mxu0 0.0
      %1986 = vmatprep.subr.mxu0 0.0
      %1987 = vmatpush1.msra.mxu0 0.0
      %1988 = vmatprep.subr.mxu0 0.0
      %1989 = vmatpush1.msra.mxu0 0.0
      %1990 = vmatprep.subr.mxu0 0.0
      %1991 = vmatpush1.msra.mxu0 0.0
      %1992 = vmatprep.subr.mxu0 0.0
      %1993 = vmatpush1.msra.mxu0 0.0
      %1994 = vmatprep.subr.mxu0 0.0
      %1995 = vmatpush1.msra.mxu0 0.0
      %1996 = vmatprep.subr.mxu0 0.0
      %1997 = vmatpush1.msra.mxu0 0.0
      %1998 = vmatprep.subr.mxu0 0.0
      %1999 = vmatpush1.msra.mxu0 0.0
      %2000 = vmatprep.subr.mxu0 0.0
      %2001 = vmatpush1.msra.mxu0 0.0
      %2002 = vmatprep.subr.mxu0 0.0
      %2003 = vmatpush1.msra.mxu0 0.0
      %2004 = vmatprep.subr.mxu0 0.0
      %2005 = vmatpush1.msra.mxu0 0.0
      %2006 = vmatprep.subr.mxu0 0.0
      %2007 = vmatpush1.msra.mxu0 0.0
      %2008 = vmatprep.subr.mxu0 0.0
      %2009 = vmatpush1.msra.mxu0 0.0
      %2010 = vmatprep.subr.mxu0 0.0
      %2011 = vmatpush1.msra.mxu0 0.0
      %2012 = vmatprep.subr.mxu0 0.0
      %2013 = vmatpush1.msra.mxu0 0.0
      %2014 = vmatprep.subr.mxu0 0.0
      %2015 = vmatpush1.msra.mxu0 0.0
      %2016 = vmatprep.subr.mxu0 0.0
      %2017 = vmatpush1.msra.mxu0 0.0
      %2018 = vmatprep.subr.mxu0 0.0
      %2019 = vmatpush1.msra.mxu0 0.0
      %2020 = vmatprep.subr.mxu0 0.0
      %2021 = vmatpush1.msra.mxu0 0.0
      %2022 = vmatprep.subr.mxu0 0.0
      %2023 = vmatpush1.msra.mxu0 0.0
      %2024 = vmatprep.subr.mxu0 0.0
      %2025 = vmatpush1.msra.mxu0 0.0
      %2026 = vmatprep.subr.mxu0 0.0
      %2027 = vmatpush1.msra.mxu0 0.0
      %2028 = vmatprep.subr.mxu0 0.0
      %2029 = vmatpush1.msra.mxu0 0.0
      %2030 = vmatprep.subr.mxu0 0.0
      %2031 = vmatpush1.msra.mxu0 0.0
      %2032 = vmatprep.subr.mxu0 0.0
      %2033 = vmatpush1.msra.mxu0 0.0
      %2034 = vmatprep.subr.mxu0 0.0
      %2035 = vmatpush1.msra.mxu0 0.0
      %2036 = vmatprep.subr.mxu0 0.0
      %2037 = vmatpush1.msra.mxu0 0.0
      %2038 = vmatprep.mubr.f32.mxu0 0.0
      %2039 = vmatmul.mubr.f32.gmra.mrb[0].mxu0 %v1967
      %v2040 = vpop.f32.mrb[0].mxu0
      %v2041 = vadd.f32 0.0, %v2040
      %v2042 = vpop.f32.mrb[0].mxu0
      %2043 = vmatprep.mubr.f32.mxu0 0.0
      %2044 = vmatmul.mubr.f32.gmra.mrb[0].mxu0 %v1970
      %v2045 = vpop.f32.mrb[0].mxu0
      %v2046 = vadd.f32 0.0, %v2045
      %v2047 = vpop.f32.mrb[0].mxu0
      %2048 = vdwg.mxu0
      %2051 = vrot.lane.b32.xlu0 %v2041, 24
      %v2052 = vpop.permute.xlu0 %2051
      %2053 = vrot.lane.b32.xlu0 %v2046, 24
      %v2054 = vpop.permute.xlu0 %2053
      %vm2057 = vcmask 228544
      %2058 = vst.msk [vmem:[#allocation2] sm:$0xff] %vm2057, %v2052
      %vm2059 = vcmask 221376
      %2060 = vst.msk [vmem:[#allocation2 + $0x8] sm:$0x1] %vm2059, %v2054
      %2061 = vrot.lane.b32.xlu0 %v569, 100
      %v2062 = vpop.permute.xlu0 %2061
      %2063 = vrot.lane.b32.xlu0 %v574, 100
      %v2064 = vpop.permute.xlu0 %2063
      %2065 = vrot.lane.b32.xlu0 %v569, 68
      %v2066 = vpop.permute.xlu0 %2065
      %2067 = vrot.lane.b32.xlu0 %v574, 68
      %v2068 = vpop.permute.xlu0 %2067
      %v2069 = vsel %vm583, %v2062, 0
      %v2071 = vsel %vm583, %v2064, 0
      %v2073 = vsel %vm583, %v2066, 0
      %v2075 = vsel %vm583, %v2068, 0
      %2077 = vmatprep.subr.mxu0 0.0
      %2078 = vmatpush1.xpose.msra.mxu0 %v2073
      %2079 = vmatprep.subr.mxu0 0.0
      %2080 = vmatpush1.xpose.msra.mxu0 %v2075
      %2081 = vmatprep.subr.mxu0 0.0
      %2082 = vmatpush1.xpose.msra.mxu0 0.0
      %2083 = vmatprep.subr.mxu0 0.0
      %2084 = vmatpush1.xpose.msra.mxu0 0.0
      %2085 = vmatprep.subr.mxu0 0.0
      %2086 = vmatpush1.xpose.msra.mxu0 0.0
      %2087 = vmatprep.subr.mxu0 0.0
      %2088 = vmatpush1.xpose.msra.mxu0 0.0
      %2089 = vmatprep.subr.mxu0 0.0
      %2090 = vmatpush1.xpose.msra.mxu0 0.0
      %2091 = vmatprep.subr.mxu0 0.0
      %2092 = vmatpush1.xpose.msra.mxu0 0.0
      %2093 = vmatprep.subr.mxu0 0.0
      %2094 = vmatpush1.xpose.msra.mxu0 0.0
      %2095 = vmatprep.subr.mxu0 0.0
      %2096 = vmatpush1.xpose.msra.mxu0 0.0
      %2097 = vmatprep.subr.mxu0 0.0
      %2098 = vmatpush1.xpose.msra.mxu0 0.0
      %2099 = vmatprep.subr.mxu0 0.0
      %2100 = vmatpush1.xpose.msra.mxu0 0.0
      %2101 = vmatprep.subr.mxu0 0.0
      %2102 = vmatpush1.xpose.msra.mxu0 0.0
      %2103 = vmatprep.subr.mxu0 0.0
      %2104 = vmatpush1.xpose.msra.mxu0 0.0
      %2105 = vmatprep.subr.mxu0 0.0
      %2106 = vmatpush1.xpose.msra.mxu0 0.0
      %2107 = vmatprep.subr.mxu0 0.0
      %2108 = vmatpush1.xpose.msra.mxu0 0.0
      %2109 = vmatprep.subr.mxu0 0.0
      %2110 = vmatpush1.xpose.msra.mxu0 0.0
      %2111 = vmatprep.subr.mxu0 0.0
      %2112 = vmatpush1.xpose.msra.mxu0 0.0
      %2113 = vmatprep.subr.mxu0 0.0
      %2114 = vmatpush1.xpose.msra.mxu0 0.0
      %2115 = vmatprep.subr.mxu0 0.0
      %2116 = vmatpush1.xpose.msra.mxu0 0.0
      %2117 = vmatprep.subr.mxu0 0.0
      %2118 = vmatpush1.xpose.msra.mxu0 0.0
      %2119 = vmatprep.subr.mxu0 0.0
      %2120 = vmatpush1.xpose.msra.mxu0 0.0
      %2121 = vmatprep.subr.mxu0 0.0
      %2122 = vmatpush1.xpose.msra.mxu0 0.0
      %2123 = vmatprep.subr.mxu0 0.0
      %2124 = vmatpush1.xpose.msra.mxu0 0.0
      %2125 = vmatprep.subr.mxu0 0.0
      %2126 = vmatpush1.xpose.msra.mxu0 0.0
      %2127 = vmatprep.subr.mxu0 0.0
      %2128 = vmatpush1.xpose.msra.mxu0 0.0
      %2129 = vmatprep.subr.mxu0 0.0
      %2130 = vmatpush1.xpose.msra.mxu0 0.0
      %2131 = vmatprep.subr.mxu0 0.0
      %2132 = vmatpush1.xpose.msra.mxu0 0.0
      %2133 = vmatprep.subr.mxu0 0.0
      %2134 = vmatpush1.xpose.msra.mxu0 0.0
      %2135 = vmatprep.subr.mxu0 0.0
      %2136 = vmatpush1.xpose.msra.mxu0 0.0
      %2137 = vmatprep.subr.mxu0 0.0
      %2138 = vmatpush1.xpose.msra.mxu0 0.0
      %2139 = vmatprep.subr.mxu0 0.0
      %2140 = vmatpush1.xpose.msra.mxu0 0.0
      %2141 = vmatprep.mubr.f32.mxu0 0.0
      %2142 = vmatmul.mubr.f32.gmra.mrb[0].mxu0 %v2069
      %v2143 = vpop.f32.mrb[0].mxu0
      %v2144 = vadd.f32 0.0, %v2143
      %v2145 = vpop.f32.mrb[0].mxu0
      %2146 = vmatprep.mubr.f32.mxu0 0.0
      %2147 = vmatmul.mubr.f32.gmra.mrb[0].mxu0 %v2071
      %v2148 = vpop.f32.mrb[0].mxu0
      %v2149 = vadd.f32 0.0, %v2148
      %v2150 = vpop.f32.mrb[0].mxu0
      %2151 = vdwg.mxu0
      %v2152 = vsel %vm667, %v2144, -inf
      %2153 = vmax.xlane.f32.xlu0 %v2152
      %v2154 = vpop.xlane.xlu0 %2153
      %v2155 = vsel %vm671, %v2149, -inf
      %2156 = vmax.xlane.f32.xlu0 %v2155
      %v2157 = vpop.xlane.xlu0 %2156
      %v2158 = vsub.f32 %v2144, %v2154
      %v2159 = vsub.f32 %v2149, %v2157
      %v2160 = vmul.f32 %v2158, 1.442695
      %v2161 = vpow.pop %v2160
      %v2162 = vmul.f32 %v2159, 1.442695
      %v2163 = vpow.pop %v2162
      %v2164 = vsel %vm667, %v2161, 0.0
      %2165 = vadd.xlane.f32.xlu0 %v2164
      %v2166 = vpop.xlane.xlu0 %2165
      %v2167 = vsel %vm671, %v2163, 0.0
      %2168 = vadd.xlane.f32.xlu0 %v2167
      %v2169 = vpop.xlane.xlu0 %2168
      %v2170 = vrcp.pop %v2166
      %v2171 = vrcp.pop %v2169
      %v2172 = vmul.f32 %v2161, %v2170
      %v2173 = vmul.f32 %v2163, %v2171
      %2174 = vrot.lane.b32.xlu0 %v569, 36
      %v2175 = vpop.permute.xlu0 %2174
      %2176 = vrot.lane.b32.xlu0 %v574, 36
      %v2177 = vpop.permute.xlu0 %2176
      %v2180 = vsel %vm667, %v2172, 0
      %v2183 = vsel %vm667, %v2173, 0
      %v2185 = vsel %vm702, %v2177, 0
      %2187 = vmatprep.subr.mxu0 0.0
      %2188 = vmatpush1.msra.mxu0 %v2175
      %2189 = vmatprep.subr.mxu0 0.0
      %2190 = vmatpush1.msra.mxu0 %v2185
      %2191 = vmatprep.subr.mxu0 0.0
      %2192 = vmatpush1.msra.mxu0 0.0
      %2193 = vmatprep.subr.mxu0 0.0
      %2194 = vmatpush1.msra.mxu0 0.0
      %2195 = vmatprep.subr.mxu0 0.0
      %2196 = vmatpush1.msra.mxu0 0.0
      %2197 = vmatprep.subr.mxu0 0.0
      %2198 = vmatpush1.msra.mxu0 0.0
      %2199 = vmatprep.subr.mxu0 0.0
      %2200 = vmatpush1.msra.mxu0 0.0
      %2201 = vmatprep.subr.mxu0 0.0
      %2202 = vmatpush1.msra.mxu0 0.0
      %2203 = vmatprep.subr.mxu0 0.0
      %2204 = vmatpush1.msra.mxu0 0.0
      %2205 = vmatprep.subr.mxu0 0.0
      %2206 = vmatpush1.msra.mxu0 0.0
      %2207 = vmatprep.subr.mxu0 0.0
      %2208 = vmatpush1.msra.mxu0 0.0
      %2209 = vmatprep.subr.mxu0 0.0
      %2210 = vmatpush1.msra.mxu0 0.0
      %2211 = vmatprep.subr.mxu0 0.0
      %2212 = vmatpush1.msra.mxu0 0.0
      %2213 = vmatprep.subr.mxu0 0.0
      %2214 = vmatpush1.msra.mxu0 0.0
      %2215 = vmatprep.subr.mxu0 0.0
      %2216 = vmatpush1.msra.mxu0 0.0
      %2217 = vmatprep.subr.mxu0 0.0
      %2218 = vmatpush1.msra.mxu0 0.0
      %2219 = vmatprep.subr.mxu0 0.0
      %2220 = vmatpush1.msra.mxu0 0.0
      %2221 = vmatprep.subr.mxu0 0.0
      %2222 = vmatpush1.msra.mxu0 0.0
      %2223 = vmatprep.subr.mxu0 0.0
      %2224 = vmatpush1.msra.mxu0 0.0
      %2225 = vmatprep.subr.mxu0 0.0
      %2226 = vmatpush1.msra.mxu0 0.0
      %2227 = vmatprep.subr.mxu0 0.0
      %2228 = vmatpush1.msra.mxu0 0.0
      %2229 = vmatprep.subr.mxu0 0.0
      %2230 = vmatpush1.msra.mxu0 0.0
      %2231 = vmatprep.subr.mxu0 0.0
      %2232 = vmatpush1.msra.mxu0 0.0
      %2233 = vmatprep.subr.mxu0 0.0
      %2234 = vmatpush1.msra.mxu0 0.0
      %2235 = vmatprep.subr.mxu0 0.0
      %2236 = vmatpush1.msra.mxu0 0.0
      %2237 = vmatprep.subr.mxu0 0.0
      %2238 = vmatpush1.msra.mxu0 0.0
      %2239 = vmatprep.subr.mxu0 0.0
      %2240 = vmatpush1.msra.mxu0 0.0
      %2241 = vmatprep.subr.mxu0 0.0
      %2242 = vmatpush1.msra.mxu0 0.0
      %2243 = vmatprep.subr.mxu0 0.0
      %2244 = vmatpush1.msra.mxu0 0.0
      %2245 = vmatprep.subr.mxu0 0.0
      %2246 = vmatpush1.msra.mxu0 0.0
      %2247 = vmatprep.subr.mxu0 0.0
      %2248 = vmatpush1.msra.mxu0 0.0
      %2249 = vmatprep.subr.mxu0 0.0
      %2250 = vmatpush1.msra.mxu0 0.0
      %2251 = vmatprep.mubr.f32.mxu0 0.0
      %2252 = vmatmul.mubr.f32.gmra.mrb[0].mxu0 %v2180
      %v2253 = vpop.f32.mrb[0].mxu0
      %v2254 = vadd.f32 0.0, %v2253
      %v2255 = vpop.f32.mrb[0].mxu0
      %2256 = vmatprep.mubr.f32.mxu0 0.0
      %2257 = vmatmul.mubr.f32.gmra.mrb[0].mxu0 %v2183
      %v2258 = vpop.f32.mrb[0].mxu0
      %v2259 = vadd.f32 0.0, %v2258
      %v2260 = vpop.f32.mrb[0].mxu0
      %2261 = vdwg.mxu0
      %2264 = vrot.lane.b32.xlu0 %v2254, 28
      %v2265 = vpop.permute.xlu0 %2264
      %2266 = vrot.lane.b32.xlu0 %v2259, 28
      %v2267 = vpop.permute.xlu0 %2266
      %vm2270 = vcmask 261344
      %2271 = vst.msk [vmem:[#allocation2] sm:$0xff] %vm2270, %v2265
      %vm2272 = vcmask 254176
      %2273 = vst.msk [vmem:[#allocation2 + $0x8] sm:$0x1] %vm2272, %v2267
      %v2274 = vld [vmem:[#allocation2] sm:$0xff]
      %v2275 = vld [vmem:[#allocation2 + $0x8] sm:$0x1]
      %v2277 = vsel %vm461, %v2274, 0
      %v2280 = vsel %vm461, %v2275, 0
      %2282 = vmatprep.subr.mxu0 0.0
      %2283 = vmatpush1.msra.mxu0 %v434
      %2284 = vmatprep.subr.mxu0 0.0
      %2285 = vmatpush1.msra.mxu0 %v435
      %2286 = vmatprep.subr.mxu0 0.0
      %2287 = vmatpush1.msra.mxu0 %v436
      %2288 = vmatprep.subr.mxu0 0.0
      %2289 = vmatpush1.msra.mxu0 %v437
      %2290 = vmatprep.subr.mxu0 0.0
      %2291 = vmatpush1.msra.mxu0 0.0
      %2292 = vmatprep.subr.mxu0 0.0
      %2293 = vmatpush1.msra.mxu0 0.0
      %2294 = vmatprep.subr.mxu0 0.0
      %2295 = vmatpush1.msra.mxu0 0.0
      %2296 = vmatprep.subr.mxu0 0.0
      %2297 = vmatpush1.msra.mxu0 0.0
      %2298 = vmatprep.subr.mxu0 0.0
      %2299 = vmatpush1.msra.mxu0 0.0
      %2300 = vmatprep.subr.mxu0 0.0
      %2301 = vmatpush1.msra.mxu0 0.0
      %2302 = vmatprep.subr.mxu0 0.0
      %2303 = vmatpush1.msra.mxu0 0.0
      %2304 = vmatprep.subr.mxu0 0.0
      %2305 = vmatpush1.msra.mxu0 0.0
      %2306 = vmatprep.subr.mxu0 0.0
      %2307 = vmatpush1.msra.mxu0 0.0
      %2308 = vmatprep.subr.mxu0 0.0
      %2309 = vmatpush1.msra.mxu0 0.0
      %2310 = vmatprep.subr.mxu0 0.0
      %2311 = vmatpush1.msra.mxu0 0.0
      %2312 = vmatprep.subr.mxu0 0.0
      %2313 = vmatpush1.msra.mxu0 0.0
      %2314 = vmatprep.subr.mxu0 0.0
      %2315 = vmatpush1.msra.mxu0 0.0
      %2316 = vmatprep.subr.mxu0 0.0
      %2317 = vmatpush1.msra.mxu0 0.0
      %2318 = vmatprep.subr.mxu0 0.0
      %2319 = vmatpush1.msra.mxu0 0.0
      %2320 = vmatprep.subr.mxu0 0.0
      %2321 = vmatpush1.msra.mxu0 0.0
      %2322 = vmatprep.subr.mxu0 0.0
      %2323 = vmatpush1.msra.mxu0 0.0
      %2324 = vmatprep.subr.mxu0 0.0
      %2325 = vmatpush1.msra.mxu0 0.0
      %2326 = vmatprep.subr.mxu0 0.0
      %2327 = vmatpush1.msra.mxu0 0.0
      %2328 = vmatprep.subr.mxu0 0.0
      %2329 = vmatpush1.msra.mxu0 0.0
      %2330 = vmatprep.subr.mxu0 0.0
      %2331 = vmatpush1.msra.mxu0 0.0
      %2332 = vmatprep.subr.mxu0 0.0
      %2333 = vmatpush1.msra.mxu0 0.0
      %2334 = vmatprep.subr.mxu0 0.0
      %2335 = vmatpush1.msra.mxu0 0.0
      %2336 = vmatprep.subr.mxu0 0.0
      %2337 = vmatpush1.msra.mxu0 0.0
      %2338 = vmatprep.subr.mxu0 0.0
      %2339 = vmatpush1.msra.mxu0 0.0
      %2340 = vmatprep.subr.mxu0 0.0
      %2341 = vmatpush1.msra.mxu0 0.0
      %2342 = vmatprep.subr.mxu0 0.0
      %2343 = vmatpush1.msra.mxu0 0.0
      %2344 = vmatprep.subr.mxu0 0.0
      %2345 = vmatpush1.msra.mxu0 0.0
      %2346 = vmatprep.mubr.f32.mxu0 0.0
      %2347 = vmatmul.mubr.f32.gmra.mrb[0].mxu0 %v2277
      %v2348 = vpop.f32.mrb[0].mxu0
      %v2349 = vadd.f32 0.0, %v2348
      %v2350 = vpop.f32.mrb[0].mxu0
      %2351 = vmatprep.mubr.f32.mxu0 0.0
      %2352 = vmatmul.mubr.f32.gmra.mrb[0].mxu0 %v2280
      %v2353 = vpop.f32.mrb[0].mxu0
      %v2354 = vadd.f32 0.0, %v2353
      %v2355 = vpop.f32.mrb[0].mxu0
      %2356 = vdwg.mxu0
      %v2357 = vadd.f32 %v427, %v2349
      %v2358 = vadd.f32 %v428, %v2354
      %v2360 = vlaneseq
      %v2361 = vshrl.u32 %v2360, 7
      %v2362 = vsub.s32 0, %v2361
      %v2363 = vrot.slane %v438, %v2362
      %v2365 = vadd.f32 %v2357, %v2363
      %v2366 = vadd.f32 %v2358, %v2363
      %v2367 = vsel %vm461, %v2365, 0.0
      %2368 = vadd.xlane.f32.xlu0 %v2367
      %v2369 = vpop.xlane.xlu0 %2368
      %v2370 = vsel %vm465, %v2366, 0.0
      %2371 = vadd.xlane.f32.xlu0 %v2370
      %v2372 = vpop.xlane.xlu0 %2371
      %v2373 = vmul.f32 %v2369, %v469
      %v2374 = vmul.f32 %v2372, %v469
      %v2375 = vsub.f32 %v2365, %v2373
      %v2376 = vsub.f32 %v2366, %v2374
      %v2377 = vmul.f32 %v2375, %v2375
      %v2378 = vmul.f32 %v2376, %v2376
      %v2379 = vsel %vm461, %v2377, 0.0
      %2380 = vadd.xlane.f32.xlu0 %v2379
      %v2381 = vpop.xlane.xlu0 %2380
      %v2382 = vsel %vm465, %v2378, 0.0
      %2383 = vadd.xlane.f32.xlu0 %v2382
      %v2384 = vpop.xlane.xlu0 %2383
      %v2385 = vmul.f32 %v2381, %v469
      %v2386 = vmul.f32 %v2384, %v469
      %v2387 = vadd.f32 %v2385, 1e-05
      %v2388 = vadd.f32 %v2386, 1e-05
      %v2389 = vrsqrt.pop %v2387
      %v2390 = vrsqrt.pop %v2388
      %v2391 = vmul.f32 %v2375, %v2389
      %v2392 = vmul.f32 %v2376, %v2390
      %v2394 = vlaneseq
      %v2395 = vshrl.u32 %v2394, 7
      %v2396 = vsub.s32 0, %v2395
      %v2397 = vrot.slane %v443, %v2396
      %v2400 = vsel %vm461, %v2391, 0
      %v2403 = vsel %vm461, %v2392, 0
      %2405 = vmatprep.subr.mxu0 0.0
      %2406 = vmatpush1.msra.mxu0 %v439
      %2407 = vmatprep.subr.mxu0 0.0
      %2408 = vmatpush1.msra.mxu0 %v440
      %2409 = vmatprep.subr.mxu0 0.0
      %2410 = vmatpush1.msra.mxu0 %v441
      %2411 = vmatprep.subr.mxu0 0.0
      %2412 = vmatpush1.msra.mxu0 %v442
      %2413 = vmatprep.subr.mxu0 0.0
      %2414 = vmatpush1.msra.mxu0 0.0
      %2415 = vmatprep.subr.mxu0 0.0
      %2416 = vmatpush1.msra.mxu0 0.0
      %2417 = vmatprep.subr.mxu0 0.0
      %2418 = vmatpush1.msra.mxu0 0.0
      %2419 = vmatprep.subr.mxu0 0.0
      %2420 = vmatpush1.msra.mxu0 0.0
      %2421 = vmatprep.subr.mxu0 0.0
      %2422 = vmatpush1.msra.mxu0 0.0
      %2423 = vmatprep.subr.mxu0 0.0
      %2424 = vmatpush1.msra.mxu0 0.0
      %2425 = vmatprep.subr.mxu0 0.0
      %2426 = vmatpush1.msra.mxu0 0.0
      %2427 = vmatprep.subr.mxu0 0.0
      %2428 = vmatpush1.msra.mxu0 0.0
      %2429 = vmatprep.subr.mxu0 0.0
      %2430 = vmatpush1.msra.mxu0 0.0
      %2431 = vmatprep.subr.mxu0 0.0
      %2432 = vmatpush1.msra.mxu0 0.0
      %2433 = vmatprep.subr.mxu0 0.0
      %2434 = vmatpush1.msra.mxu0 0.0
      %2435 = vmatprep.subr.mxu0 0.0
      %2436 = vmatpush1.msra.mxu0 0.0
      %2437 = vmatprep.subr.mxu0 0.0
      %2438 = vmatpush1.msra.mxu0 0.0
      %2439 = vmatprep.subr.mxu0 0.0
      %2440 = vmatpush1.msra.mxu0 0.0
      %2441 = vmatprep.subr.mxu0 0.0
      %2442 = vmatpush1.msra.mxu0 0.0
      %2443 = vmatprep.subr.mxu0 0.0
      %2444 = vmatpush1.msra.mxu0 0.0
      %2445 = vmatprep.subr.mxu0 0.0
      %2446 = vmatpush1.msra.mxu0 0.0
      %2447 = vmatprep.subr.mxu0 0.0
      %2448 = vmatpush1.msra.mxu0 0.0
      %2449 = vmatprep.subr.mxu0 0.0
      %2450 = vmatpush1.msra.mxu0 0.0
      %2451 = vmatprep.subr.mxu0 0.0
      %2452 = vmatpush1.msra.mxu0 0.0
      %2453 = vmatprep.subr.mxu0 0.0
      %2454 = vmatpush1.msra.mxu0 0.0
      %2455 = vmatprep.subr.mxu0 0.0
      %2456 = vmatpush1.msra.mxu0 0.0
      %2457 = vmatprep.subr.mxu0 0.0
      %2458 = vmatpush1.msra.mxu0 0.0
      %2459 = vmatprep.subr.mxu0 0.0
      %2460 = vmatpush1.msra.mxu0 0.0
      %2461 = vmatprep.subr.mxu0 0.0
      %2462 = vmatpush1.msra.mxu0 0.0
      %2463 = vmatprep.subr.mxu0 0.0
      %2464 = vmatpush1.msra.mxu0 0.0
      %2465 = vmatprep.subr.mxu0 0.0
      %2466 = vmatpush1.msra.mxu0 0.0
      %2467 = vmatprep.subr.mxu0 0.0
      %2468 = vmatpush1.msra.mxu0 0.0
      %2469 = vmatprep.mubr.f32.mxu0 0.0
      %2470 = vmatmul.mubr.f32.gmra.mrb[0].mxu0 %v2400
      %v2471 = vpop.f32.mrb[0].mxu0
      %v2472 = vadd.f32 %v2397, %v2471
      %v2473 = vpop.f32.mrb[0].mxu0
      %2474 = vmatprep.mubr.f32.mxu0 0.0
      %2475 = vmatmul.mubr.f32.gmra.mrb[0].mxu0 %v2403
      %v2476 = vpop.f32.mrb[0].mxu0
      %v2477 = vadd.f32 %v2397, %v2476
      %v2478 = vpop.f32.mrb[0].mxu0
      %2479 = vdwg.mxu0
      %v2480 = vmul.f32 %v2472, 0.5
      %v2481 = vmul.f32 %v2477, 0.5
      %v2482 = vmul.f32 %v2472, 0.70710677
      %v2483 = vmul.f32 %v2477, 0.70710677
      %v2484 = verf.f32.pop %v2482
      %v2485 = verf.f32.pop %v2483
      %v2486 = vadd.f32 %v2484, 1.0
      %v2487 = vadd.f32 %v2485, 1.0
      %v2488 = vmul.f32 %v2480, %v2486
      %v2489 = vmul.f32 %v2481, %v2487
      %v2491 = vlaneseq
      %v2492 = vshrl.u32 %v2491, 7
      %v2493 = vsub.s32 0, %v2492
      %v2494 = vrot.slane %v460, %v2493
      %2496 = vmatprep.subr.mxu0 0.0
      %2497 = vmatpush1.msra.mxu0 %v444
      %2498 = vmatprep.subr.mxu0 0.0
      %2499 = vmatpush1.msra.mxu0 %v445
      %2500 = vmatprep.subr.mxu0 0.0
      %2501 = vmatpush1.msra.mxu0 %v446
      %2502 = vmatprep.subr.mxu0 0.0
      %2503 = vmatpush1.msra.mxu0 %v447
      %2504 = vmatprep.subr.mxu0 0.0
      %2505 = vmatpush1.msra.mxu0 %v448
      %2506 = vmatprep.subr.mxu0 0.0
      %2507 = vmatpush1.msra.mxu0 %v449
      %2508 = vmatprep.subr.mxu0 0.0
      %2509 = vmatpush1.msra.mxu0 %v450
      %2510 = vmatprep.subr.mxu0 0.0
      %2511 = vmatpush1.msra.mxu0 %v451
      %2512 = vmatprep.subr.mxu0 0.0
      %2513 = vmatpush1.msra.mxu0 %v452
      %2514 = vmatprep.subr.mxu0 0.0
      %2515 = vmatpush1.msra.mxu0 %v453
      %2516 = vmatprep.subr.mxu0 0.0
      %2517 = vmatpush1.msra.mxu0 %v454
      %2518 = vmatprep.subr.mxu0 0.0
      %2519 = vmatpush1.msra.mxu0 %v455
      %2520 = vmatprep.subr.mxu0 0.0
      %2521 = vmatpush1.msra.mxu0 %v456
      %2522 = vmatprep.subr.mxu0 0.0
      %2523 = vmatpush1.msra.mxu0 %v457
      %2524 = vmatprep.subr.mxu0 0.0
      %2525 = vmatpush1.msra.mxu0 %v458
      %2526 = vmatprep.subr.mxu0 0.0
      %2527 = vmatpush1.msra.mxu0 %v459
      %2528 = vmatprep.subr.mxu0 0.0
      %2529 = vmatpush1.msra.mxu0 0.0
      %2530 = vmatprep.subr.mxu0 0.0
      %2531 = vmatpush1.msra.mxu0 0.0
      %2532 = vmatprep.subr.mxu0 0.0
      %2533 = vmatpush1.msra.mxu0 0.0
      %2534 = vmatprep.subr.mxu0 0.0
      %2535 = vmatpush1.msra.mxu0 0.0
      %2536 = vmatprep.subr.mxu0 0.0
      %2537 = vmatpush1.msra.mxu0 0.0
      %2538 = vmatprep.subr.mxu0 0.0
      %2539 = vmatpush1.msra.mxu0 0.0
      %2540 = vmatprep.subr.mxu0 0.0
      %2541 = vmatpush1.msra.mxu0 0.0
      %2542 = vmatprep.subr.mxu0 0.0
      %2543 = vmatpush1.msra.mxu0 0.0
      %2544 = vmatprep.subr.mxu0 0.0
      %2545 = vmatpush1.msra.mxu0 0.0
      %2546 = vmatprep.subr.mxu0 0.0
      %2547 = vmatpush1.msra.mxu0 0.0
      %2548 = vmatprep.subr.mxu0 0.0
      %2549 = vmatpush1.msra.mxu0 0.0
      %2550 = vmatprep.subr.mxu0 0.0
      %2551 = vmatpush1.msra.mxu0 0.0
      %2552 = vmatprep.subr.mxu0 0.0
      %2553 = vmatpush1.msra.mxu0 0.0
      %2554 = vmatprep.subr.mxu0 0.0
      %2555 = vmatpush1.msra.mxu0 0.0
      %2556 = vmatprep.subr.mxu0 0.0
      %2557 = vmatpush1.msra.mxu0 0.0
      %2558 = vmatprep.subr.mxu0 0.0
      %2559 = vmatpush1.msra.mxu0 0.0
      %2560 = vmatprep.mubr.f32.mxu0 0.0
      %2561 = vmatmul.mubr.f32.gmra.mrb[0].mxu0 %v2488
      %v2562 = vpop.f32.mrb[0].mxu0
      %v2563 = vadd.f32 %v2494, %v2562
      %v2564 = vpop.f32.mrb[0].mxu0
      %2565 = vmatprep.mubr.f32.mxu0 0.0
      %2566 = vmatmul.mubr.f32.gmra.mrb[0].mxu0 %v2489
      %v2567 = vpop.f32.mrb[0].mxu0
      %v2568 = vadd.f32 %v2494, %v2567
      %v2569 = vpop.f32.mrb[0].mxu0
      %2570 = vdwg.mxu0
      %v2571 = vadd.f32 %v2365, %v2563
      %v2572 = vadd.f32 %v2366, %v2568
      %2573 = vst.msk [vmem:[%s421] sm:$0xff] %vm461, %v2571
      %2574 = vst.msk [vmem:[%s421 + $0x8] sm:$0x1] %vm465, %v2572
      %v2575 = vsel %vm461, %v2571, 0.0
      %2576 = vadd.xlane.f32.xlu0 %v2575
      %v2577 = vpop.xlane.xlu0 %2576
      %v2578 = vsel %vm465, %v2572, 0.0
      %2579 = vadd.xlane.f32.xlu0 %v2578
      %v2580 = vpop.xlane.xlu0 %2579
      %v2581 = vmul.f32 %v2577, %v469
      %v2582 = vmul.f32 %v2580, %v469
      %v2583 = vsub.f32 %v2571, %v2581
      %v2584 = vsub.f32 %v2572, %v2582
      %v2585 = vmul.f32 %v2583, %v2583
      %v2586 = vmul.f32 %v2584, %v2584
      %v2587 = vsel %vm461, %v2585, 0.0
      %2588 = vadd.xlane.f32.xlu0 %v2587
      %v2589 = vpop.xlane.xlu0 %2588
      %v2590 = vsel %vm465, %v2586, 0.0
      %2591 = vadd.xlane.f32.xlu0 %v2590
      %v2592 = vpop.xlane.xlu0 %2591
      %v2593 = vmul.f32 %v2589, %v469
      %v2594 = vmul.f32 %v2592, %v469
      %v2595 = vadd.f32 %v2593, 1e-05
      %v2596 = vadd.f32 %v2594, 1e-05
      %v2597 = vrsqrt.pop %v2595
      %v2598 = vrsqrt.pop %v2596
      %v2599 = vmul.f32 %v2583, %v2597
      %v2600 = vmul.f32 %v2584, %v2598
      %v2601 = vld [vmem:[%s9] sm:$0xff]
      %v2602 = vld [vmem:[%s9 + $0x8] sm:$0xff]
      %v2603 = vld [vmem:[%s9 + $0x10] sm:$0xff]
      %v2604 = vld [vmem:[%s9 + $0x18] sm:$0xff]
      %v2605 = vld [vmem:[%s10] sm:$0x1]
      %v2607 = vlaneseq
      %v2608 = vshrl.u32 %v2607, 7
      %v2609 = vsub.s32 0, %v2608
      %v2610 = vrot.slane %v2605, %v2609
      %v2613 = vsel %vm461, %v2599, 0
      %v2616 = vsel %vm461, %v2600, 0
      %2618 = vmatprep.subr.mxu0 0.0
      %2619 = vmatpush1.msra.mxu0 %v2601
      %2620 = vmatprep.subr.mxu0 0.0
      %2621 = vmatpush1.msra.mxu0 %v2602
      %2622 = vmatprep.subr.mxu0 0.0
      %2623 = vmatpush1.msra.mxu0 %v2603
      %2624 = vmatprep.subr.mxu0 0.0
      %2625 = vmatpush1.msra.mxu0 %v2604
      %2626 = vmatprep.subr.mxu0 0.0
      %2627 = vmatpush1.msra.mxu0 0.0
      %2628 = vmatprep.subr.mxu0 0.0
      %2629 = vmatpush1.msra.mxu0 0.0
      %2630 = vmatprep.subr.mxu0 0.0
      %2631 = vmatpush1.msra.mxu0 0.0
      %2632 = vmatprep.subr.mxu0 0.0
      %2633 = vmatpush1.msra.mxu0 0.0
      %2634 = vmatprep.subr.mxu0 0.0
      %2635 = vmatpush1.msra.mxu0 0.0
      %2636 = vmatprep.subr.mxu0 0.0
      %2637 = vmatpush1.msra.mxu0 0.0
      %2638 = vmatprep.subr.mxu0 0.0
      %2639 = vmatpush1.msra.mxu0 0.0
      %2640 = vmatprep.subr.mxu0 0.0
      %2641 = vmatpush1.msra.mxu0 0.0
      %2642 = vmatprep.subr.mxu0 0.0
      %2643 = vmatpush1.msra.mxu0 0.0
      %2644 = vmatprep.subr.mxu0 0.0
      %2645 = vmatpush1.msra.mxu0 0.0
      %2646 = vmatprep.subr.mxu0 0.0
      %2647 = vmatpush1.msra.mxu0 0.0
      %2648 = vmatprep.subr.mxu0 0.0
      %2649 = vmatpush1.msra.mxu0 0.0
      %2650 = vmatprep.subr.mxu0 0.0
      %2651 = vmatpush1.msra.mxu0 0.0
      %2652 = vmatprep.subr.mxu0 0.0
      %2653 = vmatpush1.msra.mxu0 0.0
      %2654 = vmatprep.subr.mxu0 0.0
      %2655 = vmatpush1.msra.mxu0 0.0
      %2656 = vmatprep.subr.mxu0 0.0
      %2657 = vmatpush1.msra.mxu0 0.0
      %2658 = vmatprep.subr.mxu0 0.0
      %2659 = vmatpush1.msra.mxu0 0.0
      %2660 = vmatprep.subr.mxu0 0.0
      %2661 = vmatpush1.msra.mxu0 0.0
      %2662 = vmatprep.subr.mxu0 0.0
      %2663 = vmatpush1.msra.mxu0 0.0
      %2664 = vmatprep.subr.mxu0 0.0
      %2665 = vmatpush1.msra.mxu0 0.0
      %2666 = vmatprep.subr.mxu0 0.0
      %2667 = vmatpush1.msra.mxu0 0.0
      %2668 = vmatprep.subr.mxu0 0.0
      %2669 = vmatpush1.msra.mxu0 0.0
      %2670 = vmatprep.subr.mxu0 0.0
      %2671 = vmatpush1.msra.mxu0 0.0
      %2672 = vmatprep.subr.mxu0 0.0
      %2673 = vmatpush1.msra.mxu0 0.0
      %2674 = vmatprep.subr.mxu0 0.0
      %2675 = vmatpush1.msra.mxu0 0.0
      %2676 = vmatprep.subr.mxu0 0.0
      %2677 = vmatpush1.msra.mxu0 0.0
      %2678 = vmatprep.subr.mxu0 0.0
      %2679 = vmatpush1.msra.mxu0 0.0
      %2680 = vmatprep.subr.mxu0 0.0
      %2681 = vmatpush1.msra.mxu0 0.0
      %2682 = vmatprep.mubr.f32.mxu0 0.0
      %2683 = vmatmul.mubr.f32.gmra.mrb[0].mxu0 %v2613
      %v2684 = vpop.f32.mrb[0].mxu0
      %v2685 = vadd.f32 %v2610, %v2684
      %v2686 = vpop.f32.mrb[0].mxu0
      %2687 = vmatprep.mubr.f32.mxu0 0.0
      %2688 = vmatmul.mubr.f32.gmra.mrb[0].mxu0 %v2616
      %v2689 = vpop.f32.mrb[0].mxu0
      %v2690 = vadd.f32 %v2610, %v2689
      %v2691 = vpop.f32.mrb[0].mxu0
      %2692 = vdwg.mxu0
      %vm2693 = vcmask 392192
      %2694 = vst.msk [vmem:[%s426] sm:$0xff] %vm2693, %v2685
      %vm2695 = vcmask 385024
      %2696 = vst.msk [vmem:[%s426 + $0x8] sm:$0x1] %vm2695, %v2690
      %p2697 = scmp.lt.s32.totalorder %s24, 1
      %s2698 = scalar_select %p2697, %s24, 1
      %s2699 = smul.addr %s2698, 2
      %s2700 = smul.addr %s2699, 8
      %s2701 = scalar_lea.vmem %s11, %s2700
      %p2702 = scmp.lt.s32.totalorder %s24, 1
      %s2703 = scalar_select %p2702, %s24, 1
      %s2704 = smul.addr %s2703, 2
      %s2705 = smul.addr %s2704, 8
      %s2706 = scalar_lea.vmem %s12, %s2705
      // Predicated region
      $region65: #{_forward_core.5} parent=63 // pred_check
        %p2707 = pneg %p278
      $region66: #{_forward_core.5} parent=63 // pred_check_branch
        %2709 = sbr.rel (%p2707) target = $region68
      $region67: #{_forward_core.5} parent=63 // pred_region
        _
      $region68: #{_forward_core.5} parent=63 // pred_fallthru
        _
      // Predicated region
      $region69: #{_forward_core.5} parent=63 // pred_check
        %p2710 = pneg %p304
      $region70: #{_forward_core.5} parent=63 // pred_check_branch
        %2712 = sbr.rel (%p2710) target = $region72
      $region71: #{_forward_core.5} parent=63 // pred_region
        _
      $region72: #{_forward_core.5} parent=63 // pred_fallthru
        _
    $region64: #{_forward_core.5} parent=5 // pred_fallthru
      _
    %p2713 = scmp.le.s32.totalorder 2, %s19
    // Predicated region
    $region73: #{_forward_core.5} parent=5 // pred_check
      %p2714 = pneg %p2713
    $region74: #{_forward_core.5} parent=5 // pred_check_branch
      %2716 = sbr.rel (%p2714) target = $region76
    $region75: #{_forward_core.5} parent=5 // pred_region
      %s2717 = ssub.s32 %s19, 2
      // Predicated region
      $region77: #{_forward_core.5} parent=75 // pred_check
        %p2718 = pneg %p284
      $region78: #{_forward_core.5} parent=75 // pred_check_branch
        %2720 = sbr.rel (%p2718) target = $region80
      $region79: #{_forward_core.5} parent=75 // pred_region
        %p2721 = scmp.lt.s32.totalorder %s25, 1
        %s2722 = scalar_select %p2721, %s25, 1
        %s2723 = smul.addr %s2722, 2
        %s2724 = smul.addr %s2723, 8
        %s2725 = scalar_lea.vmem %s11, %s2724
      $region80: #{_forward_core.5} parent=75 // pred_fallthru
        _
      // Predicated region
      $region81: #{_forward_core.5} parent=75 // pred_check
        %p2726 = pneg %p310
      $region82: #{_forward_core.5} parent=75 // pred_check_branch
        %2728 = sbr.rel (%p2726) target = $region84
      $region83: #{_forward_core.5} parent=75 // pred_region
        %p2729 = scmp.lt.s32.totalorder %s25, 1
        %s2730 = scalar_select %p2729, %s25, 1
        %s2731 = smul.addr %s2730, 2
        %s2732 = smul.addr %s2731, 8
        %s2733 = scalar_lea.vmem %s12, %s2732
      $region84: #{_forward_core.5} parent=75 // pred_fallthru
        _
    $region76: #{_forward_core.5} parent=5 // pred_fallthru
      _
  $region6: #{_forward_core.5} parent=0 // loop_footer
    %s23 = sadd.s32 1, %s19
  $region7: #{_forward_core.5} parent=0 // loop_footer_branch
    %18 = sbr.rel target = $region3
  $region8: #{_forward_core.5} parent=0 // loop_exit
    _

</llo_original>
